<compile_context>
chip_gen: v5e
topology: v5e:2x2
jax: 0.10.0
libtpu: 0.0.40
codegen_flags: <defaults>
</compile_context>

<pallas_src>
import jax
import jax.numpy as jnp
from jax.experimental import pallas as pl
from jax.experimental.pallas import tpu as pltpu

EPS = 1e-5
_LPAD = 8  # sublane-aligned left halo offset inside the padded 3x3 scratch


def _mish(x):
    """Mish in f32: x * tanh(softplus(x)) == x * (1 - 2 / ((1 + e^x)^2 + 1)).

    One EUP exp + one approx reciprocal.  The clamp keeps (1+e^x)^2 finite; for
    x > 20 mish(x) == x to f32 precision anyway.
    """
    e = jnp.exp(jnp.minimum(x, 20.0))
    t = 1.0 + e
    return x * (1.0 - 2.0 * pl.reciprocal(t * t + 1.0, approx=True))


# --------------------------- fused CSPBlock kernel ---------------------------

def _make_csp_kernel(n_res, H, W, cin, half, quarter, cout):
    HW = H * W

    def kernel(*refs):
        # refs = (x, ws, bs, [w1, b1, w2, b2] * n_res, wc_s, wc_r, bc, out, hpad_scratch)
        x_ref = refs[0]
        o_ref = refs[-2]
        hpad_ref = refs[-1]

        widx = 1
        ws, bs = refs[widx], refs[widx + 1]
        widx += 2
        res_w = []
        for _ in range(n_res):
            res_w.append(tuple(refs[widx:widx + 4]))
            widx += 4
        wc_s, wc_r, bc = refs[widx], refs[widx + 1], refs[widx + 2]

        # ---- split_conv: 1x1 conv (BN scale folded into weights) + Mish ----
        x2d = x_ref[...].reshape(HW, cin).astype(jnp.bfloat16)
        split = _mish(jnp.dot(x2d, ws[...], preferred_element_type=jnp.float32)
                      + bs[...])                                     # (HW, half) f32

        # Zero the haloed scratch once: the interior is fully overwritten every
        # residual block, the border rows/cols stay zero (== conv padding).
        if n_res:
            hpad_ref[...] = jnp.zeros_like(hpad_ref)

        res = split
        for (w1, b1, w2, b2) in res_w:
            # 1x1 ConvBlock: half -> quarter
            hidden = _mish(jnp.dot(res.astype(jnp.bfloat16), w1[...],
                                   preferred_element_type=jnp.float32)
                           + b1[...])                                # (HW, quarter)

            # 3x3 ConvBlock (stride 1, pad 1): 9 shifted matmuls over the
            # in-VMEM haloed tile -- no HBM im2col.  Store at a sublane-aligned
            # column offset so the store is unmasked; tap loads are shifted
            # static slices of the scratch.
            hpad_ref[1:1 + H, _LPAD:_LPAD + W, :] = (
                hidden.astype(jnp.bfloat16).reshape(H, W, quarter))

            acc = jnp.zeros((HW, half), jnp.float32)
            for ki in range(3):
                for kj in range(3):
                    c0 = _LPAD - 1 + kj
                    tap = hpad_ref[ki:ki + H, c0:c0 + W, :]          # (H, W, quarter) bf16
                    acc = acc + jnp.dot(tap.reshape(HW, quarter), w2[ki * 3 + kj],
                                        preferred_element_type=jnp.float32)

            res = _mish(acc + b2[...]) + res                         # residual add

        # ---- fused concat([split, res]) + 1x1 Conv2d (bias, no BN / act) ----
        out = (jnp.dot(split.astype(jnp.bfloat16), wc_s[...],
                       preferred_element_type=jnp.float32)
               + jnp.dot(res.astype(jnp.bfloat16), wc_r[...],
                         preferred_element_type=jnp.float32)
               + bc[...])
        o_ref[...] = out.reshape(1, H, W, cout).astype(o_ref.dtype)

    return kernel


def csp_block_forward(params, x_nhwc):
    n, h, w, cin = x_nhwc.shape
    half = params["split_conv"]["w"].shape[-1]
    quarter = (params["res_blocks"][0]["conv1"]["w"].shape[-1]
               if params["res_blocks"] else 1)
    cout = params["concat_conv"]["b"].shape[-1]
    n_res = len(params["res_blocks"])

    inputs = [x_nhwc]
    in_specs = [pl.BlockSpec((1, h, w, cin), lambda i: (i, 0, 0, 0))]

    def _add(arr):  # weights / biases stay resident in VMEM for every grid step
        inputs.append(arr)
        in_specs.append(pl.BlockSpec(arr.shape, lambda i, nd=arr.ndim: (0,) * nd))

    sp = params["split_conv"]
    _add(sp["w"]); _add(sp["b"])
    for blk in params["res_blocks"]:
        _add(blk["conv1"]["w"]); _add(blk["conv1"]["b"])
        _add(blk["conv2"]["w"]); _add(blk["conv2"]["b"])
    cc = params["concat_conv"]
    _add(cc["w_split"]); _add(cc["w_res"]); _add(cc["b"])

    kernel = _make_csp_kernel(n_res, h, w, cin, half, quarter, cout)

    # Advisory cost estimate so XLA schedules sensibly around the custom call.
    m = n * h * w
    flops = 2 * m * cin * half
    flops += n_res * (2 * m * half * quarter + 2 * m * (9 * quarter) * half)
    flops += 2 * m * (2 * half) * cout
    transcendentals = m * (half + n_res * (quarter + half))
    bytes_accessed = sum(int(a.size) * a.dtype.itemsize for a in inputs)
    bytes_accessed += m * cout * 4

    return pl.pallas_call(
        kernel,
        out_shape=jax.ShapeDtypeStruct((n, h, w, cout), jnp.float32),
        grid=(n,),
        in_specs=in_specs,
        out_specs=pl.BlockSpec((1, h, w, cout), lambda i: (i, 0, 0, 0)),
        scratch_shapes=[pltpu.VMEM((h + 2, w + 2 * _LPAD, quarter), jnp.bfloat16)],
        compiler_params=pltpu.CompilerParams(
            dimension_semantics=("parallel",),
            vmem_limit_bytes=32 * 1024 * 1024),
        cost_estimate=pl.CostEstimate(
            flops=int(flops),
            transcendentals=int(transcendentals),
            bytes_accessed=int(bytes_accessed)),
    )(*inputs)


# --------------------------- parameter init ----------------------------------

def _fold_convblock(w, conv_b, gamma, beta, mean, var):
    """Fold eval-mode BN (and the conv bias) into the conv weight/bias.

    y = ((x*W + b) - mean) / sqrt(var+eps) * gamma + beta
      =  x * (W * s) + ((b - mean) * s + beta),   s = gamma / sqrt(var+eps)
    The scale folds into the output-channel (last) dim of W.
    """
    s = gamma / jnp.sqrt(var + EPS)
    w_f = (w * s).astype(jnp.bfloat16)                      # bf16 MXU operands
    b_f = ((conv_b - mean) * s + beta).reshape(1, -1).astype(jnp.float32)
    return w_f, b_f


def _init_convblock(key, cin, cout, ksize):
    kw, kb, kg, kbt, km, kv = jax.random.split(key, 6)
    if ksize == 1:
        w = 0.2 * jax.random.normal(kw, (cin, cout), jnp.float32)
    else:
        # tap-major layout: w[ki*3+kj] is the (cin, cout) matrix for tap (ki, kj)
        w = 0.2 * jax.random.normal(kw, (ksize * ksize, cin, cout), jnp.float32)
    b = 0.1 * jax.random.normal(kb, (cout,), jnp.float32)
    gamma = 1.0 + 0.1 * jax.random.normal(kg, (cout,), jnp.float32)
    beta = 0.1 * jax.random.normal(kbt, (cout,), jnp.float32)
    mean = 0.1 * jax.random.normal(km, (cout,), jnp.float32)
    var = jax.random.uniform(kv, (cout,), jnp.float32, 0.5, 1.5)
    w_f, b_f = _fold_convblock(w, b, gamma, beta, mean, var)
    return {"w": w_f, "b": b_f}


def init_csp_params(key, in_channels, out_channels, num_residual_blocks):
    half, quarter = out_channels // 2, out_channels // 4
    keys = jax.random.split(key, 2 + num_residual_blocks)
    params = {
        "split_conv": _init_convblock(keys[0], in_channels, half, 1),
        "res_blocks": [],
    }
    for i in range(num_residual_blocks):
        k1, k2 = jax.random.split(keys[1 + i])
        params["res_blocks"].append({
            "conv1": _init_convblock(k1, half, quarter, 1),    # 1x1
            "conv2": _init_convblock(k2, quarter, half, 3),    # 3x3, pad 1
        })
    kcw, kcb = jax.random.split(keys[-1])
    wc = 0.2 * jax.random.normal(kcw, (out_channels, out_channels), jnp.float32)
    bc = 0.1 * jax.random.normal(kcb, (out_channels,), jnp.float32)
    params["concat_conv"] = {
        # torch.cat([split, residual_output], dim=1) ordering:
        "w_split": wc[:half].astype(jnp.bfloat16),
        "w_res": wc[half:].astype(jnp.bfloat16),
        "b": bc.reshape(1, -1).astype(jnp.float32),
    }
    return params


if __name__ == "__main__":
    key = jax.random.PRNGKey(0)
    k_x, k_p = jax.random.split(key)

    N, H, W = 2, 16, 16
    in_channels, out_channels, num_residual_blocks = 8, 8, 2

    x = jax.random.normal(k_x, (N, H, W, in_channels), jnp.float32)  # NHWC
    params = init_csp_params(k_p, in_channels, out_channels, num_residual_blocks)

    fwd = jax.jit(csp_block_forward)
    out = jax.block_until_ready(fwd(params, x))

    assert out.shape == (N, H, W, out_channels), out.shape
    assert bool(jnp.all(jnp.isfinite(out)))
    print("KERNEL_OK")
</pallas_src>

<mosaic_0001>
module attributes {stable_mosaic.version = 11 : i64} {
  func.func @kernel(%arg0: i32, %arg1: memref<1x16x16x8xf32, #tpu.memory_space<vmem>>, %arg2: memref<8x4xbf16, #tpu.memory_space<vmem>>, %arg3: memref<1x4xf32, #tpu.memory_space<vmem>>, %arg4: memref<4x2xbf16, #tpu.memory_space<vmem>>, %arg5: memref<1x2xf32, #tpu.memory_space<vmem>>, %arg6: memref<9x2x4xbf16, #tpu.memory_space<vmem>>, %arg7: memref<1x4xf32, #tpu.memory_space<vmem>>, %arg8: memref<4x2xbf16, #tpu.memory_space<vmem>>, %arg9: memref<1x2xf32, #tpu.memory_space<vmem>>, %arg10: memref<9x2x4xbf16, #tpu.memory_space<vmem>>, %arg11: memref<1x4xf32, #tpu.memory_space<vmem>>, %arg12: memref<4x8xbf16, #tpu.memory_space<vmem>>, %arg13: memref<4x8xbf16, #tpu.memory_space<vmem>>, %arg14: memref<1x8xf32, #tpu.memory_space<vmem>>, %arg15: memref<1x16x16x8xf32, #tpu.memory_space<vmem>>, %arg16: memref<18x32x2xbf16, #tpu.memory_space<vmem>>) attributes {dimension_semantics = [#tpu.dimension_semantics<parallel>], iteration_bounds = array<i64: 2>, scalar_prefetch = 0 : i64, scratch_operands = 1 : i64, tpu.core_type = #tpu.core_type<tc>, window_params = [{transform_indices = @transform_0, window_bounds = array<i64: 1, 16, 16, 8>}, {pipeline_mode = #tpu.pipeline_mode<synchronous>, transform_indices = @transform_1, window_bounds = array<i64: 8, 4>}, {pipeline_mode = #tpu.pipeline_mode<synchronous>, transform_indices = @transform_2, window_bounds = array<i64: 1, 4>}, {pipeline_mode = #tpu.pipeline_mode<synchronous>, transform_indices = @transform_3, window_bounds = array<i64: 4, 2>}, {pipeline_mode = #tpu.pipeline_mode<synchronous>, transform_indices = @transform_4, window_bounds = array<i64: 1, 2>}, {pipeline_mode = #tpu.pipeline_mode<synchronous>, transform_indices = @transform_5, window_bounds = array<i64: 9, 2, 4>}, {pipeline_mode = #tpu.pipeline_mode<synchronous>, transform_indices = @transform_6, window_bounds = array<i64: 1, 4>}, {pipeline_mode = #tpu.pipeline_mode<synchronous>, transform_indices = @transform_7, window_bounds = array<i64: 4, 2>}, {pipeline_mode = #tpu.pipeline_mode<synchronous>, transform_indices = @transform_8, window_bounds = array<i64: 1, 2>}, {pipeline_mode = #tpu.pipeline_mode<synchronous>, transform_indices = @transform_9, window_bounds = array<i64: 9, 2, 4>}, {pipeline_mode = #tpu.pipeline_mode<synchronous>, transform_indices = @transform_10, window_bounds = array<i64: 1, 4>}, {pipeline_mode = #tpu.pipeline_mode<synchronous>, transform_indices = @transform_11, window_bounds = array<i64: 4, 8>}, {pipeline_mode = #tpu.pipeline_mode<synchronous>, transform_indices = @transform_12, window_bounds = array<i64: 4, 8>}, {pipeline_mode = #tpu.pipeline_mode<synchronous>, transform_indices = @transform_13, window_bounds = array<i64: 1, 8>}, {transform_indices = @transform_14, window_bounds = array<i64: 1, 16, 16, 8>}]} {
    %c0 = arith.constant 0 : index
    %c0_0 = arith.constant 0 : index
    %c0_1 = arith.constant 0 : index
    %c0_2 = arith.constant 0 : index
    %0 = vector.load %arg1[%c0, %c0_0, %c0_1, %c0_2] : memref<1x16x16x8xf32, #tpu.memory_space<vmem>>, vector<1x16x16x8xf32>
    %1 = vector.shape_cast %0 : vector<1x16x16x8xf32> to vector<256x8xf32>
    %2 = arith.truncf %1 : vector<256x8xf32> to vector<256x8xbf16>
    %c0_3 = arith.constant 0 : index
    %c0_4 = arith.constant 0 : index
    %3 = vector.load %arg2[%c0_3, %c0_4] : memref<8x4xbf16, #tpu.memory_space<vmem>>, vector<8x4xbf16>
    %cst = arith.constant dense<0.000000e+00> : vector<256x4xf32>
    %4 = tpu.matmul %2, %3, %cst {dimension_numbers = #tpu.dot_dimension_numbers<[1], [0], [0], [1], [0, 0, 1, 1], [], []>} : vector<256x8xbf16>, vector<8x4xbf16>, vector<256x4xf32> -> vector<256x4xf32>
    %c0_5 = arith.constant 0 : index
    %c0_6 = arith.constant 0 : index
    %5 = vector.load %arg3[%c0_5, %c0_6] : memref<1x4xf32, #tpu.memory_space<vmem>>, vector<1x4xf32>
    %6 = vector.broadcast %5 : vector<1x4xf32> to vector<256x4xf32>
    %7 = arith.addf %4, %6 : vector<256x4xf32>
    %cst_7 = arith.constant 2.000000e+01 : f32
    %8 = vector.broadcast %cst_7 : f32 to vector<256x4xf32>
    %9 = arith.minimumf %7, %8 : vector<256x4xf32>
    %10 = math.exp %9 : vector<256x4xf32>
    %cst_8 = arith.constant 1.000000e+00 : f32
    %11 = vector.broadcast %cst_8 : f32 to vector<256x4xf32>
    %12 = arith.addf %11, %10 : vector<256x4xf32>
    %13 = arith.mulf %12, %12 : vector<256x4xf32>
    %cst_9 = arith.constant 1.000000e+00 : f32
    %14 = vector.broadcast %cst_9 : f32 to vector<256x4xf32>
    %15 = arith.addf %13, %14 : vector<256x4xf32>
    %16 = tpu.reciprocal %15 {approx = true} : vector<256x4xf32> -> vector<256x4xf32>
    %cst_10 = arith.constant 2.000000e+00 : f32
    %17 = vector.broadcast %cst_10 : f32 to vector<256x4xf32>
    %18 = arith.mulf %17, %16 : vector<256x4xf32>
    %cst_11 = arith.constant 1.000000e+00 : f32
    %19 = vector.broadcast %cst_11 : f32 to vector<256x4xf32>
    %20 = arith.subf %19, %18 : vector<256x4xf32>
    %21 = arith.mulf %7, %20 : vector<256x4xf32>
    %cst_12 = arith.constant 0.000000e+00 : bf16
    %22 = vector.broadcast %cst_12 : bf16 to vector<18x32x2xbf16>
    %c0_13 = arith.constant 0 : index
    %c0_14 = arith.constant 0 : index
    %c0_15 = arith.constant 0 : index
    %23 = vector.load %arg16[%c0_13, %c0_14, %c0_15] : memref<18x32x2xbf16, #tpu.memory_space<vmem>>, vector<18x32x2xbf16>
    tpu.vector_store %arg16[%c0_13, %c0_14, %c0_15], %22 {strides = array<i32>} : memref<18x32x2xbf16, #tpu.memory_space<vmem>>, vector<18x32x2xbf16>,
    %24 = arith.truncf %21 : vector<256x4xf32> to vector<256x4xbf16>
    %c0_16 = arith.constant 0 : index
    %c0_17 = arith.constant 0 : index
    %25 = vector.load %arg4[%c0_16, %c0_17] : memref<4x2xbf16, #tpu.memory_space<vmem>>, vector<4x2xbf16>
    %cst_18 = arith.constant dense<0.000000e+00> : vector<256x2xf32>
    %26 = tpu.matmul %24, %25, %cst_18 {dimension_numbers = #tpu.dot_dimension_numbers<[1], [0], [0], [1], [0, 0, 1, 1], [], []>} : vector<256x4xbf16>, vector<4x2xbf16>, vector<256x2xf32> -> vector<256x2xf32>
    %c0_19 = arith.constant 0 : index
    %c0_20 = arith.constant 0 : index
    %27 = vector.load %arg5[%c0_19, %c0_20] : memref<1x2xf32, #tpu.memory_space<vmem>>, vector<1x2xf32>
    %28 = vector.broadcast %27 : vector<1x2xf32> to vector<256x2xf32>
    %29 = arith.addf %26, %28 : vector<256x2xf32>
    %cst_21 = arith.constant 2.000000e+01 : f32
    %30 = vector.broadcast %cst_21 : f32 to vector<256x2xf32>
    %31 = arith.minimumf %29, %30 : vector<256x2xf32>
    %32 = math.exp %31 : vector<256x2xf32>
    %cst_22 = arith.constant 1.000000e+00 : f32
    %33 = vector.broadcast %cst_22 : f32 to vector<256x2xf32>
    %34 = arith.addf %33, %32 : vector<256x2xf32>
    %35 = arith.mulf %34, %34 : vector<256x2xf32>
    %cst_23 = arith.constant 1.000000e+00 : f32
    %36 = vector.broadcast %cst_23 : f32 to vector<256x2xf32>
    %37 = arith.addf %35, %36 : vector<256x2xf32>
    %38 = tpu.reciprocal %37 {approx = true} : vector<256x2xf32> -> vector<256x2xf32>
    %cst_24 = arith.constant 2.000000e+00 : f32
    %39 = vector.broadcast %cst_24 : f32 to vector<256x2xf32>
    %40 = arith.mulf %39, %38 : vector<256x2xf32>
    %cst_25 = arith.constant 1.000000e+00 : f32
    %41 = vector.broadcast %cst_25 : f32 to vector<256x2xf32>
    %42 = arith.subf %41, %40 : vector<256x2xf32>
    %43 = arith.mulf %29, %42 : vector<256x2xf32>
    %44 = arith.truncf %43 : vector<256x2xf32> to vector<256x2xbf16>
    %45 = vector.shape_cast %44 : vector<256x2xbf16> to vector<16x16x2xbf16>
    %c1 = arith.constant 1 : index
    %c8 = arith.constant 8 : index
    %c0_26 = arith.constant 0 : index
    %46 = vector.load %arg16[%c1, %c8, %c0_26] : memref<18x32x2xbf16, #tpu.memory_space<vmem>>, vector<16x16x2xbf16>
    tpu.vector_store %arg16[%c1, %c8, %c0_26], %45 {strides = array<i32>} : memref<18x32x2xbf16, #tpu.memory_space<vmem>>, vector<16x16x2xbf16>,
    %cst_27 = arith.constant 0.000000e+00 : f32
    %47 = vector.broadcast %cst_27 : f32 to vector<256x4xf32>
    %c0_28 = arith.constant 0 : index
    %c7 = arith.constant 7 : index
    %c0_29 = arith.constant 0 : index
    %48 = vector.load %arg16[%c0_28, %c7, %c0_29] : memref<18x32x2xbf16, #tpu.memory_space<vmem>>, vector<16x16x2xbf16>
    %49 = vector.shape_cast %48 : vector<16x16x2xbf16> to vector<256x2xbf16>
    %c0_30 = arith.constant 0 : index
    %c0_31 = arith.constant 0 : index
    %c0_32 = arith.constant 0 : index
    %50 = vector.load %arg6[%c0_30, %c0_31, %c0_32] : memref<9x2x4xbf16, #tpu.memory_space<vmem>>, vector<1x2x4xbf16>
    %51 = vector.shape_cast %50 : vector<1x2x4xbf16> to vector<2x4xbf16>
    %cst_33 = arith.constant dense<0.000000e+00> : vector<256x4xf32>
    %52 = tpu.matmul %49, %51, %cst_33 {dimension_numbers = #tpu.dot_dimension_numbers<[1], [0], [0], [1], [0, 0, 1, 1], [], []>} : vector<256x2xbf16>, vector<2x4xbf16>, vector<256x4xf32> -> vector<256x4xf32>
    %53 = arith.addf %47, %52 : vector<256x4xf32>
    %c0_34 = arith.constant 0 : index
    %c8_35 = arith.constant 8 : index
    %c0_36 = arith.constant 0 : index
    %54 = vector.load %arg16[%c0_34, %c8_35, %c0_36] : memref<18x32x2xbf16, #tpu.memory_space<vmem>>, vector<16x16x2xbf16>
    %55 = vector.shape_cast %54 : vector<16x16x2xbf16> to vector<256x2xbf16>
    %c1_37 = arith.constant 1 : index
    %c0_38 = arith.constant 0 : index
    %c0_39 = arith.constant 0 : index
    %56 = vector.load %arg6[%c1_37, %c0_38, %c0_39] : memref<9x2x4xbf16, #tpu.memory_space<vmem>>, vector<1x2x4xbf16>
    %57 = vector.shape_cast %56 : vector<1x2x4xbf16> to vector<2x4xbf16>
    %cst_40 = arith.constant dense<0.000000e+00> : vector<256x4xf32>
    %58 = tpu.matmul %55, %57, %cst_40 {dimension_numbers = #tpu.dot_dimension_numbers<[1], [0], [0], [1], [0, 0, 1, 1], [], []>} : vector<256x2xbf16>, vector<2x4xbf16>, vector<256x4xf32> -> vector<256x4xf32>
    %59 = arith.addf %53, %58 : vector<256x4xf32>
    %c0_41 = arith.constant 0 : index
    %c9 = arith.constant 9 : index
    %c0_42 = arith.constant 0 : index
    %60 = vector.load %arg16[%c0_41, %c9, %c0_42] : memref<18x32x2xbf16, #tpu.memory_space<vmem>>, vector<16x16x2xbf16>
    %61 = vector.shape_cast %60 : vector<16x16x2xbf16> to vector<256x2xbf16>
    %c2 = arith.constant 2 : index
    %c0_43 = arith.constant 0 : index
    %c0_44 = arith.constant 0 : index
    %62 = vector.load %arg6[%c2, %c0_43, %c0_44] : memref<9x2x4xbf16, #tpu.memory_space<vmem>>, vector<1x2x4xbf16>
    %63 = vector.shape_cast %62 : vector<1x2x4xbf16> to vector<2x4xbf16>
    %cst_45 = arith.constant dense<0.000000e+00> : vector<256x4xf32>
    %64 = tpu.matmul %61, %63, %cst_45 {dimension_numbers = #tpu.dot_dimension_numbers<[1], [0], [0], [1], [0, 0, 1, 1], [], []>} : vector<256x2xbf16>, vector<2x4xbf16>, vector<256x4xf32> -> vector<256x4xf32>
    %65 = arith.addf %59, %64 : vector<256x4xf32>
    %c1_46 = arith.constant 1 : index
    %c7_47 = arith.constant 7 : index
    %c0_48 = arith.constant 0 : index
    %66 = vector.load %arg16[%c1_46, %c7_47, %c0_48] : memref<18x32x2xbf16, #tpu.memory_space<vmem>>, vector<16x16x2xbf16>
    %67 = vector.shape_cast %66 : vector<16x16x2xbf16> to vector<256x2xbf16>
    %c3 = arith.constant 3 : index
    %c0_49 = arith.constant 0 : index
    %c0_50 = arith.constant 0 : index
    %68 = vector.load %arg6[%c3, %c0_49, %c0_50] : memref<9x2x4xbf16, #tpu.memory_space<vmem>>, vector<1x2x4xbf16>
    %69 = vector.shape_cast %68 : vector<1x2x4xbf16> to vector<2x4xbf16>
    %cst_51 = arith.constant dense<0.000000e+00> : vector<256x4xf32>
    %70 = tpu.matmul %67, %69, %cst_51 {dimension_numbers = #tpu.dot_dimension_numbers<[1], [0], [0], [1], [0, 0, 1, 1], [], []>} : vector<256x2xbf16>, vector<2x4xbf16>, vector<256x4xf32> -> vector<256x4xf32>
    %71 = arith.addf %65, %70 : vector<256x4xf32>
    %c1_52 = arith.constant 1 : index
    %c8_53 = arith.constant 8 : index
    %c0_54 = arith.constant 0 : index
    %72 = vector.load %arg16[%c1_52, %c8_53, %c0_54] : memref<18x32x2xbf16, #tpu.memory_space<vmem>>, vector<16x16x2xbf16>
    %73 = vector.shape_cast %72 : vector<16x16x2xbf16> to vector<256x2xbf16>
    %c4 = arith.constant 4 : index
    %c0_55 = arith.constant 0 : index
    %c0_56 = arith.constant 0 : index
    %74 = vector.load %arg6[%c4, %c0_55, %c0_56] : memref<9x2x4xbf16, #tpu.memory_space<vmem>>, vector<1x2x4xbf16>
    %75 = vector.shape_cast %74 : vector<1x2x4xbf16> to vector<2x4xbf16>
    %cst_57 = arith.constant dense<0.000000e+00> : vector<256x4xf32>
    %76 = tpu.matmul %73, %75, %cst_57 {dimension_numbers = #tpu.dot_dimension_numbers<[1], [0], [0], [1], [0, 0, 1, 1], [], []>} : vector<256x2xbf16>, vector<2x4xbf16>, vector<256x4xf32> -> vector<256x4xf32>
    %77 = arith.addf %71, %76 : vector<256x4xf32>
    %c1_58 = arith.constant 1 : index
    %c9_59 = arith.constant 9 : index
    %c0_60 = arith.constant 0 : index
    %78 = vector.load %arg16[%c1_58, %c9_59, %c0_60] : memref<18x32x2xbf16, #tpu.memory_space<vmem>>, vector<16x16x2xbf16>
    %79 = vector.shape_cast %78 : vector<16x16x2xbf16> to vector<256x2xbf16>
    %c5 = arith.constant 5 : index
    %c0_61 = arith.constant 0 : index
    %c0_62 = arith.constant 0 : index
    %80 = vector.load %arg6[%c5, %c0_61, %c0_62] : memref<9x2x4xbf16, #tpu.memory_space<vmem>>, vector<1x2x4xbf16>
    %81 = vector.shape_cast %80 : vector<1x2x4xbf16> to vector<2x4xbf16>
    %cst_63 = arith.constant dense<0.000000e+00> : vector<256x4xf32>
    %82 = tpu.matmul %79, %81, %cst_63 {dimension_numbers = #tpu.dot_dimension_numbers<[1], [0], [0], [1], [0, 0, 1, 1], [], []>} : vector<256x2xbf16>, vector<2x4xbf16>, vector<256x4xf32> -> vector<256x4xf32>
    %83 = arith.addf %77, %82 : vector<256x4xf32>
    %c2_64 = arith.constant 2 : index
    %c7_65 = arith.constant 7 : index
    %c0_66 = arith.constant 0 : index
    %84 = vector.load %arg16[%c2_64, %c7_65, %c0_66] : memref<18x32x2xbf16, #tpu.memory_space<vmem>>, vector<16x16x2xbf16>
    %85 = vector.shape_cast %84 : vector<16x16x2xbf16> to vector<256x2xbf16>
    %c6 = arith.constant 6 : index
    %c0_67 = arith.constant 0 : index
    %c0_68 = arith.constant 0 : index
    %86 = vector.load %arg6[%c6, %c0_67, %c0_68] : memref<9x2x4xbf16, #tpu.memory_space<vmem>>, vector<1x2x4xbf16>
    %87 = vector.shape_cast %86 : vector<1x2x4xbf16> to vector<2x4xbf16>
    %cst_69 = arith.constant dense<0.000000e+00> : vector<256x4xf32>
    %88 = tpu.matmul %85, %87, %cst_69 {dimension_numbers = #tpu.dot_dimension_numbers<[1], [0], [0], [1], [0, 0, 1, 1], [], []>} : vector<256x2xbf16>, vector<2x4xbf16>, vector<256x4xf32> -> vector<256x4xf32>
    %89 = arith.addf %83, %88 : vector<256x4xf32>
    %c2_70 = arith.constant 2 : index
    %c8_71 = arith.constant 8 : index
    %c0_72 = arith.constant 0 : index
    %90 = vector.load %arg16[%c2_70, %c8_71, %c0_72] : memref<18x32x2xbf16, #tpu.memory_space<vmem>>, vector<16x16x2xbf16>
    %91 = vector.shape_cast %90 : vector<16x16x2xbf16> to vector<256x2xbf16>
    %c7_73 = arith.constant 7 : index
    %c0_74 = arith.constant 0 : index
    %c0_75 = arith.constant 0 : index
    %92 = vector.load %arg6[%c7_73, %c0_74, %c0_75] : memref<9x2x4xbf16, #tpu.memory_space<vmem>>, vector<1x2x4xbf16>
    %93 = vector.shape_cast %92 : vector<1x2x4xbf16> to vector<2x4xbf16>
    %cst_76 = arith.constant dense<0.000000e+00> : vector<256x4xf32>
    %94 = tpu.matmul %91, %93, %cst_76 {dimension_numbers = #tpu.dot_dimension_numbers<[1], [0], [0], [1], [0, 0, 1, 1], [], []>} : vector<256x2xbf16>, vector<2x4xbf16>, vector<256x4xf32> -> vector<256x4xf32>
    %95 = arith.addf %89, %94 : vector<256x4xf32>
    %c2_77 = arith.constant 2 : index
    %c9_78 = arith.constant 9 : index
    %c0_79 = arith.constant 0 : index
    %96 = vector.load %arg16[%c2_77, %c9_78, %c0_79] : memref<18x32x2xbf16, #tpu.memory_space<vmem>>, vector<16x16x2xbf16>
    %97 = vector.shape_cast %96 : vector<16x16x2xbf16> to vector<256x2xbf16>
    %c8_80 = arith.constant 8 : index
    %c0_81 = arith.constant 0 : index
    %c0_82 = arith.constant 0 : index
    %98 = vector.load %arg6[%c8_80, %c0_81, %c0_82] : memref<9x2x4xbf16, #tpu.memory_space<vmem>>, vector<1x2x4xbf16>
    %99 = vector.shape_cast %98 : vector<1x2x4xbf16> to vector<2x4xbf16>
    %cst_83 = arith.constant dense<0.000000e+00> : vector<256x4xf32>
    %100 = tpu.matmul %97, %99, %cst_83 {dimension_numbers = #tpu.dot_dimension_numbers<[1], [0], [0], [1], [0, 0, 1, 1], [], []>} : vector<256x2xbf16>, vector<2x4xbf16>, vector<256x4xf32> -> vector<256x4xf32>
    %101 = arith.addf %95, %100 : vector<256x4xf32>
    %c0_84 = arith.constant 0 : index
    %c0_85 = arith.constant 0 : index
    %102 = vector.load %arg7[%c0_84, %c0_85] : memref<1x4xf32, #tpu.memory_space<vmem>>, vector<1x4xf32>
    %103 = vector.broadcast %102 : vector<1x4xf32> to vector<256x4xf32>
    %104 = arith.addf %101, %103 : vector<256x4xf32>
    %cst_86 = arith.constant 2.000000e+01 : f32
    %105 = vector.broadcast %cst_86 : f32 to vector<256x4xf32>
    %106 = arith.minimumf %104, %105 : vector<256x4xf32>
    %107 = math.exp %106 : vector<256x4xf32>
    %cst_87 = arith.constant 1.000000e+00 : f32
    %108 = vector.broadcast %cst_87 : f32 to vector<256x4xf32>
    %109 = arith.addf %108, %107 : vector<256x4xf32>
    %110 = arith.mulf %109, %109 : vector<256x4xf32>
    %cst_88 = arith.constant 1.000000e+00 : f32
    %111 = vector.broadcast %cst_88 : f32 to vector<256x4xf32>
    %112 = arith.addf %110, %111 : vector<256x4xf32>
    %113 = tpu.reciprocal %112 {approx = true} : vector<256x4xf32> -> vector<256x4xf32>
    %cst_89 = arith.constant 2.000000e+00 : f32
    %114 = vector.broadcast %cst_89 : f32 to vector<256x4xf32>
    %115 = arith.mulf %114, %113 : vector<256x4xf32>
    %cst_90 = arith.constant 1.000000e+00 : f32
    %116 = vector.broadcast %cst_90 : f32 to vector<256x4xf32>
    %117 = arith.subf %116, %115 : vector<256x4xf32>
    %118 = arith.mulf %104, %117 : vector<256x4xf32>
    %119 = arith.addf %118, %21 : vector<256x4xf32>
    %120 = arith.truncf %119 : vector<256x4xf32> to vector<256x4xbf16>
    %c0_91 = arith.constant 0 : index
    %c0_92 = arith.constant 0 : index
    %121 = vector.load %arg8[%c0_91, %c0_92] : memref<4x2xbf16, #tpu.memory_space<vmem>>, vector<4x2xbf16>
    %cst_93 = arith.constant dense<0.000000e+00> : vector<256x2xf32>
    %122 = tpu.matmul %120, %121, %cst_93 {dimension_numbers = #tpu.dot_dimension_numbers<[1], [0], [0], [1], [0, 0, 1, 1], [], []>} : vector<256x4xbf16>, vector<4x2xbf16>, vector<256x2xf32> -> vector<256x2xf32>
    %c0_94 = arith.constant 0 : index
    %c0_95 = arith.constant 0 : index
    %123 = vector.load %arg9[%c0_94, %c0_95] : memref<1x2xf32, #tpu.memory_space<vmem>>, vector<1x2xf32>
    %124 = vector.broadcast %123 : vector<1x2xf32> to vector<256x2xf32>
    %125 = arith.addf %122, %124 : vector<256x2xf32>
    %cst_96 = arith.constant 2.000000e+01 : f32
    %126 = vector.broadcast %cst_96 : f32 to vector<256x2xf32>
    %127 = arith.minimumf %125, %126 : vector<256x2xf32>
    %128 = math.exp %127 : vector<256x2xf32>
    %cst_97 = arith.constant 1.000000e+00 : f32
    %129 = vector.broadcast %cst_97 : f32 to vector<256x2xf32>
    %130 = arith.addf %129, %128 : vector<256x2xf32>
    %131 = arith.mulf %130, %130 : vector<256x2xf32>
    %cst_98 = arith.constant 1.000000e+00 : f32
    %132 = vector.broadcast %cst_98 : f32 to vector<256x2xf32>
    %133 = arith.addf %131, %132 : vector<256x2xf32>
    %134 = tpu.reciprocal %133 {approx = true} : vector<256x2xf32> -> vector<256x2xf32>
    %cst_99 = arith.constant 2.000000e+00 : f32
    %135 = vector.broadcast %cst_99 : f32 to vector<256x2xf32>
    %136 = arith.mulf %135, %134 : vector<256x2xf32>
    %cst_100 = arith.constant 1.000000e+00 : f32
    %137 = vector.broadcast %cst_100 : f32 to vector<256x2xf32>
    %138 = arith.subf %137, %136 : vector<256x2xf32>
    %139 = arith.mulf %125, %138 : vector<256x2xf32>
    %140 = arith.truncf %139 : vector<256x2xf32> to vector<256x2xbf16>
    %141 = vector.shape_cast %140 : vector<256x2xbf16> to vector<16x16x2xbf16>
    %c1_101 = arith.constant 1 : index
    %c8_102 = arith.constant 8 : index
    %c0_103 = arith.constant 0 : index
    %142 = vector.load %arg16[%c1_101, %c8_102, %c0_103] : memref<18x32x2xbf16, #tpu.memory_space<vmem>>, vector<16x16x2xbf16>
    tpu.vector_store %arg16[%c1_101, %c8_102, %c0_103], %141 {strides = array<i32>} : memref<18x32x2xbf16, #tpu.memory_space<vmem>>, vector<16x16x2xbf16>,
    %cst_104 = arith.constant 0.000000e+00 : f32
    %143 = vector.broadcast %cst_104 : f32 to vector<256x4xf32>
    %c0_105 = arith.constant 0 : index
    %c7_106 = arith.constant 7 : index
    %c0_107 = arith.constant 0 : index
    %144 = vector.load %arg16[%c0_105, %c7_106, %c0_107] : memref<18x32x2xbf16, #tpu.memory_space<vmem>>, vector<16x16x2xbf16>
    %145 = vector.shape_cast %144 : vector<16x16x2xbf16> to vector<256x2xbf16>
    %c0_108 = arith.constant 0 : index
    %c0_109 = arith.constant 0 : index
    %c0_110 = arith.constant 0 : index
    %146 = vector.load %arg10[%c0_108, %c0_109, %c0_110] : memref<9x2x4xbf16, #tpu.memory_space<vmem>>, vector<1x2x4xbf16>
    %147 = vector.shape_cast %146 : vector<1x2x4xbf16> to vector<2x4xbf16>
    %cst_111 = arith.constant dense<0.000000e+00> : vector<256x4xf32>
    %148 = tpu.matmul %145, %147, %cst_111 {dimension_numbers = #tpu.dot_dimension_numbers<[1], [0], [0], [1], [0, 0, 1, 1], [], []>} : vector<256x2xbf16>, vector<2x4xbf16>, vector<256x4xf32> -> vector<256x4xf32>
    %149 = arith.addf %143, %148 : vector<256x4xf32>
    %c0_112 = arith.constant 0 : index
    %c8_113 = arith.constant 8 : index
    %c0_114 = arith.constant 0 : index
    %150 = vector.load %arg16[%c0_112, %c8_113, %c0_114] : memref<18x32x2xbf16, #tpu.memory_space<vmem>>, vector<16x16x2xbf16>
    %151 = vector.shape_cast %150 : vector<16x16x2xbf16> to vector<256x2xbf16>
    %c1_115 = arith.constant 1 : index
    %c0_116 = arith.constant 0 : index
    %c0_117 = arith.constant 0 : index
    %152 = vector.load %arg10[%c1_115, %c0_116, %c0_117] : memref<9x2x4xbf16, #tpu.memory_space<vmem>>, vector<1x2x4xbf16>
    %153 = vector.shape_cast %152 : vector<1x2x4xbf16> to vector<2x4xbf16>
    %cst_118 = arith.constant dense<0.000000e+00> : vector<256x4xf32>
    %154 = tpu.matmul %151, %153, %cst_118 {dimension_numbers = #tpu.dot_dimension_numbers<[1], [0], [0], [1], [0, 0, 1, 1], [], []>} : vector<256x2xbf16>, vector<2x4xbf16>, vector<256x4xf32> -> vector<256x4xf32>
    %155 = arith.addf %149, %154 : vector<256x4xf32>
    %c0_119 = arith.constant 0 : index
    %c9_120 = arith.constant 9 : index
    %c0_121 = arith.constant 0 : index
    %156 = vector.load %arg16[%c0_119, %c9_120, %c0_121] : memref<18x32x2xbf16, #tpu.memory_space<vmem>>, vector<16x16x2xbf16>
    %157 = vector.shape_cast %156 : vector<16x16x2xbf16> to vector<256x2xbf16>
    %c2_122 = arith.constant 2 : index
    %c0_123 = arith.constant 0 : index
    %c0_124 = arith.constant 0 : index
    %158 = vector.load %arg10[%c2_122, %c0_123, %c0_124] : memref<9x2x4xbf16, #tpu.memory_space<vmem>>, vector<1x2x4xbf16>
    %159 = vector.shape_cast %158 : vector<1x2x4xbf16> to vector<2x4xbf16>
    %cst_125 = arith.constant dense<0.000000e+00> : vector<256x4xf32>
    %160 = tpu.matmul %157, %159, %cst_125 {dimension_numbers = #tpu.dot_dimension_numbers<[1], [0], [0], [1], [0, 0, 1, 1], [], []>} : vector<256x2xbf16>, vector<2x4xbf16>, vector<256x4xf32> -> vector<256x4xf32>
    %161 = arith.addf %155, %160 : vector<256x4xf32>
    %c1_126 = arith.constant 1 : index
    %c7_127 = arith.constant 7 : index
    %c0_128 = arith.constant 0 : index
    %162 = vector.load %arg16[%c1_126, %c7_127, %c0_128] : memref<18x32x2xbf16, #tpu.memory_space<vmem>>, vector<16x16x2xbf16>
    %163 = vector.shape_cast %162 : vector<16x16x2xbf16> to vector<256x2xbf16>
    %c3_129 = arith.constant 3 : index
    %c0_130 = arith.constant 0 : index
    %c0_131 = arith.constant 0 : index
    %164 = vector.load %arg10[%c3_129, %c0_130, %c0_131] : memref<9x2x4xbf16, #tpu.memory_space<vmem>>, vector<1x2x4xbf16>
    %165 = vector.shape_cast %164 : vector<1x2x4xbf16> to vector<2x4xbf16>
    %cst_132 = arith.constant dense<0.000000e+00> : vector<256x4xf32>
    %166 = tpu.matmul %163, %165, %cst_132 {dimension_numbers = #tpu.dot_dimension_numbers<[1], [0], [0], [1], [0, 0, 1, 1], [], []>} : vector<256x2xbf16>, vector<2x4xbf16>, vector<256x4xf32> -> vector<256x4xf32>
    %167 = arith.addf %161, %166 : vector<256x4xf32>
    %c1_133 = arith.constant 1 : index
    %c8_134 = arith.constant 8 : index
    %c0_135 = arith.constant 0 : index
    %168 = vector.load %arg16[%c1_133, %c8_134, %c0_135] : memref<18x32x2xbf16, #tpu.memory_space<vmem>>, vector<16x16x2xbf16>
    %169 = vector.shape_cast %168 : vector<16x16x2xbf16> to vector<256x2xbf16>
    %c4_136 = arith.constant 4 : index
    %c0_137 = arith.constant 0 : index
    %c0_138 = arith.constant 0 : index
    %170 = vector.load %arg10[%c4_136, %c0_137, %c0_138] : memref<9x2x4xbf16, #tpu.memory_space<vmem>>, vector<1x2x4xbf16>
    %171 = vector.shape_cast %170 : vector<1x2x4xbf16> to vector<2x4xbf16>
    %cst_139 = arith.constant dense<0.000000e+00> : vector<256x4xf32>
    %172 = tpu.matmul %169, %171, %cst_139 {dimension_numbers = #tpu.dot_dimension_numbers<[1], [0], [0], [1], [0, 0, 1, 1], [], []>} : vector<256x2xbf16>, vector<2x4xbf16>, vector<256x4xf32> -> vector<256x4xf32>
    %173 = arith.addf %167, %172 : vector<256x4xf32>
    %c1_140 = arith.constant 1 : index
    %c9_141 = arith.constant 9 : index
    %c0_142 = arith.constant 0 : index
    %174 = vector.load %arg16[%c1_140, %c9_141, %c0_142] : memref<18x32x2xbf16, #tpu.memory_space<vmem>>, vector<16x16x2xbf16>
    %175 = vector.shape_cast %174 : vector<16x16x2xbf16> to vector<256x2xbf16>
    %c5_143 = arith.constant 5 : index
    %c0_144 = arith.constant 0 : index
    %c0_145 = arith.constant 0 : index
    %176 = vector.load %arg10[%c5_143, %c0_144, %c0_145] : memref<9x2x4xbf16, #tpu.memory_space<vmem>>, vector<1x2x4xbf16>
    %177 = vector.shape_cast %176 : vector<1x2x4xbf16> to vector<2x4xbf16>
    %cst_146 = arith.constant dense<0.000000e+00> : vector<256x4xf32>
    %178 = tpu.matmul %175, %177, %cst_146 {dimension_numbers = #tpu.dot_dimension_numbers<[1], [0], [0], [1], [0, 0, 1, 1], [], []>} : vector<256x2xbf16>, vector<2x4xbf16>, vector<256x4xf32> -> vector<256x4xf32>
    %179 = arith.addf %173, %178 : vector<256x4xf32>
    %c2_147 = arith.constant 2 : index
    %c7_148 = arith.constant 7 : index
    %c0_149 = arith.constant 0 : index
    %180 = vector.load %arg16[%c2_147, %c7_148, %c0_149] : memref<18x32x2xbf16, #tpu.memory_space<vmem>>, vector<16x16x2xbf16>
    %181 = vector.shape_cast %180 : vector<16x16x2xbf16> to vector<256x2xbf16>
    %c6_150 = arith.constant 6 : index
    %c0_151 = arith.constant 0 : index
    %c0_152 = arith.constant 0 : index
    %182 = vector.load %arg10[%c6_150, %c0_151, %c0_152] : memref<9x2x4xbf16, #tpu.memory_space<vmem>>, vector<1x2x4xbf16>
    %183 = vector.shape_cast %182 : vector<1x2x4xbf16> to vector<2x4xbf16>
    %cst_153 = arith.constant dense<0.000000e+00> : vector<256x4xf32>
    %184 = tpu.matmul %181, %183, %cst_153 {dimension_numbers = #tpu.dot_dimension_numbers<[1], [0], [0], [1], [0, 0, 1, 1], [], []>} : vector<256x2xbf16>, vector<2x4xbf16>, vector<256x4xf32> -> vector<256x4xf32>
    %185 = arith.addf %179, %184 : vector<256x4xf32>
    %c2_154 = arith.constant 2 : index
    %c8_155 = arith.constant 8 : index
    %c0_156 = arith.constant 0 : index
    %186 = vector.load %arg16[%c2_154, %c8_155, %c0_156] : memref<18x32x2xbf16, #tpu.memory_space<vmem>>, vector<16x16x2xbf16>
    %187 = vector.shape_cast %186 : vector<16x16x2xbf16> to vector<256x2xbf16>
    %c7_157 = arith.constant 7 : index
    %c0_158 = arith.constant 0 : index
    %c0_159 = arith.constant 0 : index
    %188 = vector.load %arg10[%c7_157, %c0_158, %c0_159] : memref<9x2x4xbf16, #tpu.memory_space<vmem>>, vector<1x2x4xbf16>
    %189 = vector.shape_cast %188 : vector<1x2x4xbf16> to vector<2x4xbf16>
    %cst_160 = arith.constant dense<0.000000e+00> : vector<256x4xf32>
    %190 = tpu.matmul %187, %189, %cst_160 {dimension_numbers = #tpu.dot_dimension_numbers<[1], [0], [0], [1], [0, 0, 1, 1], [], []>} : vector<256x2xbf16>, vector<2x4xbf16>, vector<256x4xf32> -> vector<256x4xf32>
    %191 = arith.addf %185, %190 : vector<256x4xf32>
    %c2_161 = arith.constant 2 : index
    %c9_162 = arith.constant 9 : index
    %c0_163 = arith.constant 0 : index
    %192 = vector.load %arg16[%c2_161, %c9_162, %c0_163] : memref<18x32x2xbf16, #tpu.memory_space<vmem>>, vector<16x16x2xbf16>
    %193 = vector.shape_cast %192 : vector<16x16x2xbf16> to vector<256x2xbf16>
    %c8_164 = arith.constant 8 : index
    %c0_165 = arith.constant 0 : index
    %c0_166 = arith.constant 0 : index
    %194 = vector.load %arg10[%c8_164, %c0_165, %c0_166] : memref<9x2x4xbf16, #tpu.memory_space<vmem>>, vector<1x2x4xbf16>
    %195 = vector.shape_cast %194 : vector<1x2x4xbf16> to vector<2x4xbf16>
    %cst_167 = arith.constant dense<0.000000e+00> : vector<256x4xf32>
    %196 = tpu.matmul %193, %195, %cst_167 {dimension_numbers = #tpu.dot_dimension_numbers<[1], [0], [0], [1], [0, 0, 1, 1], [], []>} : vector<256x2xbf16>, vector<2x4xbf16>, vector<256x4xf32> -> vector<256x4xf32>
    %197 = arith.addf %191, %196 : vector<256x4xf32>
    %c0_168 = arith.constant 0 : index
    %c0_169 = arith.constant 0 : index
    %198 = vector.load %arg11[%c0_168, %c0_169] : memref<1x4xf32, #tpu.memory_space<vmem>>, vector<1x4xf32>
    %199 = vector.broadcast %198 : vector<1x4xf32> to vector<256x4xf32>
    %200 = arith.addf %197, %199 : vector<256x4xf32>
    %cst_170 = arith.constant 2.000000e+01 : f32
    %201 = vector.broadcast %cst_170 : f32 to vector<256x4xf32>
    %202 = arith.minimumf %200, %201 : vector<256x4xf32>
    %203 = math.exp %202 : vector<256x4xf32>
    %cst_171 = arith.constant 1.000000e+00 : f32
    %204 = vector.broadcast %cst_171 : f32 to vector<256x4xf32>
    %205 = arith.addf %204, %203 : vector<256x4xf32>
    %206 = arith.mulf %205, %205 : vector<256x4xf32>
    %cst_172 = arith.constant 1.000000e+00 : f32
    %207 = vector.broadcast %cst_172 : f32 to vector<256x4xf32>
    %208 = arith.addf %206, %207 : vector<256x4xf32>
    %209 = tpu.reciprocal %208 {approx = true} : vector<256x4xf32> -> vector<256x4xf32>
    %cst_173 = arith.constant 2.000000e+00 : f32
    %210 = vector.broadcast %cst_173 : f32 to vector<256x4xf32>
    %211 = arith.mulf %210, %209 : vector<256x4xf32>
    %cst_174 = arith.constant 1.000000e+00 : f32
    %212 = vector.broadcast %cst_174 : f32 to vector<256x4xf32>
    %213 = arith.subf %212, %211 : vector<256x4xf32>
    %214 = arith.mulf %200, %213 : vector<256x4xf32>
    %215 = arith.addf %214, %119 : vector<256x4xf32>
    %216 = arith.truncf %21 : vector<256x4xf32> to vector<256x4xbf16>
    %c0_175 = arith.constant 0 : index
    %c0_176 = arith.constant 0 : index
    %217 = vector.load %arg12[%c0_175, %c0_176] : memref<4x8xbf16, #tpu.memory_space<vmem>>, vector<4x8xbf16>
    %cst_177 = arith.constant dense<0.000000e+00> : vector<256x8xf32>
    %218 = tpu.matmul %216, %217, %cst_177 {dimension_numbers = #tpu.dot_dimension_numbers<[1], [0], [0], [1], [0, 0, 1, 1], [], []>} : vector<256x4xbf16>, vector<4x8xbf16>, vector<256x8xf32> -> vector<256x8xf32>
    %219 = arith.truncf %215 : vector<256x4xf32> to vector<256x4xbf16>
    %c0_178 = arith.constant 0 : index
    %c0_179 = arith.constant 0 : index
    %220 = vector.load %arg13[%c0_178, %c0_179] : memref<4x8xbf16, #tpu.memory_space<vmem>>, vector<4x8xbf16>
    %cst_180 = arith.constant dense<0.000000e+00> : vector<256x8xf32>
    %221 = tpu.matmul %219, %220, %cst_180 {dimension_numbers = #tpu.dot_dimension_numbers<[1], [0], [0], [1], [0, 0, 1, 1], [], []>} : vector<256x4xbf16>, vector<4x8xbf16>, vector<256x8xf32> -> vector<256x8xf32>
    %222 = arith.addf %218, %221 : vector<256x8xf32>
    %c0_181 = arith.constant 0 : index
    %c0_182 = arith.constant 0 : index
    %223 = vector.load %arg14[%c0_181, %c0_182] : memref<1x8xf32, #tpu.memory_space<vmem>>, vector<1x8xf32>
    %224 = vector.broadcast %223 : vector<1x8xf32> to vector<256x8xf32>
    %225 = arith.addf %222, %224 : vector<256x8xf32>
    %226 = vector.shape_cast %225 : vector<256x8xf32> to vector<1x16x16x8xf32>
    %c0_183 = arith.constant 0 : index
    %c0_184 = arith.constant 0 : index
    %c0_185 = arith.constant 0 : index
    %c0_186 = arith.constant 0 : index
    %227 = vector.load %arg15[%c0_183, %c0_184, %c0_185, %c0_186] : memref<1x16x16x8xf32, #tpu.memory_space<vmem>>, vector<1x16x16x8xf32>
    tpu.vector_store %arg15[%c0_183, %c0_184, %c0_185, %c0_186], %226 {strides = array<i32>} : memref<1x16x16x8xf32, #tpu.memory_space<vmem>>, vector<1x16x16x8xf32>,
    return
  }
  func.func @transform_0(%arg0: i32) -> (i32, i32, i32, i32) {
    %c0_i32 = arith.constant 0 : i32
    %c0_i32_0 = arith.constant 0 : i32
    %c0_i32_1 = arith.constant 0 : i32
    %c0_i32_2 = arith.constant 0 : i32
    return %arg0, %c0_i32, %c0_i32_0, %c0_i32_1 : i32, i32, i32, i32
  }
  func.func @transform_1(%arg0: i32) -> (i32, i32) {
    %c0_i32 = arith.constant 0 : i32
    %c0_i32_0 = arith.constant 0 : i32
    %c0_i32_1 = arith.constant 0 : i32
    return %c0_i32, %c0_i32_0 : i32, i32
  }
  func.func @transform_2(%arg0: i32) -> (i32, i32) {
    %c0_i32 = arith.constant 0 : i32
    %c0_i32_0 = arith.constant 0 : i32
    %c0_i32_1 = arith.constant 0 : i32
    return %c0_i32, %c0_i32_0 : i32, i32
  }
  func.func @transform_3(%arg0: i32) -> (i32, i32) {
    %c0_i32 = arith.constant 0 : i32
    %c0_i32_0 = arith.constant 0 : i32
    %c0_i32_1 = arith.constant 0 : i32
    return %c0_i32, %c0_i32_0 : i32, i32
  }
  func.func @transform_4(%arg0: i32) -> (i32, i32) {
    %c0_i32 = arith.constant 0 : i32
    %c0_i32_0 = arith.constant 0 : i32
    %c0_i32_1 = arith.constant 0 : i32
    return %c0_i32, %c0_i32_0 : i32, i32
  }
  func.func @transform_5(%arg0: i32) -> (i32, i32, i32) {
    %c0_i32 = arith.constant 0 : i32
    %c0_i32_0 = arith.constant 0 : i32
    %c0_i32_1 = arith.constant 0 : i32
    %c0_i32_2 = arith.constant 0 : i32
    return %c0_i32, %c0_i32_0, %c0_i32_1 : i32, i32, i32
  }
  func.func @transform_6(%arg0: i32) -> (i32, i32) {
    %c0_i32 = arith.constant 0 : i32
    %c0_i32_0 = arith.constant 0 : i32
    %c0_i32_1 = arith.constant 0 : i32
    return %c0_i32, %c0_i32_0 : i32, i32
  }
  func.func @transform_7(%arg0: i32) -> (i32, i32) {
    %c0_i32 = arith.constant 0 : i32
    %c0_i32_0 = arith.constant 0 : i32
    %c0_i32_1 = arith.constant 0 : i32
    return %c0_i32, %c0_i32_0 : i32, i32
  }
  func.func @transform_8(%arg0: i32) -> (i32, i32) {
    %c0_i32 = arith.constant 0 : i32
    %c0_i32_0 = arith.constant 0 : i32
    %c0_i32_1 = arith.constant 0 : i32
    return %c0_i32, %c0_i32_0 : i32, i32
  }
  func.func @transform_9(%arg0: i32) -> (i32, i32, i32) {
    %c0_i32 = arith.constant 0 : i32
    %c0_i32_0 = arith.constant 0 : i32
    %c0_i32_1 = arith.constant 0 : i32
    %c0_i32_2 = arith.constant 0 : i32
    return %c0_i32, %c0_i32_0, %c0_i32_1 : i32, i32, i32
  }
  func.func @transform_10(%arg0: i32) -> (i32, i32) {
    %c0_i32 = arith.constant 0 : i32
    %c0_i32_0 = arith.constant 0 : i32
    %c0_i32_1 = arith.constant 0 : i32
    return %c0_i32, %c0_i32_0 : i32, i32
  }
  func.func @transform_11(%arg0: i32) -> (i32, i32) {
    %c0_i32 = arith.constant 0 : i32
    %c0_i32_0 = arith.constant 0 : i32
    %c0_i32_1 = arith.constant 0 : i32
    return %c0_i32, %c0_i32_0 : i32, i32
  }
  func.func @transform_12(%arg0: i32) -> (i32, i32) {
    %c0_i32 = arith.constant 0 : i32
    %c0_i32_0 = arith.constant 0 : i32
    %c0_i32_1 = arith.constant 0 : i32
    return %c0_i32, %c0_i32_0 : i32, i32
  }
  func.func @transform_13(%arg0: i32) -> (i32, i32) {
    %c0_i32 = arith.constant 0 : i32
    %c0_i32_0 = arith.constant 0 : i32
    %c0_i32_1 = arith.constant 0 : i32
    return %c0_i32, %c0_i32_0 : i32, i32
  }
  func.func @transform_14(%arg0: i32) -> (i32, i32, i32, i32) {
    %c0_i32 = arith.constant 0 : i32
    %c0_i32_0 = arith.constant 0 : i32
    %c0_i32_1 = arith.constant 0 : i32
    %c0_i32_2 = arith.constant 0 : i32
    return %arg0, %c0_i32, %c0_i32_0, %c0_i32_1 : i32, i32, i32, i32
  }
}

</mosaic_0001>

<llo_original>
// kernel: csp_block_forward.1
$region0: #{csp_block_forward.1}
  #allocation0 [shape = 'u32[]', space=smem, size = 0x4, offset = 0x4, fixed_abs, tag = 'smem constant byte address 0x4 - core index']
  #allocation1 [shape = 'u32[72,128]{1,0:T(1,128)}', space=vmem, size = 0x9000, scoped, tag = 'internal scratch']
  #allocation2 [shape = 'bf16[18,32,2]{2,1,0:T(8,128)(2,1)}', space=vmem, size = 0x24000, scoped, tag = 'scratch operand']
  %s0 = inlined_call_operand.vmem [shape: f32[2,16,16,8], index: 0, kind: input, shape index: {}]
  %s1 = inlined_call_operand.vmem [shape: bf16[8,4], index: 1, kind: input, shape index: {}]
  %s2 = inlined_call_operand.vmem [shape: f32[1,4], index: 2, kind: input, shape index: {}]
  %s3 = inlined_call_operand.vmem [shape: bf16[4,2], index: 3, kind: input, shape index: {}]
  %s4 = inlined_call_operand.vmem [shape: f32[1,2], index: 4, kind: input, shape index: {}]
  %s5 = inlined_call_operand.vmem [shape: bf16[9,2,4], index: 5, kind: input, shape index: {}]
  %s6 = inlined_call_operand.vmem [shape: f32[1,4], index: 6, kind: input, shape index: {}]
  %s7 = inlined_call_operand.vmem [shape: bf16[4,2], index: 7, kind: input, shape index: {}]
  %s8 = inlined_call_operand.vmem [shape: f32[1,2], index: 8, kind: input, shape index: {}]
  %s9 = inlined_call_operand.vmem [shape: bf16[9,2,4], index: 9, kind: input, shape index: {}]
  %s10 = inlined_call_operand.vmem [shape: f32[1,4], index: 10, kind: input, shape index: {}]
  %s11 = inlined_call_operand.vmem [shape: bf16[4,8], index: 11, kind: input, shape index: {}]
  %s12 = inlined_call_operand.vmem [shape: bf16[4,8], index: 12, kind: input, shape index: {}]
  %s13 = inlined_call_operand.vmem [shape: f32[1,8], index: 13, kind: input, shape index: {}]
  %s14 = inlined_call_operand.vmem [shape: f32[2,16,16,8], index: 14, kind: output, shape index: {}]
  %s15 = sld [smem:[#allocation0]]
  $region89: #{csp_block_forward.1} parent=0
    _
  %s17 = ssub.s32 1, %s15
  %s18 = scalar_select 0, %s17, %s15
  loop: start=0, step=1, limit=4
  $region2: #{csp_block_forward.1} parent=0 // loop_pre_header
    _
  $region3: #{csp_block_forward.1} parent=0 // loop_header
    %s20 = sphi 0, %s24
    %p21 = scmp.ge.s32.totalorder %s20, 4
    %s30 = sphi 0, %s32
    %s33 = sphi 0, %s30
    %s34 = sphi 0, %s33
    %s50 = sphi 0, %s34
    %s54 = sphi 0, %s54
    %s56 = sphi 0, %s54
    %s57 = sphi 0, %s56
    %s71 = sphi 0, %s57
    %s75 = sphi 0, %s75
    %s77 = sphi 0, %s75
    %s78 = sphi 0, %s77
    %s92 = sphi 0, %s78
    %s96 = sphi 0, %s96
    %s98 = sphi 0, %s96
    %s99 = sphi 0, %s98
    %s113 = sphi 0, %s99
    %s117 = sphi 0, %s117
    %s119 = sphi 0, %s117
    %s120 = sphi 0, %s119
    %s134 = sphi 0, %s120
    %s138 = sphi 0, %s138
    %s140 = sphi 0, %s138
    %s141 = sphi 0, %s140
    %s155 = sphi 0, %s141
    %s159 = sphi 0, %s159
    %s161 = sphi 0, %s159
    %s162 = sphi 0, %s161
    %s176 = sphi 0, %s162
    %s180 = sphi 0, %s180
    %s182 = sphi 0, %s180
    %s183 = sphi 0, %s182
    %s197 = sphi 0, %s183
    %s201 = sphi 0, %s201
    %s203 = sphi 0, %s201
    %s204 = sphi 0, %s203
    %s218 = sphi 0, %s204
    %s222 = sphi 0, %s222
    %s224 = sphi 0, %s222
    %s225 = sphi 0, %s224
    %s239 = sphi 0, %s225
    %s243 = sphi 0, %s243
    %s245 = sphi 0, %s243
    %s246 = sphi 0, %s245
    %s260 = sphi 0, %s246
    %s264 = sphi 0, %s264
    %s266 = sphi 0, %s264
    %s267 = sphi 0, %s266
    %s281 = sphi 0, %s267
    %s285 = sphi 0, %s285
    %s287 = sphi 0, %s285
    %s288 = sphi 0, %s287
    %s302 = sphi 0, %s288
    %s306 = sphi 0, %s306
    %s308 = sphi 0, %s306
    %s309 = sphi 0, %s308
    %s323 = sphi 0, %s309
    %s329 = sphi 0, %s331
    %s332 = sphi 0, %s329
    %s333 = sphi 0, %s332
    %s349 = sphi 0, %s333
  $region4: #{csp_block_forward.1} parent=0 // loop_header_branch
    %23 = sbr.rel (%p21) target = $region8
  $region5: #{csp_block_forward.1} parent=0 // loop_body
    %s25 = ssub.s32 %s20, 1
    %s26 = ssub.s32 %s20, 2
    %s27 = sadd.s32 %s20, 1
    %s28 = ssub.s32 %s20, %s27
    %p29 = scmp.eq.s32.totalorder %s28, 0
    %s31 = sadd.s32 %s30, 1
    %s32 = scalar_select %p29, %s30, %s31
    %p35 = pneg %p29
    %p36 = scmp.eq.s32.totalorder %s20, 1
    %p37 = por %p35, %p36
    %p38 = scmp.ne.s32.totalorder %s30, %s33
    %p39 = scmp.eq.s32.totalorder %s20, 0
    %p40 = por %p38, %p39
    %p41 = scmp.ne.s32.totalorder %s30, %s33
    %p42 = scmp.eq.s32.totalorder %s25, 1
    %p43 = por %p41, %p42
    %p44 = scmp.ne.s32.totalorder %s33, %s34
    %p45 = scmp.eq.s32.totalorder %s25, 0
    %p46 = por %p44, %p45
    %p47 = scmp.ne.s32.totalorder %s33, %s34
    %p48 = scmp.eq.s32.totalorder %s26, 1
    %p49 = por %p47, %p48
    %p51 = scmp.ne.s32.totalorder %s34, %s50
    %p52 = scmp.eq.s32.totalorder %s26, 0
    %p53 = por %p51, %p52
    %s55 = sadd.s32 %s54, 1
    %p58 = scmp.eq.s32.totalorder %s20, 1
    %p59 = scmp.ne.s32.totalorder %s54, %s56
    %p60 = scmp.eq.s32.totalorder %s20, 0
    %p61 = por %p59, %p60
    %p62 = scmp.ne.s32.totalorder %s54, %s56
    %p63 = scmp.eq.s32.totalorder %s25, 1
    %p64 = por %p62, %p63
    %p65 = scmp.ne.s32.totalorder %s56, %s57
    %p66 = scmp.eq.s32.totalorder %s25, 0
    %p67 = por %p65, %p66
    %p68 = scmp.ne.s32.totalorder %s56, %s57
    %p69 = scmp.eq.s32.totalorder %s26, 1
    %p70 = por %p68, %p69
    %p72 = scmp.ne.s32.totalorder %s57, %s71
    %p73 = scmp.eq.s32.totalorder %s26, 0
    %p74 = por %p72, %p73
    %s76 = sadd.s32 %s75, 1
    %p79 = scmp.eq.s32.totalorder %s20, 1
    %p80 = scmp.ne.s32.totalorder %s75, %s77
    %p81 = scmp.eq.s32.totalorder %s20, 0
    %p82 = por %p80, %p81
    %p83 = scmp.ne.s32.totalorder %s75, %s77
    %p84 = scmp.eq.s32.totalorder %s25, 1
    %p85 = por %p83, %p84
    %p86 = scmp.ne.s32.totalorder %s77, %s78
    %p87 = scmp.eq.s32.totalorder %s25, 0
    %p88 = por %p86, %p87
    %p89 = scmp.ne.s32.totalorder %s77, %s78
    %p90 = scmp.eq.s32.totalorder %s26, 1
    %p91 = por %p89, %p90
    %p93 = scmp.ne.s32.totalorder %s78, %s92
    %p94 = scmp.eq.s32.totalorder %s26, 0
    %p95 = por %p93, %p94
    %s97 = sadd.s32 %s96, 1
    %p100 = scmp.eq.s32.totalorder %s20, 1
    %p101 = scmp.ne.s32.totalorder %s96, %s98
    %p102 = scmp.eq.s32.totalorder %s20, 0
    %p103 = por %p101, %p102
    %p104 = scmp.ne.s32.totalorder %s96, %s98
    %p105 = scmp.eq.s32.totalorder %s25, 1
    %p106 = por %p104, %p105
    %p107 = scmp.ne.s32.totalorder %s98, %s99
    %p108 = scmp.eq.s32.totalorder %s25, 0
    %p109 = por %p107, %p108
    %p110 = scmp.ne.s32.totalorder %s98, %s99
    %p111 = scmp.eq.s32.totalorder %s26, 1
    %p112 = por %p110, %p111
    %p114 = scmp.ne.s32.totalorder %s99, %s113
    %p115 = scmp.eq.s32.totalorder %s26, 0
    %p116 = por %p114, %p115
    %s118 = sadd.s32 %s117, 1
    %p121 = scmp.eq.s32.totalorder %s20, 1
    %p122 = scmp.ne.s32.totalorder %s117, %s119
    %p123 = scmp.eq.s32.totalorder %s20, 0
    %p124 = por %p122, %p123
    %p125 = scmp.ne.s32.totalorder %s117, %s119
    %p126 = scmp.eq.s32.totalorder %s25, 1
    %p127 = por %p125, %p126
    %p128 = scmp.ne.s32.totalorder %s119, %s120
    %p129 = scmp.eq.s32.totalorder %s25, 0
    %p130 = por %p128, %p129
    %p131 = scmp.ne.s32.totalorder %s119, %s120
    %p132 = scmp.eq.s32.totalorder %s26, 1
    %p133 = por %p131, %p132
    %p135 = scmp.ne.s32.totalorder %s120, %s134
    %p136 = scmp.eq.s32.totalorder %s26, 0
    %p137 = por %p135, %p136
    %s139 = sadd.s32 %s138, 1
    %p142 = scmp.eq.s32.totalorder %s20, 1
    %p143 = scmp.ne.s32.totalorder %s138, %s140
    %p144 = scmp.eq.s32.totalorder %s20, 0
    %p145 = por %p143, %p144
    %p146 = scmp.ne.s32.totalorder %s138, %s140
    %p147 = scmp.eq.s32.totalorder %s25, 1
    %p148 = por %p146, %p147
    %p149 = scmp.ne.s32.totalorder %s140, %s141
    %p150 = scmp.eq.s32.totalorder %s25, 0
    %p151 = por %p149, %p150
    %p152 = scmp.ne.s32.totalorder %s140, %s141
    %p153 = scmp.eq.s32.totalorder %s26, 1
    %p154 = por %p152, %p153
    %p156 = scmp.ne.s32.totalorder %s141, %s155
    %p157 = scmp.eq.s32.totalorder %s26, 0
    %p158 = por %p156, %p157
    %s160 = sadd.s32 %s159, 1
    %p163 = scmp.eq.s32.totalorder %s20, 1
    %p164 = scmp.ne.s32.totalorder %s159, %s161
    %p165 = scmp.eq.s32.totalorder %s20, 0
    %p166 = por %p164, %p165
    %p167 = scmp.ne.s32.totalorder %s159, %s161
    %p168 = scmp.eq.s32.totalorder %s25, 1
    %p169 = por %p167, %p168
    %p170 = scmp.ne.s32.totalorder %s161, %s162
    %p171 = scmp.eq.s32.totalorder %s25, 0
    %p172 = por %p170, %p171
    %p173 = scmp.ne.s32.totalorder %s161, %s162
    %p174 = scmp.eq.s32.totalorder %s26, 1
    %p175 = por %p173, %p174
    %p177 = scmp.ne.s32.totalorder %s162, %s176
    %p178 = scmp.eq.s32.totalorder %s26, 0
    %p179 = por %p177, %p178
    %s181 = sadd.s32 %s180, 1
    %p184 = scmp.eq.s32.totalorder %s20, 1
    %p185 = scmp.ne.s32.totalorder %s180, %s182
    %p186 = scmp.eq.s32.totalorder %s20, 0
    %p187 = por %p185, %p186
    %p188 = scmp.ne.s32.totalorder %s180, %s182
    %p189 = scmp.eq.s32.totalorder %s25, 1
    %p190 = por %p188, %p189
    %p191 = scmp.ne.s32.totalorder %s182, %s183
    %p192 = scmp.eq.s32.totalorder %s25, 0
    %p193 = por %p191, %p192
    %p194 = scmp.ne.s32.totalorder %s182, %s183
    %p195 = scmp.eq.s32.totalorder %s26, 1
    %p196 = por %p194, %p195
    %p198 = scmp.ne.s32.totalorder %s183, %s197
    %p199 = scmp.eq.s32.totalorder %s26, 0
    %p200 = por %p198, %p199
    %s202 = sadd.s32 %s201, 1
    %p205 = scmp.eq.s32.totalorder %s20, 1
    %p206 = scmp.ne.s32.totalorder %s201, %s203
    %p207 = scmp.eq.s32.totalorder %s20, 0
    %p208 = por %p206, %p207
    %p209 = scmp.ne.s32.totalorder %s201, %s203
    %p210 = scmp.eq.s32.totalorder %s25, 1
    %p211 = por %p209, %p210
    %p212 = scmp.ne.s32.totalorder %s203, %s204
    %p213 = scmp.eq.s32.totalorder %s25, 0
    %p214 = por %p212, %p213
    %p215 = scmp.ne.s32.totalorder %s203, %s204
    %p216 = scmp.eq.s32.totalorder %s26, 1
    %p217 = por %p215, %p216
    %p219 = scmp.ne.s32.totalorder %s204, %s218
    %p220 = scmp.eq.s32.totalorder %s26, 0
    %p221 = por %p219, %p220
    %s223 = sadd.s32 %s222, 1
    %p226 = scmp.eq.s32.totalorder %s20, 1
    %p227 = scmp.ne.s32.totalorder %s222, %s224
    %p228 = scmp.eq.s32.totalorder %s20, 0
    %p229 = por %p227, %p228
    %p230 = scmp.ne.s32.totalorder %s222, %s224
    %p231 = scmp.eq.s32.totalorder %s25, 1
    %p232 = por %p230, %p231
    %p233 = scmp.ne.s32.totalorder %s224, %s225
    %p234 = scmp.eq.s32.totalorder %s25, 0
    %p235 = por %p233, %p234
    %p236 = scmp.ne.s32.totalorder %s224, %s225
    %p237 = scmp.eq.s32.totalorder %s26, 1
    %p238 = por %p236, %p237
    %p240 = scmp.ne.s32.totalorder %s225, %s239
    %p241 = scmp.eq.s32.totalorder %s26, 0
    %p242 = por %p240, %p241
    %s244 = sadd.s32 %s243, 1
    %p247 = scmp.eq.s32.totalorder %s20, 1
    %p248 = scmp.ne.s32.totalorder %s243, %s245
    %p249 = scmp.eq.s32.totalorder %s20, 0
    %p250 = por %p248, %p249
    %p251 = scmp.ne.s32.totalorder %s243, %s245
    %p252 = scmp.eq.s32.totalorder %s25, 1
    %p253 = por %p251, %p252
    %p254 = scmp.ne.s32.totalorder %s245, %s246
    %p255 = scmp.eq.s32.totalorder %s25, 0
    %p256 = por %p254, %p255
    %p257 = scmp.ne.s32.totalorder %s245, %s246
    %p258 = scmp.eq.s32.totalorder %s26, 1
    %p259 = por %p257, %p258
    %p261 = scmp.ne.s32.totalorder %s246, %s260
    %p262 = scmp.eq.s32.totalorder %s26, 0
    %p263 = por %p261, %p262
    %s265 = sadd.s32 %s264, 1
    %p268 = scmp.eq.s32.totalorder %s20, 1
    %p269 = scmp.ne.s32.totalorder %s264, %s266
    %p270 = scmp.eq.s32.totalorder %s20, 0
    %p271 = por %p269, %p270
    %p272 = scmp.ne.s32.totalorder %s264, %s266
    %p273 = scmp.eq.s32.totalorder %s25, 1
    %p274 = por %p272, %p273
    %p275 = scmp.ne.s32.totalorder %s266, %s267
    %p276 = scmp.eq.s32.totalorder %s25, 0
    %p277 = por %p275, %p276
    %p278 = scmp.ne.s32.totalorder %s266, %s267
    %p279 = scmp.eq.s32.totalorder %s26, 1
    %p280 = por %p278, %p279
    %p282 = scmp.ne.s32.totalorder %s267, %s281
    %p283 = scmp.eq.s32.totalorder %s26, 0
    %p284 = por %p282, %p283
    %s286 = sadd.s32 %s285, 1
    %p289 = scmp.eq.s32.totalorder %s20, 1
    %p290 = scmp.ne.s32.totalorder %s285, %s287
    %p291 = scmp.eq.s32.totalorder %s20, 0
    %p292 = por %p290, %p291
    %p293 = scmp.ne.s32.totalorder %s285, %s287
    %p294 = scmp.eq.s32.totalorder %s25, 1
    %p295 = por %p293, %p294
    %p296 = scmp.ne.s32.totalorder %s287, %s288
    %p297 = scmp.eq.s32.totalorder %s25, 0
    %p298 = por %p296, %p297
    %p299 = scmp.ne.s32.totalorder %s287, %s288
    %p300 = scmp.eq.s32.totalorder %s26, 1
    %p301 = por %p299, %p300
    %p303 = scmp.ne.s32.totalorder %s288, %s302
    %p304 = scmp.eq.s32.totalorder %s26, 0
    %p305 = por %p303, %p304
    %s307 = sadd.s32 %s306, 1
    %p310 = scmp.eq.s32.totalorder %s20, 1
    %p311 = scmp.ne.s32.totalorder %s306, %s308
    %p312 = scmp.eq.s32.totalorder %s20, 0
    %p313 = por %p311, %p312
    %p314 = scmp.ne.s32.totalorder %s306, %s308
    %p315 = scmp.eq.s32.totalorder %s25, 1
    %p316 = por %p314, %p315
    %p317 = scmp.ne.s32.totalorder %s308, %s309
    %p318 = scmp.eq.s32.totalorder %s25, 0
    %p319 = por %p317, %p318
    %p320 = scmp.ne.s32.totalorder %s308, %s309
    %p321 = scmp.eq.s32.totalorder %s26, 1
    %p322 = por %p320, %p321
    %p324 = scmp.ne.s32.totalorder %s309, %s323
    %p325 = scmp.eq.s32.totalorder %s26, 0
    %p326 = por %p324, %p325
    %s327 = ssub.s32 %s20, %s27
    %p328 = scmp.eq.s32.totalorder %s327, 0
    %s330 = sadd.s32 %s329, 1
    %s331 = scalar_select %p328, %s329, %s330
    %p334 = pneg %p328
    %p335 = scmp.eq.s32.totalorder %s20, 1
    %p336 = por %p334, %p335
    %p337 = scmp.ne.s32.totalorder %s329, %s332
    %p338 = scmp.eq.s32.totalorder %s20, 0
    %p339 = por %p337, %p338
    %p340 = scmp.ne.s32.totalorder %s329, %s332
    %p341 = scmp.eq.s32.totalorder %s25, 1
    %p342 = por %p340, %p341
    %p343 = scmp.ne.s32.totalorder %s332, %s333
    %p344 = scmp.eq.s32.totalorder %s25, 0
    %p345 = por %p343, %p344
    %p346 = scmp.ne.s32.totalorder %s332, %s333
    %p347 = scmp.eq.s32.totalorder %s26, 1
    %p348 = por %p346, %p347
    %p350 = scmp.ne.s32.totalorder %s333, %s349
    %p351 = scmp.eq.s32.totalorder %s26, 0
    %p352 = por %p350, %p351
    %p353 = scmp.le.s32.totalorder 1, %s20
    %p354 = scmp.lt.s32.totalorder %s20, 3
    %p355 = pnand %p353, %p354
    %p356 = pneg %p355
    // Predicated region
    $region9: #{csp_block_forward.1} parent=5 // pred_check
      _
    $region10: #{csp_block_forward.1} parent=5 // pred_check_branch
      %358 = sbr.rel (%p355) target = $region12
    $region11: #{csp_block_forward.1} parent=5 // pred_region
      %s359 = ssub.s32 %s20, 1
      // Predicated region
      $region13: #{csp_block_forward.1} parent=11 // pred_check
        %p360 = pneg %p67
      $region14: #{csp_block_forward.1} parent=11 // pred_check_branch
        %362 = sbr.rel (%p360) target = $region16
      $region15: #{csp_block_forward.1} parent=11 // pred_region
        _
      $region16: #{csp_block_forward.1} parent=11 // pred_fallthru
        _
      // Predicated region
      $region17: #{csp_block_forward.1} parent=11 // pred_check
        %p363 = pneg %p88
      $region18: #{csp_block_forward.1} parent=11 // pred_check_branch
        %365 = sbr.rel (%p363) target = $region20
      $region19: #{csp_block_forward.1} parent=11 // pred_region
        _
      $region20: #{csp_block_forward.1} parent=11 // pred_fallthru
        _
      // Predicated region
      $region21: #{csp_block_forward.1} parent=11 // pred_check
        %p366 = pneg %p109
      $region22: #{csp_block_forward.1} parent=11 // pred_check_branch
        %368 = sbr.rel (%p366) target = $region24
      $region23: #{csp_block_forward.1} parent=11 // pred_region
        _
      $region24: #{csp_block_forward.1} parent=11 // pred_fallthru
        _
      // Predicated region
      $region25: #{csp_block_forward.1} parent=11 // pred_check
        %p369 = pneg %p130
      $region26: #{csp_block_forward.1} parent=11 // pred_check_branch
        %371 = sbr.rel (%p369) target = $region28
      $region27: #{csp_block_forward.1} parent=11 // pred_region
        _
      $region28: #{csp_block_forward.1} parent=11 // pred_fallthru
        _
      // Predicated region
      $region29: #{csp_block_forward.1} parent=11 // pred_check
        %p372 = pneg %p151
      $region30: #{csp_block_forward.1} parent=11 // pred_check_branch
        %374 = sbr.rel (%p372) target = $region32
      $region31: #{csp_block_forward.1} parent=11 // pred_region
        _
      $region32: #{csp_block_forward.1} parent=11 // pred_fallthru
        _
      // Predicated region
      $region33: #{csp_block_forward.1} parent=11 // pred_check
        %p375 = pneg %p172
      $region34: #{csp_block_forward.1} parent=11 // pred_check_branch
        %377 = sbr.rel (%p375) target = $region36
      $region35: #{csp_block_forward.1} parent=11 // pred_region
        _
      $region36: #{csp_block_forward.1} parent=11 // pred_fallthru
        _
      // Predicated region
      $region37: #{csp_block_forward.1} parent=11 // pred_check
        %p378 = pneg %p193
      $region38: #{csp_block_forward.1} parent=11 // pred_check_branch
        %380 = sbr.rel (%p378) target = $region40
      $region39: #{csp_block_forward.1} parent=11 // pred_region
        _
      $region40: #{csp_block_forward.1} parent=11 // pred_fallthru
        _
      // Predicated region
      $region41: #{csp_block_forward.1} parent=11 // pred_check
        %p381 = pneg %p214
      $region42: #{csp_block_forward.1} parent=11 // pred_check_branch
        %383 = sbr.rel (%p381) target = $region44
      $region43: #{csp_block_forward.1} parent=11 // pred_region
        _
      $region44: #{csp_block_forward.1} parent=11 // pred_fallthru
        _
      // Predicated region
      $region45: #{csp_block_forward.1} parent=11 // pred_check
        %p384 = pneg %p235
      $region46: #{csp_block_forward.1} parent=11 // pred_check_branch
        %386 = sbr.rel (%p384) target = $region48
      $region47: #{csp_block_forward.1} parent=11 // pred_region
        _
      $region48: #{csp_block_forward.1} parent=11 // pred_fallthru
        _
      // Predicated region
      $region49: #{csp_block_forward.1} parent=11 // pred_check
        %p387 = pneg %p256
      $region50: #{csp_block_forward.1} parent=11 // pred_check_branch
        %389 = sbr.rel (%p387) target = $region52
      $region51: #{csp_block_forward.1} parent=11 // pred_region
        _
      $region52: #{csp_block_forward.1} parent=11 // pred_fallthru
        _
      // Predicated region
      $region53: #{csp_block_forward.1} parent=11 // pred_check
        %p390 = pneg %p277
      $region54: #{csp_block_forward.1} parent=11 // pred_check_branch
        %392 = sbr.rel (%p390) target = $region56
      $region55: #{csp_block_forward.1} parent=11 // pred_region
        _
      $region56: #{csp_block_forward.1} parent=11 // pred_fallthru
        _
      // Predicated region
      $region57: #{csp_block_forward.1} parent=11 // pred_check
        %p393 = pneg %p298
      $region58: #{csp_block_forward.1} parent=11 // pred_check_branch
        %395 = sbr.rel (%p393) target = $region60
      $region59: #{csp_block_forward.1} parent=11 // pred_region
        _
      $region60: #{csp_block_forward.1} parent=11 // pred_fallthru
        _
      // Predicated region
      $region61: #{csp_block_forward.1} parent=11 // pred_check
        %p396 = pneg %p319
      $region62: #{csp_block_forward.1} parent=11 // pred_check_branch
        %398 = sbr.rel (%p396) target = $region64
      $region63: #{csp_block_forward.1} parent=11 // pred_region
        _
      $region64: #{csp_block_forward.1} parent=11 // pred_fallthru
        _
    $region12: #{csp_block_forward.1} parent=5 // pred_fallthru
      _
    %p399 = scmp.lt.s32.totalorder %s20, 2
    // Predicated region
    $region65: #{csp_block_forward.1} parent=5 // pred_check
      %p400 = pneg %p399
    $region66: #{csp_block_forward.1} parent=5 // pred_check_branch
      %402 = sbr.rel (%p400) target = $region68
    $region67: #{csp_block_forward.1} parent=5 // pred_region
      // Predicated region
      $region69: #{csp_block_forward.1} parent=67 // pred_check
        %p403 = pneg %p40
      $region70: #{csp_block_forward.1} parent=67 // pred_check_branch
        %405 = sbr.rel (%p403) target = $region72
      $region71: #{csp_block_forward.1} parent=67 // pred_region
        %p406 = scmp.lt.s32.totalorder %s20, 1
        %s407 = scalar_select %p406, %s20, 1
        %s408 = smul.addr %s407, 32
        %s409 = smul.addr %s408, 8
        %s410 = scalar_lea.vmem %s0, %s409
      $region72: #{csp_block_forward.1} parent=67 // pred_fallthru
        _
    $region68: #{csp_block_forward.1} parent=5 // pred_fallthru
      _
    %p411 = scmp.le.s32.totalorder 1, %s20
    %p412 = scmp.lt.s32.totalorder %s20, 3
    %p413 = pnand %p411, %p412
    %p414 = pneg %p413
    // Predicated region
    $region73: #{csp_block_forward.1} parent=5 // pred_check
      _
    $region74: #{csp_block_forward.1} parent=5 // pred_check_branch
      %416 = sbr.rel (%p413) target = $region76
    $region75: #{csp_block_forward.1} parent=5 // pred_region
      %s417 = ssub.s32 %s20, 1
      %p418 = scmp.lt.s32.totalorder %s25, 1
      %s419 = scalar_select %p418, %s25, 1
      %s420 = smul.addr %s419, 32
      %s421 = smul.addr %s420, 8
      %s422 = scalar_lea.vmem %s0, %s421
      %p423 = pneg %p46
      %p424 = pneg %p43
      %p425 = pneg %p67
      %p426 = pneg %p64
      %p427 = pneg %p88
      %p428 = pneg %p85
      %p429 = pneg %p109
      %p430 = pneg %p106
      %p431 = pneg %p130
      %p432 = pneg %p127
      %p433 = pneg %p151
      %p434 = pneg %p148
      %p435 = pneg %p172
      %p436 = pneg %p169
      %p437 = pneg %p193
      %p438 = pneg %p190
      %p439 = pneg %p214
      %p440 = pneg %p211
      %p441 = pneg %p235
      %p442 = pneg %p232
      %p443 = pneg %p256
      %p444 = pneg %p253
      %p445 = pneg %p277
      %p446 = pneg %p274
      %p447 = pneg %p298
      %p448 = pneg %p295
      %p449 = pneg %p319
      %p450 = pneg %p316
      %p451 = pneg %p345
      %p452 = pneg %p342
      %p453 = scmp.lt.s32.totalorder %s25, 1
      %s454 = scalar_select %p453, %s25, 1
      %s455 = smul.addr %s454, 32
      %s456 = smul.addr %s455, 8
      %s457 = scalar_lea.vmem %s14, %s456
      %p458 = scmp.lt.s32.totalorder %s25, 1
      %s459 = scalar_select %p458, %s25, 1
      %s460 = smul.addr %s459, 32
      %s461 = smul.addr %s460, 8
      %s462 = scalar_lea.vmem %s0, %s461
      %p463 = scmp.lt.s32.totalorder %s25, 1
      %s464 = scalar_select %p463, %s25, 1
      %s465 = smul.addr %s464, 32
      %s466 = smul.addr %s465, 8
      %s467 = scalar_lea.vmem %s14, %s466
      %v469 = vld [vmem:[%s462] sm:$0xff]
      %v470 = vld [vmem:[%s462 + $0x8] sm:$0xff]
      %v471 = vld [vmem:[%s462 + $0x10] sm:$0xff]
      %v472 = vld [vmem:[%s462 + $0x18] sm:$0xff]
      %v473 = vld [vmem:[%s462 + $0x20] sm:$0xff]
      %v474 = vld [vmem:[%s462 + $0x28] sm:$0xff]
      %v475 = vld [vmem:[%s462 + $0x30] sm:$0xff]
      %v476 = vld [vmem:[%s462 + $0x38] sm:$0xff]
      %v477 = vld [vmem:[%s462 + $0x40] sm:$0xff]
      %v478 = vld [vmem:[%s462 + $0x48] sm:$0xff]
      %v479 = vld [vmem:[%s462 + $0x50] sm:$0xff]
      %v480 = vld [vmem:[%s462 + $0x58] sm:$0xff]
      %v481 = vld [vmem:[%s462 + $0x60] sm:$0xff]
      %v482 = vld [vmem:[%s462 + $0x68] sm:$0xff]
      %v483 = vld [vmem:[%s462 + $0x70] sm:$0xff]
      %v484 = vld [vmem:[%s462 + $0x78] sm:$0xff]
      %v485 = vld [vmem:[%s462 + $0x80] sm:$0xff]
      %v486 = vld [vmem:[%s462 + $0x88] sm:$0xff]
      %v487 = vld [vmem:[%s462 + $0x90] sm:$0xff]
      %v488 = vld [vmem:[%s462 + $0x98] sm:$0xff]
      %v489 = vld [vmem:[%s462 + $0xa0] sm:$0xff]
      %v490 = vld [vmem:[%s462 + $0xa8] sm:$0xff]
      %v491 = vld [vmem:[%s462 + $0xb0] sm:$0xff]
      %v492 = vld [vmem:[%s462 + $0xb8] sm:$0xff]
      %v493 = vld [vmem:[%s462 + $0xc0] sm:$0xff]
      %v494 = vld [vmem:[%s462 + $0xc8] sm:$0xff]
      %v495 = vld [vmem:[%s462 + $0xd0] sm:$0xff]
      %v496 = vld [vmem:[%s462 + $0xd8] sm:$0xff]
      %v497 = vld [vmem:[%s462 + $0xe0] sm:$0xff]
      %v498 = vld [vmem:[%s462 + $0xe8] sm:$0xff]
      %v499 = vld [vmem:[%s462 + $0xf0] sm:$0xff]
      %v500 = vld [vmem:[%s462 + $0xf8] sm:$0xff]
      %v501 = vpack.c.bf16 %v470, %v469
      %v502 = vpack.c.bf16 %v472, %v471
      %v503 = vpack.c.bf16 %v474, %v473
      %v504 = vpack.c.bf16 %v476, %v475
      %v505 = vpack.c.bf16 %v478, %v477
      %v506 = vpack.c.bf16 %v480, %v479
      %v507 = vpack.c.bf16 %v482, %v481
      %v508 = vpack.c.bf16 %v484, %v483
      %v509 = vpack.c.bf16 %v486, %v485
      %v510 = vpack.c.bf16 %v488, %v487
      %v511 = vpack.c.bf16 %v490, %v489
      %v512 = vpack.c.bf16 %v492, %v491
      %v513 = vpack.c.bf16 %v494, %v493
      %v514 = vpack.c.bf16 %v496, %v495
      %v515 = vpack.c.bf16 %v498, %v497
      %v516 = vpack.c.bf16 %v500, %v499
      %v517 = vld [vmem:[%s1] sm:$0xf]
      %v518 = vld [vmem:[%s2] sm:$0x1]
      %v520 = vperm.slane %v518, 0
      %vm522 = vcmask 64512
      %v524 = vsel %vm522, %v501, 0
      %v527 = vsel %vm522, %v502, 0
      %v530 = vsel %vm522, %v503, 0
      %v533 = vsel %vm522, %v504, 0
      %v536 = vsel %vm522, %v505, 0
      %v539 = vsel %vm522, %v506, 0
      %v542 = vsel %vm522, %v507, 0
      %v545 = vsel %vm522, %v508, 0
      %v548 = vsel %vm522, %v509, 0
      %v551 = vsel %vm522, %v510, 0
      %v554 = vsel %vm522, %v511, 0
      %v557 = vsel %vm522, %v512, 0
      %v560 = vsel %vm522, %v513, 0
      %v563 = vsel %vm522, %v514, 0
      %v566 = vsel %vm522, %v515, 0
      %v569 = vsel %vm522, %v516, 0
      %vm571 = vcmask 1043456
      %v573 = vsel %vm571, %v517, 0
      %575 = vmatpush.bf16.msra.mxu0 0
      %576 = vmatpush.bf16.msra.mxu0 0
      %577 = vmatpush.bf16.msra.mxu0 0
      %578 = vmatpush.bf16.msra.mxu0 0
      %579 = vmatpush.bf16.msra.mxu0 0
      %580 = vmatpush.bf16.msra.mxu0 0
      %581 = vmatpush.bf16.msra.mxu0 0
      %582 = vmatpush.bf16.msra.mxu0 %v573
      %583 = vmatmul.bf16.gmra.mxu0 %v524
      %v584 = vpop.f32.mrf.mxu0
      %v585 = vadd.f32 %v520, %v584
      %v586 = vpop.f32.mrf.mxu0
      %v587 = vadd.f32 %v520, %v586
      %588 = vmatmul.bf16.gmra.mxu0 %v527
      %v589 = vpop.f32.mrf.mxu0
      %v590 = vadd.f32 %v520, %v589
      %v591 = vpop.f32.mrf.mxu0
      %v592 = vadd.f32 %v520, %v591
      %593 = vmatmul.bf16.gmra.mxu0 %v530
      %v594 = vpop.f32.mrf.mxu0
      %v595 = vadd.f32 %v520, %v594
      %v596 = vpop.f32.mrf.mxu0
      %v597 = vadd.f32 %v520, %v596
      %598 = vmatmul.bf16.gmra.mxu0 %v533
      %v599 = vpop.f32.mrf.mxu0
      %v600 = vadd.f32 %v520, %v599
      %v601 = vpop.f32.mrf.mxu0
      %v602 = vadd.f32 %v520, %v601
      %603 = vmatmul.bf16.gmra.mxu0 %v536
      %v604 = vpop.f32.mrf.mxu0
      %v605 = vadd.f32 %v520, %v604
      %v606 = vpop.f32.mrf.mxu0
      %v607 = vadd.f32 %v520, %v606
      %608 = vmatmul.bf16.gmra.mxu0 %v539
      %v609 = vpop.f32.mrf.mxu0
      %v610 = vadd.f32 %v520, %v609
      %v611 = vpop.f32.mrf.mxu0
      %v612 = vadd.f32 %v520, %v611
      %613 = vmatmul.bf16.gmra.mxu0 %v542
      %v614 = vpop.f32.mrf.mxu0
      %v615 = vadd.f32 %v520, %v614
      %v616 = vpop.f32.mrf.mxu0
      %v617 = vadd.f32 %v520, %v616
      %618 = vmatmul.bf16.gmra.mxu0 %v545
      %v619 = vpop.f32.mrf.mxu0
      %v620 = vadd.f32 %v520, %v619
      %v621 = vpop.f32.mrf.mxu0
      %v622 = vadd.f32 %v520, %v621
      %623 = vmatmul.bf16.gmra.mxu0 %v548
      %v624 = vpop.f32.mrf.mxu0
      %v625 = vadd.f32 %v520, %v624
      %v626 = vpop.f32.mrf.mxu0
      %v627 = vadd.f32 %v520, %v626
      %628 = vmatmul.bf16.gmra.mxu0 %v551
      %v629 = vpop.f32.mrf.mxu0
      %v630 = vadd.f32 %v520, %v629
      %v631 = vpop.f32.mrf.mxu0
      %v632 = vadd.f32 %v520, %v631
      %633 = vmatmul.bf16.gmra.mxu0 %v554
      %v634 = vpop.f32.mrf.mxu0
      %v635 = vadd.f32 %v520, %v634
      %v636 = vpop.f32.mrf.mxu0
      %v637 = vadd.f32 %v520, %v636
      %638 = vmatmul.bf16.gmra.mxu0 %v557
      %v639 = vpop.f32.mrf.mxu0
      %v640 = vadd.f32 %v520, %v639
      %v641 = vpop.f32.mrf.mxu0
      %v642 = vadd.f32 %v520, %v641
      %643 = vmatmul.bf16.gmra.mxu0 %v560
      %v644 = vpop.f32.mrf.mxu0
      %v645 = vadd.f32 %v520, %v644
      %v646 = vpop.f32.mrf.mxu0
      %v647 = vadd.f32 %v520, %v646
      %648 = vmatmul.bf16.gmra.mxu0 %v563
      %v649 = vpop.f32.mrf.mxu0
      %v650 = vadd.f32 %v520, %v649
      %v651 = vpop.f32.mrf.mxu0
      %v652 = vadd.f32 %v520, %v651
      %653 = vmatmul.bf16.gmra.mxu0 %v566
      %v654 = vpop.f32.mrf.mxu0
      %v655 = vadd.f32 %v520, %v654
      %v656 = vpop.f32.mrf.mxu0
      %v657 = vadd.f32 %v520, %v656
      %658 = vmatmul.bf16.gmra.mxu0 %v569
      %v659 = vpop.f32.mrf.mxu0
      %v660 = vadd.f32 %v520, %v659
      %v661 = vpop.f32.mrf.mxu0
      %v662 = vadd.f32 %v520, %v661
      %663 = vdwg.mxu0
      %v664 = vmin.f32 %v585, 20.0
      %v665 = vmin.f32 %v587, 20.0
      %v666 = vmin.f32 %v590, 20.0
      %v667 = vmin.f32 %v592, 20.0
      %v668 = vmin.f32 %v595, 20.0
      %v669 = vmin.f32 %v597, 20.0
      %v670 = vmin.f32 %v600, 20.0
      %v671 = vmin.f32 %v602, 20.0
      %v672 = vmin.f32 %v605, 20.0
      %v673 = vmin.f32 %v607, 20.0
      %v674 = vmin.f32 %v610, 20.0
      %v675 = vmin.f32 %v612, 20.0
      %v676 = vmin.f32 %v615, 20.0
      %v677 = vmin.f32 %v617, 20.0
      %v678 = vmin.f32 %v620, 20.0
      %v679 = vmin.f32 %v622, 20.0
      %v680 = vmin.f32 %v625, 20.0
      %v681 = vmin.f32 %v627, 20.0
      %v682 = vmin.f32 %v630, 20.0
      %v683 = vmin.f32 %v632, 20.0
      %v684 = vmin.f32 %v635, 20.0
      %v685 = vmin.f32 %v637, 20.0
      %v686 = vmin.f32 %v640, 20.0
      %v687 = vmin.f32 %v642, 20.0
      %v688 = vmin.f32 %v645, 20.0
      %v689 = vmin.f32 %v647, 20.0
      %v690 = vmin.f32 %v650, 20.0
      %v691 = vmin.f32 %v652, 20.0
      %v692 = vmin.f32 %v655, 20.0
      %v693 = vmin.f32 %v657, 20.0
      %v694 = vmin.f32 %v660, 20.0
      %v695 = vmin.f32 %v662, 20.0
      %v696 = vmul.f32 %v664, 1.442695
      %v697 = vpow.pop %v696
      %v698 = vmul.f32 %v665, 1.442695
      %v699 = vpow.pop %v698
      %v700 = vmul.f32 %v666, 1.442695
      %v701 = vpow.pop %v700
      %v702 = vmul.f32 %v667, 1.442695
      %v703 = vpow.pop %v702
      %v704 = vmul.f32 %v668, 1.442695
      %v705 = vpow.pop %v704
      %v706 = vmul.f32 %v669, 1.442695
      %v707 = vpow.pop %v706
      %v708 = vmul.f32 %v670, 1.442695
      %v709 = vpow.pop %v708
      %v710 = vmul.f32 %v671, 1.442695
      %v711 = vpow.pop %v710
      %v712 = vmul.f32 %v672, 1.442695
      %v713 = vpow.pop %v712
      %v714 = vmul.f32 %v673, 1.442695
      %v715 = vpow.pop %v714
      %v716 = vmul.f32 %v674, 1.442695
      %v717 = vpow.pop %v716
      %v718 = vmul.f32 %v675, 1.442695
      %v719 = vpow.pop %v718
      %v720 = vmul.f32 %v676, 1.442695
      %v721 = vpow.pop %v720
      %v722 = vmul.f32 %v677, 1.442695
      %v723 = vpow.pop %v722
      %v724 = vmul.f32 %v678, 1.442695
      %v725 = vpow.pop %v724
      %v726 = vmul.f32 %v679, 1.442695
      %v727 = vpow.pop %v726
      %v728 = vmul.f32 %v680, 1.442695
      %v729 = vpow.pop %v728
      %v730 = vmul.f32 %v681, 1.442695
      %v731 = vpow.pop %v730
      %v732 = vmul.f32 %v682, 1.442695
      %v733 = vpow.pop %v732
      %v734 = vmul.f32 %v683, 1.442695
      %v735 = vpow.pop %v734
      %v736 = vmul.f32 %v684, 1.442695
      %v737 = vpow.pop %v736
      %v738 = vmul.f32 %v685, 1.442695
      %v739 = vpow.pop %v738
      %v740 = vmul.f32 %v686, 1.442695
      %v741 = vpow.pop %v740
      %v742 = vmul.f32 %v687, 1.442695
      %v743 = vpow.pop %v742
      %v744 = vmul.f32 %v688, 1.442695
      %v745 = vpow.pop %v744
      %v746 = vmul.f32 %v689, 1.442695
      %v747 = vpow.pop %v746
      %v748 = vmul.f32 %v690, 1.442695
      %v749 = vpow.pop %v748
      %v750 = vmul.f32 %v691, 1.442695
      %v751 = vpow.pop %v750
      %v752 = vmul.f32 %v692, 1.442695
      %v753 = vpow.pop %v752
      %v754 = vmul.f32 %v693, 1.442695
      %v755 = vpow.pop %v754
      %v756 = vmul.f32 %v694, 1.442695
      %v757 = vpow.pop %v756
      %v758 = vmul.f32 %v695, 1.442695
      %v759 = vpow.pop %v758
      %v760 = vadd.f32 %v697, 1.0
      %v761 = vadd.f32 %v699, 1.0
      %v762 = vadd.f32 %v701, 1.0
      %v763 = vadd.f32 %v703, 1.0
      %v764 = vadd.f32 %v705, 1.0
      %v765 = vadd.f32 %v707, 1.0
      %v766 = vadd.f32 %v709, 1.0
      %v767 = vadd.f32 %v711, 1.0
      %v768 = vadd.f32 %v713, 1.0
      %v769 = vadd.f32 %v715, 1.0
      %v770 = vadd.f32 %v717, 1.0
      %v771 = vadd.f32 %v719, 1.0
      %v772 = vadd.f32 %v721, 1.0
      %v773 = vadd.f32 %v723, 1.0
      %v774 = vadd.f32 %v725, 1.0
      %v775 = vadd.f32 %v727, 1.0
      %v776 = vadd.f32 %v729, 1.0
      %v777 = vadd.f32 %v731, 1.0
      %v778 = vadd.f32 %v733, 1.0
      %v779 = vadd.f32 %v735, 1.0
      %v780 = vadd.f32 %v737, 1.0
      %v781 = vadd.f32 %v739, 1.0
      %v782 = vadd.f32 %v741, 1.0
      %v783 = vadd.f32 %v743, 1.0
      %v784 = vadd.f32 %v745, 1.0
      %v785 = vadd.f32 %v747, 1.0
      %v786 = vadd.f32 %v749, 1.0
      %v787 = vadd.f32 %v751, 1.0
      %v788 = vadd.f32 %v753, 1.0
      %v789 = vadd.f32 %v755, 1.0
      %v790 = vadd.f32 %v757, 1.0
      %v791 = vadd.f32 %v759, 1.0
      %v792 = vmul.f32 %v760, %v760
      %v793 = vmul.f32 %v761, %v761
      %v794 = vmul.f32 %v762, %v762
      %v795 = vmul.f32 %v763, %v763
      %v796 = vmul.f32 %v764, %v764
      %v797 = vmul.f32 %v765, %v765
      %v798 = vmul.f32 %v766, %v766
      %v799 = vmul.f32 %v767, %v767
      %v800 = vmul.f32 %v768, %v768
      %v801 = vmul.f32 %v769, %v769
      %v802 = vmul.f32 %v770, %v770
      %v803 = vmul.f32 %v771, %v771
      %v804 = vmul.f32 %v772, %v772
      %v805 = vmul.f32 %v773, %v773
      %v806 = vmul.f32 %v774, %v774
      %v807 = vmul.f32 %v775, %v775
      %v808 = vmul.f32 %v776, %v776
      %v809 = vmul.f32 %v777, %v777
      %v810 = vmul.f32 %v778, %v778
      %v811 = vmul.f32 %v779, %v779
      %v812 = vmul.f32 %v780, %v780
      %v813 = vmul.f32 %v781, %v781
      %v814 = vmul.f32 %v782, %v782
      %v815 = vmul.f32 %v783, %v783
      %v816 = vmul.f32 %v784, %v784
      %v817 = vmul.f32 %v785, %v785
      %v818 = vmul.f32 %v786, %v786
      %v819 = vmul.f32 %v787, %v787
      %v820 = vmul.f32 %v788, %v788
      %v821 = vmul.f32 %v789, %v789
      %v822 = vmul.f32 %v790, %v790
      %v823 = vmul.f32 %v791, %v791
      %v824 = vadd.f32 %v792, 1.0
      %v825 = vadd.f32 %v793, 1.0
      %v826 = vadd.f32 %v794, 1.0
      %v827 = vadd.f32 %v795, 1.0
      %v828 = vadd.f32 %v796, 1.0
      %v829 = vadd.f32 %v797, 1.0
      %v830 = vadd.f32 %v798, 1.0
      %v831 = vadd.f32 %v799, 1.0
      %v832 = vadd.f32 %v800, 1.0
      %v833 = vadd.f32 %v801, 1.0
      %v834 = vadd.f32 %v802, 1.0
      %v835 = vadd.f32 %v803, 1.0
      %v836 = vadd.f32 %v804, 1.0
      %v837 = vadd.f32 %v805, 1.0
      %v838 = vadd.f32 %v806, 1.0
      %v839 = vadd.f32 %v807, 1.0
      %v840 = vadd.f32 %v808, 1.0
      %v841 = vadd.f32 %v809, 1.0
      %v842 = vadd.f32 %v810, 1.0
      %v843 = vadd.f32 %v811, 1.0
      %v844 = vadd.f32 %v812, 1.0
      %v845 = vadd.f32 %v813, 1.0
      %v846 = vadd.f32 %v814, 1.0
      %v847 = vadd.f32 %v815, 1.0
      %v848 = vadd.f32 %v816, 1.0
      %v849 = vadd.f32 %v817, 1.0
      %v850 = vadd.f32 %v818, 1.0
      %v851 = vadd.f32 %v819, 1.0
      %v852 = vadd.f32 %v820, 1.0
      %v853 = vadd.f32 %v821, 1.0
      %v854 = vadd.f32 %v822, 1.0
      %v855 = vadd.f32 %v823, 1.0
      %v856 = vrcp.pop %v824
      %v857 = vrcp.pop %v825
      %v858 = vrcp.pop %v826
      %v859 = vrcp.pop %v827
      %v860 = vrcp.pop %v828
      %v861 = vrcp.pop %v829
      %v862 = vrcp.pop %v830
      %v863 = vrcp.pop %v831
      %v864 = vrcp.pop %v832
      %v865 = vrcp.pop %v833
      %v866 = vrcp.pop %v834
      %v867 = vrcp.pop %v835
      %v868 = vrcp.pop %v836
      %v869 = vrcp.pop %v837
      %v870 = vrcp.pop %v838
      %v871 = vrcp.pop %v839
      %v872 = vrcp.pop %v840
      %v873 = vrcp.pop %v841
      %v874 = vrcp.pop %v842
      %v875 = vrcp.pop %v843
      %v876 = vrcp.pop %v844
      %v877 = vrcp.pop %v845
      %v878 = vrcp.pop %v846
      %v879 = vrcp.pop %v847
      %v880 = vrcp.pop %v848
      %v881 = vrcp.pop %v849
      %v882 = vrcp.pop %v850
      %v883 = vrcp.pop %v851
      %v884 = vrcp.pop %v852
      %v885 = vrcp.pop %v853
      %v886 = vrcp.pop %v854
      %v887 = vrcp.pop %v855
      %v888 = vmul.f32 %v856, 2.0
      %v889 = vmul.f32 %v857, 2.0
      %v890 = vmul.f32 %v858, 2.0
      %v891 = vmul.f32 %v859, 2.0
      %v892 = vmul.f32 %v860, 2.0
      %v893 = vmul.f32 %v861, 2.0
      %v894 = vmul.f32 %v862, 2.0
      %v895 = vmul.f32 %v863, 2.0
      %v896 = vmul.f32 %v864, 2.0
      %v897 = vmul.f32 %v865, 2.0
      %v898 = vmul.f32 %v866, 2.0
      %v899 = vmul.f32 %v867, 2.0
      %v900 = vmul.f32 %v868, 2.0
      %v901 = vmul.f32 %v869, 2.0
      %v902 = vmul.f32 %v870, 2.0
      %v903 = vmul.f32 %v871, 2.0
      %v904 = vmul.f32 %v872, 2.0
      %v905 = vmul.f32 %v873, 2.0
      %v906 = vmul.f32 %v874, 2.0
      %v907 = vmul.f32 %v875, 2.0
      %v908 = vmul.f32 %v876, 2.0
      %v909 = vmul.f32 %v877, 2.0
      %v910 = vmul.f32 %v878, 2.0
      %v911 = vmul.f32 %v879, 2.0
      %v912 = vmul.f32 %v880, 2.0
      %v913 = vmul.f32 %v881, 2.0
      %v914 = vmul.f32 %v882, 2.0
      %v915 = vmul.f32 %v883, 2.0
      %v916 = vmul.f32 %v884, 2.0
      %v917 = vmul.f32 %v885, 2.0
      %v918 = vmul.f32 %v886, 2.0
      %v919 = vmul.f32 %v887, 2.0
      %v920 = vsub.f32 1.0, %v888
      %v921 = vsub.f32 1.0, %v889
      %v922 = vsub.f32 1.0, %v890
      %v923 = vsub.f32 1.0, %v891
      %v924 = vsub.f32 1.0, %v892
      %v925 = vsub.f32 1.0, %v893
      %v926 = vsub.f32 1.0, %v894
      %v927 = vsub.f32 1.0, %v895
      %v928 = vsub.f32 1.0, %v896
      %v929 = vsub.f32 1.0, %v897
      %v930 = vsub.f32 1.0, %v898
      %v931 = vsub.f32 1.0, %v899
      %v932 = vsub.f32 1.0, %v900
      %v933 = vsub.f32 1.0, %v901
      %v934 = vsub.f32 1.0, %v902
      %v935 = vsub.f32 1.0, %v903
      %v936 = vsub.f32 1.0, %v904
      %v937 = vsub.f32 1.0, %v905
      %v938 = vsub.f32 1.0, %v906
      %v939 = vsub.f32 1.0, %v907
      %v940 = vsub.f32 1.0, %v908
      %v941 = vsub.f32 1.0, %v909
      %v942 = vsub.f32 1.0, %v910
      %v943 = vsub.f32 1.0, %v911
      %v944 = vsub.f32 1.0, %v912
      %v945 = vsub.f32 1.0, %v913
      %v946 = vsub.f32 1.0, %v914
      %v947 = vsub.f32 1.0, %v915
      %v948 = vsub.f32 1.0, %v916
      %v949 = vsub.f32 1.0, %v917
      %v950 = vsub.f32 1.0, %v918
      %v951 = vsub.f32 1.0, %v919
      %v952 = vmul.f32 %v585, %v920
      %v953 = vmul.f32 %v587, %v921
      %v954 = vmul.f32 %v590, %v922
      %v955 = vmul.f32 %v592, %v923
      %v956 = vmul.f32 %v595, %v924
      %v957 = vmul.f32 %v597, %v925
      %v958 = vmul.f32 %v600, %v926
      %v959 = vmul.f32 %v602, %v927
      %v960 = vmul.f32 %v605, %v928
      %v961 = vmul.f32 %v607, %v929
      %v962 = vmul.f32 %v610, %v930
      %v963 = vmul.f32 %v612, %v931
      %v964 = vmul.f32 %v615, %v932
      %v965 = vmul.f32 %v617, %v933
      %v966 = vmul.f32 %v620, %v934
      %v967 = vmul.f32 %v622, %v935
      %v968 = vmul.f32 %v625, %v936
      %v969 = vmul.f32 %v627, %v937
      %v970 = vmul.f32 %v630, %v938
      %v971 = vmul.f32 %v632, %v939
      %v972 = vmul.f32 %v635, %v940
      %v973 = vmul.f32 %v637, %v941
      %v974 = vmul.f32 %v640, %v942
      %v975 = vmul.f32 %v642, %v943
      %v976 = vmul.f32 %v645, %v944
      %v977 = vmul.f32 %v647, %v945
      %v978 = vmul.f32 %v650, %v946
      %v979 = vmul.f32 %v652, %v947
      %v980 = vmul.f32 %v655, %v948
      %v981 = vmul.f32 %v657, %v949
      %v982 = vmul.f32 %v660, %v950
      %v983 = vmul.f32 %v662, %v951
      %vm984 = vcmask 11264
      %985 = vst.msk [vmem:[#allocation2] sm:$0xf] %vm984, 0
      %986 = vst.msk [vmem:[#allocation2 + $0x4] sm:$0xf] %vm984, 0
      %987 = vst.msk [vmem:[#allocation2 + $0x8] sm:$0xf] %vm984, 0
      %988 = vst.msk [vmem:[#allocation2 + $0xc] sm:$0xf] %vm984, 0
      %989 = vst.msk [vmem:[#allocation2 + $0x10] sm:$0xf] %vm984, 0
      %990 = vst.msk [vmem:[#allocation2 + $0x14] sm:$0xf] %vm984, 0
      %991 = vst.msk [vmem:[#allocation2 + $0x18] sm:$0xf] %vm984, 0
      %992 = vst.msk [vmem:[#allocation2 + $0x1c] sm:$0xf] %vm984, 0
      %993 = vst.msk [vmem:[#allocation2 + $0x20] sm:$0xf] %vm984, 0
      %994 = vst.msk [vmem:[#allocation2 + $0x24] sm:$0xf] %vm984, 0
      %995 = vst.msk [vmem:[#allocation2 + $0x28] sm:$0xf] %vm984, 0
      %996 = vst.msk [vmem:[#allocation2 + $0x2c] sm:$0xf] %vm984, 0
      %997 = vst.msk [vmem:[#allocation2 + $0x30] sm:$0xf] %vm984, 0
      %998 = vst.msk [vmem:[#allocation2 + $0x34] sm:$0xf] %vm984, 0
      %999 = vst.msk [vmem:[#allocation2 + $0x38] sm:$0xf] %vm984, 0
      %1000 = vst.msk [vmem:[#allocation2 + $0x3c] sm:$0xf] %vm984, 0
      %1001 = vst.msk [vmem:[#allocation2 + $0x40] sm:$0xf] %vm984, 0
      %1002 = vst.msk [vmem:[#allocation2 + $0x44] sm:$0xf] %vm984, 0
      %1003 = vst.msk [vmem:[#allocation2 + $0x48] sm:$0xf] %vm984, 0
      %1004 = vst.msk [vmem:[#allocation2 + $0x4c] sm:$0xf] %vm984, 0
      %1005 = vst.msk [vmem:[#allocation2 + $0x50] sm:$0xf] %vm984, 0
      %1006 = vst.msk [vmem:[#allocation2 + $0x54] sm:$0xf] %vm984, 0
      %1007 = vst.msk [vmem:[#allocation2 + $0x58] sm:$0xf] %vm984, 0
      %1008 = vst.msk [vmem:[#allocation2 + $0x5c] sm:$0xf] %vm984, 0
      %1009 = vst.msk [vmem:[#allocation2 + $0x60] sm:$0xf] %vm984, 0
      %1010 = vst.msk [vmem:[#allocation2 + $0x64] sm:$0xf] %vm984, 0
      %1011 = vst.msk [vmem:[#allocation2 + $0x68] sm:$0xf] %vm984, 0
      %1012 = vst.msk [vmem:[#allocation2 + $0x6c] sm:$0xf] %vm984, 0
      %1013 = vst.msk [vmem:[#allocation2 + $0x70] sm:$0xf] %vm984, 0
      %1014 = vst.msk [vmem:[#allocation2 + $0x74] sm:$0xf] %vm984, 0
      %1015 = vst.msk [vmem:[#allocation2 + $0x78] sm:$0xf] %vm984, 0
      %1016 = vst.msk [vmem:[#allocation2 + $0x7c] sm:$0xf] %vm984, 0
      %1017 = vst.msk [vmem:[#allocation2 + $0x80] sm:$0xf] %vm984, 0
      %1018 = vst.msk [vmem:[#allocation2 + $0x84] sm:$0xf] %vm984, 0
      %1019 = vst.msk [vmem:[#allocation2 + $0x88] sm:$0xf] %vm984, 0
      %1020 = vst.msk [vmem:[#allocation2 + $0x8c] sm:$0xf] %vm984, 0
      %1021 = vst.msk [vmem:[#allocation2 + $0x90] sm:$0xf] %vm984, 0
      %1022 = vst.msk [vmem:[#allocation2 + $0x94] sm:$0xf] %vm984, 0
      %1023 = vst.msk [vmem:[#allocation2 + $0x98] sm:$0xf] %vm984, 0
      %1024 = vst.msk [vmem:[#allocation2 + $0x9c] sm:$0xf] %vm984, 0
      %1025 = vst.msk [vmem:[#allocation2 + $0xa0] sm:$0xf] %vm984, 0
      %1026 = vst.msk [vmem:[#allocation2 + $0xa4] sm:$0xf] %vm984, 0
      %1027 = vst.msk [vmem:[#allocation2 + $0xa8] sm:$0xf] %vm984, 0
      %1028 = vst.msk [vmem:[#allocation2 + $0xac] sm:$0xf] %vm984, 0
      %1029 = vst.msk [vmem:[#allocation2 + $0xb0] sm:$0xf] %vm984, 0
      %1030 = vst.msk [vmem:[#allocation2 + $0xb4] sm:$0xf] %vm984, 0
      %1031 = vst.msk [vmem:[#allocation2 + $0xb8] sm:$0xf] %vm984, 0
      %1032 = vst.msk [vmem:[#allocation2 + $0xbc] sm:$0xf] %vm984, 0
      %1033 = vst.msk [vmem:[#allocation2 + $0xc0] sm:$0xf] %vm984, 0
      %1034 = vst.msk [vmem:[#allocation2 + $0xc4] sm:$0xf] %vm984, 0
      %1035 = vst.msk [vmem:[#allocation2 + $0xc8] sm:$0xf] %vm984, 0
      %1036 = vst.msk [vmem:[#allocation2 + $0xcc] sm:$0xf] %vm984, 0
      %1037 = vst.msk [vmem:[#allocation2 + $0xd0] sm:$0xf] %vm984, 0
      %1038 = vst.msk [vmem:[#allocation2 + $0xd4] sm:$0xf] %vm984, 0
      %1039 = vst.msk [vmem:[#allocation2 + $0xd8] sm:$0xf] %vm984, 0
      %1040 = vst.msk [vmem:[#allocation2 + $0xdc] sm:$0xf] %vm984, 0
      %1041 = vst.msk [vmem:[#allocation2 + $0xe0] sm:$0xf] %vm984, 0
      %1042 = vst.msk [vmem:[#allocation2 + $0xe4] sm:$0xf] %vm984, 0
      %1043 = vst.msk [vmem:[#allocation2 + $0xe8] sm:$0xf] %vm984, 0
      %1044 = vst.msk [vmem:[#allocation2 + $0xec] sm:$0xf] %vm984, 0
      %1045 = vst.msk [vmem:[#allocation2 + $0xf0] sm:$0xf] %vm984, 0
      %1046 = vst.msk [vmem:[#allocation2 + $0xf4] sm:$0xf] %vm984, 0
      %1047 = vst.msk [vmem:[#allocation2 + $0xf8] sm:$0xf] %vm984, 0
      %1048 = vst.msk [vmem:[#allocation2 + $0xfc] sm:$0xf] %vm984, 0
      %1049 = vst.msk [vmem:[#allocation2 + $0x100] sm:$0xf] %vm984, 0
      %1050 = vst.msk [vmem:[#allocation2 + $0x104] sm:$0xf] %vm984, 0
      %1051 = vst.msk [vmem:[#allocation2 + $0x108] sm:$0xf] %vm984, 0
      %1052 = vst.msk [vmem:[#allocation2 + $0x10c] sm:$0xf] %vm984, 0
      %1053 = vst.msk [vmem:[#allocation2 + $0x110] sm:$0xf] %vm984, 0
      %1054 = vst.msk [vmem:[#allocation2 + $0x114] sm:$0xf] %vm984, 0
      %1055 = vst.msk [vmem:[#allocation2 + $0x118] sm:$0xf] %vm984, 0
      %1056 = vst.msk [vmem:[#allocation2 + $0x11c] sm:$0xf] %vm984, 0
      %v1057 = vpack.c.bf16 %v953, %v952
      %v1058 = vpack.c.bf16 %v955, %v954
      %v1059 = vpack.c.bf16 %v957, %v956
      %v1060 = vpack.c.bf16 %v959, %v958
      %v1061 = vpack.c.bf16 %v961, %v960
      %v1062 = vpack.c.bf16 %v963, %v962
      %v1063 = vpack.c.bf16 %v965, %v964
      %v1064 = vpack.c.bf16 %v967, %v966
      %v1065 = vpack.c.bf16 %v969, %v968
      %v1066 = vpack.c.bf16 %v971, %v970
      %v1067 = vpack.c.bf16 %v973, %v972
      %v1068 = vpack.c.bf16 %v975, %v974
      %v1069 = vpack.c.bf16 %v977, %v976
      %v1070 = vpack.c.bf16 %v979, %v978
      %v1071 = vpack.c.bf16 %v981, %v980
      %v1072 = vpack.c.bf16 %v983, %v982
      %v1073 = vld [vmem:[%s3] sm:$0x3]
      %v1074 = vld [vmem:[%s4] sm:$0x1]
      %v1076 = vperm.slane %v1074, 0
      %vm1078 = vcmask 31744
      %v1080 = vsel %vm1078, %v1057, 0
      %v1083 = vsel %vm1078, %v1058, 0
      %v1086 = vsel %vm1078, %v1059, 0
      %v1089 = vsel %vm1078, %v1060, 0
      %v1092 = vsel %vm1078, %v1061, 0
      %v1095 = vsel %vm1078, %v1062, 0
      %v1098 = vsel %vm1078, %v1063, 0
      %v1101 = vsel %vm1078, %v1064, 0
      %v1104 = vsel %vm1078, %v1065, 0
      %v1107 = vsel %vm1078, %v1066, 0
      %v1110 = vsel %vm1078, %v1067, 0
      %v1113 = vsel %vm1078, %v1068, 0
      %v1116 = vsel %vm1078, %v1069, 0
      %v1119 = vsel %vm1078, %v1070, 0
      %v1122 = vsel %vm1078, %v1071, 0
      %v1125 = vsel %vm1078, %v1072, 0
      %vm1127 = vcmask 1041408
      %v1129 = vsel %vm1127, %v1073, 0
      %1131 = vmatpush.bf16.msra.mxu0 0
      %1132 = vmatpush.bf16.msra.mxu0 0
      %1133 = vmatpush.bf16.msra.mxu0 0
      %1134 = vmatpush.bf16.msra.mxu0 0
      %1135 = vmatpush.bf16.msra.mxu0 0
      %1136 = vmatpush.bf16.msra.mxu0 0
      %1137 = vmatpush.bf16.msra.mxu0 0
      %1138 = vmatpush.bf16.msra.mxu0 %v1129
      %1139 = vmatmul.bf16.gmra.mxu0 %v1080
      %v1140 = vpop.f32.mrf.mxu0
      %v1141 = vadd.f32 %v1076, %v1140
      %v1142 = vpop.f32.mrf.mxu0
      %v1143 = vadd.f32 %v1076, %v1142
      %1144 = vmatmul.bf16.gmra.mxu0 %v1083
      %v1145 = vpop.f32.mrf.mxu0
      %v1146 = vadd.f32 %v1076, %v1145
      %v1147 = vpop.f32.mrf.mxu0
      %v1148 = vadd.f32 %v1076, %v1147
      %1149 = vmatmul.bf16.gmra.mxu0 %v1086
      %v1150 = vpop.f32.mrf.mxu0
      %v1151 = vadd.f32 %v1076, %v1150
      %v1152 = vpop.f32.mrf.mxu0
      %v1153 = vadd.f32 %v1076, %v1152
      %1154 = vmatmul.bf16.gmra.mxu0 %v1089
      %v1155 = vpop.f32.mrf.mxu0
      %v1156 = vadd.f32 %v1076, %v1155
      %v1157 = vpop.f32.mrf.mxu0
      %v1158 = vadd.f32 %v1076, %v1157
      %1159 = vmatmul.bf16.gmra.mxu0 %v1092
      %v1160 = vpop.f32.mrf.mxu0
      %v1161 = vadd.f32 %v1076, %v1160
      %v1162 = vpop.f32.mrf.mxu0
      %v1163 = vadd.f32 %v1076, %v1162
      %1164 = vmatmul.bf16.gmra.mxu0 %v1095
      %v1165 = vpop.f32.mrf.mxu0
      %v1166 = vadd.f32 %v1076, %v1165
      %v1167 = vpop.f32.mrf.mxu0
      %v1168 = vadd.f32 %v1076, %v1167
      %1169 = vmatmul.bf16.gmra.mxu0 %v1098
      %v1170 = vpop.f32.mrf.mxu0
      %v1171 = vadd.f32 %v1076, %v1170
      %v1172 = vpop.f32.mrf.mxu0
      %v1173 = vadd.f32 %v1076, %v1172
      %1174 = vmatmul.bf16.gmra.mxu0 %v1101
      %v1175 = vpop.f32.mrf.mxu0
      %v1176 = vadd.f32 %v1076, %v1175
      %v1177 = vpop.f32.mrf.mxu0
      %v1178 = vadd.f32 %v1076, %v1177
      %1179 = vmatmul.bf16.gmra.mxu0 %v1104
      %v1180 = vpop.f32.mrf.mxu0
      %v1181 = vadd.f32 %v1076, %v1180
      %v1182 = vpop.f32.mrf.mxu0
      %v1183 = vadd.f32 %v1076, %v1182
      %1184 = vmatmul.bf16.gmra.mxu0 %v1107
      %v1185 = vpop.f32.mrf.mxu0
      %v1186 = vadd.f32 %v1076, %v1185
      %v1187 = vpop.f32.mrf.mxu0
      %v1188 = vadd.f32 %v1076, %v1187
      %1189 = vmatmul.bf16.gmra.mxu0 %v1110
      %v1190 = vpop.f32.mrf.mxu0
      %v1191 = vadd.f32 %v1076, %v1190
      %v1192 = vpop.f32.mrf.mxu0
      %v1193 = vadd.f32 %v1076, %v1192
      %1194 = vmatmul.bf16.gmra.mxu0 %v1113
      %v1195 = vpop.f32.mrf.mxu0
      %v1196 = vadd.f32 %v1076, %v1195
      %v1197 = vpop.f32.mrf.mxu0
      %v1198 = vadd.f32 %v1076, %v1197
      %1199 = vmatmul.bf16.gmra.mxu0 %v1116
      %v1200 = vpop.f32.mrf.mxu0
      %v1201 = vadd.f32 %v1076, %v1200
      %v1202 = vpop.f32.mrf.mxu0
      %v1203 = vadd.f32 %v1076, %v1202
      %1204 = vmatmul.bf16.gmra.mxu0 %v1119
      %v1205 = vpop.f32.mrf.mxu0
      %v1206 = vadd.f32 %v1076, %v1205
      %v1207 = vpop.f32.mrf.mxu0
      %v1208 = vadd.f32 %v1076, %v1207
      %1209 = vmatmul.bf16.gmra.mxu0 %v1122
      %v1210 = vpop.f32.mrf.mxu0
      %v1211 = vadd.f32 %v1076, %v1210
      %v1212 = vpop.f32.mrf.mxu0
      %v1213 = vadd.f32 %v1076, %v1212
      %1214 = vmatmul.bf16.gmra.mxu0 %v1125
      %v1215 = vpop.f32.mrf.mxu0
      %v1216 = vadd.f32 %v1076, %v1215
      %v1217 = vpop.f32.mrf.mxu0
      %v1218 = vadd.f32 %v1076, %v1217
      %1219 = vdwg.mxu0
      %v1220 = vmin.f32 %v1141, 20.0
      %v1221 = vmin.f32 %v1143, 20.0
      %v1222 = vmin.f32 %v1146, 20.0
      %v1223 = vmin.f32 %v1148, 20.0
      %v1224 = vmin.f32 %v1151, 20.0
      %v1225 = vmin.f32 %v1153, 20.0
      %v1226 = vmin.f32 %v1156, 20.0
      %v1227 = vmin.f32 %v1158, 20.0
      %v1228 = vmin.f32 %v1161, 20.0
      %v1229 = vmin.f32 %v1163, 20.0
      %v1230 = vmin.f32 %v1166, 20.0
      %v1231 = vmin.f32 %v1168, 20.0
      %v1232 = vmin.f32 %v1171, 20.0
      %v1233 = vmin.f32 %v1173, 20.0
      %v1234 = vmin.f32 %v1176, 20.0
      %v1235 = vmin.f32 %v1178, 20.0
      %v1236 = vmin.f32 %v1181, 20.0
      %v1237 = vmin.f32 %v1183, 20.0
      %v1238 = vmin.f32 %v1186, 20.0
      %v1239 = vmin.f32 %v1188, 20.0
      %v1240 = vmin.f32 %v1191, 20.0
      %v1241 = vmin.f32 %v1193, 20.0
      %v1242 = vmin.f32 %v1196, 20.0
      %v1243 = vmin.f32 %v1198, 20.0
      %v1244 = vmin.f32 %v1201, 20.0
      %v1245 = vmin.f32 %v1203, 20.0
      %v1246 = vmin.f32 %v1206, 20.0
      %v1247 = vmin.f32 %v1208, 20.0
      %v1248 = vmin.f32 %v1211, 20.0
      %v1249 = vmin.f32 %v1213, 20.0
      %v1250 = vmin.f32 %v1216, 20.0
      %v1251 = vmin.f32 %v1218, 20.0
      %v1252 = vmul.f32 %v1220, 1.442695
      %v1253 = vpow.pop %v1252
      %v1254 = vmul.f32 %v1221, 1.442695
      %v1255 = vpow.pop %v1254
      %v1256 = vmul.f32 %v1222, 1.442695
      %v1257 = vpow.pop %v1256
      %v1258 = vmul.f32 %v1223, 1.442695
      %v1259 = vpow.pop %v1258
      %v1260 = vmul.f32 %v1224, 1.442695
      %v1261 = vpow.pop %v1260
      %v1262 = vmul.f32 %v1225, 1.442695
      %v1263 = vpow.pop %v1262
      %v1264 = vmul.f32 %v1226, 1.442695
      %v1265 = vpow.pop %v1264
      %v1266 = vmul.f32 %v1227, 1.442695
      %v1267 = vpow.pop %v1266
      %v1268 = vmul.f32 %v1228, 1.442695
      %v1269 = vpow.pop %v1268
      %v1270 = vmul.f32 %v1229, 1.442695
      %v1271 = vpow.pop %v1270
      %v1272 = vmul.f32 %v1230, 1.442695
      %v1273 = vpow.pop %v1272
      %v1274 = vmul.f32 %v1231, 1.442695
      %v1275 = vpow.pop %v1274
      %v1276 = vmul.f32 %v1232, 1.442695
      %v1277 = vpow.pop %v1276
      %v1278 = vmul.f32 %v1233, 1.442695
      %v1279 = vpow.pop %v1278
      %v1280 = vmul.f32 %v1234, 1.442695
      %v1281 = vpow.pop %v1280
      %v1282 = vmul.f32 %v1235, 1.442695
      %v1283 = vpow.pop %v1282
      %v1284 = vmul.f32 %v1236, 1.442695
      %v1285 = vpow.pop %v1284
      %v1286 = vmul.f32 %v1237, 1.442695
      %v1287 = vpow.pop %v1286
      %v1288 = vmul.f32 %v1238, 1.442695
      %v1289 = vpow.pop %v1288
      %v1290 = vmul.f32 %v1239, 1.442695
      %v1291 = vpow.pop %v1290
      %v1292 = vmul.f32 %v1240, 1.442695
      %v1293 = vpow.pop %v1292
      %v1294 = vmul.f32 %v1241, 1.442695
      %v1295 = vpow.pop %v1294
      %v1296 = vmul.f32 %v1242, 1.442695
      %v1297 = vpow.pop %v1296
      %v1298 = vmul.f32 %v1243, 1.442695
      %v1299 = vpow.pop %v1298
      %v1300 = vmul.f32 %v1244, 1.442695
      %v1301 = vpow.pop %v1300
      %v1302 = vmul.f32 %v1245, 1.442695
      %v1303 = vpow.pop %v1302
      %v1304 = vmul.f32 %v1246, 1.442695
      %v1305 = vpow.pop %v1304
      %v1306 = vmul.f32 %v1247, 1.442695
      %v1307 = vpow.pop %v1306
      %v1308 = vmul.f32 %v1248, 1.442695
      %v1309 = vpow.pop %v1308
      %v1310 = vmul.f32 %v1249, 1.442695
      %v1311 = vpow.pop %v1310
      %v1312 = vmul.f32 %v1250, 1.442695
      %v1313 = vpow.pop %v1312
      %v1314 = vmul.f32 %v1251, 1.442695
      %v1315 = vpow.pop %v1314
      %v1316 = vadd.f32 %v1253, 1.0
      %v1317 = vadd.f32 %v1255, 1.0
      %v1318 = vadd.f32 %v1257, 1.0
      %v1319 = vadd.f32 %v1259, 1.0
      %v1320 = vadd.f32 %v1261, 1.0
      %v1321 = vadd.f32 %v1263, 1.0
      %v1322 = vadd.f32 %v1265, 1.0
      %v1323 = vadd.f32 %v1267, 1.0
      %v1324 = vadd.f32 %v1269, 1.0
      %v1325 = vadd.f32 %v1271, 1.0
      %v1326 = vadd.f32 %v1273, 1.0
      %v1327 = vadd.f32 %v1275, 1.0
      %v1328 = vadd.f32 %v1277, 1.0
      %v1329 = vadd.f32 %v1279, 1.0
      %v1330 = vadd.f32 %v1281, 1.0
      %v1331 = vadd.f32 %v1283, 1.0
      %v1332 = vadd.f32 %v1285, 1.0
      %v1333 = vadd.f32 %v1287, 1.0
      %v1334 = vadd.f32 %v1289, 1.0
      %v1335 = vadd.f32 %v1291, 1.0
      %v1336 = vadd.f32 %v1293, 1.0
      %v1337 = vadd.f32 %v1295, 1.0
      %v1338 = vadd.f32 %v1297, 1.0
      %v1339 = vadd.f32 %v1299, 1.0
      %v1340 = vadd.f32 %v1301, 1.0
      %v1341 = vadd.f32 %v1303, 1.0
      %v1342 = vadd.f32 %v1305, 1.0
      %v1343 = vadd.f32 %v1307, 1.0
      %v1344 = vadd.f32 %v1309, 1.0
      %v1345 = vadd.f32 %v1311, 1.0
      %v1346 = vadd.f32 %v1313, 1.0
      %v1347 = vadd.f32 %v1315, 1.0
      %v1348 = vmul.f32 %v1316, %v1316
      %v1349 = vmul.f32 %v1317, %v1317
      %v1350 = vmul.f32 %v1318, %v1318
      %v1351 = vmul.f32 %v1319, %v1319
      %v1352 = vmul.f32 %v1320, %v1320
      %v1353 = vmul.f32 %v1321, %v1321
      %v1354 = vmul.f32 %v1322, %v1322
      %v1355 = vmul.f32 %v1323, %v1323
      %v1356 = vmul.f32 %v1324, %v1324
      %v1357 = vmul.f32 %v1325, %v1325
      %v1358 = vmul.f32 %v1326, %v1326
      %v1359 = vmul.f32 %v1327, %v1327
      %v1360 = vmul.f32 %v1328, %v1328
      %v1361 = vmul.f32 %v1329, %v1329
      %v1362 = vmul.f32 %v1330, %v1330
      %v1363 = vmul.f32 %v1331, %v1331
      %v1364 = vmul.f32 %v1332, %v1332
      %v1365 = vmul.f32 %v1333, %v1333
      %v1366 = vmul.f32 %v1334, %v1334
      %v1367 = vmul.f32 %v1335, %v1335
      %v1368 = vmul.f32 %v1336, %v1336
      %v1369 = vmul.f32 %v1337, %v1337
      %v1370 = vmul.f32 %v1338, %v1338
      %v1371 = vmul.f32 %v1339, %v1339
      %v1372 = vmul.f32 %v1340, %v1340
      %v1373 = vmul.f32 %v1341, %v1341
      %v1374 = vmul.f32 %v1342, %v1342
      %v1375 = vmul.f32 %v1343, %v1343
      %v1376 = vmul.f32 %v1344, %v1344
      %v1377 = vmul.f32 %v1345, %v1345
      %v1378 = vmul.f32 %v1346, %v1346
      %v1379 = vmul.f32 %v1347, %v1347
      %v1380 = vadd.f32 %v1348, 1.0
      %v1381 = vadd.f32 %v1349, 1.0
      %v1382 = vadd.f32 %v1350, 1.0
      %v1383 = vadd.f32 %v1351, 1.0
      %v1384 = vadd.f32 %v1352, 1.0
      %v1385 = vadd.f32 %v1353, 1.0
      %v1386 = vadd.f32 %v1354, 1.0
      %v1387 = vadd.f32 %v1355, 1.0
      %v1388 = vadd.f32 %v1356, 1.0
      %v1389 = vadd.f32 %v1357, 1.0
      %v1390 = vadd.f32 %v1358, 1.0
      %v1391 = vadd.f32 %v1359, 1.0
      %v1392 = vadd.f32 %v1360, 1.0
      %v1393 = vadd.f32 %v1361, 1.0
      %v1394 = vadd.f32 %v1362, 1.0
      %v1395 = vadd.f32 %v1363, 1.0
      %v1396 = vadd.f32 %v1364, 1.0
      %v1397 = vadd.f32 %v1365, 1.0
      %v1398 = vadd.f32 %v1366, 1.0
      %v1399 = vadd.f32 %v1367, 1.0
      %v1400 = vadd.f32 %v1368, 1.0
      %v1401 = vadd.f32 %v1369, 1.0
      %v1402 = vadd.f32 %v1370, 1.0
      %v1403 = vadd.f32 %v1371, 1.0
      %v1404 = vadd.f32 %v1372, 1.0
      %v1405 = vadd.f32 %v1373, 1.0
      %v1406 = vadd.f32 %v1374, 1.0
      %v1407 = vadd.f32 %v1375, 1.0
      %v1408 = vadd.f32 %v1376, 1.0
      %v1409 = vadd.f32 %v1377, 1.0
      %v1410 = vadd.f32 %v1378, 1.0
      %v1411 = vadd.f32 %v1379, 1.0
      %v1412 = vrcp.pop %v1380
      %v1413 = vrcp.pop %v1381
      %v1414 = vrcp.pop %v1382
      %v1415 = vrcp.pop %v1383
      %v1416 = vrcp.pop %v1384
      %v1417 = vrcp.pop %v1385
      %v1418 = vrcp.pop %v1386
      %v1419 = vrcp.pop %v1387
      %v1420 = vrcp.pop %v1388
      %v1421 = vrcp.pop %v1389
      %v1422 = vrcp.pop %v1390
      %v1423 = vrcp.pop %v1391
      %v1424 = vrcp.pop %v1392
      %v1425 = vrcp.pop %v1393
      %v1426 = vrcp.pop %v1394
      %v1427 = vrcp.pop %v1395
      %v1428 = vrcp.pop %v1396
      %v1429 = vrcp.pop %v1397
      %v1430 = vrcp.pop %v1398
      %v1431 = vrcp.pop %v1399
      %v1432 = vrcp.pop %v1400
      %v1433 = vrcp.pop %v1401
      %v1434 = vrcp.pop %v1402
      %v1435 = vrcp.pop %v1403
      %v1436 = vrcp.pop %v1404
      %v1437 = vrcp.pop %v1405
      %v1438 = vrcp.pop %v1406
      %v1439 = vrcp.pop %v1407
      %v1440 = vrcp.pop %v1408
      %v1441 = vrcp.pop %v1409
      %v1442 = vrcp.pop %v1410
      %v1443 = vrcp.pop %v1411
      %v1444 = vmul.f32 %v1412, 2.0
      %v1445 = vmul.f32 %v1413, 2.0
      %v1446 = vmul.f32 %v1414, 2.0
      %v1447 = vmul.f32 %v1415, 2.0
      %v1448 = vmul.f32 %v1416, 2.0
      %v1449 = vmul.f32 %v1417, 2.0
      %v1450 = vmul.f32 %v1418, 2.0
      %v1451 = vmul.f32 %v1419, 2.0
      %v1452 = vmul.f32 %v1420, 2.0
      %v1453 = vmul.f32 %v1421, 2.0
      %v1454 = vmul.f32 %v1422, 2.0
      %v1455 = vmul.f32 %v1423, 2.0
      %v1456 = vmul.f32 %v1424, 2.0
      %v1457 = vmul.f32 %v1425, 2.0
      %v1458 = vmul.f32 %v1426, 2.0
      %v1459 = vmul.f32 %v1427, 2.0
      %v1460 = vmul.f32 %v1428, 2.0
      %v1461 = vmul.f32 %v1429, 2.0
      %v1462 = vmul.f32 %v1430, 2.0
      %v1463 = vmul.f32 %v1431, 2.0
      %v1464 = vmul.f32 %v1432, 2.0
      %v1465 = vmul.f32 %v1433, 2.0
      %v1466 = vmul.f32 %v1434, 2.0
      %v1467 = vmul.f32 %v1435, 2.0
      %v1468 = vmul.f32 %v1436, 2.0
      %v1469 = vmul.f32 %v1437, 2.0
      %v1470 = vmul.f32 %v1438, 2.0
      %v1471 = vmul.f32 %v1439, 2.0
      %v1472 = vmul.f32 %v1440, 2.0
      %v1473 = vmul.f32 %v1441, 2.0
      %v1474 = vmul.f32 %v1442, 2.0
      %v1475 = vmul.f32 %v1443, 2.0
      %v1476 = vsub.f32 1.0, %v1444
      %v1477 = vsub.f32 1.0, %v1445
      %v1478 = vsub.f32 1.0, %v1446
      %v1479 = vsub.f32 1.0, %v1447
      %v1480 = vsub.f32 1.0, %v1448
      %v1481 = vsub.f32 1.0, %v1449
      %v1482 = vsub.f32 1.0, %v1450
      %v1483 = vsub.f32 1.0, %v1451
      %v1484 = vsub.f32 1.0, %v1452
      %v1485 = vsub.f32 1.0, %v1453
      %v1486 = vsub.f32 1.0, %v1454
      %v1487 = vsub.f32 1.0, %v1455
      %v1488 = vsub.f32 1.0, %v1456
      %v1489 = vsub.f32 1.0, %v1457
      %v1490 = vsub.f32 1.0, %v1458
      %v1491 = vsub.f32 1.0, %v1459
      %v1492 = vsub.f32 1.0, %v1460
      %v1493 = vsub.f32 1.0, %v1461
      %v1494 = vsub.f32 1.0, %v1462
      %v1495 = vsub.f32 1.0, %v1463
      %v1496 = vsub.f32 1.0, %v1464
      %v1497 = vsub.f32 1.0, %v1465
      %v1498 = vsub.f32 1.0, %v1466
      %v1499 = vsub.f32 1.0, %v1467
      %v1500 = vsub.f32 1.0, %v1468
      %v1501 = vsub.f32 1.0, %v1469
      %v1502 = vsub.f32 1.0, %v1470
      %v1503 = vsub.f32 1.0, %v1471
      %v1504 = vsub.f32 1.0, %v1472
      %v1505 = vsub.f32 1.0, %v1473
      %v1506 = vsub.f32 1.0, %v1474
      %v1507 = vsub.f32 1.0, %v1475
      %v1508 = vmul.f32 %v1141, %v1476
      %v1509 = vmul.f32 %v1143, %v1477
      %v1510 = vmul.f32 %v1146, %v1478
      %v1511 = vmul.f32 %v1148, %v1479
      %v1512 = vmul.f32 %v1151, %v1480
      %v1513 = vmul.f32 %v1153, %v1481
      %v1514 = vmul.f32 %v1156, %v1482
      %v1515 = vmul.f32 %v1158, %v1483
      %v1516 = vmul.f32 %v1161, %v1484
      %v1517 = vmul.f32 %v1163, %v1485
      %v1518 = vmul.f32 %v1166, %v1486
      %v1519 = vmul.f32 %v1168, %v1487
      %v1520 = vmul.f32 %v1171, %v1488
      %v1521 = vmul.f32 %v1173, %v1489
      %v1522 = vmul.f32 %v1176, %v1490
      %v1523 = vmul.f32 %v1178, %v1491
      %v1524 = vmul.f32 %v1181, %v1492
      %v1525 = vmul.f32 %v1183, %v1493
      %v1526 = vmul.f32 %v1186, %v1494
      %v1527 = vmul.f32 %v1188, %v1495
      %v1528 = vmul.f32 %v1191, %v1496
      %v1529 = vmul.f32 %v1193, %v1497
      %v1530 = vmul.f32 %v1196, %v1498
      %v1531 = vmul.f32 %v1198, %v1499
      %v1532 = vmul.f32 %v1201, %v1500
      %v1533 = vmul.f32 %v1203, %v1501
      %v1534 = vmul.f32 %v1206, %v1502
      %v1535 = vmul.f32 %v1208, %v1503
      %v1536 = vmul.f32 %v1211, %v1504
      %v1537 = vmul.f32 %v1213, %v1505
      %v1538 = vmul.f32 %v1216, %v1506
      %v1539 = vmul.f32 %v1218, %v1507
      %v1540 = vpack.c.bf16 %v1508, %v1508
      %v1541 = vpack.c.bf16 %v1509, %v1509
      %v1542 = vpack.c.bf16 %v1510, %v1510
      %v1543 = vpack.c.bf16 %v1511, %v1511
      %v1544 = vpack.c.bf16 %v1512, %v1512
      %v1545 = vpack.c.bf16 %v1513, %v1513
      %v1546 = vpack.c.bf16 %v1514, %v1514
      %v1547 = vpack.c.bf16 %v1515, %v1515
      %v1548 = vpack.c.bf16 %v1516, %v1516
      %v1549 = vpack.c.bf16 %v1517, %v1517
      %v1550 = vpack.c.bf16 %v1518, %v1518
      %v1551 = vpack.c.bf16 %v1519, %v1519
      %v1552 = vpack.c.bf16 %v1520, %v1520
      %v1553 = vpack.c.bf16 %v1521, %v1521
      %v1554 = vpack.c.bf16 %v1522, %v1522
      %v1555 = vpack.c.bf16 %v1523, %v1523
      %v1556 = vpack.c.bf16 %v1524, %v1524
      %v1557 = vpack.c.bf16 %v1525, %v1525
      %v1558 = vpack.c.bf16 %v1526, %v1526
      %v1559 = vpack.c.bf16 %v1527, %v1527
      %v1560 = vpack.c.bf16 %v1528, %v1528
      %v1561 = vpack.c.bf16 %v1529, %v1529
      %v1562 = vpack.c.bf16 %v1530, %v1530
      %v1563 = vpack.c.bf16 %v1531, %v1531
      %v1564 = vpack.c.bf16 %v1532, %v1532
      %v1565 = vpack.c.bf16 %v1533, %v1533
      %v1566 = vpack.c.bf16 %v1534, %v1534
      %v1567 = vpack.c.bf16 %v1535, %v1535
      %v1568 = vpack.c.bf16 %v1536, %v1536
      %v1569 = vpack.c.bf16 %v1537, %v1537
      %v1570 = vpack.c.bf16 %v1538, %v1538
      %v1571 = vpack.c.bf16 %v1539, %v1539
      %s1572 = scalar_lea.vmem [#allocation2], 16
      %1573 = vst.msk [vmem:[%s1572 + $0x4] sm:$0xf] %vm984, %v1540
      %1574 = vst.msk [vmem:[%s1572 + $0x8] sm:$0xf] %vm984, %v1541
      %1575 = vst.msk [vmem:[%s1572 + $0x14] sm:$0xf] %vm984, %v1542
      %1576 = vst.msk [vmem:[%s1572 + $0x18] sm:$0xf] %vm984, %v1543
      %1577 = vst.msk [vmem:[%s1572 + $0x24] sm:$0xf] %vm984, %v1544
      %1578 = vst.msk [vmem:[%s1572 + $0x28] sm:$0xf] %vm984, %v1545
      %1579 = vst.msk [vmem:[%s1572 + $0x34] sm:$0xf] %vm984, %v1546
      %1580 = vst.msk [vmem:[%s1572 + $0x38] sm:$0xf] %vm984, %v1547
      %1581 = vst.msk [vmem:[%s1572 + $0x44] sm:$0xf] %vm984, %v1548
      %1582 = vst.msk [vmem:[%s1572 + $0x48] sm:$0xf] %vm984, %v1549
      %1583 = vst.msk [vmem:[%s1572 + $0x54] sm:$0xf] %vm984, %v1550
      %1584 = vst.msk [vmem:[%s1572 + $0x58] sm:$0xf] %vm984, %v1551
      %1585 = vst.msk [vmem:[%s1572 + $0x64] sm:$0xf] %vm984, %v1552
      %1586 = vst.msk [vmem:[%s1572 + $0x68] sm:$0xf] %vm984, %v1553
      %1587 = vst.msk [vmem:[%s1572 + $0x74] sm:$0xf] %vm984, %v1554
      %1588 = vst.msk [vmem:[%s1572 + $0x78] sm:$0xf] %vm984, %v1555
      %1589 = vst.msk [vmem:[%s1572 + $0x84] sm:$0xf] %vm984, %v1556
      %1590 = vst.msk [vmem:[%s1572 + $0x88] sm:$0xf] %vm984, %v1557
      %1591 = vst.msk [vmem:[%s1572 + $0x94] sm:$0xf] %vm984, %v1558
      %1592 = vst.msk [vmem:[%s1572 + $0x98] sm:$0xf] %vm984, %v1559
      %1593 = vst.msk [vmem:[%s1572 + $0xa4] sm:$0xf] %vm984, %v1560
      %1594 = vst.msk [vmem:[%s1572 + $0xa8] sm:$0xf] %vm984, %v1561
      %1595 = vst.msk [vmem:[%s1572 + $0xb4] sm:$0xf] %vm984, %v1562
      %1596 = vst.msk [vmem:[%s1572 + $0xb8] sm:$0xf] %vm984, %v1563
      %1597 = vst.msk [vmem:[%s1572 + $0xc4] sm:$0xf] %vm984, %v1564
      %1598 = vst.msk [vmem:[%s1572 + $0xc8] sm:$0xf] %vm984, %v1565
      %1599 = vst.msk [vmem:[%s1572 + $0xd4] sm:$0xf] %vm984, %v1566
      %1600 = vst.msk [vmem:[%s1572 + $0xd8] sm:$0xf] %vm984, %v1567
      %1601 = vst.msk [vmem:[%s1572 + $0xe4] sm:$0xf] %vm984, %v1568
      %1602 = vst.msk [vmem:[%s1572 + $0xe8] sm:$0xf] %vm984, %v1569
      %1603 = vst.msk [vmem:[%s1572 + $0xf4] sm:$0xf] %vm984, %v1570
      %1604 = vst.msk [vmem:[%s1572 + $0xf8] sm:$0xf] %vm984, %v1571
      %v1605 = vld [vmem:[#allocation2] sm:$0x8]
      %v1606 = vld [vmem:[#allocation2 + $0x4] sm:$0xf]
      %v1607 = vld [vmem:[#allocation2 + $0x8] sm:$0xf]
      %v1608 = vld [vmem:[#allocation2 + $0x10] sm:$0x8]
      %v1609 = vld [vmem:[#allocation2 + $0x14] sm:$0xf]
      %v1610 = vld [vmem:[#allocation2 + $0x18] sm:$0xf]
      %v1611 = vld [vmem:[#allocation2 + $0x20] sm:$0x8]
      %v1612 = vld [vmem:[#allocation2 + $0x24] sm:$0xf]
      %v1613 = vld [vmem:[#allocation2 + $0x28] sm:$0xf]
      %v1614 = vld [vmem:[#allocation2 + $0x30] sm:$0x8]
      %v1615 = vld [vmem:[#allocation2 + $0x34] sm:$0xf]
      %v1616 = vld [vmem:[#allocation2 + $0x38] sm:$0xf]
      %v1617 = vld [vmem:[#allocation2 + $0x40] sm:$0x8]
      %v1618 = vld [vmem:[#allocation2 + $0x44] sm:$0xf]
      %v1619 = vld [vmem:[#allocation2 + $0x48] sm:$0xf]
      %v1620 = vld [vmem:[#allocation2 + $0x50] sm:$0x8]
      %v1621 = vld [vmem:[#allocation2 + $0x54] sm:$0xf]
      %v1622 = vld [vmem:[#allocation2 + $0x58] sm:$0xf]
      %v1623 = vld [vmem:[#allocation2 + $0x60] sm:$0x8]
      %v1624 = vld [vmem:[#allocation2 + $0x64] sm:$0xf]
      %v1625 = vld [vmem:[#allocation2 + $0x68] sm:$0xf]
      %v1626 = vld [vmem:[#allocation2 + $0x70] sm:$0x8]
      %v1627 = vld [vmem:[#allocation2 + $0x74] sm:$0xf]
      %v1628 = vld [vmem:[#allocation2 + $0x78] sm:$0xf]
      %v1629 = vld [vmem:[#allocation2 + $0x80] sm:$0x8]
      %v1630 = vld [vmem:[#allocation2 + $0x84] sm:$0xf]
      %v1631 = vld [vmem:[#allocation2 + $0x88] sm:$0xf]
      %v1632 = vld [vmem:[#allocation2 + $0x90] sm:$0x8]
      %v1633 = vld [vmem:[#allocation2 + $0x94] sm:$0xf]
      %v1634 = vld [vmem:[#allocation2 + $0x98] sm:$0xf]
      %v1635 = vld [vmem:[#allocation2 + $0xa0] sm:$0x8]
      %v1636 = vld [vmem:[#allocation2 + $0xa4] sm:$0xf]
      %v1637 = vld [vmem:[#allocation2 + $0xa8] sm:$0xf]
      %v1638 = vld [vmem:[#allocation2 + $0xb0] sm:$0x8]
      %v1639 = vld [vmem:[#allocation2 + $0xb4] sm:$0xf]
      %v1640 = vld [vmem:[#allocation2 + $0xb8] sm:$0xf]
      %v1641 = vld [vmem:[#allocation2 + $0xc0] sm:$0x8]
      %v1642 = vld [vmem:[#allocation2 + $0xc4] sm:$0xf]
      %v1643 = vld [vmem:[#allocation2 + $0xc8] sm:$0xf]
      %v1644 = vld [vmem:[#allocation2 + $0xd0] sm:$0x8]
      %v1645 = vld [vmem:[#allocation2 + $0xd4] sm:$0xf]
      %v1646 = vld [vmem:[#allocation2 + $0xd8] sm:$0xf]
      %v1647 = vld [vmem:[#allocation2 + $0xe0] sm:$0x8]
      %v1648 = vld [vmem:[#allocation2 + $0xe4] sm:$0xf]
      %v1649 = vld [vmem:[#allocation2 + $0xe8] sm:$0xf]
      %v1650 = vld [vmem:[#allocation2 + $0xf0] sm:$0x8]
      %v1651 = vld [vmem:[#allocation2 + $0xf4] sm:$0xf]
      %v1652 = vld [vmem:[#allocation2 + $0xf8] sm:$0xf]
      %vm1653 = vsmask.f32 256
      %vm1654 = vsmask.f32 4368
      %vm1655 = vmor %vm1653, %vm1654
      %v1657 = vshrl.u32 %v1605, 16
      %v1659 = vrot.slane %v1657, 7
      %v1660 = vrot.slane %v1659, 4
      %v1662 = vshrl.u32 %v1606, 16
      %v1664 = vrot.slane %v1662, 7
      %v1665 = vshll.u32 %v1606, 16
      %v1667 = vor.u32 %v1664, %v1665
      %v1668 = vsel %vm1655, %v1660, %v1667
      %v1669 = vrot.slane %v1664, 4
      %v1671 = vshrl.u32 %v1607, 16
      %v1673 = vrot.slane %v1671, 7
      %v1674 = vshll.u32 %v1607, 16
      %v1676 = vor.u32 %v1673, %v1674
      %v1677 = vsel %vm1655, %v1669, %v1676
      %v1679 = vshrl.u32 %v1608, 16
      %v1681 = vrot.slane %v1679, 7
      %v1682 = vrot.slane %v1681, 4
      %v1684 = vshrl.u32 %v1609, 16
      %v1686 = vrot.slane %v1684, 7
      %v1687 = vshll.u32 %v1609, 16
      %v1689 = vor.u32 %v1686, %v1687
      %v1690 = vsel %vm1655, %v1682, %v1689
      %v1691 = vrot.slane %v1686, 4
      %v1693 = vshrl.u32 %v1610, 16
      %v1695 = vrot.slane %v1693, 7
      %v1696 = vshll.u32 %v1610, 16
      %v1698 = vor.u32 %v1695, %v1696
      %v1699 = vsel %vm1655, %v1691, %v1698
      %v1701 = vshrl.u32 %v1611, 16
      %v1703 = vrot.slane %v1701, 7
      %v1704 = vrot.slane %v1703, 4
      %v1706 = vshrl.u32 %v1612, 16
      %v1708 = vrot.slane %v1706, 7
      %v1709 = vshll.u32 %v1612, 16
      %v1711 = vor.u32 %v1708, %v1709
      %v1712 = vsel %vm1655, %v1704, %v1711
      %v1713 = vrot.slane %v1708, 4
      %v1715 = vshrl.u32 %v1613, 16
      %v1717 = vrot.slane %v1715, 7
      %v1718 = vshll.u32 %v1613, 16
      %v1720 = vor.u32 %v1717, %v1718
      %v1721 = vsel %vm1655, %v1713, %v1720
      %v1723 = vshrl.u32 %v1614, 16
      %v1725 = vrot.slane %v1723, 7
      %v1726 = vrot.slane %v1725, 4
      %v1728 = vshrl.u32 %v1615, 16
      %v1730 = vrot.slane %v1728, 7
      %v1731 = vshll.u32 %v1615, 16
      %v1733 = vor.u32 %v1730, %v1731
      %v1734 = vsel %vm1655, %v1726, %v1733
      %v1735 = vrot.slane %v1730, 4
      %v1737 = vshrl.u32 %v1616, 16
      %v1739 = vrot.slane %v1737, 7
      %v1740 = vshll.u32 %v1616, 16
      %v1742 = vor.u32 %v1739, %v1740
      %v1743 = vsel %vm1655, %v1735, %v1742
      %v1745 = vshrl.u32 %v1617, 16
      %v1747 = vrot.slane %v1745, 7
      %v1748 = vrot.slane %v1747, 4
      %v1750 = vshrl.u32 %v1618, 16
      %v1752 = vrot.slane %v1750, 7
      %v1753 = vshll.u32 %v1618, 16
      %v1755 = vor.u32 %v1752, %v1753
      %v1756 = vsel %vm1655, %v1748, %v1755
      %v1757 = vrot.slane %v1752, 4
      %v1759 = vshrl.u32 %v1619, 16
      %v1761 = vrot.slane %v1759, 7
      %v1762 = vshll.u32 %v1619, 16
      %v1764 = vor.u32 %v1761, %v1762
      %v1765 = vsel %vm1655, %v1757, %v1764
      %v1767 = vshrl.u32 %v1620, 16
      %v1769 = vrot.slane %v1767, 7
      %v1770 = vrot.slane %v1769, 4
      %v1772 = vshrl.u32 %v1621, 16
      %v1774 = vrot.slane %v1772, 7
      %v1775 = vshll.u32 %v1621, 16
      %v1777 = vor.u32 %v1774, %v1775
      %v1778 = vsel %vm1655, %v1770, %v1777
      %v1779 = vrot.slane %v1774, 4
      %v1781 = vshrl.u32 %v1622, 16
      %v1783 = vrot.slane %v1781, 7
      %v1784 = vshll.u32 %v1622, 16
      %v1786 = vor.u32 %v1783, %v1784
      %v1787 = vsel %vm1655, %v1779, %v1786
      %v1789 = vshrl.u32 %v1623, 16
      %v1791 = vrot.slane %v1789, 7
      %v1792 = vrot.slane %v1791, 4
      %v1794 = vshrl.u32 %v1624, 16
      %v1796 = vrot.slane %v1794, 7
      %v1797 = vshll.u32 %v1624, 16
      %v1799 = vor.u32 %v1796, %v1797
      %v1800 = vsel %vm1655, %v1792, %v1799
      %v1801 = vrot.slane %v1796, 4
      %v1803 = vshrl.u32 %v1625, 16
      %v1805 = vrot.slane %v1803, 7
      %v1806 = vshll.u32 %v1625, 16
      %v1808 = vor.u32 %v1805, %v1806
      %v1809 = vsel %vm1655, %v1801, %v1808
      %v1811 = vshrl.u32 %v1626, 16
      %v1813 = vrot.slane %v1811, 7
      %v1814 = vrot.slane %v1813, 4
      %v1816 = vshrl.u32 %v1627, 16
      %v1818 = vrot.slane %v1816, 7
      %v1819 = vshll.u32 %v1627, 16
      %v1821 = vor.u32 %v1818, %v1819
      %v1822 = vsel %vm1655, %v1814, %v1821
      %v1823 = vrot.slane %v1818, 4
      %v1825 = vshrl.u32 %v1628, 16
      %v1827 = vrot.slane %v1825, 7
      %v1828 = vshll.u32 %v1628, 16
      %v1830 = vor.u32 %v1827, %v1828
      %v1831 = vsel %vm1655, %v1823, %v1830
      %v1833 = vshrl.u32 %v1629, 16
      %v1835 = vrot.slane %v1833, 7
      %v1836 = vrot.slane %v1835, 4
      %v1838 = vshrl.u32 %v1630, 16
      %v1840 = vrot.slane %v1838, 7
      %v1841 = vshll.u32 %v1630, 16
      %v1843 = vor.u32 %v1840, %v1841
      %v1844 = vsel %vm1655, %v1836, %v1843
      %v1845 = vrot.slane %v1840, 4
      %v1847 = vshrl.u32 %v1631, 16
      %v1849 = vrot.slane %v1847, 7
      %v1850 = vshll.u32 %v1631, 16
      %v1852 = vor.u32 %v1849, %v1850
      %v1853 = vsel %vm1655, %v1845, %v1852
      %v1855 = vshrl.u32 %v1632, 16
      %v1857 = vrot.slane %v1855, 7
      %v1858 = vrot.slane %v1857, 4
      %v1860 = vshrl.u32 %v1633, 16
      %v1862 = vrot.slane %v1860, 7
      %v1863 = vshll.u32 %v1633, 16
      %v1865 = vor.u32 %v1862, %v1863
      %v1866 = vsel %vm1655, %v1858, %v1865
      %v1867 = vrot.slane %v1862, 4
      %v1869 = vshrl.u32 %v1634, 16
      %v1871 = vrot.slane %v1869, 7
      %v1872 = vshll.u32 %v1634, 16
      %v1874 = vor.u32 %v1871, %v1872
      %v1875 = vsel %vm1655, %v1867, %v1874
      %v1877 = vshrl.u32 %v1635, 16
      %v1879 = vrot.slane %v1877, 7
      %v1880 = vrot.slane %v1879, 4
      %v1882 = vshrl.u32 %v1636, 16
      %v1884 = vrot.slane %v1882, 7
      %v1885 = vshll.u32 %v1636, 16
      %v1887 = vor.u32 %v1884, %v1885
      %v1888 = vsel %vm1655, %v1880, %v1887
      %v1889 = vrot.slane %v1884, 4
      %v1891 = vshrl.u32 %v1637, 16
      %v1893 = vrot.slane %v1891, 7
      %v1894 = vshll.u32 %v1637, 16
      %v1896 = vor.u32 %v1893, %v1894
      %v1897 = vsel %vm1655, %v1889, %v1896
      %v1899 = vshrl.u32 %v1638, 16
      %v1901 = vrot.slane %v1899, 7
      %v1902 = vrot.slane %v1901, 4
      %v1904 = vshrl.u32 %v1639, 16
      %v1906 = vrot.slane %v1904, 7
      %v1907 = vshll.u32 %v1639, 16
      %v1909 = vor.u32 %v1906, %v1907
      %v1910 = vsel %vm1655, %v1902, %v1909
      %v1911 = vrot.slane %v1906, 4
      %v1913 = vshrl.u32 %v1640, 16
      %v1915 = vrot.slane %v1913, 7
      %v1916 = vshll.u32 %v1640, 16
      %v1918 = vor.u32 %v1915, %v1916
      %v1919 = vsel %vm1655, %v1911, %v1918
      %v1921 = vshrl.u32 %v1641, 16
      %v1923 = vrot.slane %v1921, 7
      %v1924 = vrot.slane %v1923, 4
      %v1926 = vshrl.u32 %v1642, 16
      %v1928 = vrot.slane %v1926, 7
      %v1929 = vshll.u32 %v1642, 16
      %v1931 = vor.u32 %v1928, %v1929
      %v1932 = vsel %vm1655, %v1924, %v1931
      %v1933 = vrot.slane %v1928, 4
      %v1935 = vshrl.u32 %v1643, 16
      %v1937 = vrot.slane %v1935, 7
      %v1938 = vshll.u32 %v1643, 16
      %v1940 = vor.u32 %v1937, %v1938
      %v1941 = vsel %vm1655, %v1933, %v1940
      %v1943 = vshrl.u32 %v1644, 16
      %v1945 = vrot.slane %v1943, 7
      %v1946 = vrot.slane %v1945, 4
      %v1948 = vshrl.u32 %v1645, 16
      %v1950 = vrot.slane %v1948, 7
      %v1951 = vshll.u32 %v1645, 16
      %v1953 = vor.u32 %v1950, %v1951
      %v1954 = vsel %vm1655, %v1946, %v1953
      %v1955 = vrot.slane %v1950, 4
      %v1957 = vshrl.u32 %v1646, 16
      %v1959 = vrot.slane %v1957, 7
      %v1960 = vshll.u32 %v1646, 16
      %v1962 = vor.u32 %v1959, %v1960
      %v1963 = vsel %vm1655, %v1955, %v1962
      %v1965 = vshrl.u32 %v1647, 16
      %v1967 = vrot.slane %v1965, 7
      %v1968 = vrot.slane %v1967, 4
      %v1970 = vshrl.u32 %v1648, 16
      %v1972 = vrot.slane %v1970, 7
      %v1973 = vshll.u32 %v1648, 16
      %v1975 = vor.u32 %v1972, %v1973
      %v1976 = vsel %vm1655, %v1968, %v1975
      %v1977 = vrot.slane %v1972, 4
      %v1979 = vshrl.u32 %v1649, 16
      %v1981 = vrot.slane %v1979, 7
      %v1982 = vshll.u32 %v1649, 16
      %v1984 = vor.u32 %v1981, %v1982
      %v1985 = vsel %vm1655, %v1977, %v1984
      %v1987 = vshrl.u32 %v1650, 16
      %v1989 = vrot.slane %v1987, 7
      %v1990 = vrot.slane %v1989, 4
      %v1992 = vshrl.u32 %v1651, 16
      %v1994 = vrot.slane %v1992, 7
      %v1995 = vshll.u32 %v1651, 16
      %v1997 = vor.u32 %v1994, %v1995
      %v1998 = vsel %vm1655, %v1990, %v1997
      %v1999 = vrot.slane %v1994, 4
      %v2001 = vshrl.u32 %v1652, 16
      %v2003 = vrot.slane %v2001, 7
      %v2004 = vshll.u32 %v1652, 16
      %v2006 = vor.u32 %v2003, %v2004
      %v2007 = vsel %vm1655, %v1999, %v2006
      %v2008 = vld [vmem:[%s5] sm:$0x1]
      %s2009 = scalar_lea.vmem %s5, 1
      %v2010 = vld [vmem:[%s2009] sm:$0x1]
      %v2043 = vunpack.c.l.b16 %v1606
      %v2044 = vunpack.c.l.b16 %v1607
      %v2045 = vunpack.c.l.b16 %v1609
      %v2046 = vunpack.c.l.b16 %v1610
      %v2047 = vunpack.c.l.b16 %v1612
      %v2048 = vunpack.c.l.b16 %v1613
      %v2049 = vunpack.c.l.b16 %v1615
      %v2050 = vunpack.c.l.b16 %v1616
      %v2051 = vunpack.c.l.b16 %v1618
      %v2052 = vunpack.c.l.b16 %v1619
      %v2053 = vunpack.c.l.b16 %v1621
      %v2054 = vunpack.c.l.b16 %v1622
      %v2055 = vunpack.c.l.b16 %v1624
      %v2056 = vunpack.c.l.b16 %v1625
      %v2057 = vunpack.c.l.b16 %v1627
      %v2058 = vunpack.c.l.b16 %v1628
      %v2059 = vunpack.c.l.b16 %v1630
      %v2060 = vunpack.c.l.b16 %v1631
      %v2061 = vunpack.c.l.b16 %v1633
      %v2062 = vunpack.c.l.b16 %v1634
      %v2063 = vunpack.c.l.b16 %v1636
      %v2064 = vunpack.c.l.b16 %v1637
      %v2065 = vunpack.c.l.b16 %v1639
      %v2066 = vunpack.c.l.b16 %v1640
      %v2067 = vunpack.c.l.b16 %v1642
      %v2068 = vunpack.c.l.b16 %v1643
      %v2069 = vunpack.c.l.b16 %v1645
      %v2070 = vunpack.c.l.b16 %v1646
      %v2071 = vunpack.c.l.b16 %v1648
      %v2072 = vunpack.c.l.b16 %v1649
      %v2073 = vunpack.c.l.b16 %v1651
      %v2074 = vunpack.c.l.b16 %v1652
      %v2075 = vpack.c.b16 %v2044, %v2043
      %v2076 = vpack.c.b16 %v2046, %v2045
      %v2077 = vpack.c.b16 %v2048, %v2047
      %v2078 = vpack.c.b16 %v2050, %v2049
      %v2079 = vpack.c.b16 %v2052, %v2051
      %v2080 = vpack.c.b16 %v2054, %v2053
      %v2081 = vpack.c.b16 %v2056, %v2055
      %v2082 = vpack.c.b16 %v2058, %v2057
      %v2083 = vpack.c.b16 %v2060, %v2059
      %v2084 = vpack.c.b16 %v2062, %v2061
      %v2085 = vpack.c.b16 %v2064, %v2063
      %v2086 = vpack.c.b16 %v2066, %v2065
      %v2087 = vpack.c.b16 %v2068, %v2067
      %v2088 = vpack.c.b16 %v2070, %v2069
      %v2089 = vpack.c.b16 %v2072, %v2071
      %v2090 = vpack.c.b16 %v2074, %v2073
      %vm2091 = vcmask 15360
      %v2093 = vsel %vm2091, %v2075, 0
      %v2096 = vsel %vm2091, %v2076, 0
      %v2099 = vsel %vm2091, %v2077, 0
      %v2102 = vsel %vm2091, %v2078, 0
      %v2105 = vsel %vm2091, %v2079, 0
      %v2108 = vsel %vm2091, %v2080, 0
      %v2111 = vsel %vm2091, %v2081, 0
      %v2114 = vsel %vm2091, %v2082, 0
      %v2117 = vsel %vm2091, %v2083, 0
      %v2120 = vsel %vm2091, %v2084, 0
      %v2123 = vsel %vm2091, %v2085, 0
      %v2126 = vsel %vm2091, %v2086, 0
      %v2129 = vsel %vm2091, %v2087, 0
      %v2132 = vsel %vm2091, %v2088, 0
      %v2135 = vsel %vm2091, %v2089, 0
      %v2138 = vsel %vm2091, %v2090, 0
      %vm2140 = vcmask 1040384
      %v2142 = vsel %vm2140, %v2010, 0
      %2144 = vmatpush.bf16.msra.mxu0 0
      %2145 = vmatpush.bf16.msra.mxu0 0
      %2146 = vmatpush.bf16.msra.mxu0 0
      %2147 = vmatpush.bf16.msra.mxu0 0
      %2148 = vmatpush.bf16.msra.mxu0 0
      %2149 = vmatpush.bf16.msra.mxu0 0
      %2150 = vmatpush.bf16.msra.mxu0 0
      %2151 = vmatpush.bf16.msra.mxu0 %v2142
      %2152 = vmatmul.bf16.gmra.mxu0 %v2093
      %v2153 = vpop.f32.mrf.mxu0
      %v2154 = vadd.f32 0.0, %v2153
      %v2155 = vpop.f32.mrf.mxu0
      %v2156 = vadd.f32 0.0, %v2155
      %2157 = vmatmul.bf16.gmra.mxu0 %v2096
      %v2158 = vpop.f32.mrf.mxu0
      %v2159 = vadd.f32 0.0, %v2158
      %v2160 = vpop.f32.mrf.mxu0
      %v2161 = vadd.f32 0.0, %v2160
      %2162 = vmatmul.bf16.gmra.mxu0 %v2099
      %v2163 = vpop.f32.mrf.mxu0
      %v2164 = vadd.f32 0.0, %v2163
      %v2165 = vpop.f32.mrf.mxu0
      %v2166 = vadd.f32 0.0, %v2165
      %2167 = vmatmul.bf16.gmra.mxu0 %v2102
      %v2168 = vpop.f32.mrf.mxu0
      %v2169 = vadd.f32 0.0, %v2168
      %v2170 = vpop.f32.mrf.mxu0
      %v2171 = vadd.f32 0.0, %v2170
      %2172 = vmatmul.bf16.gmra.mxu0 %v2105
      %v2173 = vpop.f32.mrf.mxu0
      %v2174 = vadd.f32 0.0, %v2173
      %v2175 = vpop.f32.mrf.mxu0
      %v2176 = vadd.f32 0.0, %v2175
      %2177 = vmatmul.bf16.gmra.mxu0 %v2108
      %v2178 = vpop.f32.mrf.mxu0
      %v2179 = vadd.f32 0.0, %v2178
      %v2180 = vpop.f32.mrf.mxu0
      %v2181 = vadd.f32 0.0, %v2180
      %2182 = vmatmul.bf16.gmra.mxu0 %v2111
      %v2183 = vpop.f32.mrf.mxu0
      %v2184 = vadd.f32 0.0, %v2183
      %v2185 = vpop.f32.mrf.mxu0
      %v2186 = vadd.f32 0.0, %v2185
      %2187 = vmatmul.bf16.gmra.mxu0 %v2114
      %v2188 = vpop.f32.mrf.mxu0
      %v2189 = vadd.f32 0.0, %v2188
      %v2190 = vpop.f32.mrf.mxu0
      %v2191 = vadd.f32 0.0, %v2190
      %2192 = vmatmul.bf16.gmra.mxu0 %v2117
      %v2193 = vpop.f32.mrf.mxu0
      %v2194 = vadd.f32 0.0, %v2193
      %v2195 = vpop.f32.mrf.mxu0
      %v2196 = vadd.f32 0.0, %v2195
      %2197 = vmatmul.bf16.gmra.mxu0 %v2120
      %v2198 = vpop.f32.mrf.mxu0
      %v2199 = vadd.f32 0.0, %v2198
      %v2200 = vpop.f32.mrf.mxu0
      %v2201 = vadd.f32 0.0, %v2200
      %2202 = vmatmul.bf16.gmra.mxu0 %v2123
      %v2203 = vpop.f32.mrf.mxu0
      %v2204 = vadd.f32 0.0, %v2203
      %v2205 = vpop.f32.mrf.mxu0
      %v2206 = vadd.f32 0.0, %v2205
      %2207 = vmatmul.bf16.gmra.mxu0 %v2126
      %v2208 = vpop.f32.mrf.mxu0
      %v2209 = vadd.f32 0.0, %v2208
      %v2210 = vpop.f32.mrf.mxu0
      %v2211 = vadd.f32 0.0, %v2210
      %2212 = vmatmul.bf16.gmra.mxu0 %v2129
      %v2213 = vpop.f32.mrf.mxu0
      %v2214 = vadd.f32 0.0, %v2213
      %v2215 = vpop.f32.mrf.mxu0
      %v2216 = vadd.f32 0.0, %v2215
      %2217 = vmatmul.bf16.gmra.mxu0 %v2132
      %v2218 = vpop.f32.mrf.mxu0
      %v2219 = vadd.f32 0.0, %v2218
      %v2220 = vpop.f32.mrf.mxu0
      %v2221 = vadd.f32 0.0, %v2220
      %2222 = vmatmul.bf16.gmra.mxu0 %v2135
      %v2223 = vpop.f32.mrf.mxu0
      %v2224 = vadd.f32 0.0, %v2223
      %v2225 = vpop.f32.mrf.mxu0
      %v2226 = vadd.f32 0.0, %v2225
      %2227 = vmatmul.bf16.gmra.mxu0 %v2138
      %v2228 = vpop.f32.mrf.mxu0
      %v2229 = vadd.f32 0.0, %v2228
      %v2230 = vpop.f32.mrf.mxu0
      %v2231 = vadd.f32 0.0, %v2230
      %2232 = vdwg.mxu0
      %v2233 = vunpack.c.l.b16 %v1668
      %v2234 = vunpack.c.l.b16 %v1677
      %v2235 = vunpack.c.l.b16 %v1690
      %v2236 = vunpack.c.l.b16 %v1699
      %v2237 = vunpack.c.l.b16 %v1712
      %v2238 = vunpack.c.l.b16 %v1721
      %v2239 = vunpack.c.l.b16 %v1734
      %v2240 = vunpack.c.l.b16 %v1743
      %v2241 = vunpack.c.l.b16 %v1756
      %v2242 = vunpack.c.l.b16 %v1765
      %v2243 = vunpack.c.l.b16 %v1778
      %v2244 = vunpack.c.l.b16 %v1787
      %v2245 = vunpack.c.l.b16 %v1800
      %v2246 = vunpack.c.l.b16 %v1809
      %v2247 = vunpack.c.l.b16 %v1822
      %v2248 = vunpack.c.l.b16 %v1831
      %v2249 = vunpack.c.l.b16 %v1844
      %v2250 = vunpack.c.l.b16 %v1853
      %v2251 = vunpack.c.l.b16 %v1866
      %v2252 = vunpack.c.l.b16 %v1875
      %v2253 = vunpack.c.l.b16 %v1888
      %v2254 = vunpack.c.l.b16 %v1897
      %v2255 = vunpack.c.l.b16 %v1910
      %v2256 = vunpack.c.l.b16 %v1919
      %v2257 = vunpack.c.l.b16 %v1932
      %v2258 = vunpack.c.l.b16 %v1941
      %v2259 = vunpack.c.l.b16 %v1954
      %v2260 = vunpack.c.l.b16 %v1963
      %v2261 = vunpack.c.l.b16 %v1976
      %v2262 = vunpack.c.l.b16 %v1985
      %v2263 = vunpack.c.l.b16 %v1998
      %v2264 = vunpack.c.l.b16 %v2007
      %v2265 = vpack.c.b16 %v2234, %v2233
      %v2266 = vpack.c.b16 %v2236, %v2235
      %v2267 = vpack.c.b16 %v2238, %v2237
      %v2268 = vpack.c.b16 %v2240, %v2239
      %v2269 = vpack.c.b16 %v2242, %v2241
      %v2270 = vpack.c.b16 %v2244, %v2243
      %v2271 = vpack.c.b16 %v2246, %v2245
      %v2272 = vpack.c.b16 %v2248, %v2247
      %v2273 = vpack.c.b16 %v2250, %v2249
      %v2274 = vpack.c.b16 %v2252, %v2251
      %v2275 = vpack.c.b16 %v2254, %v2253
      %v2276 = vpack.c.b16 %v2256, %v2255
      %v2277 = vpack.c.b16 %v2258, %v2257
      %v2278 = vpack.c.b16 %v2260, %v2259
      %v2279 = vpack.c.b16 %v2262, %v2261
      %v2280 = vpack.c.b16 %v2264, %v2263
      %v2282 = vsel %vm2091, %v2265, 0
      %v2285 = vsel %vm2091, %v2266, 0
      %v2288 = vsel %vm2091, %v2267, 0
      %v2291 = vsel %vm2091, %v2268, 0
      %v2294 = vsel %vm2091, %v2269, 0
      %v2297 = vsel %vm2091, %v2270, 0
      %v2300 = vsel %vm2091, %v2271, 0
      %v2303 = vsel %vm2091, %v2272, 0
      %v2306 = vsel %vm2091, %v2273, 0
      %v2309 = vsel %vm2091, %v2274, 0
      %v2312 = vsel %vm2091, %v2275, 0
      %v2315 = vsel %vm2091, %v2276, 0
      %v2318 = vsel %vm2091, %v2277, 0
      %v2321 = vsel %vm2091, %v2278, 0
      %v2324 = vsel %vm2091, %v2279, 0
      %v2327 = vsel %vm2091, %v2280, 0
      %v2330 = vsel %vm2140, %v2008, 0
      %2332 = vmatpush.bf16.msra.mxu0 0
      %2333 = vmatpush.bf16.msra.mxu0 0
      %2334 = vmatpush.bf16.msra.mxu0 0
      %2335 = vmatpush.bf16.msra.mxu0 0
      %2336 = vmatpush.bf16.msra.mxu0 0
      %2337 = vmatpush.bf16.msra.mxu0 0
      %2338 = vmatpush.bf16.msra.mxu0 0
      %2339 = vmatpush.bf16.msra.mxu0 %v2330
      %2340 = vmatmul.bf16.gmra.mxu0 %v2282
      %v2341 = vpop.f32.mrf.mxu0
      %v2342 = vadd.f32 %v2154, %v2341
      %v2343 = vpop.f32.mrf.mxu0
      %v2344 = vadd.f32 %v2156, %v2343
      %2345 = vmatmul.bf16.gmra.mxu0 %v2285
      %v2346 = vpop.f32.mrf.mxu0
      %v2347 = vadd.f32 %v2159, %v2346
      %v2348 = vpop.f32.mrf.mxu0
      %v2349 = vadd.f32 %v2161, %v2348
      %2350 = vmatmul.bf16.gmra.mxu0 %v2288
      %v2351 = vpop.f32.mrf.mxu0
      %v2352 = vadd.f32 %v2164, %v2351
      %v2353 = vpop.f32.mrf.mxu0
      %v2354 = vadd.f32 %v2166, %v2353
      %2355 = vmatmul.bf16.gmra.mxu0 %v2291
      %v2356 = vpop.f32.mrf.mxu0
      %v2357 = vadd.f32 %v2169, %v2356
      %v2358 = vpop.f32.mrf.mxu0
      %v2359 = vadd.f32 %v2171, %v2358
      %2360 = vmatmul.bf16.gmra.mxu0 %v2294
      %v2361 = vpop.f32.mrf.mxu0
      %v2362 = vadd.f32 %v2174, %v2361
      %v2363 = vpop.f32.mrf.mxu0
      %v2364 = vadd.f32 %v2176, %v2363
      %2365 = vmatmul.bf16.gmra.mxu0 %v2297
      %v2366 = vpop.f32.mrf.mxu0
      %v2367 = vadd.f32 %v2179, %v2366
      %v2368 = vpop.f32.mrf.mxu0
      %v2369 = vadd.f32 %v2181, %v2368
      %2370 = vmatmul.bf16.gmra.mxu0 %v2300
      %v2371 = vpop.f32.mrf.mxu0
      %v2372 = vadd.f32 %v2184, %v2371
      %v2373 = vpop.f32.mrf.mxu0
      %v2374 = vadd.f32 %v2186, %v2373
      %2375 = vmatmul.bf16.gmra.mxu0 %v2303
      %v2376 = vpop.f32.mrf.mxu0
      %v2377 = vadd.f32 %v2189, %v2376
      %v2378 = vpop.f32.mrf.mxu0
      %v2379 = vadd.f32 %v2191, %v2378
      %2380 = vmatmul.bf16.gmra.mxu0 %v2306
      %v2381 = vpop.f32.mrf.mxu0
      %v2382 = vadd.f32 %v2194, %v2381
      %v2383 = vpop.f32.mrf.mxu0
      %v2384 = vadd.f32 %v2196, %v2383
      %2385 = vmatmul.bf16.gmra.mxu0 %v2309
      %v2386 = vpop.f32.mrf.mxu0
      %v2387 = vadd.f32 %v2199, %v2386
      %v2388 = vpop.f32.mrf.mxu0
      %v2389 = vadd.f32 %v2201, %v2388
      %2390 = vmatmul.bf16.gmra.mxu0 %v2312
      %v2391 = vpop.f32.mrf.mxu0
      %v2392 = vadd.f32 %v2204, %v2391
      %v2393 = vpop.f32.mrf.mxu0
      %v2394 = vadd.f32 %v2206, %v2393
      %2395 = vmatmul.bf16.gmra.mxu0 %v2315
      %v2396 = vpop.f32.mrf.mxu0
      %v2397 = vadd.f32 %v2209, %v2396
      %v2398 = vpop.f32.mrf.mxu0
      %v2399 = vadd.f32 %v2211, %v2398
      %2400 = vmatmul.bf16.gmra.mxu0 %v2318
      %v2401 = vpop.f32.mrf.mxu0
      %v2402 = vadd.f32 %v2214, %v2401
      %v2403 = vpop.f32.mrf.mxu0
      %v2404 = vadd.f32 %v2216, %v2403
      %2405 = vmatmul.bf16.gmra.mxu0 %v2321
      %v2406 = vpop.f32.mrf.mxu0
      %v2407 = vadd.f32 %v2219, %v2406
      %v2408 = vpop.f32.mrf.mxu0
      %v2409 = vadd.f32 %v2221, %v2408
      %2410 = vmatmul.bf16.gmra.mxu0 %v2324
      %v2411 = vpop.f32.mrf.mxu0
      %v2412 = vadd.f32 %v2224, %v2411
      %v2413 = vpop.f32.mrf.mxu0
      %v2414 = vadd.f32 %v2226, %v2413
      %2415 = vmatmul.bf16.gmra.mxu0 %v2327
      %v2416 = vpop.f32.mrf.mxu0
      %v2417 = vadd.f32 %v2229, %v2416
      %v2418 = vpop.f32.mrf.mxu0
      %v2419 = vadd.f32 %v2231, %v2418
      %2420 = vdwg.mxu0
      %v2421 = vld [vmem:[#allocation2 + $0x4] sm:$0xf]
      %v2422 = vld [vmem:[#allocation2 + $0x8] sm:$0xf]
      %v2423 = vld [vmem:[#allocation2 + $0xc] sm:$0x1]
      %v2424 = vld [vmem:[#allocation2 + $0x14] sm:$0xf]
      %v2425 = vld [vmem:[#allocation2 + $0x18] sm:$0xf]
      %v2426 = vld [vmem:[#allocation2 + $0x1c] sm:$0x1]
      %v2427 = vld [vmem:[#allocation2 + $0x24] sm:$0xf]
      %v2428 = vld [vmem:[#allocation2 + $0x28] sm:$0xf]
      %v2429 = vld [vmem:[#allocation2 + $0x2c] sm:$0x1]
      %v2430 = vld [vmem:[#allocation2 + $0x34] sm:$0xf]
      %v2431 = vld [vmem:[#allocation2 + $0x38] sm:$0xf]
      %v2432 = vld [vmem:[#allocation2 + $0x3c] sm:$0x1]
      %v2433 = vld [vmem:[#allocation2 + $0x44] sm:$0xf]
      %v2434 = vld [vmem:[#allocation2 + $0x48] sm:$0xf]
      %v2435 = vld [vmem:[#allocation2 + $0x4c] sm:$0x1]
      %v2436 = vld [vmem:[#allocation2 + $0x54] sm:$0xf]
      %v2437 = vld [vmem:[#allocation2 + $0x58] sm:$0xf]
      %v2438 = vld [vmem:[#allocation2 + $0x5c] sm:$0x1]
      %v2439 = vld [vmem:[#allocation2 + $0x64] sm:$0xf]
      %v2440 = vld [vmem:[#allocation2 + $0x68] sm:$0xf]
      %v2441 = vld [vmem:[#allocation2 + $0x6c] sm:$0x1]
      %v2442 = vld [vmem:[#allocation2 + $0x74] sm:$0xf]
      %v2443 = vld [vmem:[#allocation2 + $0x78] sm:$0xf]
      %v2444 = vld [vmem:[#allocation2 + $0x7c] sm:$0x1]
      %v2445 = vld [vmem:[#allocation2 + $0x84] sm:$0xf]
      %v2446 = vld [vmem:[#allocation2 + $0x88] sm:$0xf]
      %v2447 = vld [vmem:[#allocation2 + $0x8c] sm:$0x1]
      %v2448 = vld [vmem:[#allocation2 + $0x94] sm:$0xf]
      %v2449 = vld [vmem:[#allocation2 + $0x98] sm:$0xf]
      %v2450 = vld [vmem:[#allocation2 + $0x9c] sm:$0x1]
      %v2451 = vld [vmem:[#allocation2 + $0xa4] sm:$0xf]
      %v2452 = vld [vmem:[#allocation2 + $0xa8] sm:$0xf]
      %v2453 = vld [vmem:[#allocation2 + $0xac] sm:$0x1]
      %v2454 = vld [vmem:[#allocation2 + $0xb4] sm:$0xf]
      %v2455 = vld [vmem:[#allocation2 + $0xb8] sm:$0xf]
      %v2456 = vld [vmem:[#allocation2 + $0xbc] sm:$0x1]
      %v2457 = vld [vmem:[#allocation2 + $0xc4] sm:$0xf]
      %v2458 = vld [vmem:[#allocation2 + $0xc8] sm:$0xf]
      %v2459 = vld [vmem:[#allocation2 + $0xcc] sm:$0x1]
      %v2460 = vld [vmem:[#allocation2 + $0xd4] sm:$0xf]
      %v2461 = vld [vmem:[#allocation2 + $0xd8] sm:$0xf]
      %v2462 = vld [vmem:[#allocation2 + $0xdc] sm:$0x1]
      %v2463 = vld [vmem:[#allocation2 + $0xe4] sm:$0xf]
      %v2464 = vld [vmem:[#allocation2 + $0xe8] sm:$0xf]
      %v2465 = vld [vmem:[#allocation2 + $0xec] sm:$0x1]
      %v2466 = vld [vmem:[#allocation2 + $0xf4] sm:$0xf]
      %v2467 = vld [vmem:[#allocation2 + $0xf8] sm:$0xf]
      %v2468 = vld [vmem:[#allocation2 + $0xfc] sm:$0x1]
      %vm2469 = vsmask.f32 3328
      %vm2470 = vsmask.f32 7440
      %vm2471 = vmor %vm2469, %vm2470
      %v2473 = vshrl.u32 %v2421, 16
      %v2475 = vrot.slane %v2473, 4
      %v2476 = vshll.u32 %v2421, 16
      %v2478 = vrot.slane %v2476, 5
      %v2479 = vor.u32 %v2475, %v2478
      %v2480 = vrot.slane %v2479, 4
      %v2482 = vshll.u32 %v2422, 16
      %v2484 = vrot.slane %v2482, 5
      %v2485 = vsel %vm2471, %v2480, %v2484
      %v2486 = vshrl.u32 %v2422, 16
      %v2488 = vrot.slane %v2486, 4
      %v2489 = vor.u32 %v2488, %v2484
      %v2490 = vrot.slane %v2489, 4
      %v2492 = vshll.u32 %v2423, 16
      %v2494 = vrot.slane %v2492, 5
      %v2495 = vsel %vm2471, %v2490, %v2494
      %v2497 = vshrl.u32 %v2424, 16
      %v2499 = vrot.slane %v2497, 4
      %v2500 = vshll.u32 %v2424, 16
      %v2502 = vrot.slane %v2500, 5
      %v2503 = vor.u32 %v2499, %v2502
      %v2504 = vrot.slane %v2503, 4
      %v2506 = vshll.u32 %v2425, 16
      %v2508 = vrot.slane %v2506, 5
      %v2509 = vsel %vm2471, %v2504, %v2508
      %v2510 = vshrl.u32 %v2425, 16
      %v2512 = vrot.slane %v2510, 4
      %v2513 = vor.u32 %v2512, %v2508
      %v2514 = vrot.slane %v2513, 4
      %v2516 = vshll.u32 %v2426, 16
      %v2518 = vrot.slane %v2516, 5
      %v2519 = vsel %vm2471, %v2514, %v2518
      %v2521 = vshrl.u32 %v2427, 16
      %v2523 = vrot.slane %v2521, 4
      %v2524 = vshll.u32 %v2427, 16
      %v2526 = vrot.slane %v2524, 5
      %v2527 = vor.u32 %v2523, %v2526
      %v2528 = vrot.slane %v2527, 4
      %v2530 = vshll.u32 %v2428, 16
      %v2532 = vrot.slane %v2530, 5
      %v2533 = vsel %vm2471, %v2528, %v2532
      %v2534 = vshrl.u32 %v2428, 16
      %v2536 = vrot.slane %v2534, 4
      %v2537 = vor.u32 %v2536, %v2532
      %v2538 = vrot.slane %v2537, 4
      %v2540 = vshll.u32 %v2429, 16
      %v2542 = vrot.slane %v2540, 5
      %v2543 = vsel %vm2471, %v2538, %v2542
      %v2545 = vshrl.u32 %v2430, 16
      %v2547 = vrot.slane %v2545, 4
      %v2548 = vshll.u32 %v2430, 16
      %v2550 = vrot.slane %v2548, 5
      %v2551 = vor.u32 %v2547, %v2550
      %v2552 = vrot.slane %v2551, 4
      %v2554 = vshll.u32 %v2431, 16
      %v2556 = vrot.slane %v2554, 5
      %v2557 = vsel %vm2471, %v2552, %v2556
      %v2558 = vshrl.u32 %v2431, 16
      %v2560 = vrot.slane %v2558, 4
      %v2561 = vor.u32 %v2560, %v2556
      %v2562 = vrot.slane %v2561, 4
      %v2564 = vshll.u32 %v2432, 16
      %v2566 = vrot.slane %v2564, 5
      %v2567 = vsel %vm2471, %v2562, %v2566
      %v2569 = vshrl.u32 %v2433, 16
      %v2571 = vrot.slane %v2569, 4
      %v2572 = vshll.u32 %v2433, 16
      %v2574 = vrot.slane %v2572, 5
      %v2575 = vor.u32 %v2571, %v2574
      %v2576 = vrot.slane %v2575, 4
      %v2578 = vshll.u32 %v2434, 16
      %v2580 = vrot.slane %v2578, 5
      %v2581 = vsel %vm2471, %v2576, %v2580
      %v2582 = vshrl.u32 %v2434, 16
      %v2584 = vrot.slane %v2582, 4
      %v2585 = vor.u32 %v2584, %v2580
      %v2586 = vrot.slane %v2585, 4
      %v2588 = vshll.u32 %v2435, 16
      %v2590 = vrot.slane %v2588, 5
      %v2591 = vsel %vm2471, %v2586, %v2590
      %v2593 = vshrl.u32 %v2436, 16
      %v2595 = vrot.slane %v2593, 4
      %v2596 = vshll.u32 %v2436, 16
      %v2598 = vrot.slane %v2596, 5
      %v2599 = vor.u32 %v2595, %v2598
      %v2600 = vrot.slane %v2599, 4
      %v2602 = vshll.u32 %v2437, 16
      %v2604 = vrot.slane %v2602, 5
      %v2605 = vsel %vm2471, %v2600, %v2604
      %v2606 = vshrl.u32 %v2437, 16
      %v2608 = vrot.slane %v2606, 4
      %v2609 = vor.u32 %v2608, %v2604
      %v2610 = vrot.slane %v2609, 4
      %v2612 = vshll.u32 %v2438, 16
      %v2614 = vrot.slane %v2612, 5
      %v2615 = vsel %vm2471, %v2610, %v2614
      %v2617 = vshrl.u32 %v2439, 16
      %v2619 = vrot.slane %v2617, 4
      %v2620 = vshll.u32 %v2439, 16
      %v2622 = vrot.slane %v2620, 5
      %v2623 = vor.u32 %v2619, %v2622
      %v2624 = vrot.slane %v2623, 4
      %v2626 = vshll.u32 %v2440, 16
      %v2628 = vrot.slane %v2626, 5
      %v2629 = vsel %vm2471, %v2624, %v2628
      %v2630 = vshrl.u32 %v2440, 16
      %v2632 = vrot.slane %v2630, 4
      %v2633 = vor.u32 %v2632, %v2628
      %v2634 = vrot.slane %v2633, 4
      %v2636 = vshll.u32 %v2441, 16
      %v2638 = vrot.slane %v2636, 5
      %v2639 = vsel %vm2471, %v2634, %v2638
      %v2641 = vshrl.u32 %v2442, 16
      %v2643 = vrot.slane %v2641, 4
      %v2644 = vshll.u32 %v2442, 16
      %v2646 = vrot.slane %v2644, 5
      %v2647 = vor.u32 %v2643, %v2646
      %v2648 = vrot.slane %v2647, 4
      %v2650 = vshll.u32 %v2443, 16
      %v2652 = vrot.slane %v2650, 5
      %v2653 = vsel %vm2471, %v2648, %v2652
      %v2654 = vshrl.u32 %v2443, 16
      %v2656 = vrot.slane %v2654, 4
      %v2657 = vor.u32 %v2656, %v2652
      %v2658 = vrot.slane %v2657, 4
      %v2660 = vshll.u32 %v2444, 16
      %v2662 = vrot.slane %v2660, 5
      %v2663 = vsel %vm2471, %v2658, %v2662
      %v2665 = vshrl.u32 %v2445, 16
      %v2667 = vrot.slane %v2665, 4
      %v2668 = vshll.u32 %v2445, 16
      %v2670 = vrot.slane %v2668, 5
      %v2671 = vor.u32 %v2667, %v2670
      %v2672 = vrot.slane %v2671, 4
      %v2674 = vshll.u32 %v2446, 16
      %v2676 = vrot.slane %v2674, 5
      %v2677 = vsel %vm2471, %v2672, %v2676
      %v2678 = vshrl.u32 %v2446, 16
      %v2680 = vrot.slane %v2678, 4
      %v2681 = vor.u32 %v2680, %v2676
      %v2682 = vrot.slane %v2681, 4
      %v2684 = vshll.u32 %v2447, 16
      %v2686 = vrot.slane %v2684, 5
      %v2687 = vsel %vm2471, %v2682, %v2686
      %v2689 = vshrl.u32 %v2448, 16
      %v2691 = vrot.slane %v2689, 4
      %v2692 = vshll.u32 %v2448, 16
      %v2694 = vrot.slane %v2692, 5
      %v2695 = vor.u32 %v2691, %v2694
      %v2696 = vrot.slane %v2695, 4
      %v2698 = vshll.u32 %v2449, 16
      %v2700 = vrot.slane %v2698, 5
      %v2701 = vsel %vm2471, %v2696, %v2700
      %v2702 = vshrl.u32 %v2449, 16
      %v2704 = vrot.slane %v2702, 4
      %v2705 = vor.u32 %v2704, %v2700
      %v2706 = vrot.slane %v2705, 4
      %v2708 = vshll.u32 %v2450, 16
      %v2710 = vrot.slane %v2708, 5
      %v2711 = vsel %vm2471, %v2706, %v2710
      %v2713 = vshrl.u32 %v2451, 16
      %v2715 = vrot.slane %v2713, 4
      %v2716 = vshll.u32 %v2451, 16
      %v2718 = vrot.slane %v2716, 5
      %v2719 = vor.u32 %v2715, %v2718
      %v2720 = vrot.slane %v2719, 4
      %v2722 = vshll.u32 %v2452, 16
      %v2724 = vrot.slane %v2722, 5
      %v2725 = vsel %vm2471, %v2720, %v2724
      %v2726 = vshrl.u32 %v2452, 16
      %v2728 = vrot.slane %v2726, 4
      %v2729 = vor.u32 %v2728, %v2724
      %v2730 = vrot.slane %v2729, 4
      %v2732 = vshll.u32 %v2453, 16
      %v2734 = vrot.slane %v2732, 5
      %v2735 = vsel %vm2471, %v2730, %v2734
      %v2737 = vshrl.u32 %v2454, 16
      %v2739 = vrot.slane %v2737, 4
      %v2740 = vshll.u32 %v2454, 16
      %v2742 = vrot.slane %v2740, 5
      %v2743 = vor.u32 %v2739, %v2742
      %v2744 = vrot.slane %v2743, 4
      %v2746 = vshll.u32 %v2455, 16
      %v2748 = vrot.slane %v2746, 5
      %v2749 = vsel %vm2471, %v2744, %v2748
      %v2750 = vshrl.u32 %v2455, 16
      %v2752 = vrot.slane %v2750, 4
      %v2753 = vor.u32 %v2752, %v2748
      %v2754 = vrot.slane %v2753, 4
      %v2756 = vshll.u32 %v2456, 16
      %v2758 = vrot.slane %v2756, 5
      %v2759 = vsel %vm2471, %v2754, %v2758
      %v2761 = vshrl.u32 %v2457, 16
      %v2763 = vrot.slane %v2761, 4
      %v2764 = vshll.u32 %v2457, 16
      %v2766 = vrot.slane %v2764, 5
      %v2767 = vor.u32 %v2763, %v2766
      %v2768 = vrot.slane %v2767, 4
      %v2770 = vshll.u32 %v2458, 16
      %v2772 = vrot.slane %v2770, 5
      %v2773 = vsel %vm2471, %v2768, %v2772
      %v2774 = vshrl.u32 %v2458, 16
      %v2776 = vrot.slane %v2774, 4
      %v2777 = vor.u32 %v2776, %v2772
      %v2778 = vrot.slane %v2777, 4
      %v2780 = vshll.u32 %v2459, 16
      %v2782 = vrot.slane %v2780, 5
      %v2783 = vsel %vm2471, %v2778, %v2782
      %v2785 = vshrl.u32 %v2460, 16
      %v2787 = vrot.slane %v2785, 4
      %v2788 = vshll.u32 %v2460, 16
      %v2790 = vrot.slane %v2788, 5
      %v2791 = vor.u32 %v2787, %v2790
      %v2792 = vrot.slane %v2791, 4
      %v2794 = vshll.u32 %v2461, 16
      %v2796 = vrot.slane %v2794, 5
      %v2797 = vsel %vm2471, %v2792, %v2796
      %v2798 = vshrl.u32 %v2461, 16
      %v2800 = vrot.slane %v2798, 4
      %v2801 = vor.u32 %v2800, %v2796
      %v2802 = vrot.slane %v2801, 4
      %v2804 = vshll.u32 %v2462, 16
      %v2806 = vrot.slane %v2804, 5
      %v2807 = vsel %vm2471, %v2802, %v2806
      %v2809 = vshrl.u32 %v2463, 16
      %v2811 = vrot.slane %v2809, 4
      %v2812 = vshll.u32 %v2463, 16
      %v2814 = vrot.slane %v2812, 5
      %v2815 = vor.u32 %v2811, %v2814
      %v2816 = vrot.slane %v2815, 4
      %v2818 = vshll.u32 %v2464, 16
      %v2820 = vrot.slane %v2818, 5
      %v2821 = vsel %vm2471, %v2816, %v2820
      %v2822 = vshrl.u32 %v2464, 16
      %v2824 = vrot.slane %v2822, 4
      %v2825 = vor.u32 %v2824, %v2820
      %v2826 = vrot.slane %v2825, 4
      %v2828 = vshll.u32 %v2465, 16
      %v2830 = vrot.slane %v2828, 5
      %v2831 = vsel %vm2471, %v2826, %v2830
      %v2833 = vshrl.u32 %v2466, 16
      %v2835 = vrot.slane %v2833, 4
      %v2836 = vshll.u32 %v2466, 16
      %v2838 = vrot.slane %v2836, 5
      %v2839 = vor.u32 %v2835, %v2838
      %v2840 = vrot.slane %v2839, 4
      %v2842 = vshll.u32 %v2467, 16
      %v2844 = vrot.slane %v2842, 5
      %v2845 = vsel %vm2471, %v2840, %v2844
      %v2846 = vshrl.u32 %v2467, 16
      %v2848 = vrot.slane %v2846, 4
      %v2849 = vor.u32 %v2848, %v2844
      %v2850 = vrot.slane %v2849, 4
      %v2852 = vshll.u32 %v2468, 16
      %v2854 = vrot.slane %v2852, 5
      %v2855 = vsel %vm2471, %v2850, %v2854
      %s2856 = scalar_lea.vmem %s5, 2
      %v2857 = vld [vmem:[%s2856] sm:$0x1]
      %v2858 = vunpack.c.l.b16 %v2485
      %v2859 = vunpack.c.l.b16 %v2495
      %v2860 = vunpack.c.l.b16 %v2509
      %v2861 = vunpack.c.l.b16 %v2519
      %v2862 = vunpack.c.l.b16 %v2533
      %v2863 = vunpack.c.l.b16 %v2543
      %v2864 = vunpack.c.l.b16 %v2557
      %v2865 = vunpack.c.l.b16 %v2567
      %v2866 = vunpack.c.l.b16 %v2581
      %v2867 = vunpack.c.l.b16 %v2591
      %v2868 = vunpack.c.l.b16 %v2605
      %v2869 = vunpack.c.l.b16 %v2615
      %v2870 = vunpack.c.l.b16 %v2629
      %v2871 = vunpack.c.l.b16 %v2639
      %v2872 = vunpack.c.l.b16 %v2653
      %v2873 = vunpack.c.l.b16 %v2663
      %v2874 = vunpack.c.l.b16 %v2677
      %v2875 = vunpack.c.l.b16 %v2687
      %v2876 = vunpack.c.l.b16 %v2701
      %v2877 = vunpack.c.l.b16 %v2711
      %v2878 = vunpack.c.l.b16 %v2725
      %v2879 = vunpack.c.l.b16 %v2735
      %v2880 = vunpack.c.l.b16 %v2749
      %v2881 = vunpack.c.l.b16 %v2759
      %v2882 = vunpack.c.l.b16 %v2773
      %v2883 = vunpack.c.l.b16 %v2783
      %v2884 = vunpack.c.l.b16 %v2797
      %v2885 = vunpack.c.l.b16 %v2807
      %v2886 = vunpack.c.l.b16 %v2821
      %v2887 = vunpack.c.l.b16 %v2831
      %v2888 = vunpack.c.l.b16 %v2845
      %v2889 = vunpack.c.l.b16 %v2855
      %v2890 = vpack.c.b16 %v2859, %v2858
      %v2891 = vpack.c.b16 %v2861, %v2860
      %v2892 = vpack.c.b16 %v2863, %v2862
      %v2893 = vpack.c.b16 %v2865, %v2864
      %v2894 = vpack.c.b16 %v2867, %v2866
      %v2895 = vpack.c.b16 %v2869, %v2868
      %v2896 = vpack.c.b16 %v2871, %v2870
      %v2897 = vpack.c.b16 %v2873, %v2872
      %v2898 = vpack.c.b16 %v2875, %v2874
      %v2899 = vpack.c.b16 %v2877, %v2876
      %v2900 = vpack.c.b16 %v2879, %v2878
      %v2901 = vpack.c.b16 %v2881, %v2880
      %v2902 = vpack.c.b16 %v2883, %v2882
      %v2903 = vpack.c.b16 %v2885, %v2884
      %v2904 = vpack.c.b16 %v2887, %v2886
      %v2905 = vpack.c.b16 %v2889, %v2888
      %v2907 = vsel %vm2091, %v2890, 0
      %v2910 = vsel %vm2091, %v2891, 0
      %v2913 = vsel %vm2091, %v2892, 0
      %v2916 = vsel %vm2091, %v2893, 0
      %v2919 = vsel %vm2091, %v2894, 0
      %v2922 = vsel %vm2091, %v2895, 0
      %v2925 = vsel %vm2091, %v2896, 0
      %v2928 = vsel %vm2091, %v2897, 0
      %v2931 = vsel %vm2091, %v2898, 0
      %v2934 = vsel %vm2091, %v2899, 0
      %v2937 = vsel %vm2091, %v2900, 0
      %v2940 = vsel %vm2091, %v2901, 0
      %v2943 = vsel %vm2091, %v2902, 0
      %v2946 = vsel %vm2091, %v2903, 0
      %v2949 = vsel %vm2091, %v2904, 0
      %v2952 = vsel %vm2091, %v2905, 0
      %v2955 = vsel %vm2140, %v2857, 0
      %2957 = vmatpush.bf16.msra.mxu0 0
      %2958 = vmatpush.bf16.msra.mxu0 0
      %2959 = vmatpush.bf16.msra.mxu0 0
      %2960 = vmatpush.bf16.msra.mxu0 0
      %2961 = vmatpush.bf16.msra.mxu0 0
      %2962 = vmatpush.bf16.msra.mxu0 0
      %2963 = vmatpush.bf16.msra.mxu0 0
      %2964 = vmatpush.bf16.msra.mxu0 %v2955
      %2965 = vmatmul.bf16.gmra.mxu0 %v2907
      %v2966 = vpop.f32.mrf.mxu0
      %v2967 = vadd.f32 0.0, %v2966
      %v2968 = vpop.f32.mrf.mxu0
      %v2969 = vadd.f32 0.0, %v2968
      %2970 = vmatmul.bf16.gmra.mxu0 %v2910
      %v2971 = vpop.f32.mrf.mxu0
      %v2972 = vadd.f32 0.0, %v2971
      %v2973 = vpop.f32.mrf.mxu0
      %v2974 = vadd.f32 0.0, %v2973
      %2975 = vmatmul.bf16.gmra.mxu0 %v2913
      %v2976 = vpop.f32.mrf.mxu0
      %v2977 = vadd.f32 0.0, %v2976
      %v2978 = vpop.f32.mrf.mxu0
      %v2979 = vadd.f32 0.0, %v2978
      %2980 = vmatmul.bf16.gmra.mxu0 %v2916
      %v2981 = vpop.f32.mrf.mxu0
      %v2982 = vadd.f32 0.0, %v2981
      %v2983 = vpop.f32.mrf.mxu0
      %v2984 = vadd.f32 0.0, %v2983
      %2985 = vmatmul.bf16.gmra.mxu0 %v2919
      %v2986 = vpop.f32.mrf.mxu0
      %v2987 = vadd.f32 0.0, %v2986
      %v2988 = vpop.f32.mrf.mxu0
      %v2989 = vadd.f32 0.0, %v2988
      %2990 = vmatmul.bf16.gmra.mxu0 %v2922
      %v2991 = vpop.f32.mrf.mxu0
      %v2992 = vadd.f32 0.0, %v2991
      %v2993 = vpop.f32.mrf.mxu0
      %v2994 = vadd.f32 0.0, %v2993
      %2995 = vmatmul.bf16.gmra.mxu0 %v2925
      %v2996 = vpop.f32.mrf.mxu0
      %v2997 = vadd.f32 0.0, %v2996
      %v2998 = vpop.f32.mrf.mxu0
      %v2999 = vadd.f32 0.0, %v2998
      %3000 = vmatmul.bf16.gmra.mxu0 %v2928
      %v3001 = vpop.f32.mrf.mxu0
      %v3002 = vadd.f32 0.0, %v3001
      %v3003 = vpop.f32.mrf.mxu0
      %v3004 = vadd.f32 0.0, %v3003
      %3005 = vmatmul.bf16.gmra.mxu0 %v2931
      %v3006 = vpop.f32.mrf.mxu0
      %v3007 = vadd.f32 0.0, %v3006
      %v3008 = vpop.f32.mrf.mxu0
      %v3009 = vadd.f32 0.0, %v3008
      %3010 = vmatmul.bf16.gmra.mxu0 %v2934
      %v3011 = vpop.f32.mrf.mxu0
      %v3012 = vadd.f32 0.0, %v3011
      %v3013 = vpop.f32.mrf.mxu0
      %v3014 = vadd.f32 0.0, %v3013
      %3015 = vmatmul.bf16.gmra.mxu0 %v2937
      %v3016 = vpop.f32.mrf.mxu0
      %v3017 = vadd.f32 0.0, %v3016
      %v3018 = vpop.f32.mrf.mxu0
      %v3019 = vadd.f32 0.0, %v3018
      %3020 = vmatmul.bf16.gmra.mxu0 %v2940
      %v3021 = vpop.f32.mrf.mxu0
      %v3022 = vadd.f32 0.0, %v3021
      %v3023 = vpop.f32.mrf.mxu0
      %v3024 = vadd.f32 0.0, %v3023
      %3025 = vmatmul.bf16.gmra.mxu0 %v2943
      %v3026 = vpop.f32.mrf.mxu0
      %v3027 = vadd.f32 0.0, %v3026
      %v3028 = vpop.f32.mrf.mxu0
      %v3029 = vadd.f32 0.0, %v3028
      %3030 = vmatmul.bf16.gmra.mxu0 %v2946
      %v3031 = vpop.f32.mrf.mxu0
      %v3032 = vadd.f32 0.0, %v3031
      %v3033 = vpop.f32.mrf.mxu0
      %v3034 = vadd.f32 0.0, %v3033
      %3035 = vmatmul.bf16.gmra.mxu0 %v2949
      %v3036 = vpop.f32.mrf.mxu0
      %v3037 = vadd.f32 0.0, %v3036
      %v3038 = vpop.f32.mrf.mxu0
      %v3039 = vadd.f32 0.0, %v3038
      %3040 = vmatmul.bf16.gmra.mxu0 %v2952
      %v3041 = vpop.f32.mrf.mxu0
      %v3042 = vadd.f32 0.0, %v3041
      %v3043 = vpop.f32.mrf.mxu0
      %v3044 = vadd.f32 0.0, %v3043
      %3045 = vdwg.mxu0
      %v3046 = vadd.f32 %v2342, %v2967
      %v3047 = vadd.f32 %v2344, %v2969
      %v3048 = vadd.f32 %v2347, %v2972
      %v3049 = vadd.f32 %v2349, %v2974
      %v3050 = vadd.f32 %v2352, %v2977
      %v3051 = vadd.f32 %v2354, %v2979
      %v3052 = vadd.f32 %v2357, %v2982
      %v3053 = vadd.f32 %v2359, %v2984
      %v3054 = vadd.f32 %v2362, %v2987
      %v3055 = vadd.f32 %v2364, %v2989
      %v3056 = vadd.f32 %v2367, %v2992
      %v3057 = vadd.f32 %v2369, %v2994
      %v3058 = vadd.f32 %v2372, %v2997
      %v3059 = vadd.f32 %v2374, %v2999
      %v3060 = vadd.f32 %v2377, %v3002
      %v3061 = vadd.f32 %v2379, %v3004
      %v3062 = vadd.f32 %v2382, %v3007
      %v3063 = vadd.f32 %v2384, %v3009
      %v3064 = vadd.f32 %v2387, %v3012
      %v3065 = vadd.f32 %v2389, %v3014
      %v3066 = vadd.f32 %v2392, %v3017
      %v3067 = vadd.f32 %v2394, %v3019
      %v3068 = vadd.f32 %v2397, %v3022
      %v3069 = vadd.f32 %v2399, %v3024
      %v3070 = vadd.f32 %v2402, %v3027
      %v3071 = vadd.f32 %v2404, %v3029
      %v3072 = vadd.f32 %v2407, %v3032
      %v3073 = vadd.f32 %v2409, %v3034
      %v3074 = vadd.f32 %v2412, %v3037
      %v3075 = vadd.f32 %v2414, %v3039
      %v3076 = vadd.f32 %v2417, %v3042
      %v3077 = vadd.f32 %v2419, %v3044
      %v3078 = vld [vmem:[%s1572] sm:$0x8]
      %v3079 = vld [vmem:[%s1572 + $0x4] sm:$0xf]
      %v3080 = vld [vmem:[%s1572 + $0x8] sm:$0xf]
      %v3081 = vld [vmem:[%s1572 + $0x10] sm:$0x8]
      %v3082 = vld [vmem:[%s1572 + $0x14] sm:$0xf]
      %v3083 = vld [vmem:[%s1572 + $0x18] sm:$0xf]
      %v3084 = vld [vmem:[%s1572 + $0x20] sm:$0x8]
      %v3085 = vld [vmem:[%s1572 + $0x24] sm:$0xf]
      %v3086 = vld [vmem:[%s1572 + $0x28] sm:$0xf]
      %v3087 = vld [vmem:[%s1572 + $0x30] sm:$0x8]
      %v3088 = vld [vmem:[%s1572 + $0x34] sm:$0xf]
      %v3089 = vld [vmem:[%s1572 + $0x38] sm:$0xf]
      %v3090 = vld [vmem:[%s1572 + $0x40] sm:$0x8]
      %v3091 = vld [vmem:[%s1572 + $0x44] sm:$0xf]
      %v3092 = vld [vmem:[%s1572 + $0x48] sm:$0xf]
      %v3093 = vld [vmem:[%s1572 + $0x50] sm:$0x8]
      %v3094 = vld [vmem:[%s1572 + $0x54] sm:$0xf]
      %v3095 = vld [vmem:[%s1572 + $0x58] sm:$0xf]
      %v3096 = vld [vmem:[%s1572 + $0x60] sm:$0x8]
      %v3097 = vld [vmem:[%s1572 + $0x64] sm:$0xf]
      %v3098 = vld [vmem:[%s1572 + $0x68] sm:$0xf]
      %v3099 = vld [vmem:[%s1572 + $0x70] sm:$0x8]
      %v3100 = vld [vmem:[%s1572 + $0x74] sm:$0xf]
      %v3101 = vld [vmem:[%s1572 + $0x78] sm:$0xf]
      %v3102 = vld [vmem:[%s1572 + $0x80] sm:$0x8]
      %v3103 = vld [vmem:[%s1572 + $0x84] sm:$0xf]
      %v3104 = vld [vmem:[%s1572 + $0x88] sm:$0xf]
      %v3105 = vld [vmem:[%s1572 + $0x90] sm:$0x8]
      %v3106 = vld [vmem:[%s1572 + $0x94] sm:$0xf]
      %v3107 = vld [vmem:[%s1572 + $0x98] sm:$0xf]
      %v3108 = vld [vmem:[%s1572 + $0xa0] sm:$0x8]
      %v3109 = vld [vmem:[%s1572 + $0xa4] sm:$0xf]
      %v3110 = vld [vmem:[%s1572 + $0xa8] sm:$0xf]
      %v3111 = vld [vmem:[%s1572 + $0xb0] sm:$0x8]
      %v3112 = vld [vmem:[%s1572 + $0xb4] sm:$0xf]
      %v3113 = vld [vmem:[%s1572 + $0xb8] sm:$0xf]
      %v3114 = vld [vmem:[%s1572 + $0xc0] sm:$0x8]
      %v3115 = vld [vmem:[%s1572 + $0xc4] sm:$0xf]
      %v3116 = vld [vmem:[%s1572 + $0xc8] sm:$0xf]
      %v3117 = vld [vmem:[%s1572 + $0xd0] sm:$0x8]
      %v3118 = vld [vmem:[%s1572 + $0xd4] sm:$0xf]
      %v3119 = vld [vmem:[%s1572 + $0xd8] sm:$0xf]
      %v3120 = vld [vmem:[%s1572 + $0xe0] sm:$0x8]
      %v3121 = vld [vmem:[%s1572 + $0xe4] sm:$0xf]
      %v3122 = vld [vmem:[%s1572 + $0xe8] sm:$0xf]
      %v3123 = vld [vmem:[%s1572 + $0xf0] sm:$0x8]
      %v3124 = vld [vmem:[%s1572 + $0xf4] sm:$0xf]
      %v3125 = vld [vmem:[%s1572 + $0xf8] sm:$0xf]
      %v3127 = vshrl.u32 %v3078, 16
      %v3129 = vrot.slane %v3127, 7
      %v3130 = vrot.slane %v3129, 4
      %v3132 = vshrl.u32 %v3079, 16
      %v3134 = vrot.slane %v3132, 7
      %v3135 = vshll.u32 %v3079, 16
      %v3137 = vor.u32 %v3134, %v3135
      %v3138 = vsel %vm1655, %v3130, %v3137
      %v3139 = vrot.slane %v3134, 4
      %v3141 = vshrl.u32 %v3080, 16
      %v3143 = vrot.slane %v3141, 7
      %v3144 = vshll.u32 %v3080, 16
      %v3146 = vor.u32 %v3143, %v3144
      %v3147 = vsel %vm1655, %v3139, %v3146
      %v3149 = vshrl.u32 %v3081, 16
      %v3151 = vrot.slane %v3149, 7
      %v3152 = vrot.slane %v3151, 4
      %v3154 = vshrl.u32 %v3082, 16
      %v3156 = vrot.slane %v3154, 7
      %v3157 = vshll.u32 %v3082, 16
      %v3159 = vor.u32 %v3156, %v3157
      %v3160 = vsel %vm1655, %v3152, %v3159
      %v3161 = vrot.slane %v3156, 4
      %v3163 = vshrl.u32 %v3083, 16
      %v3165 = vrot.slane %v3163, 7
      %v3166 = vshll.u32 %v3083, 16
      %v3168 = vor.u32 %v3165, %v3166
      %v3169 = vsel %vm1655, %v3161, %v3168
      %v3171 = vshrl.u32 %v3084, 16
      %v3173 = vrot.slane %v3171, 7
      %v3174 = vrot.slane %v3173, 4
      %v3176 = vshrl.u32 %v3085, 16
      %v3178 = vrot.slane %v3176, 7
      %v3179 = vshll.u32 %v3085, 16
      %v3181 = vor.u32 %v3178, %v3179
      %v3182 = vsel %vm1655, %v3174, %v3181
      %v3183 = vrot.slane %v3178, 4
      %v3185 = vshrl.u32 %v3086, 16
      %v3187 = vrot.slane %v3185, 7
      %v3188 = vshll.u32 %v3086, 16
      %v3190 = vor.u32 %v3187, %v3188
      %v3191 = vsel %vm1655, %v3183, %v3190
      %v3193 = vshrl.u32 %v3087, 16
      %v3195 = vrot.slane %v3193, 7
      %v3196 = vrot.slane %v3195, 4
      %v3198 = vshrl.u32 %v3088, 16
      %v3200 = vrot.slane %v3198, 7
      %v3201 = vshll.u32 %v3088, 16
      %v3203 = vor.u32 %v3200, %v3201
      %v3204 = vsel %vm1655, %v3196, %v3203
      %v3205 = vrot.slane %v3200, 4
      %v3207 = vshrl.u32 %v3089, 16
      %v3209 = vrot.slane %v3207, 7
      %v3210 = vshll.u32 %v3089, 16
      %v3212 = vor.u32 %v3209, %v3210
      %v3213 = vsel %vm1655, %v3205, %v3212
      %v3215 = vshrl.u32 %v3090, 16
      %v3217 = vrot.slane %v3215, 7
      %v3218 = vrot.slane %v3217, 4
      %v3220 = vshrl.u32 %v3091, 16
      %v3222 = vrot.slane %v3220, 7
      %v3223 = vshll.u32 %v3091, 16
      %v3225 = vor.u32 %v3222, %v3223
      %v3226 = vsel %vm1655, %v3218, %v3225
      %v3227 = vrot.slane %v3222, 4
      %v3229 = vshrl.u32 %v3092, 16
      %v3231 = vrot.slane %v3229, 7
      %v3232 = vshll.u32 %v3092, 16
      %v3234 = vor.u32 %v3231, %v3232
      %v3235 = vsel %vm1655, %v3227, %v3234
      %v3237 = vshrl.u32 %v3093, 16
      %v3239 = vrot.slane %v3237, 7
      %v3240 = vrot.slane %v3239, 4
      %v3242 = vshrl.u32 %v3094, 16
      %v3244 = vrot.slane %v3242, 7
      %v3245 = vshll.u32 %v3094, 16
      %v3247 = vor.u32 %v3244, %v3245
      %v3248 = vsel %vm1655, %v3240, %v3247
      %v3249 = vrot.slane %v3244, 4
      %v3251 = vshrl.u32 %v3095, 16
      %v3253 = vrot.slane %v3251, 7
      %v3254 = vshll.u32 %v3095, 16
      %v3256 = vor.u32 %v3253, %v3254
      %v3257 = vsel %vm1655, %v3249, %v3256
      %v3259 = vshrl.u32 %v3096, 16
      %v3261 = vrot.slane %v3259, 7
      %v3262 = vrot.slane %v3261, 4
      %v3264 = vshrl.u32 %v3097, 16
      %v3266 = vrot.slane %v3264, 7
      %v3267 = vshll.u32 %v3097, 16
      %v3269 = vor.u32 %v3266, %v3267
      %v3270 = vsel %vm1655, %v3262, %v3269
      %v3271 = vrot.slane %v3266, 4
      %v3273 = vshrl.u32 %v3098, 16
      %v3275 = vrot.slane %v3273, 7
      %v3276 = vshll.u32 %v3098, 16
      %v3278 = vor.u32 %v3275, %v3276
      %v3279 = vsel %vm1655, %v3271, %v3278
      %v3281 = vshrl.u32 %v3099, 16
      %v3283 = vrot.slane %v3281, 7
      %v3284 = vrot.slane %v3283, 4
      %v3286 = vshrl.u32 %v3100, 16
      %v3288 = vrot.slane %v3286, 7
      %v3289 = vshll.u32 %v3100, 16
      %v3291 = vor.u32 %v3288, %v3289
      %v3292 = vsel %vm1655, %v3284, %v3291
      %v3293 = vrot.slane %v3288, 4
      %v3295 = vshrl.u32 %v3101, 16
      %v3297 = vrot.slane %v3295, 7
      %v3298 = vshll.u32 %v3101, 16
      %v3300 = vor.u32 %v3297, %v3298
      %v3301 = vsel %vm1655, %v3293, %v3300
      %v3303 = vshrl.u32 %v3102, 16
      %v3305 = vrot.slane %v3303, 7
      %v3306 = vrot.slane %v3305, 4
      %v3308 = vshrl.u32 %v3103, 16
      %v3310 = vrot.slane %v3308, 7
      %v3311 = vshll.u32 %v3103, 16
      %v3313 = vor.u32 %v3310, %v3311
      %v3314 = vsel %vm1655, %v3306, %v3313
      %v3315 = vrot.slane %v3310, 4
      %v3317 = vshrl.u32 %v3104, 16
      %v3319 = vrot.slane %v3317, 7
      %v3320 = vshll.u32 %v3104, 16
      %v3322 = vor.u32 %v3319, %v3320
      %v3323 = vsel %vm1655, %v3315, %v3322
      %v3325 = vshrl.u32 %v3105, 16
      %v3327 = vrot.slane %v3325, 7
      %v3328 = vrot.slane %v3327, 4
      %v3330 = vshrl.u32 %v3106, 16
      %v3332 = vrot.slane %v3330, 7
      %v3333 = vshll.u32 %v3106, 16
      %v3335 = vor.u32 %v3332, %v3333
      %v3336 = vsel %vm1655, %v3328, %v3335
      %v3337 = vrot.slane %v3332, 4
      %v3339 = vshrl.u32 %v3107, 16
      %v3341 = vrot.slane %v3339, 7
      %v3342 = vshll.u32 %v3107, 16
      %v3344 = vor.u32 %v3341, %v3342
      %v3345 = vsel %vm1655, %v3337, %v3344
      %v3347 = vshrl.u32 %v3108, 16
      %v3349 = vrot.slane %v3347, 7
      %v3350 = vrot.slane %v3349, 4
      %v3352 = vshrl.u32 %v3109, 16
      %v3354 = vrot.slane %v3352, 7
      %v3355 = vshll.u32 %v3109, 16
      %v3357 = vor.u32 %v3354, %v3355
      %v3358 = vsel %vm1655, %v3350, %v3357
      %v3359 = vrot.slane %v3354, 4
      %v3361 = vshrl.u32 %v3110, 16
      %v3363 = vrot.slane %v3361, 7
      %v3364 = vshll.u32 %v3110, 16
      %v3366 = vor.u32 %v3363, %v3364
      %v3367 = vsel %vm1655, %v3359, %v3366
      %v3369 = vshrl.u32 %v3111, 16
      %v3371 = vrot.slane %v3369, 7
      %v3372 = vrot.slane %v3371, 4
      %v3374 = vshrl.u32 %v3112, 16
      %v3376 = vrot.slane %v3374, 7
      %v3377 = vshll.u32 %v3112, 16
      %v3379 = vor.u32 %v3376, %v3377
      %v3380 = vsel %vm1655, %v3372, %v3379
      %v3381 = vrot.slane %v3376, 4
      %v3383 = vshrl.u32 %v3113, 16
      %v3385 = vrot.slane %v3383, 7
      %v3386 = vshll.u32 %v3113, 16
      %v3388 = vor.u32 %v3385, %v3386
      %v3389 = vsel %vm1655, %v3381, %v3388
      %v3391 = vshrl.u32 %v3114, 16
      %v3393 = vrot.slane %v3391, 7
      %v3394 = vrot.slane %v3393, 4
      %v3396 = vshrl.u32 %v3115, 16
      %v3398 = vrot.slane %v3396, 7
      %v3399 = vshll.u32 %v3115, 16
      %v3401 = vor.u32 %v3398, %v3399
      %v3402 = vsel %vm1655, %v3394, %v3401
      %v3403 = vrot.slane %v3398, 4
      %v3405 = vshrl.u32 %v3116, 16
      %v3407 = vrot.slane %v3405, 7
      %v3408 = vshll.u32 %v3116, 16
      %v3410 = vor.u32 %v3407, %v3408
      %v3411 = vsel %vm1655, %v3403, %v3410
      %v3413 = vshrl.u32 %v3117, 16
      %v3415 = vrot.slane %v3413, 7
      %v3416 = vrot.slane %v3415, 4
      %v3418 = vshrl.u32 %v3118, 16
      %v3420 = vrot.slane %v3418, 7
      %v3421 = vshll.u32 %v3118, 16
      %v3423 = vor.u32 %v3420, %v3421
      %v3424 = vsel %vm1655, %v3416, %v3423
      %v3425 = vrot.slane %v3420, 4
      %v3427 = vshrl.u32 %v3119, 16
      %v3429 = vrot.slane %v3427, 7
      %v3430 = vshll.u32 %v3119, 16
      %v3432 = vor.u32 %v3429, %v3430
      %v3433 = vsel %vm1655, %v3425, %v3432
      %v3435 = vshrl.u32 %v3120, 16
      %v3437 = vrot.slane %v3435, 7
      %v3438 = vrot.slane %v3437, 4
      %v3440 = vshrl.u32 %v3121, 16
      %v3442 = vrot.slane %v3440, 7
      %v3443 = vshll.u32 %v3121, 16
      %v3445 = vor.u32 %v3442, %v3443
      %v3446 = vsel %vm1655, %v3438, %v3445
      %v3447 = vrot.slane %v3442, 4
      %v3449 = vshrl.u32 %v3122, 16
      %v3451 = vrot.slane %v3449, 7
      %v3452 = vshll.u32 %v3122, 16
      %v3454 = vor.u32 %v3451, %v3452
      %v3455 = vsel %vm1655, %v3447, %v3454
      %v3457 = vshrl.u32 %v3123, 16
      %v3459 = vrot.slane %v3457, 7
      %v3460 = vrot.slane %v3459, 4
      %v3462 = vshrl.u32 %v3124, 16
      %v3464 = vrot.slane %v3462, 7
      %v3465 = vshll.u32 %v3124, 16
      %v3467 = vor.u32 %v3464, %v3465
      %v3468 = vsel %vm1655, %v3460, %v3467
      %v3469 = vrot.slane %v3464, 4
      %v3471 = vshrl.u32 %v3125, 16
      %v3473 = vrot.slane %v3471, 7
      %v3474 = vshll.u32 %v3125, 16
      %v3476 = vor.u32 %v3473, %v3474
      %v3477 = vsel %vm1655, %v3469, %v3476
      %s3478 = scalar_lea.vmem %s5, 3
      %v3479 = vld [vmem:[%s3478] sm:$0x1]
      %v3480 = vunpack.c.l.b16 %v3138
      %v3481 = vunpack.c.l.b16 %v3147
      %v3482 = vunpack.c.l.b16 %v3160
      %v3483 = vunpack.c.l.b16 %v3169
      %v3484 = vunpack.c.l.b16 %v3182
      %v3485 = vunpack.c.l.b16 %v3191
      %v3486 = vunpack.c.l.b16 %v3204
      %v3487 = vunpack.c.l.b16 %v3213
      %v3488 = vunpack.c.l.b16 %v3226
      %v3489 = vunpack.c.l.b16 %v3235
      %v3490 = vunpack.c.l.b16 %v3248
      %v3491 = vunpack.c.l.b16 %v3257
      %v3492 = vunpack.c.l.b16 %v3270
      %v3493 = vunpack.c.l.b16 %v3279
      %v3494 = vunpack.c.l.b16 %v3292
      %v3495 = vunpack.c.l.b16 %v3301
      %v3496 = vunpack.c.l.b16 %v3314
      %v3497 = vunpack.c.l.b16 %v3323
      %v3498 = vunpack.c.l.b16 %v3336
      %v3499 = vunpack.c.l.b16 %v3345
      %v3500 = vunpack.c.l.b16 %v3358
      %v3501 = vunpack.c.l.b16 %v3367
      %v3502 = vunpack.c.l.b16 %v3380
      %v3503 = vunpack.c.l.b16 %v3389
      %v3504 = vunpack.c.l.b16 %v3402
      %v3505 = vunpack.c.l.b16 %v3411
      %v3506 = vunpack.c.l.b16 %v3424
      %v3507 = vunpack.c.l.b16 %v3433
      %v3508 = vunpack.c.l.b16 %v3446
      %v3509 = vunpack.c.l.b16 %v3455
      %v3510 = vunpack.c.l.b16 %v3468
      %v3511 = vunpack.c.l.b16 %v3477
      %v3512 = vpack.c.b16 %v3481, %v3480
      %v3513 = vpack.c.b16 %v3483, %v3482
      %v3514 = vpack.c.b16 %v3485, %v3484
      %v3515 = vpack.c.b16 %v3487, %v3486
      %v3516 = vpack.c.b16 %v3489, %v3488
      %v3517 = vpack.c.b16 %v3491, %v3490
      %v3518 = vpack.c.b16 %v3493, %v3492
      %v3519 = vpack.c.b16 %v3495, %v3494
      %v3520 = vpack.c.b16 %v3497, %v3496
      %v3521 = vpack.c.b16 %v3499, %v3498
      %v3522 = vpack.c.b16 %v3501, %v3500
      %v3523 = vpack.c.b16 %v3503, %v3502
      %v3524 = vpack.c.b16 %v3505, %v3504
      %v3525 = vpack.c.b16 %v3507, %v3506
      %v3526 = vpack.c.b16 %v3509, %v3508
      %v3527 = vpack.c.b16 %v3511, %v3510
      %v3529 = vsel %vm2091, %v3512, 0
      %v3532 = vsel %vm2091, %v3513, 0
      %v3535 = vsel %vm2091, %v3514, 0
      %v3538 = vsel %vm2091, %v3515, 0
      %v3541 = vsel %vm2091, %v3516, 0
      %v3544 = vsel %vm2091, %v3517, 0
      %v3547 = vsel %vm2091, %v3518, 0
      %v3550 = vsel %vm2091, %v3519, 0
      %v3553 = vsel %vm2091, %v3520, 0
      %v3556 = vsel %vm2091, %v3521, 0
      %v3559 = vsel %vm2091, %v3522, 0
      %v3562 = vsel %vm2091, %v3523, 0
      %v3565 = vsel %vm2091, %v3524, 0
      %v3568 = vsel %vm2091, %v3525, 0
      %v3571 = vsel %vm2091, %v3526, 0
      %v3574 = vsel %vm2091, %v3527, 0
      %v3577 = vsel %vm2140, %v3479, 0
      %3579 = vmatpush.bf16.msra.mxu0 0
      %3580 = vmatpush.bf16.msra.mxu0 0
      %3581 = vmatpush.bf16.msra.mxu0 0
      %3582 = vmatpush.bf16.msra.mxu0 0
      %3583 = vmatpush.bf16.msra.mxu0 0
      %3584 = vmatpush.bf16.msra.mxu0 0
      %3585 = vmatpush.bf16.msra.mxu0 0
      %3586 = vmatpush.bf16.msra.mxu0 %v3577
      %3587 = vmatmul.bf16.gmra.mxu0 %v3529
      %v3588 = vpop.f32.mrf.mxu0
      %v3589 = vadd.f32 0.0, %v3588
      %v3590 = vpop.f32.mrf.mxu0
      %v3591 = vadd.f32 0.0, %v3590
      %3592 = vmatmul.bf16.gmra.mxu0 %v3532
      %v3593 = vpop.f32.mrf.mxu0
      %v3594 = vadd.f32 0.0, %v3593
      %v3595 = vpop.f32.mrf.mxu0
      %v3596 = vadd.f32 0.0, %v3595
      %3597 = vmatmul.bf16.gmra.mxu0 %v3535
      %v3598 = vpop.f32.mrf.mxu0
      %v3599 = vadd.f32 0.0, %v3598
      %v3600 = vpop.f32.mrf.mxu0
      %v3601 = vadd.f32 0.0, %v3600
      %3602 = vmatmul.bf16.gmra.mxu0 %v3538
      %v3603 = vpop.f32.mrf.mxu0
      %v3604 = vadd.f32 0.0, %v3603
      %v3605 = vpop.f32.mrf.mxu0
      %v3606 = vadd.f32 0.0, %v3605
      %3607 = vmatmul.bf16.gmra.mxu0 %v3541
      %v3608 = vpop.f32.mrf.mxu0
      %v3609 = vadd.f32 0.0, %v3608
      %v3610 = vpop.f32.mrf.mxu0
      %v3611 = vadd.f32 0.0, %v3610
      %3612 = vmatmul.bf16.gmra.mxu0 %v3544
      %v3613 = vpop.f32.mrf.mxu0
      %v3614 = vadd.f32 0.0, %v3613
      %v3615 = vpop.f32.mrf.mxu0
      %v3616 = vadd.f32 0.0, %v3615
      %3617 = vmatmul.bf16.gmra.mxu0 %v3547
      %v3618 = vpop.f32.mrf.mxu0
      %v3619 = vadd.f32 0.0, %v3618
      %v3620 = vpop.f32.mrf.mxu0
      %v3621 = vadd.f32 0.0, %v3620
      %3622 = vmatmul.bf16.gmra.mxu0 %v3550
      %v3623 = vpop.f32.mrf.mxu0
      %v3624 = vadd.f32 0.0, %v3623
      %v3625 = vpop.f32.mrf.mxu0
      %v3626 = vadd.f32 0.0, %v3625
      %3627 = vmatmul.bf16.gmra.mxu0 %v3553
      %v3628 = vpop.f32.mrf.mxu0
      %v3629 = vadd.f32 0.0, %v3628
      %v3630 = vpop.f32.mrf.mxu0
      %v3631 = vadd.f32 0.0, %v3630
      %3632 = vmatmul.bf16.gmra.mxu0 %v3556
      %v3633 = vpop.f32.mrf.mxu0
      %v3634 = vadd.f32 0.0, %v3633
      %v3635 = vpop.f32.mrf.mxu0
      %v3636 = vadd.f32 0.0, %v3635
      %3637 = vmatmul.bf16.gmra.mxu0 %v3559
      %v3638 = vpop.f32.mrf.mxu0
      %v3639 = vadd.f32 0.0, %v3638
      %v3640 = vpop.f32.mrf.mxu0
      %v3641 = vadd.f32 0.0, %v3640
      %3642 = vmatmul.bf16.gmra.mxu0 %v3562
      %v3643 = vpop.f32.mrf.mxu0
      %v3644 = vadd.f32 0.0, %v3643
      %v3645 = vpop.f32.mrf.mxu0
      %v3646 = vadd.f32 0.0, %v3645
      %3647 = vmatmul.bf16.gmra.mxu0 %v3565
      %v3648 = vpop.f32.mrf.mxu0
      %v3649 = vadd.f32 0.0, %v3648
      %v3650 = vpop.f32.mrf.mxu0
      %v3651 = vadd.f32 0.0, %v3650
      %3652 = vmatmul.bf16.gmra.mxu0 %v3568
      %v3653 = vpop.f32.mrf.mxu0
      %v3654 = vadd.f32 0.0, %v3653
      %v3655 = vpop.f32.mrf.mxu0
      %v3656 = vadd.f32 0.0, %v3655
      %3657 = vmatmul.bf16.gmra.mxu0 %v3571
      %v3658 = vpop.f32.mrf.mxu0
      %v3659 = vadd.f32 0.0, %v3658
      %v3660 = vpop.f32.mrf.mxu0
      %v3661 = vadd.f32 0.0, %v3660
      %3662 = vmatmul.bf16.gmra.mxu0 %v3574
      %v3663 = vpop.f32.mrf.mxu0
      %v3664 = vadd.f32 0.0, %v3663
      %v3665 = vpop.f32.mrf.mxu0
      %v3666 = vadd.f32 0.0, %v3665
      %3667 = vdwg.mxu0
      %v3668 = vadd.f32 %v3046, %v3589
      %v3669 = vadd.f32 %v3047, %v3591
      %v3670 = vadd.f32 %v3048, %v3594
      %v3671 = vadd.f32 %v3049, %v3596
      %v3672 = vadd.f32 %v3050, %v3599
      %v3673 = vadd.f32 %v3051, %v3601
      %v3674 = vadd.f32 %v3052, %v3604
      %v3675 = vadd.f32 %v3053, %v3606
      %v3676 = vadd.f32 %v3054, %v3609
      %v3677 = vadd.f32 %v3055, %v3611
      %v3678 = vadd.f32 %v3056, %v3614
      %v3679 = vadd.f32 %v3057, %v3616
      %v3680 = vadd.f32 %v3058, %v3619
      %v3681 = vadd.f32 %v3059, %v3621
      %v3682 = vadd.f32 %v3060, %v3624
      %v3683 = vadd.f32 %v3061, %v3626
      %v3684 = vadd.f32 %v3062, %v3629
      %v3685 = vadd.f32 %v3063, %v3631
      %v3686 = vadd.f32 %v3064, %v3634
      %v3687 = vadd.f32 %v3065, %v3636
      %v3688 = vadd.f32 %v3066, %v3639
      %v3689 = vadd.f32 %v3067, %v3641
      %v3690 = vadd.f32 %v3068, %v3644
      %v3691 = vadd.f32 %v3069, %v3646
      %v3692 = vadd.f32 %v3070, %v3649
      %v3693 = vadd.f32 %v3071, %v3651
      %v3694 = vadd.f32 %v3072, %v3654
      %v3695 = vadd.f32 %v3073, %v3656
      %v3696 = vadd.f32 %v3074, %v3659
      %v3697 = vadd.f32 %v3075, %v3661
      %v3698 = vadd.f32 %v3076, %v3664
      %v3699 = vadd.f32 %v3077, %v3666
      %s3700 = scalar_lea.vmem %s5, 4
      %v3701 = vld [vmem:[%s3700] sm:$0x1]
      %v3734 = vunpack.c.l.b16 %v3079
      %v3735 = vunpack.c.l.b16 %v3080
      %v3736 = vunpack.c.l.b16 %v3082
      %v3737 = vunpack.c.l.b16 %v3083
      %v3738 = vunpack.c.l.b16 %v3085
      %v3739 = vunpack.c.l.b16 %v3086
      %v3740 = vunpack.c.l.b16 %v3088
      %v3741 = vunpack.c.l.b16 %v3089
      %v3742 = vunpack.c.l.b16 %v3091
      %v3743 = vunpack.c.l.b16 %v3092
      %v3744 = vunpack.c.l.b16 %v3094
      %v3745 = vunpack.c.l.b16 %v3095
      %v3746 = vunpack.c.l.b16 %v3097
      %v3747 = vunpack.c.l.b16 %v3098
      %v3748 = vunpack.c.l.b16 %v3100
      %v3749 = vunpack.c.l.b16 %v3101
      %v3750 = vunpack.c.l.b16 %v3103
      %v3751 = vunpack.c.l.b16 %v3104
      %v3752 = vunpack.c.l.b16 %v3106
      %v3753 = vunpack.c.l.b16 %v3107
      %v3754 = vunpack.c.l.b16 %v3109
      %v3755 = vunpack.c.l.b16 %v3110
      %v3756 = vunpack.c.l.b16 %v3112
      %v3757 = vunpack.c.l.b16 %v3113
      %v3758 = vunpack.c.l.b16 %v3115
      %v3759 = vunpack.c.l.b16 %v3116
      %v3760 = vunpack.c.l.b16 %v3118
      %v3761 = vunpack.c.l.b16 %v3119
      %v3762 = vunpack.c.l.b16 %v3121
      %v3763 = vunpack.c.l.b16 %v3122
      %v3764 = vunpack.c.l.b16 %v3124
      %v3765 = vunpack.c.l.b16 %v3125
      %v3766 = vpack.c.b16 %v3735, %v3734
      %v3767 = vpack.c.b16 %v3737, %v3736
      %v3768 = vpack.c.b16 %v3739, %v3738
      %v3769 = vpack.c.b16 %v3741, %v3740
      %v3770 = vpack.c.b16 %v3743, %v3742
      %v3771 = vpack.c.b16 %v3745, %v3744
      %v3772 = vpack.c.b16 %v3747, %v3746
      %v3773 = vpack.c.b16 %v3749, %v3748
      %v3774 = vpack.c.b16 %v3751, %v3750
      %v3775 = vpack.c.b16 %v3753, %v3752
      %v3776 = vpack.c.b16 %v3755, %v3754
      %v3777 = vpack.c.b16 %v3757, %v3756
      %v3778 = vpack.c.b16 %v3759, %v3758
      %v3779 = vpack.c.b16 %v3761, %v3760
      %v3780 = vpack.c.b16 %v3763, %v3762
      %v3781 = vpack.c.b16 %v3765, %v3764
      %v3783 = vsel %vm2091, %v3766, 0
      %v3786 = vsel %vm2091, %v3767, 0
      %v3789 = vsel %vm2091, %v3768, 0
      %v3792 = vsel %vm2091, %v3769, 0
      %v3795 = vsel %vm2091, %v3770, 0
      %v3798 = vsel %vm2091, %v3771, 0
      %v3801 = vsel %vm2091, %v3772, 0
      %v3804 = vsel %vm2091, %v3773, 0
      %v3807 = vsel %vm2091, %v3774, 0
      %v3810 = vsel %vm2091, %v3775, 0
      %v3813 = vsel %vm2091, %v3776, 0
      %v3816 = vsel %vm2091, %v3777, 0
      %v3819 = vsel %vm2091, %v3778, 0
      %v3822 = vsel %vm2091, %v3779, 0
      %v3825 = vsel %vm2091, %v3780, 0
      %v3828 = vsel %vm2091, %v3781, 0
      %v3831 = vsel %vm2140, %v3701, 0
      %3833 = vmatpush.bf16.msra.mxu0 0
      %3834 = vmatpush.bf16.msra.mxu0 0
      %3835 = vmatpush.bf16.msra.mxu0 0
      %3836 = vmatpush.bf16.msra.mxu0 0
      %3837 = vmatpush.bf16.msra.mxu0 0
      %3838 = vmatpush.bf16.msra.mxu0 0
      %3839 = vmatpush.bf16.msra.mxu0 0
      %3840 = vmatpush.bf16.msra.mxu0 %v3831
      %3841 = vmatmul.bf16.gmra.mxu0 %v3783
      %v3842 = vpop.f32.mrf.mxu0
      %v3843 = vadd.f32 0.0, %v3842
      %v3844 = vpop.f32.mrf.mxu0
      %v3845 = vadd.f32 0.0, %v3844
      %3846 = vmatmul.bf16.gmra.mxu0 %v3786
      %v3847 = vpop.f32.mrf.mxu0
      %v3848 = vadd.f32 0.0, %v3847
      %v3849 = vpop.f32.mrf.mxu0
      %v3850 = vadd.f32 0.0, %v3849
      %3851 = vmatmul.bf16.gmra.mxu0 %v3789
      %v3852 = vpop.f32.mrf.mxu0
      %v3853 = vadd.f32 0.0, %v3852
      %v3854 = vpop.f32.mrf.mxu0
      %v3855 = vadd.f32 0.0, %v3854
      %3856 = vmatmul.bf16.gmra.mxu0 %v3792
      %v3857 = vpop.f32.mrf.mxu0
      %v3858 = vadd.f32 0.0, %v3857
      %v3859 = vpop.f32.mrf.mxu0
      %v3860 = vadd.f32 0.0, %v3859
      %3861 = vmatmul.bf16.gmra.mxu0 %v3795
      %v3862 = vpop.f32.mrf.mxu0
      %v3863 = vadd.f32 0.0, %v3862
      %v3864 = vpop.f32.mrf.mxu0
      %v3865 = vadd.f32 0.0, %v3864
      %3866 = vmatmul.bf16.gmra.mxu0 %v3798
      %v3867 = vpop.f32.mrf.mxu0
      %v3868 = vadd.f32 0.0, %v3867
      %v3869 = vpop.f32.mrf.mxu0
      %v3870 = vadd.f32 0.0, %v3869
      %3871 = vmatmul.bf16.gmra.mxu0 %v3801
      %v3872 = vpop.f32.mrf.mxu0
      %v3873 = vadd.f32 0.0, %v3872
      %v3874 = vpop.f32.mrf.mxu0
      %v3875 = vadd.f32 0.0, %v3874
      %3876 = vmatmul.bf16.gmra.mxu0 %v3804
      %v3877 = vpop.f32.mrf.mxu0
      %v3878 = vadd.f32 0.0, %v3877
      %v3879 = vpop.f32.mrf.mxu0
      %v3880 = vadd.f32 0.0, %v3879
      %3881 = vmatmul.bf16.gmra.mxu0 %v3807
      %v3882 = vpop.f32.mrf.mxu0
      %v3883 = vadd.f32 0.0, %v3882
      %v3884 = vpop.f32.mrf.mxu0
      %v3885 = vadd.f32 0.0, %v3884
      %3886 = vmatmul.bf16.gmra.mxu0 %v3810
      %v3887 = vpop.f32.mrf.mxu0
      %v3888 = vadd.f32 0.0, %v3887
      %v3889 = vpop.f32.mrf.mxu0
      %v3890 = vadd.f32 0.0, %v3889
      %3891 = vmatmul.bf16.gmra.mxu0 %v3813
      %v3892 = vpop.f32.mrf.mxu0
      %v3893 = vadd.f32 0.0, %v3892
      %v3894 = vpop.f32.mrf.mxu0
      %v3895 = vadd.f32 0.0, %v3894
      %3896 = vmatmul.bf16.gmra.mxu0 %v3816
      %v3897 = vpop.f32.mrf.mxu0
      %v3898 = vadd.f32 0.0, %v3897
      %v3899 = vpop.f32.mrf.mxu0
      %v3900 = vadd.f32 0.0, %v3899
      %3901 = vmatmul.bf16.gmra.mxu0 %v3819
      %v3902 = vpop.f32.mrf.mxu0
      %v3903 = vadd.f32 0.0, %v3902
      %v3904 = vpop.f32.mrf.mxu0
      %v3905 = vadd.f32 0.0, %v3904
      %3906 = vmatmul.bf16.gmra.mxu0 %v3822
      %v3907 = vpop.f32.mrf.mxu0
      %v3908 = vadd.f32 0.0, %v3907
      %v3909 = vpop.f32.mrf.mxu0
      %v3910 = vadd.f32 0.0, %v3909
      %3911 = vmatmul.bf16.gmra.mxu0 %v3825
      %v3912 = vpop.f32.mrf.mxu0
      %v3913 = vadd.f32 0.0, %v3912
      %v3914 = vpop.f32.mrf.mxu0
      %v3915 = vadd.f32 0.0, %v3914
      %3916 = vmatmul.bf16.gmra.mxu0 %v3828
      %v3917 = vpop.f32.mrf.mxu0
      %v3918 = vadd.f32 0.0, %v3917
      %v3919 = vpop.f32.mrf.mxu0
      %v3920 = vadd.f32 0.0, %v3919
      %3921 = vdwg.mxu0
      %v3922 = vadd.f32 %v3668, %v3843
      %v3923 = vadd.f32 %v3669, %v3845
      %v3924 = vadd.f32 %v3670, %v3848
      %v3925 = vadd.f32 %v3671, %v3850
      %v3926 = vadd.f32 %v3672, %v3853
      %v3927 = vadd.f32 %v3673, %v3855
      %v3928 = vadd.f32 %v3674, %v3858
      %v3929 = vadd.f32 %v3675, %v3860
      %v3930 = vadd.f32 %v3676, %v3863
      %v3931 = vadd.f32 %v3677, %v3865
      %v3932 = vadd.f32 %v3678, %v3868
      %v3933 = vadd.f32 %v3679, %v3870
      %v3934 = vadd.f32 %v3680, %v3873
      %v3935 = vadd.f32 %v3681, %v3875
      %v3936 = vadd.f32 %v3682, %v3878
      %v3937 = vadd.f32 %v3683, %v3880
      %v3938 = vadd.f32 %v3684, %v3883
      %v3939 = vadd.f32 %v3685, %v3885
      %v3940 = vadd.f32 %v3686, %v3888
      %v3941 = vadd.f32 %v3687, %v3890
      %v3942 = vadd.f32 %v3688, %v3893
      %v3943 = vadd.f32 %v3689, %v3895
      %v3944 = vadd.f32 %v3690, %v3898
      %v3945 = vadd.f32 %v3691, %v3900
      %v3946 = vadd.f32 %v3692, %v3903
      %v3947 = vadd.f32 %v3693, %v3905
      %v3948 = vadd.f32 %v3694, %v3908
      %v3949 = vadd.f32 %v3695, %v3910
      %v3950 = vadd.f32 %v3696, %v3913
      %v3951 = vadd.f32 %v3697, %v3915
      %v3952 = vadd.f32 %v3698, %v3918
      %v3953 = vadd.f32 %v3699, %v3920
      %v3954 = vld [vmem:[%s1572 + $0x4] sm:$0xf]
      %v3955 = vld [vmem:[%s1572 + $0x8] sm:$0xf]
      %v3956 = vld [vmem:[%s1572 + $0xc] sm:$0x1]
      %v3957 = vld [vmem:[%s1572 + $0x14] sm:$0xf]
      %v3958 = vld [vmem:[%s1572 + $0x18] sm:$0xf]
      %v3959 = vld [vmem:[%s1572 + $0x1c] sm:$0x1]
      %v3960 = vld [vmem:[%s1572 + $0x24] sm:$0xf]
      %v3961 = vld [vmem:[%s1572 + $0x28] sm:$0xf]
      %v3962 = vld [vmem:[%s1572 + $0x2c] sm:$0x1]
      %v3963 = vld [vmem:[%s1572 + $0x34] sm:$0xf]
      %v3964 = vld [vmem:[%s1572 + $0x38] sm:$0xf]
      %v3965 = vld [vmem:[%s1572 + $0x3c] sm:$0x1]
      %v3966 = vld [vmem:[%s1572 + $0x44] sm:$0xf]
      %v3967 = vld [vmem:[%s1572 + $0x48] sm:$0xf]
      %v3968 = vld [vmem:[%s1572 + $0x4c] sm:$0x1]
      %v3969 = vld [vmem:[%s1572 + $0x54] sm:$0xf]
      %v3970 = vld [vmem:[%s1572 + $0x58] sm:$0xf]
      %v3971 = vld [vmem:[%s1572 + $0x5c] sm:$0x1]
      %v3972 = vld [vmem:[%s1572 + $0x64] sm:$0xf]
      %v3973 = vld [vmem:[%s1572 + $0x68] sm:$0xf]
      %v3974 = vld [vmem:[%s1572 + $0x6c] sm:$0x1]
      %v3975 = vld [vmem:[%s1572 + $0x74] sm:$0xf]
      %v3976 = vld [vmem:[%s1572 + $0x78] sm:$0xf]
      %v3977 = vld [vmem:[%s1572 + $0x7c] sm:$0x1]
      %v3978 = vld [vmem:[%s1572 + $0x84] sm:$0xf]
      %v3979 = vld [vmem:[%s1572 + $0x88] sm:$0xf]
      %v3980 = vld [vmem:[%s1572 + $0x8c] sm:$0x1]
      %v3981 = vld [vmem:[%s1572 + $0x94] sm:$0xf]
      %v3982 = vld [vmem:[%s1572 + $0x98] sm:$0xf]
      %v3983 = vld [vmem:[%s1572 + $0x9c] sm:$0x1]
      %v3984 = vld [vmem:[%s1572 + $0xa4] sm:$0xf]
      %v3985 = vld [vmem:[%s1572 + $0xa8] sm:$0xf]
      %v3986 = vld [vmem:[%s1572 + $0xac] sm:$0x1]
      %v3987 = vld [vmem:[%s1572 + $0xb4] sm:$0xf]
      %v3988 = vld [vmem:[%s1572 + $0xb8] sm:$0xf]
      %v3989 = vld [vmem:[%s1572 + $0xbc] sm:$0x1]
      %v3990 = vld [vmem:[%s1572 + $0xc4] sm:$0xf]
      %v3991 = vld [vmem:[%s1572 + $0xc8] sm:$0xf]
      %v3992 = vld [vmem:[%s1572 + $0xcc] sm:$0x1]
      %v3993 = vld [vmem:[%s1572 + $0xd4] sm:$0xf]
      %v3994 = vld [vmem:[%s1572 + $0xd8] sm:$0xf]
      %v3995 = vld [vmem:[%s1572 + $0xdc] sm:$0x1]
      %v3996 = vld [vmem:[%s1572 + $0xe4] sm:$0xf]
      %v3997 = vld [vmem:[%s1572 + $0xe8] sm:$0xf]
      %v3998 = vld [vmem:[%s1572 + $0xec] sm:$0x1]
      %v3999 = vld [vmem:[%s1572 + $0xf4] sm:$0xf]
      %v4000 = vld [vmem:[%s1572 + $0xf8] sm:$0xf]
      %v4001 = vld [vmem:[%s1572 + $0xfc] sm:$0x1]
      %v4003 = vshrl.u32 %v3954, 16
      %v4005 = vrot.slane %v4003, 4
      %v4006 = vshll.u32 %v3954, 16
      %v4008 = vrot.slane %v4006, 5
      %v4009 = vor.u32 %v4005, %v4008
      %v4010 = vrot.slane %v4009, 4
      %v4012 = vshll.u32 %v3955, 16
      %v4014 = vrot.slane %v4012, 5
      %v4015 = vsel %vm2471, %v4010, %v4014
      %v4016 = vshrl.u32 %v3955, 16
      %v4018 = vrot.slane %v4016, 4
      %v4019 = vor.u32 %v4018, %v4014
      %v4020 = vrot.slane %v4019, 4
      %v4022 = vshll.u32 %v3956, 16
      %v4024 = vrot.slane %v4022, 5
      %v4025 = vsel %vm2471, %v4020, %v4024
      %v4027 = vshrl.u32 %v3957, 16
      %v4029 = vrot.slane %v4027, 4
      %v4030 = vshll.u32 %v3957, 16
      %v4032 = vrot.slane %v4030, 5
      %v4033 = vor.u32 %v4029, %v4032
      %v4034 = vrot.slane %v4033, 4
      %v4036 = vshll.u32 %v3958, 16
      %v4038 = vrot.slane %v4036, 5
      %v4039 = vsel %vm2471, %v4034, %v4038
      %v4040 = vshrl.u32 %v3958, 16
      %v4042 = vrot.slane %v4040, 4
      %v4043 = vor.u32 %v4042, %v4038
      %v4044 = vrot.slane %v4043, 4
      %v4046 = vshll.u32 %v3959, 16
      %v4048 = vrot.slane %v4046, 5
      %v4049 = vsel %vm2471, %v4044, %v4048
      %v4051 = vshrl.u32 %v3960, 16
      %v4053 = vrot.slane %v4051, 4
      %v4054 = vshll.u32 %v3960, 16
      %v4056 = vrot.slane %v4054, 5
      %v4057 = vor.u32 %v4053, %v4056
      %v4058 = vrot.slane %v4057, 4
      %v4060 = vshll.u32 %v3961, 16
      %v4062 = vrot.slane %v4060, 5
      %v4063 = vsel %vm2471, %v4058, %v4062
      %v4064 = vshrl.u32 %v3961, 16
      %v4066 = vrot.slane %v4064, 4
      %v4067 = vor.u32 %v4066, %v4062
      %v4068 = vrot.slane %v4067, 4
      %v4070 = vshll.u32 %v3962, 16
      %v4072 = vrot.slane %v4070, 5
      %v4073 = vsel %vm2471, %v4068, %v4072
      %v4075 = vshrl.u32 %v3963, 16
      %v4077 = vrot.slane %v4075, 4
      %v4078 = vshll.u32 %v3963, 16
      %v4080 = vrot.slane %v4078, 5
      %v4081 = vor.u32 %v4077, %v4080
      %v4082 = vrot.slane %v4081, 4
      %v4084 = vshll.u32 %v3964, 16
      %v4086 = vrot.slane %v4084, 5
      %v4087 = vsel %vm2471, %v4082, %v4086
      %v4088 = vshrl.u32 %v3964, 16
      %v4090 = vrot.slane %v4088, 4
      %v4091 = vor.u32 %v4090, %v4086
      %v4092 = vrot.slane %v4091, 4
      %v4094 = vshll.u32 %v3965, 16
      %v4096 = vrot.slane %v4094, 5
      %v4097 = vsel %vm2471, %v4092, %v4096
      %v4099 = vshrl.u32 %v3966, 16
      %v4101 = vrot.slane %v4099, 4
      %v4102 = vshll.u32 %v3966, 16
      %v4104 = vrot.slane %v4102, 5
      %v4105 = vor.u32 %v4101, %v4104
      %v4106 = vrot.slane %v4105, 4
      %v4108 = vshll.u32 %v3967, 16
      %v4110 = vrot.slane %v4108, 5
      %v4111 = vsel %vm2471, %v4106, %v4110
      %v4112 = vshrl.u32 %v3967, 16
      %v4114 = vrot.slane %v4112, 4
      %v4115 = vor.u32 %v4114, %v4110
      %v4116 = vrot.slane %v4115, 4
      %v4118 = vshll.u32 %v3968, 16
      %v4120 = vrot.slane %v4118, 5
      %v4121 = vsel %vm2471, %v4116, %v4120
      %v4123 = vshrl.u32 %v3969, 16
      %v4125 = vrot.slane %v4123, 4
      %v4126 = vshll.u32 %v3969, 16
      %v4128 = vrot.slane %v4126, 5
      %v4129 = vor.u32 %v4125, %v4128
      %v4130 = vrot.slane %v4129, 4
      %v4132 = vshll.u32 %v3970, 16
      %v4134 = vrot.slane %v4132, 5
      %v4135 = vsel %vm2471, %v4130, %v4134
      %v4136 = vshrl.u32 %v3970, 16
      %v4138 = vrot.slane %v4136, 4
      %v4139 = vor.u32 %v4138, %v4134
      %v4140 = vrot.slane %v4139, 4
      %v4142 = vshll.u32 %v3971, 16
      %v4144 = vrot.slane %v4142, 5
      %v4145 = vsel %vm2471, %v4140, %v4144
      %v4147 = vshrl.u32 %v3972, 16
      %v4149 = vrot.slane %v4147, 4
      %v4150 = vshll.u32 %v3972, 16
      %v4152 = vrot.slane %v4150, 5
      %v4153 = vor.u32 %v4149, %v4152
      %v4154 = vrot.slane %v4153, 4
      %v4156 = vshll.u32 %v3973, 16
      %v4158 = vrot.slane %v4156, 5
      %v4159 = vsel %vm2471, %v4154, %v4158
      %v4160 = vshrl.u32 %v3973, 16
      %v4162 = vrot.slane %v4160, 4
      %v4163 = vor.u32 %v4162, %v4158
      %v4164 = vrot.slane %v4163, 4
      %v4166 = vshll.u32 %v3974, 16
      %v4168 = vrot.slane %v4166, 5
      %v4169 = vsel %vm2471, %v4164, %v4168
      %v4171 = vshrl.u32 %v3975, 16
      %v4173 = vrot.slane %v4171, 4
      %v4174 = vshll.u32 %v3975, 16
      %v4176 = vrot.slane %v4174, 5
      %v4177 = vor.u32 %v4173, %v4176
      %v4178 = vrot.slane %v4177, 4
      %v4180 = vshll.u32 %v3976, 16
      %v4182 = vrot.slane %v4180, 5
      %v4183 = vsel %vm2471, %v4178, %v4182
      %v4184 = vshrl.u32 %v3976, 16
      %v4186 = vrot.slane %v4184, 4
      %v4187 = vor.u32 %v4186, %v4182
      %v4188 = vrot.slane %v4187, 4
      %v4190 = vshll.u32 %v3977, 16
      %v4192 = vrot.slane %v4190, 5
      %v4193 = vsel %vm2471, %v4188, %v4192
      %v4195 = vshrl.u32 %v3978, 16
      %v4197 = vrot.slane %v4195, 4
      %v4198 = vshll.u32 %v3978, 16
      %v4200 = vrot.slane %v4198, 5
      %v4201 = vor.u32 %v4197, %v4200
      %v4202 = vrot.slane %v4201, 4
      %v4204 = vshll.u32 %v3979, 16
      %v4206 = vrot.slane %v4204, 5
      %v4207 = vsel %vm2471, %v4202, %v4206
      %v4208 = vshrl.u32 %v3979, 16
      %v4210 = vrot.slane %v4208, 4
      %v4211 = vor.u32 %v4210, %v4206
      %v4212 = vrot.slane %v4211, 4
      %v4214 = vshll.u32 %v3980, 16
      %v4216 = vrot.slane %v4214, 5
      %v4217 = vsel %vm2471, %v4212, %v4216
      %v4219 = vshrl.u32 %v3981, 16
      %v4221 = vrot.slane %v4219, 4
      %v4222 = vshll.u32 %v3981, 16
      %v4224 = vrot.slane %v4222, 5
      %v4225 = vor.u32 %v4221, %v4224
      %v4226 = vrot.slane %v4225, 4
      %v4228 = vshll.u32 %v3982, 16
      %v4230 = vrot.slane %v4228, 5
      %v4231 = vsel %vm2471, %v4226, %v4230
      %v4232 = vshrl.u32 %v3982, 16
      %v4234 = vrot.slane %v4232, 4
      %v4235 = vor.u32 %v4234, %v4230
      %v4236 = vrot.slane %v4235, 4
      %v4238 = vshll.u32 %v3983, 16
      %v4240 = vrot.slane %v4238, 5
      %v4241 = vsel %vm2471, %v4236, %v4240
      %v4243 = vshrl.u32 %v3984, 16
      %v4245 = vrot.slane %v4243, 4
      %v4246 = vshll.u32 %v3984, 16
      %v4248 = vrot.slane %v4246, 5
      %v4249 = vor.u32 %v4245, %v4248
      %v4250 = vrot.slane %v4249, 4
      %v4252 = vshll.u32 %v3985, 16
      %v4254 = vrot.slane %v4252, 5
      %v4255 = vsel %vm2471, %v4250, %v4254
      %v4256 = vshrl.u32 %v3985, 16
      %v4258 = vrot.slane %v4256, 4
      %v4259 = vor.u32 %v4258, %v4254
      %v4260 = vrot.slane %v4259, 4
      %v4262 = vshll.u32 %v3986, 16
      %v4264 = vrot.slane %v4262, 5
      %v4265 = vsel %vm2471, %v4260, %v4264
      %v4267 = vshrl.u32 %v3987, 16
      %v4269 = vrot.slane %v4267, 4
      %v4270 = vshll.u32 %v3987, 16
      %v4272 = vrot.slane %v4270, 5
      %v4273 = vor.u32 %v4269, %v4272
      %v4274 = vrot.slane %v4273, 4
      %v4276 = vshll.u32 %v3988, 16
      %v4278 = vrot.slane %v4276, 5
      %v4279 = vsel %vm2471, %v4274, %v4278
      %v4280 = vshrl.u32 %v3988, 16
      %v4282 = vrot.slane %v4280, 4
      %v4283 = vor.u32 %v4282, %v4278
      %v4284 = vrot.slane %v4283, 4
      %v4286 = vshll.u32 %v3989, 16
      %v4288 = vrot.slane %v4286, 5
      %v4289 = vsel %vm2471, %v4284, %v4288
      %v4291 = vshrl.u32 %v3990, 16
      %v4293 = vrot.slane %v4291, 4
      %v4294 = vshll.u32 %v3990, 16
      %v4296 = vrot.slane %v4294, 5
      %v4297 = vor.u32 %v4293, %v4296
      %v4298 = vrot.slane %v4297, 4
      %v4300 = vshll.u32 %v3991, 16
      %v4302 = vrot.slane %v4300, 5
      %v4303 = vsel %vm2471, %v4298, %v4302
      %v4304 = vshrl.u32 %v3991, 16
      %v4306 = vrot.slane %v4304, 4
      %v4307 = vor.u32 %v4306, %v4302
      %v4308 = vrot.slane %v4307, 4
      %v4310 = vshll.u32 %v3992, 16
      %v4312 = vrot.slane %v4310, 5
      %v4313 = vsel %vm2471, %v4308, %v4312
      %v4315 = vshrl.u32 %v3993, 16
      %v4317 = vrot.slane %v4315, 4
      %v4318 = vshll.u32 %v3993, 16
      %v4320 = vrot.slane %v4318, 5
      %v4321 = vor.u32 %v4317, %v4320
      %v4322 = vrot.slane %v4321, 4
      %v4324 = vshll.u32 %v3994, 16
      %v4326 = vrot.slane %v4324, 5
      %v4327 = vsel %vm2471, %v4322, %v4326
      %v4328 = vshrl.u32 %v3994, 16
      %v4330 = vrot.slane %v4328, 4
      %v4331 = vor.u32 %v4330, %v4326
      %v4332 = vrot.slane %v4331, 4
      %v4334 = vshll.u32 %v3995, 16
      %v4336 = vrot.slane %v4334, 5
      %v4337 = vsel %vm2471, %v4332, %v4336
      %v4339 = vshrl.u32 %v3996, 16
      %v4341 = vrot.slane %v4339, 4
      %v4342 = vshll.u32 %v3996, 16
      %v4344 = vrot.slane %v4342, 5
      %v4345 = vor.u32 %v4341, %v4344
      %v4346 = vrot.slane %v4345, 4
      %v4348 = vshll.u32 %v3997, 16
      %v4350 = vrot.slane %v4348, 5
      %v4351 = vsel %vm2471, %v4346, %v4350
      %v4352 = vshrl.u32 %v3997, 16
      %v4354 = vrot.slane %v4352, 4
      %v4355 = vor.u32 %v4354, %v4350
      %v4356 = vrot.slane %v4355, 4
      %v4358 = vshll.u32 %v3998, 16
      %v4360 = vrot.slane %v4358, 5
      %v4361 = vsel %vm2471, %v4356, %v4360
      %v4363 = vshrl.u32 %v3999, 16
      %v4365 = vrot.slane %v4363, 4
      %v4366 = vshll.u32 %v3999, 16
      %v4368 = vrot.slane %v4366, 5
      %v4369 = vor.u32 %v4365, %v4368
      %v4370 = vrot.slane %v4369, 4
      %v4372 = vshll.u32 %v4000, 16
      %v4374 = vrot.slane %v4372, 5
      %v4375 = vsel %vm2471, %v4370, %v4374
      %v4376 = vshrl.u32 %v4000, 16
      %v4378 = vrot.slane %v4376, 4
      %v4379 = vor.u32 %v4378, %v4374
      %v4380 = vrot.slane %v4379, 4
      %v4382 = vshll.u32 %v4001, 16
      %v4384 = vrot.slane %v4382, 5
      %v4385 = vsel %vm2471, %v4380, %v4384
      %s4386 = scalar_lea.vmem %s5, 5
      %v4387 = vld [vmem:[%s4386] sm:$0x1]
      %v4388 = vunpack.c.l.b16 %v4015
      %v4389 = vunpack.c.l.b16 %v4025
      %v4390 = vunpack.c.l.b16 %v4039
      %v4391 = vunpack.c.l.b16 %v4049
      %v4392 = vunpack.c.l.b16 %v4063
      %v4393 = vunpack.c.l.b16 %v4073
      %v4394 = vunpack.c.l.b16 %v4087
      %v4395 = vunpack.c.l.b16 %v4097
      %v4396 = vunpack.c.l.b16 %v4111
      %v4397 = vunpack.c.l.b16 %v4121
      %v4398 = vunpack.c.l.b16 %v4135
      %v4399 = vunpack.c.l.b16 %v4145
      %v4400 = vunpack.c.l.b16 %v4159
      %v4401 = vunpack.c.l.b16 %v4169
      %v4402 = vunpack.c.l.b16 %v4183
      %v4403 = vunpack.c.l.b16 %v4193
      %v4404 = vunpack.c.l.b16 %v4207
      %v4405 = vunpack.c.l.b16 %v4217
      %v4406 = vunpack.c.l.b16 %v4231
      %v4407 = vunpack.c.l.b16 %v4241
      %v4408 = vunpack.c.l.b16 %v4255
      %v4409 = vunpack.c.l.b16 %v4265
      %v4410 = vunpack.c.l.b16 %v4279
      %v4411 = vunpack.c.l.b16 %v4289
      %v4412 = vunpack.c.l.b16 %v4303
      %v4413 = vunpack.c.l.b16 %v4313
      %v4414 = vunpack.c.l.b16 %v4327
      %v4415 = vunpack.c.l.b16 %v4337
      %v4416 = vunpack.c.l.b16 %v4351
      %v4417 = vunpack.c.l.b16 %v4361
      %v4418 = vunpack.c.l.b16 %v4375
      %v4419 = vunpack.c.l.b16 %v4385
      %v4420 = vpack.c.b16 %v4389, %v4388
      %v4421 = vpack.c.b16 %v4391, %v4390
      %v4422 = vpack.c.b16 %v4393, %v4392
      %v4423 = vpack.c.b16 %v4395, %v4394
      %v4424 = vpack.c.b16 %v4397, %v4396
      %v4425 = vpack.c.b16 %v4399, %v4398
      %v4426 = vpack.c.b16 %v4401, %v4400
      %v4427 = vpack.c.b16 %v4403, %v4402
      %v4428 = vpack.c.b16 %v4405, %v4404
      %v4429 = vpack.c.b16 %v4407, %v4406
      %v4430 = vpack.c.b16 %v4409, %v4408
      %v4431 = vpack.c.b16 %v4411, %v4410
      %v4432 = vpack.c.b16 %v4413, %v4412
      %v4433 = vpack.c.b16 %v4415, %v4414
      %v4434 = vpack.c.b16 %v4417, %v4416
      %v4435 = vpack.c.b16 %v4419, %v4418
      %v4437 = vsel %vm2091, %v4420, 0
      %v4440 = vsel %vm2091, %v4421, 0
      %v4443 = vsel %vm2091, %v4422, 0
      %v4446 = vsel %vm2091, %v4423, 0
      %v4449 = vsel %vm2091, %v4424, 0
      %v4452 = vsel %vm2091, %v4425, 0
      %v4455 = vsel %vm2091, %v4426, 0
      %v4458 = vsel %vm2091, %v4427, 0
      %v4461 = vsel %vm2091, %v4428, 0
      %v4464 = vsel %vm2091, %v4429, 0
      %v4467 = vsel %vm2091, %v4430, 0
      %v4470 = vsel %vm2091, %v4431, 0
      %v4473 = vsel %vm2091, %v4432, 0
      %v4476 = vsel %vm2091, %v4433, 0
      %v4479 = vsel %vm2091, %v4434, 0
      %v4482 = vsel %vm2091, %v4435, 0
      %v4485 = vsel %vm2140, %v4387, 0
      %4487 = vmatpush.bf16.msra.mxu0 0
      %4488 = vmatpush.bf16.msra.mxu0 0
      %4489 = vmatpush.bf16.msra.mxu0 0
      %4490 = vmatpush.bf16.msra.mxu0 0
      %4491 = vmatpush.bf16.msra.mxu0 0
      %4492 = vmatpush.bf16.msra.mxu0 0
      %4493 = vmatpush.bf16.msra.mxu0 0
      %4494 = vmatpush.bf16.msra.mxu0 %v4485
      %4495 = vmatmul.bf16.gmra.mxu0 %v4437
      %v4496 = vpop.f32.mrf.mxu0
      %v4497 = vadd.f32 0.0, %v4496
      %v4498 = vpop.f32.mrf.mxu0
      %v4499 = vadd.f32 0.0, %v4498
      %4500 = vmatmul.bf16.gmra.mxu0 %v4440
      %v4501 = vpop.f32.mrf.mxu0
      %v4502 = vadd.f32 0.0, %v4501
      %v4503 = vpop.f32.mrf.mxu0
      %v4504 = vadd.f32 0.0, %v4503
      %4505 = vmatmul.bf16.gmra.mxu0 %v4443
      %v4506 = vpop.f32.mrf.mxu0
      %v4507 = vadd.f32 0.0, %v4506
      %v4508 = vpop.f32.mrf.mxu0
      %v4509 = vadd.f32 0.0, %v4508
      %4510 = vmatmul.bf16.gmra.mxu0 %v4446
      %v4511 = vpop.f32.mrf.mxu0
      %v4512 = vadd.f32 0.0, %v4511
      %v4513 = vpop.f32.mrf.mxu0
      %v4514 = vadd.f32 0.0, %v4513
      %4515 = vmatmul.bf16.gmra.mxu0 %v4449
      %v4516 = vpop.f32.mrf.mxu0
      %v4517 = vadd.f32 0.0, %v4516
      %v4518 = vpop.f32.mrf.mxu0
      %v4519 = vadd.f32 0.0, %v4518
      %4520 = vmatmul.bf16.gmra.mxu0 %v4452
      %v4521 = vpop.f32.mrf.mxu0
      %v4522 = vadd.f32 0.0, %v4521
      %v4523 = vpop.f32.mrf.mxu0
      %v4524 = vadd.f32 0.0, %v4523
      %4525 = vmatmul.bf16.gmra.mxu0 %v4455
      %v4526 = vpop.f32.mrf.mxu0
      %v4527 = vadd.f32 0.0, %v4526
      %v4528 = vpop.f32.mrf.mxu0
      %v4529 = vadd.f32 0.0, %v4528
      %4530 = vmatmul.bf16.gmra.mxu0 %v4458
      %v4531 = vpop.f32.mrf.mxu0
      %v4532 = vadd.f32 0.0, %v4531
      %v4533 = vpop.f32.mrf.mxu0
      %v4534 = vadd.f32 0.0, %v4533
      %4535 = vmatmul.bf16.gmra.mxu0 %v4461
      %v4536 = vpop.f32.mrf.mxu0
      %v4537 = vadd.f32 0.0, %v4536
      %v4538 = vpop.f32.mrf.mxu0
      %v4539 = vadd.f32 0.0, %v4538
      %4540 = vmatmul.bf16.gmra.mxu0 %v4464
      %v4541 = vpop.f32.mrf.mxu0
      %v4542 = vadd.f32 0.0, %v4541
      %v4543 = vpop.f32.mrf.mxu0
      %v4544 = vadd.f32 0.0, %v4543
      %4545 = vmatmul.bf16.gmra.mxu0 %v4467
      %v4546 = vpop.f32.mrf.mxu0
      %v4547 = vadd.f32 0.0, %v4546
      %v4548 = vpop.f32.mrf.mxu0
      %v4549 = vadd.f32 0.0, %v4548
      %4550 = vmatmul.bf16.gmra.mxu0 %v4470
      %v4551 = vpop.f32.mrf.mxu0
      %v4552 = vadd.f32 0.0, %v4551
      %v4553 = vpop.f32.mrf.mxu0
      %v4554 = vadd.f32 0.0, %v4553
      %4555 = vmatmul.bf16.gmra.mxu0 %v4473
      %v4556 = vpop.f32.mrf.mxu0
      %v4557 = vadd.f32 0.0, %v4556
      %v4558 = vpop.f32.mrf.mxu0
      %v4559 = vadd.f32 0.0, %v4558
      %4560 = vmatmul.bf16.gmra.mxu0 %v4476
      %v4561 = vpop.f32.mrf.mxu0
      %v4562 = vadd.f32 0.0, %v4561
      %v4563 = vpop.f32.mrf.mxu0
      %v4564 = vadd.f32 0.0, %v4563
      %4565 = vmatmul.bf16.gmra.mxu0 %v4479
      %v4566 = vpop.f32.mrf.mxu0
      %v4567 = vadd.f32 0.0, %v4566
      %v4568 = vpop.f32.mrf.mxu0
      %v4569 = vadd.f32 0.0, %v4568
      %4570 = vmatmul.bf16.gmra.mxu0 %v4482
      %v4571 = vpop.f32.mrf.mxu0
      %v4572 = vadd.f32 0.0, %v4571
      %v4573 = vpop.f32.mrf.mxu0
      %v4574 = vadd.f32 0.0, %v4573
      %4575 = vdwg.mxu0
      %v4576 = vadd.f32 %v3922, %v4497
      %v4577 = vadd.f32 %v3923, %v4499
      %v4578 = vadd.f32 %v3924, %v4502
      %v4579 = vadd.f32 %v3925, %v4504
      %v4580 = vadd.f32 %v3926, %v4507
      %v4581 = vadd.f32 %v3927, %v4509
      %v4582 = vadd.f32 %v3928, %v4512
      %v4583 = vadd.f32 %v3929, %v4514
      %v4584 = vadd.f32 %v3930, %v4517
      %v4585 = vadd.f32 %v3931, %v4519
      %v4586 = vadd.f32 %v3932, %v4522
      %v4587 = vadd.f32 %v3933, %v4524
      %v4588 = vadd.f32 %v3934, %v4527
      %v4589 = vadd.f32 %v3935, %v4529
      %v4590 = vadd.f32 %v3936, %v4532
      %v4591 = vadd.f32 %v3937, %v4534
      %v4592 = vadd.f32 %v3938, %v4537
      %v4593 = vadd.f32 %v3939, %v4539
      %v4594 = vadd.f32 %v3940, %v4542
      %v4595 = vadd.f32 %v3941, %v4544
      %v4596 = vadd.f32 %v3942, %v4547
      %v4597 = vadd.f32 %v3943, %v4549
      %v4598 = vadd.f32 %v3944, %v4552
      %v4599 = vadd.f32 %v3945, %v4554
      %v4600 = vadd.f32 %v3946, %v4557
      %v4601 = vadd.f32 %v3947, %v4559
      %v4602 = vadd.f32 %v3948, %v4562
      %v4603 = vadd.f32 %v3949, %v4564
      %v4604 = vadd.f32 %v3950, %v4567
      %v4605 = vadd.f32 %v3951, %v4569
      %v4606 = vadd.f32 %v3952, %v4572
      %v4607 = vadd.f32 %v3953, %v4574
      %s4608 = scalar_lea.vmem [#allocation2], 32
      %v4609 = vld [vmem:[%s4608] sm:$0x8]
      %v4610 = vld [vmem:[%s4608 + $0x4] sm:$0xf]
      %v4611 = vld [vmem:[%s4608 + $0x8] sm:$0xf]
      %v4612 = vld [vmem:[%s4608 + $0x10] sm:$0x8]
      %v4613 = vld [vmem:[%s4608 + $0x14] sm:$0xf]
      %v4614 = vld [vmem:[%s4608 + $0x18] sm:$0xf]
      %v4615 = vld [vmem:[%s4608 + $0x20] sm:$0x8]
      %v4616 = vld [vmem:[%s4608 + $0x24] sm:$0xf]
      %v4617 = vld [vmem:[%s4608 + $0x28] sm:$0xf]
      %v4618 = vld [vmem:[%s4608 + $0x30] sm:$0x8]
      %v4619 = vld [vmem:[%s4608 + $0x34] sm:$0xf]
      %v4620 = vld [vmem:[%s4608 + $0x38] sm:$0xf]
      %v4621 = vld [vmem:[%s4608 + $0x40] sm:$0x8]
      %v4622 = vld [vmem:[%s4608 + $0x44] sm:$0xf]
      %v4623 = vld [vmem:[%s4608 + $0x48] sm:$0xf]
      %v4624 = vld [vmem:[%s4608 + $0x50] sm:$0x8]
      %v4625 = vld [vmem:[%s4608 + $0x54] sm:$0xf]
      %v4626 = vld [vmem:[%s4608 + $0x58] sm:$0xf]
      %v4627 = vld [vmem:[%s4608 + $0x60] sm:$0x8]
      %v4628 = vld [vmem:[%s4608 + $0x64] sm:$0xf]
      %v4629 = vld [vmem:[%s4608 + $0x68] sm:$0xf]
      %v4630 = vld [vmem:[%s4608 + $0x70] sm:$0x8]
      %v4631 = vld [vmem:[%s4608 + $0x74] sm:$0xf]
      %v4632 = vld [vmem:[%s4608 + $0x78] sm:$0xf]
      %v4633 = vld [vmem:[%s4608 + $0x80] sm:$0x8]
      %v4634 = vld [vmem:[%s4608 + $0x84] sm:$0xf]
      %v4635 = vld [vmem:[%s4608 + $0x88] sm:$0xf]
      %v4636 = vld [vmem:[%s4608 + $0x90] sm:$0x8]
      %v4637 = vld [vmem:[%s4608 + $0x94] sm:$0xf]
      %v4638 = vld [vmem:[%s4608 + $0x98] sm:$0xf]
      %v4639 = vld [vmem:[%s4608 + $0xa0] sm:$0x8]
      %v4640 = vld [vmem:[%s4608 + $0xa4] sm:$0xf]
      %v4641 = vld [vmem:[%s4608 + $0xa8] sm:$0xf]
      %v4642 = vld [vmem:[%s4608 + $0xb0] sm:$0x8]
      %v4643 = vld [vmem:[%s4608 + $0xb4] sm:$0xf]
      %v4644 = vld [vmem:[%s4608 + $0xb8] sm:$0xf]
      %v4645 = vld [vmem:[%s4608 + $0xc0] sm:$0x8]
      %v4646 = vld [vmem:[%s4608 + $0xc4] sm:$0xf]
      %v4647 = vld [vmem:[%s4608 + $0xc8] sm:$0xf]
      %v4648 = vld [vmem:[%s4608 + $0xd0] sm:$0x8]
      %v4649 = vld [vmem:[%s4608 + $0xd4] sm:$0xf]
      %v4650 = vld [vmem:[%s4608 + $0xd8] sm:$0xf]
      %v4651 = vld [vmem:[%s4608 + $0xe0] sm:$0x8]
      %v4652 = vld [vmem:[%s4608 + $0xe4] sm:$0xf]
      %v4653 = vld [vmem:[%s4608 + $0xe8] sm:$0xf]
      %v4654 = vld [vmem:[%s4608 + $0xf0] sm:$0x8]
      %v4655 = vld [vmem:[%s4608 + $0xf4] sm:$0xf]
      %v4656 = vld [vmem:[%s4608 + $0xf8] sm:$0xf]
      %v4658 = vshrl.u32 %v4609, 16
      %v4660 = vrot.slane %v4658, 7
      %v4661 = vrot.slane %v4660, 4
      %v4663 = vshrl.u32 %v4610, 16
      %v4665 = vrot.slane %v4663, 7
      %v4666 = vshll.u32 %v4610, 16
      %v4668 = vor.u32 %v4665, %v4666
      %v4669 = vsel %vm1655, %v4661, %v4668
      %v4670 = vrot.slane %v4665, 4
      %v4672 = vshrl.u32 %v4611, 16
      %v4674 = vrot.slane %v4672, 7
      %v4675 = vshll.u32 %v4611, 16
      %v4677 = vor.u32 %v4674, %v4675
      %v4678 = vsel %vm1655, %v4670, %v4677
      %v4680 = vshrl.u32 %v4612, 16
      %v4682 = vrot.slane %v4680, 7
      %v4683 = vrot.slane %v4682, 4
      %v4685 = vshrl.u32 %v4613, 16
      %v4687 = vrot.slane %v4685, 7
      %v4688 = vshll.u32 %v4613, 16
      %v4690 = vor.u32 %v4687, %v4688
      %v4691 = vsel %vm1655, %v4683, %v4690
      %v4692 = vrot.slane %v4687, 4
      %v4694 = vshrl.u32 %v4614, 16
      %v4696 = vrot.slane %v4694, 7
      %v4697 = vshll.u32 %v4614, 16
      %v4699 = vor.u32 %v4696, %v4697
      %v4700 = vsel %vm1655, %v4692, %v4699
      %v4702 = vshrl.u32 %v4615, 16
      %v4704 = vrot.slane %v4702, 7
      %v4705 = vrot.slane %v4704, 4
      %v4707 = vshrl.u32 %v4616, 16
      %v4709 = vrot.slane %v4707, 7
      %v4710 = vshll.u32 %v4616, 16
      %v4712 = vor.u32 %v4709, %v4710
      %v4713 = vsel %vm1655, %v4705, %v4712
      %v4714 = vrot.slane %v4709, 4
      %v4716 = vshrl.u32 %v4617, 16
      %v4718 = vrot.slane %v4716, 7
      %v4719 = vshll.u32 %v4617, 16
      %v4721 = vor.u32 %v4718, %v4719
      %v4722 = vsel %vm1655, %v4714, %v4721
      %v4724 = vshrl.u32 %v4618, 16
      %v4726 = vrot.slane %v4724, 7
      %v4727 = vrot.slane %v4726, 4
      %v4729 = vshrl.u32 %v4619, 16
      %v4731 = vrot.slane %v4729, 7
      %v4732 = vshll.u32 %v4619, 16
      %v4734 = vor.u32 %v4731, %v4732
      %v4735 = vsel %vm1655, %v4727, %v4734
      %v4736 = vrot.slane %v4731, 4
      %v4738 = vshrl.u32 %v4620, 16
      %v4740 = vrot.slane %v4738, 7
      %v4741 = vshll.u32 %v4620, 16
      %v4743 = vor.u32 %v4740, %v4741
      %v4744 = vsel %vm1655, %v4736, %v4743
      %v4746 = vshrl.u32 %v4621, 16
      %v4748 = vrot.slane %v4746, 7
      %v4749 = vrot.slane %v4748, 4
      %v4751 = vshrl.u32 %v4622, 16
      %v4753 = vrot.slane %v4751, 7
      %v4754 = vshll.u32 %v4622, 16
      %v4756 = vor.u32 %v4753, %v4754
      %v4757 = vsel %vm1655, %v4749, %v4756
      %v4758 = vrot.slane %v4753, 4
      %v4760 = vshrl.u32 %v4623, 16
      %v4762 = vrot.slane %v4760, 7
      %v4763 = vshll.u32 %v4623, 16
      %v4765 = vor.u32 %v4762, %v4763
      %v4766 = vsel %vm1655, %v4758, %v4765
      %v4768 = vshrl.u32 %v4624, 16
      %v4770 = vrot.slane %v4768, 7
      %v4771 = vrot.slane %v4770, 4
      %v4773 = vshrl.u32 %v4625, 16
      %v4775 = vrot.slane %v4773, 7
      %v4776 = vshll.u32 %v4625, 16
      %v4778 = vor.u32 %v4775, %v4776
      %v4779 = vsel %vm1655, %v4771, %v4778
      %v4780 = vrot.slane %v4775, 4
      %v4782 = vshrl.u32 %v4626, 16
      %v4784 = vrot.slane %v4782, 7
      %v4785 = vshll.u32 %v4626, 16
      %v4787 = vor.u32 %v4784, %v4785
      %v4788 = vsel %vm1655, %v4780, %v4787
      %v4790 = vshrl.u32 %v4627, 16
      %v4792 = vrot.slane %v4790, 7
      %v4793 = vrot.slane %v4792, 4
      %v4795 = vshrl.u32 %v4628, 16
      %v4797 = vrot.slane %v4795, 7
      %v4798 = vshll.u32 %v4628, 16
      %v4800 = vor.u32 %v4797, %v4798
      %v4801 = vsel %vm1655, %v4793, %v4800
      %v4802 = vrot.slane %v4797, 4
      %v4804 = vshrl.u32 %v4629, 16
      %v4806 = vrot.slane %v4804, 7
      %v4807 = vshll.u32 %v4629, 16
      %v4809 = vor.u32 %v4806, %v4807
      %v4810 = vsel %vm1655, %v4802, %v4809
      %v4812 = vshrl.u32 %v4630, 16
      %v4814 = vrot.slane %v4812, 7
      %v4815 = vrot.slane %v4814, 4
      %v4817 = vshrl.u32 %v4631, 16
      %v4819 = vrot.slane %v4817, 7
      %v4820 = vshll.u32 %v4631, 16
      %v4822 = vor.u32 %v4819, %v4820
      %v4823 = vsel %vm1655, %v4815, %v4822
      %v4824 = vrot.slane %v4819, 4
      %v4826 = vshrl.u32 %v4632, 16
      %v4828 = vrot.slane %v4826, 7
      %v4829 = vshll.u32 %v4632, 16
      %v4831 = vor.u32 %v4828, %v4829
      %v4832 = vsel %vm1655, %v4824, %v4831
      %v4834 = vshrl.u32 %v4633, 16
      %v4836 = vrot.slane %v4834, 7
      %v4837 = vrot.slane %v4836, 4
      %v4839 = vshrl.u32 %v4634, 16
      %v4841 = vrot.slane %v4839, 7
      %v4842 = vshll.u32 %v4634, 16
      %v4844 = vor.u32 %v4841, %v4842
      %v4845 = vsel %vm1655, %v4837, %v4844
      %v4846 = vrot.slane %v4841, 4
      %v4848 = vshrl.u32 %v4635, 16
      %v4850 = vrot.slane %v4848, 7
      %v4851 = vshll.u32 %v4635, 16
      %v4853 = vor.u32 %v4850, %v4851
      %v4854 = vsel %vm1655, %v4846, %v4853
      %v4856 = vshrl.u32 %v4636, 16
      %v4858 = vrot.slane %v4856, 7
      %v4859 = vrot.slane %v4858, 4
      %v4861 = vshrl.u32 %v4637, 16
      %v4863 = vrot.slane %v4861, 7
      %v4864 = vshll.u32 %v4637, 16
      %v4866 = vor.u32 %v4863, %v4864
      %v4867 = vsel %vm1655, %v4859, %v4866
      %v4868 = vrot.slane %v4863, 4
      %v4870 = vshrl.u32 %v4638, 16
      %v4872 = vrot.slane %v4870, 7
      %v4873 = vshll.u32 %v4638, 16
      %v4875 = vor.u32 %v4872, %v4873
      %v4876 = vsel %vm1655, %v4868, %v4875
      %v4878 = vshrl.u32 %v4639, 16
      %v4880 = vrot.slane %v4878, 7
      %v4881 = vrot.slane %v4880, 4
      %v4883 = vshrl.u32 %v4640, 16
      %v4885 = vrot.slane %v4883, 7
      %v4886 = vshll.u32 %v4640, 16
      %v4888 = vor.u32 %v4885, %v4886
      %v4889 = vsel %vm1655, %v4881, %v4888
      %v4890 = vrot.slane %v4885, 4
      %v4892 = vshrl.u32 %v4641, 16
      %v4894 = vrot.slane %v4892, 7
      %v4895 = vshll.u32 %v4641, 16
      %v4897 = vor.u32 %v4894, %v4895
      %v4898 = vsel %vm1655, %v4890, %v4897
      %v4900 = vshrl.u32 %v4642, 16
      %v4902 = vrot.slane %v4900, 7
      %v4903 = vrot.slane %v4902, 4
      %v4905 = vshrl.u32 %v4643, 16
      %v4907 = vrot.slane %v4905, 7
      %v4908 = vshll.u32 %v4643, 16
      %v4910 = vor.u32 %v4907, %v4908
      %v4911 = vsel %vm1655, %v4903, %v4910
      %v4912 = vrot.slane %v4907, 4
      %v4914 = vshrl.u32 %v4644, 16
      %v4916 = vrot.slane %v4914, 7
      %v4917 = vshll.u32 %v4644, 16
      %v4919 = vor.u32 %v4916, %v4917
      %v4920 = vsel %vm1655, %v4912, %v4919
      %v4922 = vshrl.u32 %v4645, 16
      %v4924 = vrot.slane %v4922, 7
      %v4925 = vrot.slane %v4924, 4
      %v4927 = vshrl.u32 %v4646, 16
      %v4929 = vrot.slane %v4927, 7
      %v4930 = vshll.u32 %v4646, 16
      %v4932 = vor.u32 %v4929, %v4930
      %v4933 = vsel %vm1655, %v4925, %v4932
      %v4934 = vrot.slane %v4929, 4
      %v4936 = vshrl.u32 %v4647, 16
      %v4938 = vrot.slane %v4936, 7
      %v4939 = vshll.u32 %v4647, 16
      %v4941 = vor.u32 %v4938, %v4939
      %v4942 = vsel %vm1655, %v4934, %v4941
      %v4944 = vshrl.u32 %v4648, 16
      %v4946 = vrot.slane %v4944, 7
      %v4947 = vrot.slane %v4946, 4
      %v4949 = vshrl.u32 %v4649, 16
      %v4951 = vrot.slane %v4949, 7
      %v4952 = vshll.u32 %v4649, 16
      %v4954 = vor.u32 %v4951, %v4952
      %v4955 = vsel %vm1655, %v4947, %v4954
      %v4956 = vrot.slane %v4951, 4
      %v4958 = vshrl.u32 %v4650, 16
      %v4960 = vrot.slane %v4958, 7
      %v4961 = vshll.u32 %v4650, 16
      %v4963 = vor.u32 %v4960, %v4961
      %v4964 = vsel %vm1655, %v4956, %v4963
      %v4966 = vshrl.u32 %v4651, 16
      %v4968 = vrot.slane %v4966, 7
      %v4969 = vrot.slane %v4968, 4
      %v4971 = vshrl.u32 %v4652, 16
      %v4973 = vrot.slane %v4971, 7
      %v4974 = vshll.u32 %v4652, 16
      %v4976 = vor.u32 %v4973, %v4974
      %v4977 = vsel %vm1655, %v4969, %v4976
      %v4978 = vrot.slane %v4973, 4
      %v4980 = vshrl.u32 %v4653, 16
      %v4982 = vrot.slane %v4980, 7
      %v4983 = vshll.u32 %v4653, 16
      %v4985 = vor.u32 %v4982, %v4983
      %v4986 = vsel %vm1655, %v4978, %v4985
      %v4988 = vshrl.u32 %v4654, 16
      %v4990 = vrot.slane %v4988, 7
      %v4991 = vrot.slane %v4990, 4
      %v4993 = vshrl.u32 %v4655, 16
      %v4995 = vrot.slane %v4993, 7
      %v4996 = vshll.u32 %v4655, 16
      %v4998 = vor.u32 %v4995, %v4996
      %v4999 = vsel %vm1655, %v4991, %v4998
      %v5000 = vrot.slane %v4995, 4
      %v5002 = vshrl.u32 %v4656, 16
      %v5004 = vrot.slane %v5002, 7
      %v5005 = vshll.u32 %v4656, 16
      %v5007 = vor.u32 %v5004, %v5005
      %v5008 = vsel %vm1655, %v5000, %v5007
      %s5009 = scalar_lea.vmem %s5, 6
      %v5010 = vld [vmem:[%s5009] sm:$0x1]
      %v5011 = vunpack.c.l.b16 %v4669
      %v5012 = vunpack.c.l.b16 %v4678
      %v5013 = vunpack.c.l.b16 %v4691
      %v5014 = vunpack.c.l.b16 %v4700
      %v5015 = vunpack.c.l.b16 %v4713
      %v5016 = vunpack.c.l.b16 %v4722
      %v5017 = vunpack.c.l.b16 %v4735
      %v5018 = vunpack.c.l.b16 %v4744
      %v5019 = vunpack.c.l.b16 %v4757
      %v5020 = vunpack.c.l.b16 %v4766
      %v5021 = vunpack.c.l.b16 %v4779
      %v5022 = vunpack.c.l.b16 %v4788
      %v5023 = vunpack.c.l.b16 %v4801
      %v5024 = vunpack.c.l.b16 %v4810
      %v5025 = vunpack.c.l.b16 %v4823
      %v5026 = vunpack.c.l.b16 %v4832
      %v5027 = vunpack.c.l.b16 %v4845
      %v5028 = vunpack.c.l.b16 %v4854
      %v5029 = vunpack.c.l.b16 %v4867
      %v5030 = vunpack.c.l.b16 %v4876
      %v5031 = vunpack.c.l.b16 %v4889
      %v5032 = vunpack.c.l.b16 %v4898
      %v5033 = vunpack.c.l.b16 %v4911
      %v5034 = vunpack.c.l.b16 %v4920
      %v5035 = vunpack.c.l.b16 %v4933
      %v5036 = vunpack.c.l.b16 %v4942
      %v5037 = vunpack.c.l.b16 %v4955
      %v5038 = vunpack.c.l.b16 %v4964
      %v5039 = vunpack.c.l.b16 %v4977
      %v5040 = vunpack.c.l.b16 %v4986
      %v5041 = vunpack.c.l.b16 %v4999
      %v5042 = vunpack.c.l.b16 %v5008
      %v5043 = vpack.c.b16 %v5012, %v5011
      %v5044 = vpack.c.b16 %v5014, %v5013
      %v5045 = vpack.c.b16 %v5016, %v5015
      %v5046 = vpack.c.b16 %v5018, %v5017
      %v5047 = vpack.c.b16 %v5020, %v5019
      %v5048 = vpack.c.b16 %v5022, %v5021
      %v5049 = vpack.c.b16 %v5024, %v5023
      %v5050 = vpack.c.b16 %v5026, %v5025
      %v5051 = vpack.c.b16 %v5028, %v5027
      %v5052 = vpack.c.b16 %v5030, %v5029
      %v5053 = vpack.c.b16 %v5032, %v5031
      %v5054 = vpack.c.b16 %v5034, %v5033
      %v5055 = vpack.c.b16 %v5036, %v5035
      %v5056 = vpack.c.b16 %v5038, %v5037
      %v5057 = vpack.c.b16 %v5040, %v5039
      %v5058 = vpack.c.b16 %v5042, %v5041
      %v5060 = vsel %vm2091, %v5043, 0
      %v5063 = vsel %vm2091, %v5044, 0
      %v5066 = vsel %vm2091, %v5045, 0
      %v5069 = vsel %vm2091, %v5046, 0
      %v5072 = vsel %vm2091, %v5047, 0
      %v5075 = vsel %vm2091, %v5048, 0
      %v5078 = vsel %vm2091, %v5049, 0
      %v5081 = vsel %vm2091, %v5050, 0
      %v5084 = vsel %vm2091, %v5051, 0
      %v5087 = vsel %vm2091, %v5052, 0
      %v5090 = vsel %vm2091, %v5053, 0
      %v5093 = vsel %vm2091, %v5054, 0
      %v5096 = vsel %vm2091, %v5055, 0
      %v5099 = vsel %vm2091, %v5056, 0
      %v5102 = vsel %vm2091, %v5057, 0
      %v5105 = vsel %vm2091, %v5058, 0
      %v5108 = vsel %vm2140, %v5010, 0
      %5110 = vmatpush.bf16.msra.mxu0 0
      %5111 = vmatpush.bf16.msra.mxu0 0
      %5112 = vmatpush.bf16.msra.mxu0 0
      %5113 = vmatpush.bf16.msra.mxu0 0
      %5114 = vmatpush.bf16.msra.mxu0 0
      %5115 = vmatpush.bf16.msra.mxu0 0
      %5116 = vmatpush.bf16.msra.mxu0 0
      %5117 = vmatpush.bf16.msra.mxu0 %v5108
      %5118 = vmatmul.bf16.gmra.mxu0 %v5060
      %v5119 = vpop.f32.mrf.mxu0
      %v5120 = vadd.f32 0.0, %v5119
      %v5121 = vpop.f32.mrf.mxu0
      %v5122 = vadd.f32 0.0, %v5121
      %5123 = vmatmul.bf16.gmra.mxu0 %v5063
      %v5124 = vpop.f32.mrf.mxu0
      %v5125 = vadd.f32 0.0, %v5124
      %v5126 = vpop.f32.mrf.mxu0
      %v5127 = vadd.f32 0.0, %v5126
      %5128 = vmatmul.bf16.gmra.mxu0 %v5066
      %v5129 = vpop.f32.mrf.mxu0
      %v5130 = vadd.f32 0.0, %v5129
      %v5131 = vpop.f32.mrf.mxu0
      %v5132 = vadd.f32 0.0, %v5131
      %5133 = vmatmul.bf16.gmra.mxu0 %v5069
      %v5134 = vpop.f32.mrf.mxu0
      %v5135 = vadd.f32 0.0, %v5134
      %v5136 = vpop.f32.mrf.mxu0
      %v5137 = vadd.f32 0.0, %v5136
      %5138 = vmatmul.bf16.gmra.mxu0 %v5072
      %v5139 = vpop.f32.mrf.mxu0
      %v5140 = vadd.f32 0.0, %v5139
      %v5141 = vpop.f32.mrf.mxu0
      %v5142 = vadd.f32 0.0, %v5141
      %5143 = vmatmul.bf16.gmra.mxu0 %v5075
      %v5144 = vpop.f32.mrf.mxu0
      %v5145 = vadd.f32 0.0, %v5144
      %v5146 = vpop.f32.mrf.mxu0
      %v5147 = vadd.f32 0.0, %v5146
      %5148 = vmatmul.bf16.gmra.mxu0 %v5078
      %v5149 = vpop.f32.mrf.mxu0
      %v5150 = vadd.f32 0.0, %v5149
      %v5151 = vpop.f32.mrf.mxu0
      %v5152 = vadd.f32 0.0, %v5151
      %5153 = vmatmul.bf16.gmra.mxu0 %v5081
      %v5154 = vpop.f32.mrf.mxu0
      %v5155 = vadd.f32 0.0, %v5154
      %v5156 = vpop.f32.mrf.mxu0
      %v5157 = vadd.f32 0.0, %v5156
      %5158 = vmatmul.bf16.gmra.mxu0 %v5084
      %v5159 = vpop.f32.mrf.mxu0
      %v5160 = vadd.f32 0.0, %v5159
      %v5161 = vpop.f32.mrf.mxu0
      %v5162 = vadd.f32 0.0, %v5161
      %5163 = vmatmul.bf16.gmra.mxu0 %v5087
      %v5164 = vpop.f32.mrf.mxu0
      %v5165 = vadd.f32 0.0, %v5164
      %v5166 = vpop.f32.mrf.mxu0
      %v5167 = vadd.f32 0.0, %v5166
      %5168 = vmatmul.bf16.gmra.mxu0 %v5090
      %v5169 = vpop.f32.mrf.mxu0
      %v5170 = vadd.f32 0.0, %v5169
      %v5171 = vpop.f32.mrf.mxu0
      %v5172 = vadd.f32 0.0, %v5171
      %5173 = vmatmul.bf16.gmra.mxu0 %v5093
      %v5174 = vpop.f32.mrf.mxu0
      %v5175 = vadd.f32 0.0, %v5174
      %v5176 = vpop.f32.mrf.mxu0
      %v5177 = vadd.f32 0.0, %v5176
      %5178 = vmatmul.bf16.gmra.mxu0 %v5096
      %v5179 = vpop.f32.mrf.mxu0
      %v5180 = vadd.f32 0.0, %v5179
      %v5181 = vpop.f32.mrf.mxu0
      %v5182 = vadd.f32 0.0, %v5181
      %5183 = vmatmul.bf16.gmra.mxu0 %v5099
      %v5184 = vpop.f32.mrf.mxu0
      %v5185 = vadd.f32 0.0, %v5184
      %v5186 = vpop.f32.mrf.mxu0
      %v5187 = vadd.f32 0.0, %v5186
      %5188 = vmatmul.bf16.gmra.mxu0 %v5102
      %v5189 = vpop.f32.mrf.mxu0
      %v5190 = vadd.f32 0.0, %v5189
      %v5191 = vpop.f32.mrf.mxu0
      %v5192 = vadd.f32 0.0, %v5191
      %5193 = vmatmul.bf16.gmra.mxu0 %v5105
      %v5194 = vpop.f32.mrf.mxu0
      %v5195 = vadd.f32 0.0, %v5194
      %v5196 = vpop.f32.mrf.mxu0
      %v5197 = vadd.f32 0.0, %v5196
      %5198 = vdwg.mxu0
      %v5199 = vadd.f32 %v4576, %v5120
      %v5200 = vadd.f32 %v4577, %v5122
      %v5201 = vadd.f32 %v4578, %v5125
      %v5202 = vadd.f32 %v4579, %v5127
      %v5203 = vadd.f32 %v4580, %v5130
      %v5204 = vadd.f32 %v4581, %v5132
      %v5205 = vadd.f32 %v4582, %v5135
      %v5206 = vadd.f32 %v4583, %v5137
      %v5207 = vadd.f32 %v4584, %v5140
      %v5208 = vadd.f32 %v4585, %v5142
      %v5209 = vadd.f32 %v4586, %v5145
      %v5210 = vadd.f32 %v4587, %v5147
      %v5211 = vadd.f32 %v4588, %v5150
      %v5212 = vadd.f32 %v4589, %v5152
      %v5213 = vadd.f32 %v4590, %v5155
      %v5214 = vadd.f32 %v4591, %v5157
      %v5215 = vadd.f32 %v4592, %v5160
      %v5216 = vadd.f32 %v4593, %v5162
      %v5217 = vadd.f32 %v4594, %v5165
      %v5218 = vadd.f32 %v4595, %v5167
      %v5219 = vadd.f32 %v4596, %v5170
      %v5220 = vadd.f32 %v4597, %v5172
      %v5221 = vadd.f32 %v4598, %v5175
      %v5222 = vadd.f32 %v4599, %v5177
      %v5223 = vadd.f32 %v4600, %v5180
      %v5224 = vadd.f32 %v4601, %v5182
      %v5225 = vadd.f32 %v4602, %v5185
      %v5226 = vadd.f32 %v4603, %v5187
      %v5227 = vadd.f32 %v4604, %v5190
      %v5228 = vadd.f32 %v4605, %v5192
      %v5229 = vadd.f32 %v4606, %v5195
      %v5230 = vadd.f32 %v4607, %v5197
      %s5231 = scalar_lea.vmem %s5, 7
      %v5232 = vld [vmem:[%s5231] sm:$0x1]
      %v5265 = vunpack.c.l.b16 %v4610
      %v5266 = vunpack.c.l.b16 %v4611
      %v5267 = vunpack.c.l.b16 %v4613
      %v5268 = vunpack.c.l.b16 %v4614
      %v5269 = vunpack.c.l.b16 %v4616
      %v5270 = vunpack.c.l.b16 %v4617
      %v5271 = vunpack.c.l.b16 %v4619
      %v5272 = vunpack.c.l.b16 %v4620
      %v5273 = vunpack.c.l.b16 %v4622
      %v5274 = vunpack.c.l.b16 %v4623
      %v5275 = vunpack.c.l.b16 %v4625
      %v5276 = vunpack.c.l.b16 %v4626
      %v5277 = vunpack.c.l.b16 %v4628
      %v5278 = vunpack.c.l.b16 %v4629
      %v5279 = vunpack.c.l.b16 %v4631
      %v5280 = vunpack.c.l.b16 %v4632
      %v5281 = vunpack.c.l.b16 %v4634
      %v5282 = vunpack.c.l.b16 %v4635
      %v5283 = vunpack.c.l.b16 %v4637
      %v5284 = vunpack.c.l.b16 %v4638
      %v5285 = vunpack.c.l.b16 %v4640
      %v5286 = vunpack.c.l.b16 %v4641
      %v5287 = vunpack.c.l.b16 %v4643
      %v5288 = vunpack.c.l.b16 %v4644
      %v5289 = vunpack.c.l.b16 %v4646
      %v5290 = vunpack.c.l.b16 %v4647
      %v5291 = vunpack.c.l.b16 %v4649
      %v5292 = vunpack.c.l.b16 %v4650
      %v5293 = vunpack.c.l.b16 %v4652
      %v5294 = vunpack.c.l.b16 %v4653
      %v5295 = vunpack.c.l.b16 %v4655
      %v5296 = vunpack.c.l.b16 %v4656
      %v5297 = vpack.c.b16 %v5266, %v5265
      %v5298 = vpack.c.b16 %v5268, %v5267
      %v5299 = vpack.c.b16 %v5270, %v5269
      %v5300 = vpack.c.b16 %v5272, %v5271
      %v5301 = vpack.c.b16 %v5274, %v5273
      %v5302 = vpack.c.b16 %v5276, %v5275
      %v5303 = vpack.c.b16 %v5278, %v5277
      %v5304 = vpack.c.b16 %v5280, %v5279
      %v5305 = vpack.c.b16 %v5282, %v5281
      %v5306 = vpack.c.b16 %v5284, %v5283
      %v5307 = vpack.c.b16 %v5286, %v5285
      %v5308 = vpack.c.b16 %v5288, %v5287
      %v5309 = vpack.c.b16 %v5290, %v5289
      %v5310 = vpack.c.b16 %v5292, %v5291
      %v5311 = vpack.c.b16 %v5294, %v5293
      %v5312 = vpack.c.b16 %v5296, %v5295
      %v5314 = vsel %vm2091, %v5297, 0
      %v5317 = vsel %vm2091, %v5298, 0
      %v5320 = vsel %vm2091, %v5299, 0
      %v5323 = vsel %vm2091, %v5300, 0
      %v5326 = vsel %vm2091, %v5301, 0
      %v5329 = vsel %vm2091, %v5302, 0
      %v5332 = vsel %vm2091, %v5303, 0
      %v5335 = vsel %vm2091, %v5304, 0
      %v5338 = vsel %vm2091, %v5305, 0
      %v5341 = vsel %vm2091, %v5306, 0
      %v5344 = vsel %vm2091, %v5307, 0
      %v5347 = vsel %vm2091, %v5308, 0
      %v5350 = vsel %vm2091, %v5309, 0
      %v5353 = vsel %vm2091, %v5310, 0
      %v5356 = vsel %vm2091, %v5311, 0
      %v5359 = vsel %vm2091, %v5312, 0
      %v5362 = vsel %vm2140, %v5232, 0
      %5364 = vmatpush.bf16.msra.mxu0 0
      %5365 = vmatpush.bf16.msra.mxu0 0
      %5366 = vmatpush.bf16.msra.mxu0 0
      %5367 = vmatpush.bf16.msra.mxu0 0
      %5368 = vmatpush.bf16.msra.mxu0 0
      %5369 = vmatpush.bf16.msra.mxu0 0
      %5370 = vmatpush.bf16.msra.mxu0 0
      %5371 = vmatpush.bf16.msra.mxu0 %v5362
      %5372 = vmatmul.bf16.gmra.mxu0 %v5314
      %v5373 = vpop.f32.mrf.mxu0
      %v5374 = vadd.f32 0.0, %v5373
      %v5375 = vpop.f32.mrf.mxu0
      %v5376 = vadd.f32 0.0, %v5375
      %5377 = vmatmul.bf16.gmra.mxu0 %v5317
      %v5378 = vpop.f32.mrf.mxu0
      %v5379 = vadd.f32 0.0, %v5378
      %v5380 = vpop.f32.mrf.mxu0
      %v5381 = vadd.f32 0.0, %v5380
      %5382 = vmatmul.bf16.gmra.mxu0 %v5320
      %v5383 = vpop.f32.mrf.mxu0
      %v5384 = vadd.f32 0.0, %v5383
      %v5385 = vpop.f32.mrf.mxu0
      %v5386 = vadd.f32 0.0, %v5385
      %5387 = vmatmul.bf16.gmra.mxu0 %v5323
      %v5388 = vpop.f32.mrf.mxu0
      %v5389 = vadd.f32 0.0, %v5388
      %v5390 = vpop.f32.mrf.mxu0
      %v5391 = vadd.f32 0.0, %v5390
      %5392 = vmatmul.bf16.gmra.mxu0 %v5326
      %v5393 = vpop.f32.mrf.mxu0
      %v5394 = vadd.f32 0.0, %v5393
      %v5395 = vpop.f32.mrf.mxu0
      %v5396 = vadd.f32 0.0, %v5395
      %5397 = vmatmul.bf16.gmra.mxu0 %v5329
      %v5398 = vpop.f32.mrf.mxu0
      %v5399 = vadd.f32 0.0, %v5398
      %v5400 = vpop.f32.mrf.mxu0
      %v5401 = vadd.f32 0.0, %v5400
      %5402 = vmatmul.bf16.gmra.mxu0 %v5332
      %v5403 = vpop.f32.mrf.mxu0
      %v5404 = vadd.f32 0.0, %v5403
      %v5405 = vpop.f32.mrf.mxu0
      %v5406 = vadd.f32 0.0, %v5405
      %5407 = vmatmul.bf16.gmra.mxu0 %v5335
      %v5408 = vpop.f32.mrf.mxu0
      %v5409 = vadd.f32 0.0, %v5408
      %v5410 = vpop.f32.mrf.mxu0
      %v5411 = vadd.f32 0.0, %v5410
      %5412 = vmatmul.bf16.gmra.mxu0 %v5338
      %v5413 = vpop.f32.mrf.mxu0
      %v5414 = vadd.f32 0.0, %v5413
      %v5415 = vpop.f32.mrf.mxu0
      %v5416 = vadd.f32 0.0, %v5415
      %5417 = vmatmul.bf16.gmra.mxu0 %v5341
      %v5418 = vpop.f32.mrf.mxu0
      %v5419 = vadd.f32 0.0, %v5418
      %v5420 = vpop.f32.mrf.mxu0
      %v5421 = vadd.f32 0.0, %v5420
      %5422 = vmatmul.bf16.gmra.mxu0 %v5344
      %v5423 = vpop.f32.mrf.mxu0
      %v5424 = vadd.f32 0.0, %v5423
      %v5425 = vpop.f32.mrf.mxu0
      %v5426 = vadd.f32 0.0, %v5425
      %5427 = vmatmul.bf16.gmra.mxu0 %v5347
      %v5428 = vpop.f32.mrf.mxu0
      %v5429 = vadd.f32 0.0, %v5428
      %v5430 = vpop.f32.mrf.mxu0
      %v5431 = vadd.f32 0.0, %v5430
      %5432 = vmatmul.bf16.gmra.mxu0 %v5350
      %v5433 = vpop.f32.mrf.mxu0
      %v5434 = vadd.f32 0.0, %v5433
      %v5435 = vpop.f32.mrf.mxu0
      %v5436 = vadd.f32 0.0, %v5435
      %5437 = vmatmul.bf16.gmra.mxu0 %v5353
      %v5438 = vpop.f32.mrf.mxu0
      %v5439 = vadd.f32 0.0, %v5438
      %v5440 = vpop.f32.mrf.mxu0
      %v5441 = vadd.f32 0.0, %v5440
      %5442 = vmatmul.bf16.gmra.mxu0 %v5356
      %v5443 = vpop.f32.mrf.mxu0
      %v5444 = vadd.f32 0.0, %v5443
      %v5445 = vpop.f32.mrf.mxu0
      %v5446 = vadd.f32 0.0, %v5445
      %5447 = vmatmul.bf16.gmra.mxu0 %v5359
      %v5448 = vpop.f32.mrf.mxu0
      %v5449 = vadd.f32 0.0, %v5448
      %v5450 = vpop.f32.mrf.mxu0
      %v5451 = vadd.f32 0.0, %v5450
      %5452 = vdwg.mxu0
      %v5453 = vadd.f32 %v5199, %v5374
      %v5454 = vadd.f32 %v5200, %v5376
      %v5455 = vadd.f32 %v5201, %v5379
      %v5456 = vadd.f32 %v5202, %v5381
      %v5457 = vadd.f32 %v5203, %v5384
      %v5458 = vadd.f32 %v5204, %v5386
      %v5459 = vadd.f32 %v5205, %v5389
      %v5460 = vadd.f32 %v5206, %v5391
      %v5461 = vadd.f32 %v5207, %v5394
      %v5462 = vadd.f32 %v5208, %v5396
      %v5463 = vadd.f32 %v5209, %v5399
      %v5464 = vadd.f32 %v5210, %v5401
      %v5465 = vadd.f32 %v5211, %v5404
      %v5466 = vadd.f32 %v5212, %v5406
      %v5467 = vadd.f32 %v5213, %v5409
      %v5468 = vadd.f32 %v5214, %v5411
      %v5469 = vadd.f32 %v5215, %v5414
      %v5470 = vadd.f32 %v5216, %v5416
      %v5471 = vadd.f32 %v5217, %v5419
      %v5472 = vadd.f32 %v5218, %v5421
      %v5473 = vadd.f32 %v5219, %v5424
      %v5474 = vadd.f32 %v5220, %v5426
      %v5475 = vadd.f32 %v5221, %v5429
      %v5476 = vadd.f32 %v5222, %v5431
      %v5477 = vadd.f32 %v5223, %v5434
      %v5478 = vadd.f32 %v5224, %v5436
      %v5479 = vadd.f32 %v5225, %v5439
      %v5480 = vadd.f32 %v5226, %v5441
      %v5481 = vadd.f32 %v5227, %v5444
      %v5482 = vadd.f32 %v5228, %v5446
      %v5483 = vadd.f32 %v5229, %v5449
      %v5484 = vadd.f32 %v5230, %v5451
      %v5485 = vld [vmem:[%s4608 + $0x4] sm:$0xf]
      %v5486 = vld [vmem:[%s4608 + $0x8] sm:$0xf]
      %v5487 = vld [vmem:[%s4608 + $0xc] sm:$0x1]
      %v5488 = vld [vmem:[%s4608 + $0x14] sm:$0xf]
      %v5489 = vld [vmem:[%s4608 + $0x18] sm:$0xf]
      %v5490 = vld [vmem:[%s4608 + $0x1c] sm:$0x1]
      %v5491 = vld [vmem:[%s4608 + $0x24] sm:$0xf]
      %v5492 = vld [vmem:[%s4608 + $0x28] sm:$0xf]
      %v5493 = vld [vmem:[%s4608 + $0x2c] sm:$0x1]
      %v5494 = vld [vmem:[%s4608 + $0x34] sm:$0xf]
      %v5495 = vld [vmem:[%s4608 + $0x38] sm:$0xf]
      %v5496 = vld [vmem:[%s4608 + $0x3c] sm:$0x1]
      %v5497 = vld [vmem:[%s4608 + $0x44] sm:$0xf]
      %v5498 = vld [vmem:[%s4608 + $0x48] sm:$0xf]
      %v5499 = vld [vmem:[%s4608 + $0x4c] sm:$0x1]
      %v5500 = vld [vmem:[%s4608 + $0x54] sm:$0xf]
      %v5501 = vld [vmem:[%s4608 + $0x58] sm:$0xf]
      %v5502 = vld [vmem:[%s4608 + $0x5c] sm:$0x1]
      %v5503 = vld [vmem:[%s4608 + $0x64] sm:$0xf]
      %v5504 = vld [vmem:[%s4608 + $0x68] sm:$0xf]
      %v5505 = vld [vmem:[%s4608 + $0x6c] sm:$0x1]
      %v5506 = vld [vmem:[%s4608 + $0x74] sm:$0xf]
      %v5507 = vld [vmem:[%s4608 + $0x78] sm:$0xf]
      %v5508 = vld [vmem:[%s4608 + $0x7c] sm:$0x1]
      %v5509 = vld [vmem:[%s4608 + $0x84] sm:$0xf]
      %v5510 = vld [vmem:[%s4608 + $0x88] sm:$0xf]
      %v5511 = vld [vmem:[%s4608 + $0x8c] sm:$0x1]
      %v5512 = vld [vmem:[%s4608 + $0x94] sm:$0xf]
      %v5513 = vld [vmem:[%s4608 + $0x98] sm:$0xf]
      %v5514 = vld [vmem:[%s4608 + $0x9c] sm:$0x1]
      %v5515 = vld [vmem:[%s4608 + $0xa4] sm:$0xf]
      %v5516 = vld [vmem:[%s4608 + $0xa8] sm:$0xf]
      %v5517 = vld [vmem:[%s4608 + $0xac] sm:$0x1]
      %v5518 = vld [vmem:[%s4608 + $0xb4] sm:$0xf]
      %v5519 = vld [vmem:[%s4608 + $0xb8] sm:$0xf]
      %v5520 = vld [vmem:[%s4608 + $0xbc] sm:$0x1]
      %v5521 = vld [vmem:[%s4608 + $0xc4] sm:$0xf]
      %v5522 = vld [vmem:[%s4608 + $0xc8] sm:$0xf]
      %v5523 = vld [vmem:[%s4608 + $0xcc] sm:$0x1]
      %v5524 = vld [vmem:[%s4608 + $0xd4] sm:$0xf]
      %v5525 = vld [vmem:[%s4608 + $0xd8] sm:$0xf]
      %v5526 = vld [vmem:[%s4608 + $0xdc] sm:$0x1]
      %v5527 = vld [vmem:[%s4608 + $0xe4] sm:$0xf]
      %v5528 = vld [vmem:[%s4608 + $0xe8] sm:$0xf]
      %v5529 = vld [vmem:[%s4608 + $0xec] sm:$0x1]
      %v5530 = vld [vmem:[%s4608 + $0xf4] sm:$0xf]
      %v5531 = vld [vmem:[%s4608 + $0xf8] sm:$0xf]
      %v5532 = vld [vmem:[%s4608 + $0xfc] sm:$0x1]
      %v5534 = vshrl.u32 %v5485, 16
      %v5536 = vrot.slane %v5534, 4
      %v5537 = vshll.u32 %v5485, 16
      %v5539 = vrot.slane %v5537, 5
      %v5540 = vor.u32 %v5536, %v5539
      %v5541 = vrot.slane %v5540, 4
      %v5543 = vshll.u32 %v5486, 16
      %v5545 = vrot.slane %v5543, 5
      %v5546 = vsel %vm2471, %v5541, %v5545
      %v5547 = vshrl.u32 %v5486, 16
      %v5549 = vrot.slane %v5547, 4
      %v5550 = vor.u32 %v5549, %v5545
      %v5551 = vrot.slane %v5550, 4
      %v5553 = vshll.u32 %v5487, 16
      %v5555 = vrot.slane %v5553, 5
      %v5556 = vsel %vm2471, %v5551, %v5555
      %v5558 = vshrl.u32 %v5488, 16
      %v5560 = vrot.slane %v5558, 4
      %v5561 = vshll.u32 %v5488, 16
      %v5563 = vrot.slane %v5561, 5
      %v5564 = vor.u32 %v5560, %v5563
      %v5565 = vrot.slane %v5564, 4
      %v5567 = vshll.u32 %v5489, 16
      %v5569 = vrot.slane %v5567, 5
      %v5570 = vsel %vm2471, %v5565, %v5569
      %v5571 = vshrl.u32 %v5489, 16
      %v5573 = vrot.slane %v5571, 4
      %v5574 = vor.u32 %v5573, %v5569
      %v5575 = vrot.slane %v5574, 4
      %v5577 = vshll.u32 %v5490, 16
      %v5579 = vrot.slane %v5577, 5
      %v5580 = vsel %vm2471, %v5575, %v5579
      %v5582 = vshrl.u32 %v5491, 16
      %v5584 = vrot.slane %v5582, 4
      %v5585 = vshll.u32 %v5491, 16
      %v5587 = vrot.slane %v5585, 5
      %v5588 = vor.u32 %v5584, %v5587
      %v5589 = vrot.slane %v5588, 4
      %v5591 = vshll.u32 %v5492, 16
      %v5593 = vrot.slane %v5591, 5
      %v5594 = vsel %vm2471, %v5589, %v5593
      %v5595 = vshrl.u32 %v5492, 16
      %v5597 = vrot.slane %v5595, 4
      %v5598 = vor.u32 %v5597, %v5593
      %v5599 = vrot.slane %v5598, 4
      %v5601 = vshll.u32 %v5493, 16
      %v5603 = vrot.slane %v5601, 5
      %v5604 = vsel %vm2471, %v5599, %v5603
      %v5606 = vshrl.u32 %v5494, 16
      %v5608 = vrot.slane %v5606, 4
      %v5609 = vshll.u32 %v5494, 16
      %v5611 = vrot.slane %v5609, 5
      %v5612 = vor.u32 %v5608, %v5611
      %v5613 = vrot.slane %v5612, 4
      %v5615 = vshll.u32 %v5495, 16
      %v5617 = vrot.slane %v5615, 5
      %v5618 = vsel %vm2471, %v5613, %v5617
      %v5619 = vshrl.u32 %v5495, 16
      %v5621 = vrot.slane %v5619, 4
      %v5622 = vor.u32 %v5621, %v5617
      %v5623 = vrot.slane %v5622, 4
      %v5625 = vshll.u32 %v5496, 16
      %v5627 = vrot.slane %v5625, 5
      %v5628 = vsel %vm2471, %v5623, %v5627
      %v5630 = vshrl.u32 %v5497, 16
      %v5632 = vrot.slane %v5630, 4
      %v5633 = vshll.u32 %v5497, 16
      %v5635 = vrot.slane %v5633, 5
      %v5636 = vor.u32 %v5632, %v5635
      %v5637 = vrot.slane %v5636, 4
      %v5639 = vshll.u32 %v5498, 16
      %v5641 = vrot.slane %v5639, 5
      %v5642 = vsel %vm2471, %v5637, %v5641
      %v5643 = vshrl.u32 %v5498, 16
      %v5645 = vrot.slane %v5643, 4
      %v5646 = vor.u32 %v5645, %v5641
      %v5647 = vrot.slane %v5646, 4
      %v5649 = vshll.u32 %v5499, 16
      %v5651 = vrot.slane %v5649, 5
      %v5652 = vsel %vm2471, %v5647, %v5651
      %v5654 = vshrl.u32 %v5500, 16
      %v5656 = vrot.slane %v5654, 4
      %v5657 = vshll.u32 %v5500, 16
      %v5659 = vrot.slane %v5657, 5
      %v5660 = vor.u32 %v5656, %v5659
      %v5661 = vrot.slane %v5660, 4
      %v5663 = vshll.u32 %v5501, 16
      %v5665 = vrot.slane %v5663, 5
      %v5666 = vsel %vm2471, %v5661, %v5665
      %v5667 = vshrl.u32 %v5501, 16
      %v5669 = vrot.slane %v5667, 4
      %v5670 = vor.u32 %v5669, %v5665
      %v5671 = vrot.slane %v5670, 4
      %v5673 = vshll.u32 %v5502, 16
      %v5675 = vrot.slane %v5673, 5
      %v5676 = vsel %vm2471, %v5671, %v5675
      %v5678 = vshrl.u32 %v5503, 16
      %v5680 = vrot.slane %v5678, 4
      %v5681 = vshll.u32 %v5503, 16
      %v5683 = vrot.slane %v5681, 5
      %v5684 = vor.u32 %v5680, %v5683
      %v5685 = vrot.slane %v5684, 4
      %v5687 = vshll.u32 %v5504, 16
      %v5689 = vrot.slane %v5687, 5
      %v5690 = vsel %vm2471, %v5685, %v5689
      %v5691 = vshrl.u32 %v5504, 16
      %v5693 = vrot.slane %v5691, 4
      %v5694 = vor.u32 %v5693, %v5689
      %v5695 = vrot.slane %v5694, 4
      %v5697 = vshll.u32 %v5505, 16
      %v5699 = vrot.slane %v5697, 5
      %v5700 = vsel %vm2471, %v5695, %v5699
      %v5702 = vshrl.u32 %v5506, 16
      %v5704 = vrot.slane %v5702, 4
      %v5705 = vshll.u32 %v5506, 16
      %v5707 = vrot.slane %v5705, 5
      %v5708 = vor.u32 %v5704, %v5707
      %v5709 = vrot.slane %v5708, 4
      %v5711 = vshll.u32 %v5507, 16
      %v5713 = vrot.slane %v5711, 5
      %v5714 = vsel %vm2471, %v5709, %v5713
      %v5715 = vshrl.u32 %v5507, 16
      %v5717 = vrot.slane %v5715, 4
      %v5718 = vor.u32 %v5717, %v5713
      %v5719 = vrot.slane %v5718, 4
      %v5721 = vshll.u32 %v5508, 16
      %v5723 = vrot.slane %v5721, 5
      %v5724 = vsel %vm2471, %v5719, %v5723
      %v5726 = vshrl.u32 %v5509, 16
      %v5728 = vrot.slane %v5726, 4
      %v5729 = vshll.u32 %v5509, 16
      %v5731 = vrot.slane %v5729, 5
      %v5732 = vor.u32 %v5728, %v5731
      %v5733 = vrot.slane %v5732, 4
      %v5735 = vshll.u32 %v5510, 16
      %v5737 = vrot.slane %v5735, 5
      %v5738 = vsel %vm2471, %v5733, %v5737
      %v5739 = vshrl.u32 %v5510, 16
      %v5741 = vrot.slane %v5739, 4
      %v5742 = vor.u32 %v5741, %v5737
      %v5743 = vrot.slane %v5742, 4
      %v5745 = vshll.u32 %v5511, 16
      %v5747 = vrot.slane %v5745, 5
      %v5748 = vsel %vm2471, %v5743, %v5747
      %v5750 = vshrl.u32 %v5512, 16
      %v5752 = vrot.slane %v5750, 4
      %v5753 = vshll.u32 %v5512, 16
      %v5755 = vrot.slane %v5753, 5
      %v5756 = vor.u32 %v5752, %v5755
      %v5757 = vrot.slane %v5756, 4
      %v5759 = vshll.u32 %v5513, 16
      %v5761 = vrot.slane %v5759, 5
      %v5762 = vsel %vm2471, %v5757, %v5761
      %v5763 = vshrl.u32 %v5513, 16
      %v5765 = vrot.slane %v5763, 4
      %v5766 = vor.u32 %v5765, %v5761
      %v5767 = vrot.slane %v5766, 4
      %v5769 = vshll.u32 %v5514, 16
      %v5771 = vrot.slane %v5769, 5
      %v5772 = vsel %vm2471, %v5767, %v5771
      %v5774 = vshrl.u32 %v5515, 16
      %v5776 = vrot.slane %v5774, 4
      %v5777 = vshll.u32 %v5515, 16
      %v5779 = vrot.slane %v5777, 5
      %v5780 = vor.u32 %v5776, %v5779
      %v5781 = vrot.slane %v5780, 4
      %v5783 = vshll.u32 %v5516, 16
      %v5785 = vrot.slane %v5783, 5
      %v5786 = vsel %vm2471, %v5781, %v5785
      %v5787 = vshrl.u32 %v5516, 16
      %v5789 = vrot.slane %v5787, 4
      %v5790 = vor.u32 %v5789, %v5785
      %v5791 = vrot.slane %v5790, 4
      %v5793 = vshll.u32 %v5517, 16
      %v5795 = vrot.slane %v5793, 5
      %v5796 = vsel %vm2471, %v5791, %v5795
      %v5798 = vshrl.u32 %v5518, 16
      %v5800 = vrot.slane %v5798, 4
      %v5801 = vshll.u32 %v5518, 16
      %v5803 = vrot.slane %v5801, 5
      %v5804 = vor.u32 %v5800, %v5803
      %v5805 = vrot.slane %v5804, 4
      %v5807 = vshll.u32 %v5519, 16
      %v5809 = vrot.slane %v5807, 5
      %v5810 = vsel %vm2471, %v5805, %v5809
      %v5811 = vshrl.u32 %v5519, 16
      %v5813 = vrot.slane %v5811, 4
      %v5814 = vor.u32 %v5813, %v5809
      %v5815 = vrot.slane %v5814, 4
      %v5817 = vshll.u32 %v5520, 16
      %v5819 = vrot.slane %v5817, 5
      %v5820 = vsel %vm2471, %v5815, %v5819
      %v5822 = vshrl.u32 %v5521, 16
      %v5824 = vrot.slane %v5822, 4
      %v5825 = vshll.u32 %v5521, 16
      %v5827 = vrot.slane %v5825, 5
      %v5828 = vor.u32 %v5824, %v5827
      %v5829 = vrot.slane %v5828, 4
      %v5831 = vshll.u32 %v5522, 16
      %v5833 = vrot.slane %v5831, 5
      %v5834 = vsel %vm2471, %v5829, %v5833
      %v5835 = vshrl.u32 %v5522, 16
      %v5837 = vrot.slane %v5835, 4
      %v5838 = vor.u32 %v5837, %v5833
      %v5839 = vrot.slane %v5838, 4
      %v5841 = vshll.u32 %v5523, 16
      %v5843 = vrot.slane %v5841, 5
      %v5844 = vsel %vm2471, %v5839, %v5843
      %v5846 = vshrl.u32 %v5524, 16
      %v5848 = vrot.slane %v5846, 4
      %v5849 = vshll.u32 %v5524, 16
      %v5851 = vrot.slane %v5849, 5
      %v5852 = vor.u32 %v5848, %v5851
      %v5853 = vrot.slane %v5852, 4
      %v5855 = vshll.u32 %v5525, 16
      %v5857 = vrot.slane %v5855, 5
      %v5858 = vsel %vm2471, %v5853, %v5857
      %v5859 = vshrl.u32 %v5525, 16
      %v5861 = vrot.slane %v5859, 4
      %v5862 = vor.u32 %v5861, %v5857
      %v5863 = vrot.slane %v5862, 4
      %v5865 = vshll.u32 %v5526, 16
      %v5867 = vrot.slane %v5865, 5
      %v5868 = vsel %vm2471, %v5863, %v5867
      %v5870 = vshrl.u32 %v5527, 16
      %v5872 = vrot.slane %v5870, 4
      %v5873 = vshll.u32 %v5527, 16
      %v5875 = vrot.slane %v5873, 5
      %v5876 = vor.u32 %v5872, %v5875
      %v5877 = vrot.slane %v5876, 4
      %v5879 = vshll.u32 %v5528, 16
      %v5881 = vrot.slane %v5879, 5
      %v5882 = vsel %vm2471, %v5877, %v5881
      %v5883 = vshrl.u32 %v5528, 16
      %v5885 = vrot.slane %v5883, 4
      %v5886 = vor.u32 %v5885, %v5881
      %v5887 = vrot.slane %v5886, 4
      %v5889 = vshll.u32 %v5529, 16
      %v5891 = vrot.slane %v5889, 5
      %v5892 = vsel %vm2471, %v5887, %v5891
      %v5894 = vshrl.u32 %v5530, 16
      %v5896 = vrot.slane %v5894, 4
      %v5897 = vshll.u32 %v5530, 16
      %v5899 = vrot.slane %v5897, 5
      %v5900 = vor.u32 %v5896, %v5899
      %v5901 = vrot.slane %v5900, 4
      %v5903 = vshll.u32 %v5531, 16
      %v5905 = vrot.slane %v5903, 5
      %v5906 = vsel %vm2471, %v5901, %v5905
      %v5907 = vshrl.u32 %v5531, 16
      %v5909 = vrot.slane %v5907, 4
      %v5910 = vor.u32 %v5909, %v5905
      %v5911 = vrot.slane %v5910, 4
      %v5913 = vshll.u32 %v5532, 16
      %v5915 = vrot.slane %v5913, 5
      %v5916 = vsel %vm2471, %v5911, %v5915
      %s5917 = scalar_lea.vmem %s5, 8
      %v5918 = vld [vmem:[%s5917] sm:$0x1]
      %v5919 = vunpack.c.l.b16 %v5546
      %v5920 = vunpack.c.l.b16 %v5556
      %v5921 = vunpack.c.l.b16 %v5570
      %v5922 = vunpack.c.l.b16 %v5580
      %v5923 = vunpack.c.l.b16 %v5594
      %v5924 = vunpack.c.l.b16 %v5604
      %v5925 = vunpack.c.l.b16 %v5618
      %v5926 = vunpack.c.l.b16 %v5628
      %v5927 = vunpack.c.l.b16 %v5642
      %v5928 = vunpack.c.l.b16 %v5652
      %v5929 = vunpack.c.l.b16 %v5666
      %v5930 = vunpack.c.l.b16 %v5676
      %v5931 = vunpack.c.l.b16 %v5690
      %v5932 = vunpack.c.l.b16 %v5700
      %v5933 = vunpack.c.l.b16 %v5714
      %v5934 = vunpack.c.l.b16 %v5724
      %v5935 = vunpack.c.l.b16 %v5738
      %v5936 = vunpack.c.l.b16 %v5748
      %v5937 = vunpack.c.l.b16 %v5762
      %v5938 = vunpack.c.l.b16 %v5772
      %v5939 = vunpack.c.l.b16 %v5786
      %v5940 = vunpack.c.l.b16 %v5796
      %v5941 = vunpack.c.l.b16 %v5810
      %v5942 = vunpack.c.l.b16 %v5820
      %v5943 = vunpack.c.l.b16 %v5834
      %v5944 = vunpack.c.l.b16 %v5844
      %v5945 = vunpack.c.l.b16 %v5858
      %v5946 = vunpack.c.l.b16 %v5868
      %v5947 = vunpack.c.l.b16 %v5882
      %v5948 = vunpack.c.l.b16 %v5892
      %v5949 = vunpack.c.l.b16 %v5906
      %v5950 = vunpack.c.l.b16 %v5916
      %v5951 = vpack.c.b16 %v5920, %v5919
      %v5952 = vpack.c.b16 %v5922, %v5921
      %v5953 = vpack.c.b16 %v5924, %v5923
      %v5954 = vpack.c.b16 %v5926, %v5925
      %v5955 = vpack.c.b16 %v5928, %v5927
      %v5956 = vpack.c.b16 %v5930, %v5929
      %v5957 = vpack.c.b16 %v5932, %v5931
      %v5958 = vpack.c.b16 %v5934, %v5933
      %v5959 = vpack.c.b16 %v5936, %v5935
      %v5960 = vpack.c.b16 %v5938, %v5937
      %v5961 = vpack.c.b16 %v5940, %v5939
      %v5962 = vpack.c.b16 %v5942, %v5941
      %v5963 = vpack.c.b16 %v5944, %v5943
      %v5964 = vpack.c.b16 %v5946, %v5945
      %v5965 = vpack.c.b16 %v5948, %v5947
      %v5966 = vpack.c.b16 %v5950, %v5949
      %v5968 = vsel %vm2091, %v5951, 0
      %v5971 = vsel %vm2091, %v5952, 0
      %v5974 = vsel %vm2091, %v5953, 0
      %v5977 = vsel %vm2091, %v5954, 0
      %v5980 = vsel %vm2091, %v5955, 0
      %v5983 = vsel %vm2091, %v5956, 0
      %v5986 = vsel %vm2091, %v5957, 0
      %v5989 = vsel %vm2091, %v5958, 0
      %v5992 = vsel %vm2091, %v5959, 0
      %v5995 = vsel %vm2091, %v5960, 0
      %v5998 = vsel %vm2091, %v5961, 0
      %v6001 = vsel %vm2091, %v5962, 0
      %v6004 = vsel %vm2091, %v5963, 0
      %v6007 = vsel %vm2091, %v5964, 0
      %v6010 = vsel %vm2091, %v5965, 0
      %v6013 = vsel %vm2091, %v5966, 0
      %v6016 = vsel %vm2140, %v5918, 0
      %6018 = vmatpush.bf16.msra.mxu0 0
      %6019 = vmatpush.bf16.msra.mxu0 0
      %6020 = vmatpush.bf16.msra.mxu0 0
      %6021 = vmatpush.bf16.msra.mxu0 0
      %6022 = vmatpush.bf16.msra.mxu0 0
      %6023 = vmatpush.bf16.msra.mxu0 0
      %6024 = vmatpush.bf16.msra.mxu0 0
      %6025 = vmatpush.bf16.msra.mxu0 %v6016
      %6026 = vmatmul.bf16.gmra.mxu0 %v5968
      %v6027 = vpop.f32.mrf.mxu0
      %v6028 = vadd.f32 0.0, %v6027
      %v6029 = vpop.f32.mrf.mxu0
      %v6030 = vadd.f32 0.0, %v6029
      %6031 = vmatmul.bf16.gmra.mxu0 %v5971
      %v6032 = vpop.f32.mrf.mxu0
      %v6033 = vadd.f32 0.0, %v6032
      %v6034 = vpop.f32.mrf.mxu0
      %v6035 = vadd.f32 0.0, %v6034
      %6036 = vmatmul.bf16.gmra.mxu0 %v5974
      %v6037 = vpop.f32.mrf.mxu0
      %v6038 = vadd.f32 0.0, %v6037
      %v6039 = vpop.f32.mrf.mxu0
      %v6040 = vadd.f32 0.0, %v6039
      %6041 = vmatmul.bf16.gmra.mxu0 %v5977
      %v6042 = vpop.f32.mrf.mxu0
      %v6043 = vadd.f32 0.0, %v6042
      %v6044 = vpop.f32.mrf.mxu0
      %v6045 = vadd.f32 0.0, %v6044
      %6046 = vmatmul.bf16.gmra.mxu0 %v5980
      %v6047 = vpop.f32.mrf.mxu0
      %v6048 = vadd.f32 0.0, %v6047
      %v6049 = vpop.f32.mrf.mxu0
      %v6050 = vadd.f32 0.0, %v6049
      %6051 = vmatmul.bf16.gmra.mxu0 %v5983
      %v6052 = vpop.f32.mrf.mxu0
      %v6053 = vadd.f32 0.0, %v6052
      %v6054 = vpop.f32.mrf.mxu0
      %v6055 = vadd.f32 0.0, %v6054
      %6056 = vmatmul.bf16.gmra.mxu0 %v5986
      %v6057 = vpop.f32.mrf.mxu0
      %v6058 = vadd.f32 0.0, %v6057
      %v6059 = vpop.f32.mrf.mxu0
      %v6060 = vadd.f32 0.0, %v6059
      %6061 = vmatmul.bf16.gmra.mxu0 %v5989
      %v6062 = vpop.f32.mrf.mxu0
      %v6063 = vadd.f32 0.0, %v6062
      %v6064 = vpop.f32.mrf.mxu0
      %v6065 = vadd.f32 0.0, %v6064
      %6066 = vmatmul.bf16.gmra.mxu0 %v5992
      %v6067 = vpop.f32.mrf.mxu0
      %v6068 = vadd.f32 0.0, %v6067
      %v6069 = vpop.f32.mrf.mxu0
      %v6070 = vadd.f32 0.0, %v6069
      %6071 = vmatmul.bf16.gmra.mxu0 %v5995
      %v6072 = vpop.f32.mrf.mxu0
      %v6073 = vadd.f32 0.0, %v6072
      %v6074 = vpop.f32.mrf.mxu0
      %v6075 = vadd.f32 0.0, %v6074
      %6076 = vmatmul.bf16.gmra.mxu0 %v5998
      %v6077 = vpop.f32.mrf.mxu0
      %v6078 = vadd.f32 0.0, %v6077
      %v6079 = vpop.f32.mrf.mxu0
      %v6080 = vadd.f32 0.0, %v6079
      %6081 = vmatmul.bf16.gmra.mxu0 %v6001
      %v6082 = vpop.f32.mrf.mxu0
      %v6083 = vadd.f32 0.0, %v6082
      %v6084 = vpop.f32.mrf.mxu0
      %v6085 = vadd.f32 0.0, %v6084
      %6086 = vmatmul.bf16.gmra.mxu0 %v6004
      %v6087 = vpop.f32.mrf.mxu0
      %v6088 = vadd.f32 0.0, %v6087
      %v6089 = vpop.f32.mrf.mxu0
      %v6090 = vadd.f32 0.0, %v6089
      %6091 = vmatmul.bf16.gmra.mxu0 %v6007
      %v6092 = vpop.f32.mrf.mxu0
      %v6093 = vadd.f32 0.0, %v6092
      %v6094 = vpop.f32.mrf.mxu0
      %v6095 = vadd.f32 0.0, %v6094
      %6096 = vmatmul.bf16.gmra.mxu0 %v6010
      %v6097 = vpop.f32.mrf.mxu0
      %v6098 = vadd.f32 0.0, %v6097
      %v6099 = vpop.f32.mrf.mxu0
      %v6100 = vadd.f32 0.0, %v6099
      %6101 = vmatmul.bf16.gmra.mxu0 %v6013
      %v6102 = vpop.f32.mrf.mxu0
      %v6103 = vadd.f32 0.0, %v6102
      %v6104 = vpop.f32.mrf.mxu0
      %v6105 = vadd.f32 0.0, %v6104
      %6106 = vdwg.mxu0
      %v6107 = vadd.f32 %v5453, %v6028
      %v6108 = vadd.f32 %v5454, %v6030
      %v6109 = vadd.f32 %v5455, %v6033
      %v6110 = vadd.f32 %v5456, %v6035
      %v6111 = vadd.f32 %v5457, %v6038
      %v6112 = vadd.f32 %v5458, %v6040
      %v6113 = vadd.f32 %v5459, %v6043
      %v6114 = vadd.f32 %v5460, %v6045
      %v6115 = vadd.f32 %v5461, %v6048
      %v6116 = vadd.f32 %v5462, %v6050
      %v6117 = vadd.f32 %v5463, %v6053
      %v6118 = vadd.f32 %v5464, %v6055
      %v6119 = vadd.f32 %v5465, %v6058
      %v6120 = vadd.f32 %v5466, %v6060
      %v6121 = vadd.f32 %v5467, %v6063
      %v6122 = vadd.f32 %v5468, %v6065
      %v6123 = vadd.f32 %v5469, %v6068
      %v6124 = vadd.f32 %v5470, %v6070
      %v6125 = vadd.f32 %v5471, %v6073
      %v6126 = vadd.f32 %v5472, %v6075
      %v6127 = vadd.f32 %v5473, %v6078
      %v6128 = vadd.f32 %v5474, %v6080
      %v6129 = vadd.f32 %v5475, %v6083
      %v6130 = vadd.f32 %v5476, %v6085
      %v6131 = vadd.f32 %v5477, %v6088
      %v6132 = vadd.f32 %v5478, %v6090
      %v6133 = vadd.f32 %v5479, %v6093
      %v6134 = vadd.f32 %v5480, %v6095
      %v6135 = vadd.f32 %v5481, %v6098
      %v6136 = vadd.f32 %v5482, %v6100
      %v6137 = vadd.f32 %v5483, %v6103
      %v6138 = vadd.f32 %v5484, %v6105
      %v6139 = vld [vmem:[%s6] sm:$0x1]
      %v6141 = vperm.slane %v6139, 0
      %v6143 = vadd.f32 %v6107, %v6141
      %v6144 = vadd.f32 %v6108, %v6141
      %v6145 = vadd.f32 %v6109, %v6141
      %v6146 = vadd.f32 %v6110, %v6141
      %v6147 = vadd.f32 %v6111, %v6141
      %v6148 = vadd.f32 %v6112, %v6141
      %v6149 = vadd.f32 %v6113, %v6141
      %v6150 = vadd.f32 %v6114, %v6141
      %v6151 = vadd.f32 %v6115, %v6141
      %v6152 = vadd.f32 %v6116, %v6141
      %v6153 = vadd.f32 %v6117, %v6141
      %v6154 = vadd.f32 %v6118, %v6141
      %v6155 = vadd.f32 %v6119, %v6141
      %v6156 = vadd.f32 %v6120, %v6141
      %v6157 = vadd.f32 %v6121, %v6141
      %v6158 = vadd.f32 %v6122, %v6141
      %v6159 = vadd.f32 %v6123, %v6141
      %v6160 = vadd.f32 %v6124, %v6141
      %v6161 = vadd.f32 %v6125, %v6141
      %v6162 = vadd.f32 %v6126, %v6141
      %v6163 = vadd.f32 %v6127, %v6141
      %v6164 = vadd.f32 %v6128, %v6141
      %v6165 = vadd.f32 %v6129, %v6141
      %v6166 = vadd.f32 %v6130, %v6141
      %v6167 = vadd.f32 %v6131, %v6141
      %v6168 = vadd.f32 %v6132, %v6141
      %v6169 = vadd.f32 %v6133, %v6141
      %v6170 = vadd.f32 %v6134, %v6141
      %v6171 = vadd.f32 %v6135, %v6141
      %v6172 = vadd.f32 %v6136, %v6141
      %v6173 = vadd.f32 %v6137, %v6141
      %v6174 = vadd.f32 %v6138, %v6141
      %v6175 = vmin.f32 %v6143, 20.0
      %v6176 = vmin.f32 %v6144, 20.0
      %v6177 = vmin.f32 %v6145, 20.0
      %v6178 = vmin.f32 %v6146, 20.0
      %v6179 = vmin.f32 %v6147, 20.0
      %v6180 = vmin.f32 %v6148, 20.0
      %v6181 = vmin.f32 %v6149, 20.0
      %v6182 = vmin.f32 %v6150, 20.0
      %v6183 = vmin.f32 %v6151, 20.0
      %v6184 = vmin.f32 %v6152, 20.0
      %v6185 = vmin.f32 %v6153, 20.0
      %v6186 = vmin.f32 %v6154, 20.0
      %v6187 = vmin.f32 %v6155, 20.0
      %v6188 = vmin.f32 %v6156, 20.0
      %v6189 = vmin.f32 %v6157, 20.0
      %v6190 = vmin.f32 %v6158, 20.0
      %v6191 = vmin.f32 %v6159, 20.0
      %v6192 = vmin.f32 %v6160, 20.0
      %v6193 = vmin.f32 %v6161, 20.0
      %v6194 = vmin.f32 %v6162, 20.0
      %v6195 = vmin.f32 %v6163, 20.0
      %v6196 = vmin.f32 %v6164, 20.0
      %v6197 = vmin.f32 %v6165, 20.0
      %v6198 = vmin.f32 %v6166, 20.0
      %v6199 = vmin.f32 %v6167, 20.0
      %v6200 = vmin.f32 %v6168, 20.0
      %v6201 = vmin.f32 %v6169, 20.0
      %v6202 = vmin.f32 %v6170, 20.0
      %v6203 = vmin.f32 %v6171, 20.0
      %v6204 = vmin.f32 %v6172, 20.0
      %v6205 = vmin.f32 %v6173, 20.0
      %v6206 = vmin.f32 %v6174, 20.0
      %v6207 = vmul.f32 %v6175, 1.442695
      %v6208 = vpow.pop %v6207
      %v6209 = vmul.f32 %v6176, 1.442695
      %v6210 = vpow.pop %v6209
      %v6211 = vmul.f32 %v6177, 1.442695
      %v6212 = vpow.pop %v6211
      %v6213 = vmul.f32 %v6178, 1.442695
      %v6214 = vpow.pop %v6213
      %v6215 = vmul.f32 %v6179, 1.442695
      %v6216 = vpow.pop %v6215
      %v6217 = vmul.f32 %v6180, 1.442695
      %v6218 = vpow.pop %v6217
      %v6219 = vmul.f32 %v6181, 1.442695
      %v6220 = vpow.pop %v6219
      %v6221 = vmul.f32 %v6182, 1.442695
      %v6222 = vpow.pop %v6221
      %v6223 = vmul.f32 %v6183, 1.442695
      %v6224 = vpow.pop %v6223
      %v6225 = vmul.f32 %v6184, 1.442695
      %v6226 = vpow.pop %v6225
      %v6227 = vmul.f32 %v6185, 1.442695
      %v6228 = vpow.pop %v6227
      %v6229 = vmul.f32 %v6186, 1.442695
      %v6230 = vpow.pop %v6229
      %v6231 = vmul.f32 %v6187, 1.442695
      %v6232 = vpow.pop %v6231
      %v6233 = vmul.f32 %v6188, 1.442695
      %v6234 = vpow.pop %v6233
      %v6235 = vmul.f32 %v6189, 1.442695
      %v6236 = vpow.pop %v6235
      %v6237 = vmul.f32 %v6190, 1.442695
      %v6238 = vpow.pop %v6237
      %v6239 = vmul.f32 %v6191, 1.442695
      %v6240 = vpow.pop %v6239
      %v6241 = vmul.f32 %v6192, 1.442695
      %v6242 = vpow.pop %v6241
      %v6243 = vmul.f32 %v6193, 1.442695
      %v6244 = vpow.pop %v6243
      %v6245 = vmul.f32 %v6194, 1.442695
      %v6246 = vpow.pop %v6245
      %v6247 = vmul.f32 %v6195, 1.442695
      %v6248 = vpow.pop %v6247
      %v6249 = vmul.f32 %v6196, 1.442695
      %v6250 = vpow.pop %v6249
      %v6251 = vmul.f32 %v6197, 1.442695
      %v6252 = vpow.pop %v6251
      %v6253 = vmul.f32 %v6198, 1.442695
      %v6254 = vpow.pop %v6253
      %v6255 = vmul.f32 %v6199, 1.442695
      %v6256 = vpow.pop %v6255
      %v6257 = vmul.f32 %v6200, 1.442695
      %v6258 = vpow.pop %v6257
      %v6259 = vmul.f32 %v6201, 1.442695
      %v6260 = vpow.pop %v6259
      %v6261 = vmul.f32 %v6202, 1.442695
      %v6262 = vpow.pop %v6261
      %v6263 = vmul.f32 %v6203, 1.442695
      %v6264 = vpow.pop %v6263
      %v6265 = vmul.f32 %v6204, 1.442695
      %v6266 = vpow.pop %v6265
      %v6267 = vmul.f32 %v6205, 1.442695
      %v6268 = vpow.pop %v6267
      %v6269 = vmul.f32 %v6206, 1.442695
      %v6270 = vpow.pop %v6269
      %v6271 = vadd.f32 %v6208, 1.0
      %v6272 = vadd.f32 %v6210, 1.0
      %v6273 = vadd.f32 %v6212, 1.0
      %v6274 = vadd.f32 %v6214, 1.0
      %v6275 = vadd.f32 %v6216, 1.0
      %v6276 = vadd.f32 %v6218, 1.0
      %v6277 = vadd.f32 %v6220, 1.0
      %v6278 = vadd.f32 %v6222, 1.0
      %v6279 = vadd.f32 %v6224, 1.0
      %v6280 = vadd.f32 %v6226, 1.0
      %v6281 = vadd.f32 %v6228, 1.0
      %v6282 = vadd.f32 %v6230, 1.0
      %v6283 = vadd.f32 %v6232, 1.0
      %v6284 = vadd.f32 %v6234, 1.0
      %v6285 = vadd.f32 %v6236, 1.0
      %v6286 = vadd.f32 %v6238, 1.0
      %v6287 = vadd.f32 %v6240, 1.0
      %v6288 = vadd.f32 %v6242, 1.0
      %v6289 = vadd.f32 %v6244, 1.0
      %v6290 = vadd.f32 %v6246, 1.0
      %v6291 = vadd.f32 %v6248, 1.0
      %v6292 = vadd.f32 %v6250, 1.0
      %v6293 = vadd.f32 %v6252, 1.0
      %v6294 = vadd.f32 %v6254, 1.0
      %v6295 = vadd.f32 %v6256, 1.0
      %v6296 = vadd.f32 %v6258, 1.0
      %v6297 = vadd.f32 %v6260, 1.0
      %v6298 = vadd.f32 %v6262, 1.0
      %v6299 = vadd.f32 %v6264, 1.0
      %v6300 = vadd.f32 %v6266, 1.0
      %v6301 = vadd.f32 %v6268, 1.0
      %v6302 = vadd.f32 %v6270, 1.0
      %v6303 = vmul.f32 %v6271, %v6271
      %v6304 = vmul.f32 %v6272, %v6272
      %v6305 = vmul.f32 %v6273, %v6273
      %v6306 = vmul.f32 %v6274, %v6274
      %v6307 = vmul.f32 %v6275, %v6275
      %v6308 = vmul.f32 %v6276, %v6276
      %v6309 = vmul.f32 %v6277, %v6277
      %v6310 = vmul.f32 %v6278, %v6278
      %v6311 = vmul.f32 %v6279, %v6279
      %v6312 = vmul.f32 %v6280, %v6280
      %v6313 = vmul.f32 %v6281, %v6281
      %v6314 = vmul.f32 %v6282, %v6282
      %v6315 = vmul.f32 %v6283, %v6283
      %v6316 = vmul.f32 %v6284, %v6284
      %v6317 = vmul.f32 %v6285, %v6285
      %v6318 = vmul.f32 %v6286, %v6286
      %v6319 = vmul.f32 %v6287, %v6287
      %v6320 = vmul.f32 %v6288, %v6288
      %v6321 = vmul.f32 %v6289, %v6289
      %v6322 = vmul.f32 %v6290, %v6290
      %v6323 = vmul.f32 %v6291, %v6291
      %v6324 = vmul.f32 %v6292, %v6292
      %v6325 = vmul.f32 %v6293, %v6293
      %v6326 = vmul.f32 %v6294, %v6294
      %v6327 = vmul.f32 %v6295, %v6295
      %v6328 = vmul.f32 %v6296, %v6296
      %v6329 = vmul.f32 %v6297, %v6297
      %v6330 = vmul.f32 %v6298, %v6298
      %v6331 = vmul.f32 %v6299, %v6299
      %v6332 = vmul.f32 %v6300, %v6300
      %v6333 = vmul.f32 %v6301, %v6301
      %v6334 = vmul.f32 %v6302, %v6302
      %v6335 = vadd.f32 %v6303, 1.0
      %v6336 = vadd.f32 %v6304, 1.0
      %v6337 = vadd.f32 %v6305, 1.0
      %v6338 = vadd.f32 %v6306, 1.0
      %v6339 = vadd.f32 %v6307, 1.0
      %v6340 = vadd.f32 %v6308, 1.0
      %v6341 = vadd.f32 %v6309, 1.0
      %v6342 = vadd.f32 %v6310, 1.0
      %v6343 = vadd.f32 %v6311, 1.0
      %v6344 = vadd.f32 %v6312, 1.0
      %v6345 = vadd.f32 %v6313, 1.0
      %v6346 = vadd.f32 %v6314, 1.0
      %v6347 = vadd.f32 %v6315, 1.0
      %v6348 = vadd.f32 %v6316, 1.0
      %v6349 = vadd.f32 %v6317, 1.0
      %v6350 = vadd.f32 %v6318, 1.0
      %v6351 = vadd.f32 %v6319, 1.0
      %v6352 = vadd.f32 %v6320, 1.0
      %v6353 = vadd.f32 %v6321, 1.0
      %v6354 = vadd.f32 %v6322, 1.0
      %v6355 = vadd.f32 %v6323, 1.0
      %v6356 = vadd.f32 %v6324, 1.0
      %v6357 = vadd.f32 %v6325, 1.0
      %v6358 = vadd.f32 %v6326, 1.0
      %v6359 = vadd.f32 %v6327, 1.0
      %v6360 = vadd.f32 %v6328, 1.0
      %v6361 = vadd.f32 %v6329, 1.0
      %v6362 = vadd.f32 %v6330, 1.0
      %v6363 = vadd.f32 %v6331, 1.0
      %v6364 = vadd.f32 %v6332, 1.0
      %v6365 = vadd.f32 %v6333, 1.0
      %v6366 = vadd.f32 %v6334, 1.0
      %v6367 = vrcp.pop %v6335
      %v6368 = vrcp.pop %v6336
      %v6369 = vrcp.pop %v6337
      %v6370 = vrcp.pop %v6338
      %v6371 = vrcp.pop %v6339
      %v6372 = vrcp.pop %v6340
      %v6373 = vrcp.pop %v6341
      %v6374 = vrcp.pop %v6342
      %v6375 = vrcp.pop %v6343
      %v6376 = vrcp.pop %v6344
      %v6377 = vrcp.pop %v6345
      %v6378 = vrcp.pop %v6346
      %v6379 = vrcp.pop %v6347
      %v6380 = vrcp.pop %v6348
      %v6381 = vrcp.pop %v6349
      %v6382 = vrcp.pop %v6350
      %v6383 = vrcp.pop %v6351
      %v6384 = vrcp.pop %v6352
      %v6385 = vrcp.pop %v6353
      %v6386 = vrcp.pop %v6354
      %v6387 = vrcp.pop %v6355
      %v6388 = vrcp.pop %v6356
      %v6389 = vrcp.pop %v6357
      %v6390 = vrcp.pop %v6358
      %v6391 = vrcp.pop %v6359
      %v6392 = vrcp.pop %v6360
      %v6393 = vrcp.pop %v6361
      %v6394 = vrcp.pop %v6362
      %v6395 = vrcp.pop %v6363
      %v6396 = vrcp.pop %v6364
      %v6397 = vrcp.pop %v6365
      %v6398 = vrcp.pop %v6366
      %v6399 = vmul.f32 %v6367, 2.0
      %v6400 = vmul.f32 %v6368, 2.0
      %v6401 = vmul.f32 %v6369, 2.0
      %v6402 = vmul.f32 %v6370, 2.0
      %v6403 = vmul.f32 %v6371, 2.0
      %v6404 = vmul.f32 %v6372, 2.0
      %v6405 = vmul.f32 %v6373, 2.0
      %v6406 = vmul.f32 %v6374, 2.0
      %v6407 = vmul.f32 %v6375, 2.0
      %v6408 = vmul.f32 %v6376, 2.0
      %v6409 = vmul.f32 %v6377, 2.0
      %v6410 = vmul.f32 %v6378, 2.0
      %v6411 = vmul.f32 %v6379, 2.0
      %v6412 = vmul.f32 %v6380, 2.0
      %v6413 = vmul.f32 %v6381, 2.0
      %v6414 = vmul.f32 %v6382, 2.0
      %v6415 = vmul.f32 %v6383, 2.0
      %v6416 = vmul.f32 %v6384, 2.0
      %v6417 = vmul.f32 %v6385, 2.0
      %v6418 = vmul.f32 %v6386, 2.0
      %v6419 = vmul.f32 %v6387, 2.0
      %v6420 = vmul.f32 %v6388, 2.0
      %v6421 = vmul.f32 %v6389, 2.0
      %v6422 = vmul.f32 %v6390, 2.0
      %v6423 = vmul.f32 %v6391, 2.0
      %v6424 = vmul.f32 %v6392, 2.0
      %v6425 = vmul.f32 %v6393, 2.0
      %v6426 = vmul.f32 %v6394, 2.0
      %v6427 = vmul.f32 %v6395, 2.0
      %v6428 = vmul.f32 %v6396, 2.0
      %v6429 = vmul.f32 %v6397, 2.0
      %v6430 = vmul.f32 %v6398, 2.0
      %v6431 = vsub.f32 1.0, %v6399
      %v6432 = vsub.f32 1.0, %v6400
      %v6433 = vsub.f32 1.0, %v6401
      %v6434 = vsub.f32 1.0, %v6402
      %v6435 = vsub.f32 1.0, %v6403
      %v6436 = vsub.f32 1.0, %v6404
      %v6437 = vsub.f32 1.0, %v6405
      %v6438 = vsub.f32 1.0, %v6406
      %v6439 = vsub.f32 1.0, %v6407
      %v6440 = vsub.f32 1.0, %v6408
      %v6441 = vsub.f32 1.0, %v6409
      %v6442 = vsub.f32 1.0, %v6410
      %v6443 = vsub.f32 1.0, %v6411
      %v6444 = vsub.f32 1.0, %v6412
      %v6445 = vsub.f32 1.0, %v6413
      %v6446 = vsub.f32 1.0, %v6414
      %v6447 = vsub.f32 1.0, %v6415
      %v6448 = vsub.f32 1.0, %v6416
      %v6449 = vsub.f32 1.0, %v6417
      %v6450 = vsub.f32 1.0, %v6418
      %v6451 = vsub.f32 1.0, %v6419
      %v6452 = vsub.f32 1.0, %v6420
      %v6453 = vsub.f32 1.0, %v6421
      %v6454 = vsub.f32 1.0, %v6422
      %v6455 = vsub.f32 1.0, %v6423
      %v6456 = vsub.f32 1.0, %v6424
      %v6457 = vsub.f32 1.0, %v6425
      %v6458 = vsub.f32 1.0, %v6426
      %v6459 = vsub.f32 1.0, %v6427
      %v6460 = vsub.f32 1.0, %v6428
      %v6461 = vsub.f32 1.0, %v6429
      %v6462 = vsub.f32 1.0, %v6430
      %v6463 = vmul.f32 %v6143, %v6431
      %v6464 = vmul.f32 %v6144, %v6432
      %v6465 = vmul.f32 %v6145, %v6433
      %v6466 = vmul.f32 %v6146, %v6434
      %v6467 = vmul.f32 %v6147, %v6435
      %v6468 = vmul.f32 %v6148, %v6436
      %v6469 = vmul.f32 %v6149, %v6437
      %v6470 = vmul.f32 %v6150, %v6438
      %v6471 = vmul.f32 %v6151, %v6439
      %v6472 = vmul.f32 %v6152, %v6440
      %v6473 = vmul.f32 %v6153, %v6441
      %v6474 = vmul.f32 %v6154, %v6442
      %v6475 = vmul.f32 %v6155, %v6443
      %v6476 = vmul.f32 %v6156, %v6444
      %v6477 = vmul.f32 %v6157, %v6445
      %v6478 = vmul.f32 %v6158, %v6446
      %v6479 = vmul.f32 %v6159, %v6447
      %v6480 = vmul.f32 %v6160, %v6448
      %v6481 = vmul.f32 %v6161, %v6449
      %v6482 = vmul.f32 %v6162, %v6450
      %v6483 = vmul.f32 %v6163, %v6451
      %v6484 = vmul.f32 %v6164, %v6452
      %v6485 = vmul.f32 %v6165, %v6453
      %v6486 = vmul.f32 %v6166, %v6454
      %v6487 = vmul.f32 %v6167, %v6455
      %v6488 = vmul.f32 %v6168, %v6456
      %v6489 = vmul.f32 %v6169, %v6457
      %v6490 = vmul.f32 %v6170, %v6458
      %v6491 = vmul.f32 %v6171, %v6459
      %v6492 = vmul.f32 %v6172, %v6460
      %v6493 = vmul.f32 %v6173, %v6461
      %v6494 = vmul.f32 %v6174, %v6462
      %v6495 = vadd.f32 %v6463, %v952
      %v6496 = vadd.f32 %v6464, %v953
      %v6497 = vadd.f32 %v6465, %v954
      %v6498 = vadd.f32 %v6466, %v955
      %v6499 = vadd.f32 %v6467, %v956
      %v6500 = vadd.f32 %v6468, %v957
      %v6501 = vadd.f32 %v6469, %v958
      %v6502 = vadd.f32 %v6470, %v959
      %v6503 = vadd.f32 %v6471, %v960
      %v6504 = vadd.f32 %v6472, %v961
      %v6505 = vadd.f32 %v6473, %v962
      %v6506 = vadd.f32 %v6474, %v963
      %v6507 = vadd.f32 %v6475, %v964
      %v6508 = vadd.f32 %v6476, %v965
      %v6509 = vadd.f32 %v6477, %v966
      %v6510 = vadd.f32 %v6478, %v967
      %v6511 = vadd.f32 %v6479, %v968
      %v6512 = vadd.f32 %v6480, %v969
      %v6513 = vadd.f32 %v6481, %v970
      %v6514 = vadd.f32 %v6482, %v971
      %v6515 = vadd.f32 %v6483, %v972
      %v6516 = vadd.f32 %v6484, %v973
      %v6517 = vadd.f32 %v6485, %v974
      %v6518 = vadd.f32 %v6486, %v975
      %v6519 = vadd.f32 %v6487, %v976
      %v6520 = vadd.f32 %v6488, %v977
      %v6521 = vadd.f32 %v6489, %v978
      %v6522 = vadd.f32 %v6490, %v979
      %v6523 = vadd.f32 %v6491, %v980
      %v6524 = vadd.f32 %v6492, %v981
      %v6525 = vadd.f32 %v6493, %v982
      %v6526 = vadd.f32 %v6494, %v983
      %v6527 = vpack.c.bf16 %v6496, %v6495
      %v6528 = vpack.c.bf16 %v6498, %v6497
      %v6529 = vpack.c.bf16 %v6500, %v6499
      %v6530 = vpack.c.bf16 %v6502, %v6501
      %v6531 = vpack.c.bf16 %v6504, %v6503
      %v6532 = vpack.c.bf16 %v6506, %v6505
      %v6533 = vpack.c.bf16 %v6508, %v6507
      %v6534 = vpack.c.bf16 %v6510, %v6509
      %v6535 = vpack.c.bf16 %v6512, %v6511
      %v6536 = vpack.c.bf16 %v6514, %v6513
      %v6537 = vpack.c.bf16 %v6516, %v6515
      %v6538 = vpack.c.bf16 %v6518, %v6517
      %v6539 = vpack.c.bf16 %v6520, %v6519
      %v6540 = vpack.c.bf16 %v6522, %v6521
      %v6541 = vpack.c.bf16 %v6524, %v6523
      %v6542 = vpack.c.bf16 %v6526, %v6525
      %v6543 = vld [vmem:[%s7] sm:$0x3]
      %v6544 = vld [vmem:[%s8] sm:$0x1]
      %v6546 = vperm.slane %v6544, 0
      %v6549 = vsel %vm1078, %v6527, 0
      %v6552 = vsel %vm1078, %v6528, 0
      %v6555 = vsel %vm1078, %v6529, 0
      %v6558 = vsel %vm1078, %v6530, 0
      %v6561 = vsel %vm1078, %v6531, 0
      %v6564 = vsel %vm1078, %v6532, 0
      %v6567 = vsel %vm1078, %v6533, 0
      %v6570 = vsel %vm1078, %v6534, 0
      %v6573 = vsel %vm1078, %v6535, 0
      %v6576 = vsel %vm1078, %v6536, 0
      %v6579 = vsel %vm1078, %v6537, 0
      %v6582 = vsel %vm1078, %v6538, 0
      %v6585 = vsel %vm1078, %v6539, 0
      %v6588 = vsel %vm1078, %v6540, 0
      %v6591 = vsel %vm1078, %v6541, 0
      %v6594 = vsel %vm1078, %v6542, 0
      %v6597 = vsel %vm1127, %v6543, 0
      %6599 = vmatpush.bf16.msra.mxu0 0
      %6600 = vmatpush.bf16.msra.mxu0 0
      %6601 = vmatpush.bf16.msra.mxu0 0
      %6602 = vmatpush.bf16.msra.mxu0 0
      %6603 = vmatpush.bf16.msra.mxu0 0
      %6604 = vmatpush.bf16.msra.mxu0 0
      %6605 = vmatpush.bf16.msra.mxu0 0
      %6606 = vmatpush.bf16.msra.mxu0 %v6597
      %6607 = vmatmul.bf16.gmra.mxu0 %v6549
      %v6608 = vpop.f32.mrf.mxu0
      %v6609 = vadd.f32 %v6546, %v6608
      %v6610 = vpop.f32.mrf.mxu0
      %v6611 = vadd.f32 %v6546, %v6610
      %6612 = vmatmul.bf16.gmra.mxu0 %v6552
      %v6613 = vpop.f32.mrf.mxu0
      %v6614 = vadd.f32 %v6546, %v6613
      %v6615 = vpop.f32.mrf.mxu0
      %v6616 = vadd.f32 %v6546, %v6615
      %6617 = vmatmul.bf16.gmra.mxu0 %v6555
      %v6618 = vpop.f32.mrf.mxu0
      %v6619 = vadd.f32 %v6546, %v6618
      %v6620 = vpop.f32.mrf.mxu0
      %v6621 = vadd.f32 %v6546, %v6620
      %6622 = vmatmul.bf16.gmra.mxu0 %v6558
      %v6623 = vpop.f32.mrf.mxu0
      %v6624 = vadd.f32 %v6546, %v6623
      %v6625 = vpop.f32.mrf.mxu0
      %v6626 = vadd.f32 %v6546, %v6625
      %6627 = vmatmul.bf16.gmra.mxu0 %v6561
      %v6628 = vpop.f32.mrf.mxu0
      %v6629 = vadd.f32 %v6546, %v6628
      %v6630 = vpop.f32.mrf.mxu0
      %v6631 = vadd.f32 %v6546, %v6630
      %6632 = vmatmul.bf16.gmra.mxu0 %v6564
      %v6633 = vpop.f32.mrf.mxu0
      %v6634 = vadd.f32 %v6546, %v6633
      %v6635 = vpop.f32.mrf.mxu0
      %v6636 = vadd.f32 %v6546, %v6635
      %6637 = vmatmul.bf16.gmra.mxu0 %v6567
      %v6638 = vpop.f32.mrf.mxu0
      %v6639 = vadd.f32 %v6546, %v6638
      %v6640 = vpop.f32.mrf.mxu0
      %v6641 = vadd.f32 %v6546, %v6640
      %6642 = vmatmul.bf16.gmra.mxu0 %v6570
      %v6643 = vpop.f32.mrf.mxu0
      %v6644 = vadd.f32 %v6546, %v6643
      %v6645 = vpop.f32.mrf.mxu0
      %v6646 = vadd.f32 %v6546, %v6645
      %6647 = vmatmul.bf16.gmra.mxu0 %v6573
      %v6648 = vpop.f32.mrf.mxu0
      %v6649 = vadd.f32 %v6546, %v6648
      %v6650 = vpop.f32.mrf.mxu0
      %v6651 = vadd.f32 %v6546, %v6650
      %6652 = vmatmul.bf16.gmra.mxu0 %v6576
      %v6653 = vpop.f32.mrf.mxu0
      %v6654 = vadd.f32 %v6546, %v6653
      %v6655 = vpop.f32.mrf.mxu0
      %v6656 = vadd.f32 %v6546, %v6655
      %6657 = vmatmul.bf16.gmra.mxu0 %v6579
      %v6658 = vpop.f32.mrf.mxu0
      %v6659 = vadd.f32 %v6546, %v6658
      %v6660 = vpop.f32.mrf.mxu0
      %v6661 = vadd.f32 %v6546, %v6660
      %6662 = vmatmul.bf16.gmra.mxu0 %v6582
      %v6663 = vpop.f32.mrf.mxu0
      %v6664 = vadd.f32 %v6546, %v6663
      %v6665 = vpop.f32.mrf.mxu0
      %v6666 = vadd.f32 %v6546, %v6665
      %6667 = vmatmul.bf16.gmra.mxu0 %v6585
      %v6668 = vpop.f32.mrf.mxu0
      %v6669 = vadd.f32 %v6546, %v6668
      %v6670 = vpop.f32.mrf.mxu0
      %v6671 = vadd.f32 %v6546, %v6670
      %6672 = vmatmul.bf16.gmra.mxu0 %v6588
      %v6673 = vpop.f32.mrf.mxu0
      %v6674 = vadd.f32 %v6546, %v6673
      %v6675 = vpop.f32.mrf.mxu0
      %v6676 = vadd.f32 %v6546, %v6675
      %6677 = vmatmul.bf16.gmra.mxu0 %v6591
      %v6678 = vpop.f32.mrf.mxu0
      %v6679 = vadd.f32 %v6546, %v6678
      %v6680 = vpop.f32.mrf.mxu0
      %v6681 = vadd.f32 %v6546, %v6680
      %6682 = vmatmul.bf16.gmra.mxu0 %v6594
      %v6683 = vpop.f32.mrf.mxu0
      %v6684 = vadd.f32 %v6546, %v6683
      %v6685 = vpop.f32.mrf.mxu0
      %v6686 = vadd.f32 %v6546, %v6685
      %6687 = vdwg.mxu0
      %v6688 = vmin.f32 %v6609, 20.0
      %v6689 = vmin.f32 %v6611, 20.0
      %v6690 = vmin.f32 %v6614, 20.0
      %v6691 = vmin.f32 %v6616, 20.0
      %v6692 = vmin.f32 %v6619, 20.0
      %v6693 = vmin.f32 %v6621, 20.0
      %v6694 = vmin.f32 %v6624, 20.0
      %v6695 = vmin.f32 %v6626, 20.0
      %v6696 = vmin.f32 %v6629, 20.0
      %v6697 = vmin.f32 %v6631, 20.0
      %v6698 = vmin.f32 %v6634, 20.0
      %v6699 = vmin.f32 %v6636, 20.0
      %v6700 = vmin.f32 %v6639, 20.0
      %v6701 = vmin.f32 %v6641, 20.0
      %v6702 = vmin.f32 %v6644, 20.0
      %v6703 = vmin.f32 %v6646, 20.0
      %v6704 = vmin.f32 %v6649, 20.0
      %v6705 = vmin.f32 %v6651, 20.0
      %v6706 = vmin.f32 %v6654, 20.0
      %v6707 = vmin.f32 %v6656, 20.0
      %v6708 = vmin.f32 %v6659, 20.0
      %v6709 = vmin.f32 %v6661, 20.0
      %v6710 = vmin.f32 %v6664, 20.0
      %v6711 = vmin.f32 %v6666, 20.0
      %v6712 = vmin.f32 %v6669, 20.0
      %v6713 = vmin.f32 %v6671, 20.0
      %v6714 = vmin.f32 %v6674, 20.0
      %v6715 = vmin.f32 %v6676, 20.0
      %v6716 = vmin.f32 %v6679, 20.0
      %v6717 = vmin.f32 %v6681, 20.0
      %v6718 = vmin.f32 %v6684, 20.0
      %v6719 = vmin.f32 %v6686, 20.0
      %v6720 = vmul.f32 %v6688, 1.442695
      %v6721 = vpow.pop %v6720
      %v6722 = vmul.f32 %v6689, 1.442695
      %v6723 = vpow.pop %v6722
      %v6724 = vmul.f32 %v6690, 1.442695
      %v6725 = vpow.pop %v6724
      %v6726 = vmul.f32 %v6691, 1.442695
      %v6727 = vpow.pop %v6726
      %v6728 = vmul.f32 %v6692, 1.442695
      %v6729 = vpow.pop %v6728
      %v6730 = vmul.f32 %v6693, 1.442695
      %v6731 = vpow.pop %v6730
      %v6732 = vmul.f32 %v6694, 1.442695
      %v6733 = vpow.pop %v6732
      %v6734 = vmul.f32 %v6695, 1.442695
      %v6735 = vpow.pop %v6734
      %v6736 = vmul.f32 %v6696, 1.442695
      %v6737 = vpow.pop %v6736
      %v6738 = vmul.f32 %v6697, 1.442695
      %v6739 = vpow.pop %v6738
      %v6740 = vmul.f32 %v6698, 1.442695
      %v6741 = vpow.pop %v6740
      %v6742 = vmul.f32 %v6699, 1.442695
      %v6743 = vpow.pop %v6742
      %v6744 = vmul.f32 %v6700, 1.442695
      %v6745 = vpow.pop %v6744
      %v6746 = vmul.f32 %v6701, 1.442695
      %v6747 = vpow.pop %v6746
      %v6748 = vmul.f32 %v6702, 1.442695
      %v6749 = vpow.pop %v6748
      %v6750 = vmul.f32 %v6703, 1.442695
      %v6751 = vpow.pop %v6750
      %v6752 = vmul.f32 %v6704, 1.442695
      %v6753 = vpow.pop %v6752
      %v6754 = vmul.f32 %v6705, 1.442695
      %v6755 = vpow.pop %v6754
      %v6756 = vmul.f32 %v6706, 1.442695
      %v6757 = vpow.pop %v6756
      %v6758 = vmul.f32 %v6707, 1.442695
      %v6759 = vpow.pop %v6758
      %v6760 = vmul.f32 %v6708, 1.442695
      %v6761 = vpow.pop %v6760
      %v6762 = vmul.f32 %v6709, 1.442695
      %v6763 = vpow.pop %v6762
      %v6764 = vmul.f32 %v6710, 1.442695
      %v6765 = vpow.pop %v6764
      %v6766 = vmul.f32 %v6711, 1.442695
      %v6767 = vpow.pop %v6766
      %v6768 = vmul.f32 %v6712, 1.442695
      %v6769 = vpow.pop %v6768
      %v6770 = vmul.f32 %v6713, 1.442695
      %v6771 = vpow.pop %v6770
      %v6772 = vmul.f32 %v6714, 1.442695
      %v6773 = vpow.pop %v6772
      %v6774 = vmul.f32 %v6715, 1.442695
      %v6775 = vpow.pop %v6774
      %v6776 = vmul.f32 %v6716, 1.442695
      %v6777 = vpow.pop %v6776
      %v6778 = vmul.f32 %v6717, 1.442695
      %v6779 = vpow.pop %v6778
      %v6780 = vmul.f32 %v6718, 1.442695
      %v6781 = vpow.pop %v6780
      %v6782 = vmul.f32 %v6719, 1.442695
      %v6783 = vpow.pop %v6782
      %v6784 = vadd.f32 %v6721, 1.0
      %v6785 = vadd.f32 %v6723, 1.0
      %v6786 = vadd.f32 %v6725, 1.0
      %v6787 = vadd.f32 %v6727, 1.0
      %v6788 = vadd.f32 %v6729, 1.0
      %v6789 = vadd.f32 %v6731, 1.0
      %v6790 = vadd.f32 %v6733, 1.0
      %v6791 = vadd.f32 %v6735, 1.0
      %v6792 = vadd.f32 %v6737, 1.0
      %v6793 = vadd.f32 %v6739, 1.0
      %v6794 = vadd.f32 %v6741, 1.0
      %v6795 = vadd.f32 %v6743, 1.0
      %v6796 = vadd.f32 %v6745, 1.0
      %v6797 = vadd.f32 %v6747, 1.0
      %v6798 = vadd.f32 %v6749, 1.0
      %v6799 = vadd.f32 %v6751, 1.0
      %v6800 = vadd.f32 %v6753, 1.0
      %v6801 = vadd.f32 %v6755, 1.0
      %v6802 = vadd.f32 %v6757, 1.0
      %v6803 = vadd.f32 %v6759, 1.0
      %v6804 = vadd.f32 %v6761, 1.0
      %v6805 = vadd.f32 %v6763, 1.0
      %v6806 = vadd.f32 %v6765, 1.0
      %v6807 = vadd.f32 %v6767, 1.0
      %v6808 = vadd.f32 %v6769, 1.0
      %v6809 = vadd.f32 %v6771, 1.0
      %v6810 = vadd.f32 %v6773, 1.0
      %v6811 = vadd.f32 %v6775, 1.0
      %v6812 = vadd.f32 %v6777, 1.0
      %v6813 = vadd.f32 %v6779, 1.0
      %v6814 = vadd.f32 %v6781, 1.0
      %v6815 = vadd.f32 %v6783, 1.0
      %v6816 = vmul.f32 %v6784, %v6784
      %v6817 = vmul.f32 %v6785, %v6785
      %v6818 = vmul.f32 %v6786, %v6786
      %v6819 = vmul.f32 %v6787, %v6787
      %v6820 = vmul.f32 %v6788, %v6788
      %v6821 = vmul.f32 %v6789, %v6789
      %v6822 = vmul.f32 %v6790, %v6790
      %v6823 = vmul.f32 %v6791, %v6791
      %v6824 = vmul.f32 %v6792, %v6792
      %v6825 = vmul.f32 %v6793, %v6793
      %v6826 = vmul.f32 %v6794, %v6794
      %v6827 = vmul.f32 %v6795, %v6795
      %v6828 = vmul.f32 %v6796, %v6796
      %v6829 = vmul.f32 %v6797, %v6797
      %v6830 = vmul.f32 %v6798, %v6798
      %v6831 = vmul.f32 %v6799, %v6799
      %v6832 = vmul.f32 %v6800, %v6800
      %v6833 = vmul.f32 %v6801, %v6801
      %v6834 = vmul.f32 %v6802, %v6802
      %v6835 = vmul.f32 %v6803, %v6803
      %v6836 = vmul.f32 %v6804, %v6804
      %v6837 = vmul.f32 %v6805, %v6805
      %v6838 = vmul.f32 %v6806, %v6806
      %v6839 = vmul.f32 %v6807, %v6807
      %v6840 = vmul.f32 %v6808, %v6808
      %v6841 = vmul.f32 %v6809, %v6809
      %v6842 = vmul.f32 %v6810, %v6810
      %v6843 = vmul.f32 %v6811, %v6811
      %v6844 = vmul.f32 %v6812, %v6812
      %v6845 = vmul.f32 %v6813, %v6813
      %v6846 = vmul.f32 %v6814, %v6814
      %v6847 = vmul.f32 %v6815, %v6815
      %v6848 = vadd.f32 %v6816, 1.0
      %v6849 = vadd.f32 %v6817, 1.0
      %v6850 = vadd.f32 %v6818, 1.0
      %v6851 = vadd.f32 %v6819, 1.0
      %v6852 = vadd.f32 %v6820, 1.0
      %v6853 = vadd.f32 %v6821, 1.0
      %v6854 = vadd.f32 %v6822, 1.0
      %v6855 = vadd.f32 %v6823, 1.0
      %v6856 = vadd.f32 %v6824, 1.0
      %v6857 = vadd.f32 %v6825, 1.0
      %v6858 = vadd.f32 %v6826, 1.0
      %v6859 = vadd.f32 %v6827, 1.0
      %v6860 = vadd.f32 %v6828, 1.0
      %v6861 = vadd.f32 %v6829, 1.0
      %v6862 = vadd.f32 %v6830, 1.0
      %v6863 = vadd.f32 %v6831, 1.0
      %v6864 = vadd.f32 %v6832, 1.0
      %v6865 = vadd.f32 %v6833, 1.0
      %v6866 = vadd.f32 %v6834, 1.0
      %v6867 = vadd.f32 %v6835, 1.0
      %v6868 = vadd.f32 %v6836, 1.0
      %v6869 = vadd.f32 %v6837, 1.0
      %v6870 = vadd.f32 %v6838, 1.0
      %v6871 = vadd.f32 %v6839, 1.0
      %v6872 = vadd.f32 %v6840, 1.0
      %v6873 = vadd.f32 %v6841, 1.0
      %v6874 = vadd.f32 %v6842, 1.0
      %v6875 = vadd.f32 %v6843, 1.0
      %v6876 = vadd.f32 %v6844, 1.0
      %v6877 = vadd.f32 %v6845, 1.0
      %v6878 = vadd.f32 %v6846, 1.0
      %v6879 = vadd.f32 %v6847, 1.0
      %v6880 = vrcp.pop %v6848
      %v6881 = vrcp.pop %v6849
      %v6882 = vrcp.pop %v6850
      %v6883 = vrcp.pop %v6851
      %v6884 = vrcp.pop %v6852
      %v6885 = vrcp.pop %v6853
      %v6886 = vrcp.pop %v6854
      %v6887 = vrcp.pop %v6855
      %v6888 = vrcp.pop %v6856
      %v6889 = vrcp.pop %v6857
      %v6890 = vrcp.pop %v6858
      %v6891 = vrcp.pop %v6859
      %v6892 = vrcp.pop %v6860
      %v6893 = vrcp.pop %v6861
      %v6894 = vrcp.pop %v6862
      %v6895 = vrcp.pop %v6863
      %v6896 = vrcp.pop %v6864
      %v6897 = vrcp.pop %v6865
      %v6898 = vrcp.pop %v6866
      %v6899 = vrcp.pop %v6867
      %v6900 = vrcp.pop %v6868
      %v6901 = vrcp.pop %v6869
      %v6902 = vrcp.pop %v6870
      %v6903 = vrcp.pop %v6871
      %v6904 = vrcp.pop %v6872
      %v6905 = vrcp.pop %v6873
      %v6906 = vrcp.pop %v6874
      %v6907 = vrcp.pop %v6875
      %v6908 = vrcp.pop %v6876
      %v6909 = vrcp.pop %v6877
      %v6910 = vrcp.pop %v6878
      %v6911 = vrcp.pop %v6879
      %v6912 = vmul.f32 %v6880, 2.0
      %v6913 = vmul.f32 %v6881, 2.0
      %v6914 = vmul.f32 %v6882, 2.0
      %v6915 = vmul.f32 %v6883, 2.0
      %v6916 = vmul.f32 %v6884, 2.0
      %v6917 = vmul.f32 %v6885, 2.0
      %v6918 = vmul.f32 %v6886, 2.0
      %v6919 = vmul.f32 %v6887, 2.0
      %v6920 = vmul.f32 %v6888, 2.0
      %v6921 = vmul.f32 %v6889, 2.0
      %v6922 = vmul.f32 %v6890, 2.0
      %v6923 = vmul.f32 %v6891, 2.0
      %v6924 = vmul.f32 %v6892, 2.0
      %v6925 = vmul.f32 %v6893, 2.0
      %v6926 = vmul.f32 %v6894, 2.0
      %v6927 = vmul.f32 %v6895, 2.0
      %v6928 = vmul.f32 %v6896, 2.0
      %v6929 = vmul.f32 %v6897, 2.0
      %v6930 = vmul.f32 %v6898, 2.0
      %v6931 = vmul.f32 %v6899, 2.0
      %v6932 = vmul.f32 %v6900, 2.0
      %v6933 = vmul.f32 %v6901, 2.0
      %v6934 = vmul.f32 %v6902, 2.0
      %v6935 = vmul.f32 %v6903, 2.0
      %v6936 = vmul.f32 %v6904, 2.0
      %v6937 = vmul.f32 %v6905, 2.0
      %v6938 = vmul.f32 %v6906, 2.0
      %v6939 = vmul.f32 %v6907, 2.0
      %v6940 = vmul.f32 %v6908, 2.0
      %v6941 = vmul.f32 %v6909, 2.0
      %v6942 = vmul.f32 %v6910, 2.0
      %v6943 = vmul.f32 %v6911, 2.0
      %v6944 = vsub.f32 1.0, %v6912
      %v6945 = vsub.f32 1.0, %v6913
      %v6946 = vsub.f32 1.0, %v6914
      %v6947 = vsub.f32 1.0, %v6915
      %v6948 = vsub.f32 1.0, %v6916
      %v6949 = vsub.f32 1.0, %v6917
      %v6950 = vsub.f32 1.0, %v6918
      %v6951 = vsub.f32 1.0, %v6919
      %v6952 = vsub.f32 1.0, %v6920
      %v6953 = vsub.f32 1.0, %v6921
      %v6954 = vsub.f32 1.0, %v6922
      %v6955 = vsub.f32 1.0, %v6923
      %v6956 = vsub.f32 1.0, %v6924
      %v6957 = vsub.f32 1.0, %v6925
      %v6958 = vsub.f32 1.0, %v6926
      %v6959 = vsub.f32 1.0, %v6927
      %v6960 = vsub.f32 1.0, %v6928
      %v6961 = vsub.f32 1.0, %v6929
      %v6962 = vsub.f32 1.0, %v6930
      %v6963 = vsub.f32 1.0, %v6931
      %v6964 = vsub.f32 1.0, %v6932
      %v6965 = vsub.f32 1.0, %v6933
      %v6966 = vsub.f32 1.0, %v6934
      %v6967 = vsub.f32 1.0, %v6935
      %v6968 = vsub.f32 1.0, %v6936
      %v6969 = vsub.f32 1.0, %v6937
      %v6970 = vsub.f32 1.0, %v6938
      %v6971 = vsub.f32 1.0, %v6939
      %v6972 = vsub.f32 1.0, %v6940
      %v6973 = vsub.f32 1.0, %v6941
      %v6974 = vsub.f32 1.0, %v6942
      %v6975 = vsub.f32 1.0, %v6943
      %v6976 = vmul.f32 %v6609, %v6944
      %v6977 = vmul.f32 %v6611, %v6945
      %v6978 = vmul.f32 %v6614, %v6946
      %v6979 = vmul.f32 %v6616, %v6947
      %v6980 = vmul.f32 %v6619, %v6948
      %v6981 = vmul.f32 %v6621, %v6949
      %v6982 = vmul.f32 %v6624, %v6950
      %v6983 = vmul.f32 %v6626, %v6951
      %v6984 = vmul.f32 %v6629, %v6952
      %v6985 = vmul.f32 %v6631, %v6953
      %v6986 = vmul.f32 %v6634, %v6954
      %v6987 = vmul.f32 %v6636, %v6955
      %v6988 = vmul.f32 %v6639, %v6956
      %v6989 = vmul.f32 %v6641, %v6957
      %v6990 = vmul.f32 %v6644, %v6958
      %v6991 = vmul.f32 %v6646, %v6959
      %v6992 = vmul.f32 %v6649, %v6960
      %v6993 = vmul.f32 %v6651, %v6961
      %v6994 = vmul.f32 %v6654, %v6962
      %v6995 = vmul.f32 %v6656, %v6963
      %v6996 = vmul.f32 %v6659, %v6964
      %v6997 = vmul.f32 %v6661, %v6965
      %v6998 = vmul.f32 %v6664, %v6966
      %v6999 = vmul.f32 %v6666, %v6967
      %v7000 = vmul.f32 %v6669, %v6968
      %v7001 = vmul.f32 %v6671, %v6969
      %v7002 = vmul.f32 %v6674, %v6970
      %v7003 = vmul.f32 %v6676, %v6971
      %v7004 = vmul.f32 %v6679, %v6972
      %v7005 = vmul.f32 %v6681, %v6973
      %v7006 = vmul.f32 %v6684, %v6974
      %v7007 = vmul.f32 %v6686, %v6975
      %v7008 = vpack.c.bf16 %v6976, %v6976
      %v7009 = vpack.c.bf16 %v6977, %v6977
      %v7010 = vpack.c.bf16 %v6978, %v6978
      %v7011 = vpack.c.bf16 %v6979, %v6979
      %v7012 = vpack.c.bf16 %v6980, %v6980
      %v7013 = vpack.c.bf16 %v6981, %v6981
      %v7014 = vpack.c.bf16 %v6982, %v6982
      %v7015 = vpack.c.bf16 %v6983, %v6983
      %v7016 = vpack.c.bf16 %v6984, %v6984
      %v7017 = vpack.c.bf16 %v6985, %v6985
      %v7018 = vpack.c.bf16 %v6986, %v6986
      %v7019 = vpack.c.bf16 %v6987, %v6987
      %v7020 = vpack.c.bf16 %v6988, %v6988
      %v7021 = vpack.c.bf16 %v6989, %v6989
      %v7022 = vpack.c.bf16 %v6990, %v6990
      %v7023 = vpack.c.bf16 %v6991, %v6991
      %v7024 = vpack.c.bf16 %v6992, %v6992
      %v7025 = vpack.c.bf16 %v6993, %v6993
      %v7026 = vpack.c.bf16 %v6994, %v6994
      %v7027 = vpack.c.bf16 %v6995, %v6995
      %v7028 = vpack.c.bf16 %v6996, %v6996
      %v7029 = vpack.c.bf16 %v6997, %v6997
      %v7030 = vpack.c.bf16 %v6998, %v6998
      %v7031 = vpack.c.bf16 %v6999, %v6999
      %v7032 = vpack.c.bf16 %v7000, %v7000
      %v7033 = vpack.c.bf16 %v7001, %v7001
      %v7034 = vpack.c.bf16 %v7002, %v7002
      %v7035 = vpack.c.bf16 %v7003, %v7003
      %v7036 = vpack.c.bf16 %v7004, %v7004
      %v7037 = vpack.c.bf16 %v7005, %v7005
      %v7038 = vpack.c.bf16 %v7006, %v7006
      %v7039 = vpack.c.bf16 %v7007, %v7007
      %7040 = vst.msk [vmem:[%s1572 + $0x4] sm:$0xf] %vm984, %v7008
      %7041 = vst.msk [vmem:[%s1572 + $0x8] sm:$0xf] %vm984, %v7009
      %7042 = vst.msk [vmem:[%s1572 + $0x14] sm:$0xf] %vm984, %v7010
      %7043 = vst.msk [vmem:[%s1572 + $0x18] sm:$0xf] %vm984, %v7011
      %7044 = vst.msk [vmem:[%s1572 + $0x24] sm:$0xf] %vm984, %v7012
      %7045 = vst.msk [vmem:[%s1572 + $0x28] sm:$0xf] %vm984, %v7013
      %7046 = vst.msk [vmem:[%s1572 + $0x34] sm:$0xf] %vm984, %v7014
      %7047 = vst.msk [vmem:[%s1572 + $0x38] sm:$0xf] %vm984, %v7015
      %7048 = vst.msk [vmem:[%s1572 + $0x44] sm:$0xf] %vm984, %v7016
      %7049 = vst.msk [vmem:[%s1572 + $0x48] sm:$0xf] %vm984, %v7017
      %7050 = vst.msk [vmem:[%s1572 + $0x54] sm:$0xf] %vm984, %v7018
      %7051 = vst.msk [vmem:[%s1572 + $0x58] sm:$0xf] %vm984, %v7019
      %7052 = vst.msk [vmem:[%s1572 + $0x64] sm:$0xf] %vm984, %v7020
      %7053 = vst.msk [vmem:[%s1572 + $0x68] sm:$0xf] %vm984, %v7021
      %7054 = vst.msk [vmem:[%s1572 + $0x74] sm:$0xf] %vm984, %v7022
      %7055 = vst.msk [vmem:[%s1572 + $0x78] sm:$0xf] %vm984, %v7023
      %7056 = vst.msk [vmem:[%s1572 + $0x84] sm:$0xf] %vm984, %v7024
      %7057 = vst.msk [vmem:[%s1572 + $0x88] sm:$0xf] %vm984, %v7025
      %7058 = vst.msk [vmem:[%s1572 + $0x94] sm:$0xf] %vm984, %v7026
      %7059 = vst.msk [vmem:[%s1572 + $0x98] sm:$0xf] %vm984, %v7027
      %7060 = vst.msk [vmem:[%s1572 + $0xa4] sm:$0xf] %vm984, %v7028
      %7061 = vst.msk [vmem:[%s1572 + $0xa8] sm:$0xf] %vm984, %v7029
      %7062 = vst.msk [vmem:[%s1572 + $0xb4] sm:$0xf] %vm984, %v7030
      %7063 = vst.msk [vmem:[%s1572 + $0xb8] sm:$0xf] %vm984, %v7031
      %7064 = vst.msk [vmem:[%s1572 + $0xc4] sm:$0xf] %vm984, %v7032
      %7065 = vst.msk [vmem:[%s1572 + $0xc8] sm:$0xf] %vm984, %v7033
      %7066 = vst.msk [vmem:[%s1572 + $0xd4] sm:$0xf] %vm984, %v7034
      %7067 = vst.msk [vmem:[%s1572 + $0xd8] sm:$0xf] %vm984, %v7035
      %7068 = vst.msk [vmem:[%s1572 + $0xe4] sm:$0xf] %vm984, %v7036
      %7069 = vst.msk [vmem:[%s1572 + $0xe8] sm:$0xf] %vm984, %v7037
      %7070 = vst.msk [vmem:[%s1572 + $0xf4] sm:$0xf] %vm984, %v7038
      %7071 = vst.msk [vmem:[%s1572 + $0xf8] sm:$0xf] %vm984, %v7039
      %v7072 = vld [vmem:[#allocation2] sm:$0x8]
      %v7073 = vld [vmem:[#allocation2 + $0x4] sm:$0xf]
      %v7074 = vld [vmem:[#allocation2 + $0x8] sm:$0xf]
      %v7075 = vld [vmem:[#allocation2 + $0x10] sm:$0x8]
      %v7076 = vld [vmem:[#allocation2 + $0x14] sm:$0xf]
      %v7077 = vld [vmem:[#allocation2 + $0x18] sm:$0xf]
      %v7078 = vld [vmem:[#allocation2 + $0x20] sm:$0x8]
      %v7079 = vld [vmem:[#allocation2 + $0x24] sm:$0xf]
      %v7080 = vld [vmem:[#allocation2 + $0x28] sm:$0xf]
      %v7081 = vld [vmem:[#allocation2 + $0x30] sm:$0x8]
      %v7082 = vld [vmem:[#allocation2 + $0x34] sm:$0xf]
      %v7083 = vld [vmem:[#allocation2 + $0x38] sm:$0xf]
      %v7084 = vld [vmem:[#allocation2 + $0x40] sm:$0x8]
      %v7085 = vld [vmem:[#allocation2 + $0x44] sm:$0xf]
      %v7086 = vld [vmem:[#allocation2 + $0x48] sm:$0xf]
      %v7087 = vld [vmem:[#allocation2 + $0x50] sm:$0x8]
      %v7088 = vld [vmem:[#allocation2 + $0x54] sm:$0xf]
      %v7089 = vld [vmem:[#allocation2 + $0x58] sm:$0xf]
      %v7090 = vld [vmem:[#allocation2 + $0x60] sm:$0x8]
      %v7091 = vld [vmem:[#allocation2 + $0x64] sm:$0xf]
      %v7092 = vld [vmem:[#allocation2 + $0x68] sm:$0xf]
      %v7093 = vld [vmem:[#allocation2 + $0x70] sm:$0x8]
      %v7094 = vld [vmem:[#allocation2 + $0x74] sm:$0xf]
      %v7095 = vld [vmem:[#allocation2 + $0x78] sm:$0xf]
      %v7096 = vld [vmem:[#allocation2 + $0x80] sm:$0x8]
      %v7097 = vld [vmem:[#allocation2 + $0x84] sm:$0xf]
      %v7098 = vld [vmem:[#allocation2 + $0x88] sm:$0xf]
      %v7099 = vld [vmem:[#allocation2 + $0x90] sm:$0x8]
      %v7100 = vld [vmem:[#allocation2 + $0x94] sm:$0xf]
      %v7101 = vld [vmem:[#allocation2 + $0x98] sm:$0xf]
      %v7102 = vld [vmem:[#allocation2 + $0xa0] sm:$0x8]
      %v7103 = vld [vmem:[#allocation2 + $0xa4] sm:$0xf]
      %v7104 = vld [vmem:[#allocation2 + $0xa8] sm:$0xf]
      %v7105 = vld [vmem:[#allocation2 + $0xb0] sm:$0x8]
      %v7106 = vld [vmem:[#allocation2 + $0xb4] sm:$0xf]
      %v7107 = vld [vmem:[#allocation2 + $0xb8] sm:$0xf]
      %v7108 = vld [vmem:[#allocation2 + $0xc0] sm:$0x8]
      %v7109 = vld [vmem:[#allocation2 + $0xc4] sm:$0xf]
      %v7110 = vld [vmem:[#allocation2 + $0xc8] sm:$0xf]
      %v7111 = vld [vmem:[#allocation2 + $0xd0] sm:$0x8]
      %v7112 = vld [vmem:[#allocation2 + $0xd4] sm:$0xf]
      %v7113 = vld [vmem:[#allocation2 + $0xd8] sm:$0xf]
      %v7114 = vld [vmem:[#allocation2 + $0xe0] sm:$0x8]
      %v7115 = vld [vmem:[#allocation2 + $0xe4] sm:$0xf]
      %v7116 = vld [vmem:[#allocation2 + $0xe8] sm:$0xf]
      %v7117 = vld [vmem:[#allocation2 + $0xf0] sm:$0x8]
      %v7118 = vld [vmem:[#allocation2 + $0xf4] sm:$0xf]
      %v7119 = vld [vmem:[#allocation2 + $0xf8] sm:$0xf]
      %v7121 = vshrl.u32 %v7072, 16
      %v7123 = vrot.slane %v7121, 7
      %v7124 = vrot.slane %v7123, 4
      %v7126 = vshrl.u32 %v7073, 16
      %v7128 = vrot.slane %v7126, 7
      %v7129 = vshll.u32 %v7073, 16
      %v7131 = vor.u32 %v7128, %v7129
      %v7132 = vsel %vm1655, %v7124, %v7131
      %v7133 = vrot.slane %v7128, 4
      %v7135 = vshrl.u32 %v7074, 16
      %v7137 = vrot.slane %v7135, 7
      %v7138 = vshll.u32 %v7074, 16
      %v7140 = vor.u32 %v7137, %v7138
      %v7141 = vsel %vm1655, %v7133, %v7140
      %v7143 = vshrl.u32 %v7075, 16
      %v7145 = vrot.slane %v7143, 7
      %v7146 = vrot.slane %v7145, 4
      %v7148 = vshrl.u32 %v7076, 16
      %v7150 = vrot.slane %v7148, 7
      %v7151 = vshll.u32 %v7076, 16
      %v7153 = vor.u32 %v7150, %v7151
      %v7154 = vsel %vm1655, %v7146, %v7153
      %v7155 = vrot.slane %v7150, 4
      %v7157 = vshrl.u32 %v7077, 16
      %v7159 = vrot.slane %v7157, 7
      %v7160 = vshll.u32 %v7077, 16
      %v7162 = vor.u32 %v7159, %v7160
      %v7163 = vsel %vm1655, %v7155, %v7162
      %v7165 = vshrl.u32 %v7078, 16
      %v7167 = vrot.slane %v7165, 7
      %v7168 = vrot.slane %v7167, 4
      %v7170 = vshrl.u32 %v7079, 16
      %v7172 = vrot.slane %v7170, 7
      %v7173 = vshll.u32 %v7079, 16
      %v7175 = vor.u32 %v7172, %v7173
      %v7176 = vsel %vm1655, %v7168, %v7175
      %v7177 = vrot.slane %v7172, 4
      %v7179 = vshrl.u32 %v7080, 16
      %v7181 = vrot.slane %v7179, 7
      %v7182 = vshll.u32 %v7080, 16
      %v7184 = vor.u32 %v7181, %v7182
      %v7185 = vsel %vm1655, %v7177, %v7184
      %v7187 = vshrl.u32 %v7081, 16
      %v7189 = vrot.slane %v7187, 7
      %v7190 = vrot.slane %v7189, 4
      %v7192 = vshrl.u32 %v7082, 16
      %v7194 = vrot.slane %v7192, 7
      %v7195 = vshll.u32 %v7082, 16
      %v7197 = vor.u32 %v7194, %v7195
      %v7198 = vsel %vm1655, %v7190, %v7197
      %v7199 = vrot.slane %v7194, 4
      %v7201 = vshrl.u32 %v7083, 16
      %v7203 = vrot.slane %v7201, 7
      %v7204 = vshll.u32 %v7083, 16
      %v7206 = vor.u32 %v7203, %v7204
      %v7207 = vsel %vm1655, %v7199, %v7206
      %v7209 = vshrl.u32 %v7084, 16
      %v7211 = vrot.slane %v7209, 7
      %v7212 = vrot.slane %v7211, 4
      %v7214 = vshrl.u32 %v7085, 16
      %v7216 = vrot.slane %v7214, 7
      %v7217 = vshll.u32 %v7085, 16
      %v7219 = vor.u32 %v7216, %v7217
      %v7220 = vsel %vm1655, %v7212, %v7219
      %v7221 = vrot.slane %v7216, 4
      %v7223 = vshrl.u32 %v7086, 16
      %v7225 = vrot.slane %v7223, 7
      %v7226 = vshll.u32 %v7086, 16
      %v7228 = vor.u32 %v7225, %v7226
      %v7229 = vsel %vm1655, %v7221, %v7228
      %v7231 = vshrl.u32 %v7087, 16
      %v7233 = vrot.slane %v7231, 7
      %v7234 = vrot.slane %v7233, 4
      %v7236 = vshrl.u32 %v7088, 16
      %v7238 = vrot.slane %v7236, 7
      %v7239 = vshll.u32 %v7088, 16
      %v7241 = vor.u32 %v7238, %v7239
      %v7242 = vsel %vm1655, %v7234, %v7241
      %v7243 = vrot.slane %v7238, 4
      %v7245 = vshrl.u32 %v7089, 16
      %v7247 = vrot.slane %v7245, 7
      %v7248 = vshll.u32 %v7089, 16
      %v7250 = vor.u32 %v7247, %v7248
      %v7251 = vsel %vm1655, %v7243, %v7250
      %v7253 = vshrl.u32 %v7090, 16
      %v7255 = vrot.slane %v7253, 7
      %v7256 = vrot.slane %v7255, 4
      %v7258 = vshrl.u32 %v7091, 16
      %v7260 = vrot.slane %v7258, 7
      %v7261 = vshll.u32 %v7091, 16
      %v7263 = vor.u32 %v7260, %v7261
      %v7264 = vsel %vm1655, %v7256, %v7263
      %v7265 = vrot.slane %v7260, 4
      %v7267 = vshrl.u32 %v7092, 16
      %v7269 = vrot.slane %v7267, 7
      %v7270 = vshll.u32 %v7092, 16
      %v7272 = vor.u32 %v7269, %v7270
      %v7273 = vsel %vm1655, %v7265, %v7272
      %v7275 = vshrl.u32 %v7093, 16
      %v7277 = vrot.slane %v7275, 7
      %v7278 = vrot.slane %v7277, 4
      %v7280 = vshrl.u32 %v7094, 16
      %v7282 = vrot.slane %v7280, 7
      %v7283 = vshll.u32 %v7094, 16
      %v7285 = vor.u32 %v7282, %v7283
      %v7286 = vsel %vm1655, %v7278, %v7285
      %v7287 = vrot.slane %v7282, 4
      %v7289 = vshrl.u32 %v7095, 16
      %v7291 = vrot.slane %v7289, 7
      %v7292 = vshll.u32 %v7095, 16
      %v7294 = vor.u32 %v7291, %v7292
      %v7295 = vsel %vm1655, %v7287, %v7294
      %v7297 = vshrl.u32 %v7096, 16
      %v7299 = vrot.slane %v7297, 7
      %v7300 = vrot.slane %v7299, 4
      %v7302 = vshrl.u32 %v7097, 16
      %v7304 = vrot.slane %v7302, 7
      %v7305 = vshll.u32 %v7097, 16
      %v7307 = vor.u32 %v7304, %v7305
      %v7308 = vsel %vm1655, %v7300, %v7307
      %v7309 = vrot.slane %v7304, 4
      %v7311 = vshrl.u32 %v7098, 16
      %v7313 = vrot.slane %v7311, 7
      %v7314 = vshll.u32 %v7098, 16
      %v7316 = vor.u32 %v7313, %v7314
      %v7317 = vsel %vm1655, %v7309, %v7316
      %v7319 = vshrl.u32 %v7099, 16
      %v7321 = vrot.slane %v7319, 7
      %v7322 = vrot.slane %v7321, 4
      %v7324 = vshrl.u32 %v7100, 16
      %v7326 = vrot.slane %v7324, 7
      %v7327 = vshll.u32 %v7100, 16
      %v7329 = vor.u32 %v7326, %v7327
      %v7330 = vsel %vm1655, %v7322, %v7329
      %v7331 = vrot.slane %v7326, 4
      %v7333 = vshrl.u32 %v7101, 16
      %v7335 = vrot.slane %v7333, 7
      %v7336 = vshll.u32 %v7101, 16
      %v7338 = vor.u32 %v7335, %v7336
      %v7339 = vsel %vm1655, %v7331, %v7338
      %v7341 = vshrl.u32 %v7102, 16
      %v7343 = vrot.slane %v7341, 7
      %v7344 = vrot.slane %v7343, 4
      %v7346 = vshrl.u32 %v7103, 16
      %v7348 = vrot.slane %v7346, 7
      %v7349 = vshll.u32 %v7103, 16
      %v7351 = vor.u32 %v7348, %v7349
      %v7352 = vsel %vm1655, %v7344, %v7351
      %v7353 = vrot.slane %v7348, 4
      %v7355 = vshrl.u32 %v7104, 16
      %v7357 = vrot.slane %v7355, 7
      %v7358 = vshll.u32 %v7104, 16
      %v7360 = vor.u32 %v7357, %v7358
      %v7361 = vsel %vm1655, %v7353, %v7360
      %v7363 = vshrl.u32 %v7105, 16
      %v7365 = vrot.slane %v7363, 7
      %v7366 = vrot.slane %v7365, 4
      %v7368 = vshrl.u32 %v7106, 16
      %v7370 = vrot.slane %v7368, 7
      %v7371 = vshll.u32 %v7106, 16
      %v7373 = vor.u32 %v7370, %v7371
      %v7374 = vsel %vm1655, %v7366, %v7373
      %v7375 = vrot.slane %v7370, 4
      %v7377 = vshrl.u32 %v7107, 16
      %v7379 = vrot.slane %v7377, 7
      %v7380 = vshll.u32 %v7107, 16
      %v7382 = vor.u32 %v7379, %v7380
      %v7383 = vsel %vm1655, %v7375, %v7382
      %v7385 = vshrl.u32 %v7108, 16
      %v7387 = vrot.slane %v7385, 7
      %v7388 = vrot.slane %v7387, 4
      %v7390 = vshrl.u32 %v7109, 16
      %v7392 = vrot.slane %v7390, 7
      %v7393 = vshll.u32 %v7109, 16
      %v7395 = vor.u32 %v7392, %v7393
      %v7396 = vsel %vm1655, %v7388, %v7395
      %v7397 = vrot.slane %v7392, 4
      %v7399 = vshrl.u32 %v7110, 16
      %v7401 = vrot.slane %v7399, 7
      %v7402 = vshll.u32 %v7110, 16
      %v7404 = vor.u32 %v7401, %v7402
      %v7405 = vsel %vm1655, %v7397, %v7404
      %v7407 = vshrl.u32 %v7111, 16
      %v7409 = vrot.slane %v7407, 7
      %v7410 = vrot.slane %v7409, 4
      %v7412 = vshrl.u32 %v7112, 16
      %v7414 = vrot.slane %v7412, 7
      %v7415 = vshll.u32 %v7112, 16
      %v7417 = vor.u32 %v7414, %v7415
      %v7418 = vsel %vm1655, %v7410, %v7417
      %v7419 = vrot.slane %v7414, 4
      %v7421 = vshrl.u32 %v7113, 16
      %v7423 = vrot.slane %v7421, 7
      %v7424 = vshll.u32 %v7113, 16
      %v7426 = vor.u32 %v7423, %v7424
      %v7427 = vsel %vm1655, %v7419, %v7426
      %v7429 = vshrl.u32 %v7114, 16
      %v7431 = vrot.slane %v7429, 7
      %v7432 = vrot.slane %v7431, 4
      %v7434 = vshrl.u32 %v7115, 16
      %v7436 = vrot.slane %v7434, 7
      %v7437 = vshll.u32 %v7115, 16
      %v7439 = vor.u32 %v7436, %v7437
      %v7440 = vsel %vm1655, %v7432, %v7439
      %v7441 = vrot.slane %v7436, 4
      %v7443 = vshrl.u32 %v7116, 16
      %v7445 = vrot.slane %v7443, 7
      %v7446 = vshll.u32 %v7116, 16
      %v7448 = vor.u32 %v7445, %v7446
      %v7449 = vsel %vm1655, %v7441, %v7448
      %v7451 = vshrl.u32 %v7117, 16
      %v7453 = vrot.slane %v7451, 7
      %v7454 = vrot.slane %v7453, 4
      %v7456 = vshrl.u32 %v7118, 16
      %v7458 = vrot.slane %v7456, 7
      %v7459 = vshll.u32 %v7118, 16
      %v7461 = vor.u32 %v7458, %v7459
      %v7462 = vsel %vm1655, %v7454, %v7461
      %v7463 = vrot.slane %v7458, 4
      %v7465 = vshrl.u32 %v7119, 16
      %v7467 = vrot.slane %v7465, 7
      %v7468 = vshll.u32 %v7119, 16
      %v7470 = vor.u32 %v7467, %v7468
      %v7471 = vsel %vm1655, %v7463, %v7470
      %v7472 = vld [vmem:[%s9] sm:$0x1]
      %s7473 = scalar_lea.vmem %s9, 1
      %v7474 = vld [vmem:[%s7473] sm:$0x1]
      %v7507 = vunpack.c.l.b16 %v7073
      %v7508 = vunpack.c.l.b16 %v7074
      %v7509 = vunpack.c.l.b16 %v7076
      %v7510 = vunpack.c.l.b16 %v7077
      %v7511 = vunpack.c.l.b16 %v7079
      %v7512 = vunpack.c.l.b16 %v7080
      %v7513 = vunpack.c.l.b16 %v7082
      %v7514 = vunpack.c.l.b16 %v7083
      %v7515 = vunpack.c.l.b16 %v7085
      %v7516 = vunpack.c.l.b16 %v7086
      %v7517 = vunpack.c.l.b16 %v7088
      %v7518 = vunpack.c.l.b16 %v7089
      %v7519 = vunpack.c.l.b16 %v7091
      %v7520 = vunpack.c.l.b16 %v7092
      %v7521 = vunpack.c.l.b16 %v7094
      %v7522 = vunpack.c.l.b16 %v7095
      %v7523 = vunpack.c.l.b16 %v7097
      %v7524 = vunpack.c.l.b16 %v7098
      %v7525 = vunpack.c.l.b16 %v7100
      %v7526 = vunpack.c.l.b16 %v7101
      %v7527 = vunpack.c.l.b16 %v7103
      %v7528 = vunpack.c.l.b16 %v7104
      %v7529 = vunpack.c.l.b16 %v7106
      %v7530 = vunpack.c.l.b16 %v7107
      %v7531 = vunpack.c.l.b16 %v7109
      %v7532 = vunpack.c.l.b16 %v7110
      %v7533 = vunpack.c.l.b16 %v7112
      %v7534 = vunpack.c.l.b16 %v7113
      %v7535 = vunpack.c.l.b16 %v7115
      %v7536 = vunpack.c.l.b16 %v7116
      %v7537 = vunpack.c.l.b16 %v7118
      %v7538 = vunpack.c.l.b16 %v7119
      %v7539 = vpack.c.b16 %v7508, %v7507
      %v7540 = vpack.c.b16 %v7510, %v7509
      %v7541 = vpack.c.b16 %v7512, %v7511
      %v7542 = vpack.c.b16 %v7514, %v7513
      %v7543 = vpack.c.b16 %v7516, %v7515
      %v7544 = vpack.c.b16 %v7518, %v7517
      %v7545 = vpack.c.b16 %v7520, %v7519
      %v7546 = vpack.c.b16 %v7522, %v7521
      %v7547 = vpack.c.b16 %v7524, %v7523
      %v7548 = vpack.c.b16 %v7526, %v7525
      %v7549 = vpack.c.b16 %v7528, %v7527
      %v7550 = vpack.c.b16 %v7530, %v7529
      %v7551 = vpack.c.b16 %v7532, %v7531
      %v7552 = vpack.c.b16 %v7534, %v7533
      %v7553 = vpack.c.b16 %v7536, %v7535
      %v7554 = vpack.c.b16 %v7538, %v7537
      %v7556 = vsel %vm2091, %v7539, 0
      %v7559 = vsel %vm2091, %v7540, 0
      %v7562 = vsel %vm2091, %v7541, 0
      %v7565 = vsel %vm2091, %v7542, 0
      %v7568 = vsel %vm2091, %v7543, 0
      %v7571 = vsel %vm2091, %v7544, 0
      %v7574 = vsel %vm2091, %v7545, 0
      %v7577 = vsel %vm2091, %v7546, 0
      %v7580 = vsel %vm2091, %v7547, 0
      %v7583 = vsel %vm2091, %v7548, 0
      %v7586 = vsel %vm2091, %v7549, 0
      %v7589 = vsel %vm2091, %v7550, 0
      %v7592 = vsel %vm2091, %v7551, 0
      %v7595 = vsel %vm2091, %v7552, 0
      %v7598 = vsel %vm2091, %v7553, 0
      %v7601 = vsel %vm2091, %v7554, 0
      %v7604 = vsel %vm2140, %v7474, 0
      %7606 = vmatpush.bf16.msra.mxu0 0
      %7607 = vmatpush.bf16.msra.mxu0 0
      %7608 = vmatpush.bf16.msra.mxu0 0
      %7609 = vmatpush.bf16.msra.mxu0 0
      %7610 = vmatpush.bf16.msra.mxu0 0
      %7611 = vmatpush.bf16.msra.mxu0 0
      %7612 = vmatpush.bf16.msra.mxu0 0
      %7613 = vmatpush.bf16.msra.mxu0 %v7604
      %7614 = vmatmul.bf16.gmra.mxu0 %v7556
      %v7615 = vpop.f32.mrf.mxu0
      %v7616 = vadd.f32 0.0, %v7615
      %v7617 = vpop.f32.mrf.mxu0
      %v7618 = vadd.f32 0.0, %v7617
      %7619 = vmatmul.bf16.gmra.mxu0 %v7559
      %v7620 = vpop.f32.mrf.mxu0
      %v7621 = vadd.f32 0.0, %v7620
      %v7622 = vpop.f32.mrf.mxu0
      %v7623 = vadd.f32 0.0, %v7622
      %7624 = vmatmul.bf16.gmra.mxu0 %v7562
      %v7625 = vpop.f32.mrf.mxu0
      %v7626 = vadd.f32 0.0, %v7625
      %v7627 = vpop.f32.mrf.mxu0
      %v7628 = vadd.f32 0.0, %v7627
      %7629 = vmatmul.bf16.gmra.mxu0 %v7565
      %v7630 = vpop.f32.mrf.mxu0
      %v7631 = vadd.f32 0.0, %v7630
      %v7632 = vpop.f32.mrf.mxu0
      %v7633 = vadd.f32 0.0, %v7632
      %7634 = vmatmul.bf16.gmra.mxu0 %v7568
      %v7635 = vpop.f32.mrf.mxu0
      %v7636 = vadd.f32 0.0, %v7635
      %v7637 = vpop.f32.mrf.mxu0
      %v7638 = vadd.f32 0.0, %v7637
      %7639 = vmatmul.bf16.gmra.mxu0 %v7571
      %v7640 = vpop.f32.mrf.mxu0
      %v7641 = vadd.f32 0.0, %v7640
      %v7642 = vpop.f32.mrf.mxu0
      %v7643 = vadd.f32 0.0, %v7642
      %7644 = vmatmul.bf16.gmra.mxu0 %v7574
      %v7645 = vpop.f32.mrf.mxu0
      %v7646 = vadd.f32 0.0, %v7645
      %v7647 = vpop.f32.mrf.mxu0
      %v7648 = vadd.f32 0.0, %v7647
      %7649 = vmatmul.bf16.gmra.mxu0 %v7577
      %v7650 = vpop.f32.mrf.mxu0
      %v7651 = vadd.f32 0.0, %v7650
      %v7652 = vpop.f32.mrf.mxu0
      %v7653 = vadd.f32 0.0, %v7652
      %7654 = vmatmul.bf16.gmra.mxu0 %v7580
      %v7655 = vpop.f32.mrf.mxu0
      %v7656 = vadd.f32 0.0, %v7655
      %v7657 = vpop.f32.mrf.mxu0
      %v7658 = vadd.f32 0.0, %v7657
      %7659 = vmatmul.bf16.gmra.mxu0 %v7583
      %v7660 = vpop.f32.mrf.mxu0
      %v7661 = vadd.f32 0.0, %v7660
      %v7662 = vpop.f32.mrf.mxu0
      %v7663 = vadd.f32 0.0, %v7662
      %7664 = vmatmul.bf16.gmra.mxu0 %v7586
      %v7665 = vpop.f32.mrf.mxu0
      %v7666 = vadd.f32 0.0, %v7665
      %v7667 = vpop.f32.mrf.mxu0
      %v7668 = vadd.f32 0.0, %v7667
      %7669 = vmatmul.bf16.gmra.mxu0 %v7589
      %v7670 = vpop.f32.mrf.mxu0
      %v7671 = vadd.f32 0.0, %v7670
      %v7672 = vpop.f32.mrf.mxu0
      %v7673 = vadd.f32 0.0, %v7672
      %7674 = vmatmul.bf16.gmra.mxu0 %v7592
      %v7675 = vpop.f32.mrf.mxu0
      %v7676 = vadd.f32 0.0, %v7675
      %v7677 = vpop.f32.mrf.mxu0
      %v7678 = vadd.f32 0.0, %v7677
      %7679 = vmatmul.bf16.gmra.mxu0 %v7595
      %v7680 = vpop.f32.mrf.mxu0
      %v7681 = vadd.f32 0.0, %v7680
      %v7682 = vpop.f32.mrf.mxu0
      %v7683 = vadd.f32 0.0, %v7682
      %7684 = vmatmul.bf16.gmra.mxu0 %v7598
      %v7685 = vpop.f32.mrf.mxu0
      %v7686 = vadd.f32 0.0, %v7685
      %v7687 = vpop.f32.mrf.mxu0
      %v7688 = vadd.f32 0.0, %v7687
      %7689 = vmatmul.bf16.gmra.mxu0 %v7601
      %v7690 = vpop.f32.mrf.mxu0
      %v7691 = vadd.f32 0.0, %v7690
      %v7692 = vpop.f32.mrf.mxu0
      %v7693 = vadd.f32 0.0, %v7692
      %7694 = vdwg.mxu0
      %v7695 = vunpack.c.l.b16 %v7132
      %v7696 = vunpack.c.l.b16 %v7141
      %v7697 = vunpack.c.l.b16 %v7154
      %v7698 = vunpack.c.l.b16 %v7163
      %v7699 = vunpack.c.l.b16 %v7176
      %v7700 = vunpack.c.l.b16 %v7185
      %v7701 = vunpack.c.l.b16 %v7198
      %v7702 = vunpack.c.l.b16 %v7207
      %v7703 = vunpack.c.l.b16 %v7220
      %v7704 = vunpack.c.l.b16 %v7229
      %v7705 = vunpack.c.l.b16 %v7242
      %v7706 = vunpack.c.l.b16 %v7251
      %v7707 = vunpack.c.l.b16 %v7264
      %v7708 = vunpack.c.l.b16 %v7273
      %v7709 = vunpack.c.l.b16 %v7286
      %v7710 = vunpack.c.l.b16 %v7295
      %v7711 = vunpack.c.l.b16 %v7308
      %v7712 = vunpack.c.l.b16 %v7317
      %v7713 = vunpack.c.l.b16 %v7330
      %v7714 = vunpack.c.l.b16 %v7339
      %v7715 = vunpack.c.l.b16 %v7352
      %v7716 = vunpack.c.l.b16 %v7361
      %v7717 = vunpack.c.l.b16 %v7374
      %v7718 = vunpack.c.l.b16 %v7383
      %v7719 = vunpack.c.l.b16 %v7396
      %v7720 = vunpack.c.l.b16 %v7405
      %v7721 = vunpack.c.l.b16 %v7418
      %v7722 = vunpack.c.l.b16 %v7427
      %v7723 = vunpack.c.l.b16 %v7440
      %v7724 = vunpack.c.l.b16 %v7449
      %v7725 = vunpack.c.l.b16 %v7462
      %v7726 = vunpack.c.l.b16 %v7471
      %v7727 = vpack.c.b16 %v7696, %v7695
      %v7728 = vpack.c.b16 %v7698, %v7697
      %v7729 = vpack.c.b16 %v7700, %v7699
      %v7730 = vpack.c.b16 %v7702, %v7701
      %v7731 = vpack.c.b16 %v7704, %v7703
      %v7732 = vpack.c.b16 %v7706, %v7705
      %v7733 = vpack.c.b16 %v7708, %v7707
      %v7734 = vpack.c.b16 %v7710, %v7709
      %v7735 = vpack.c.b16 %v7712, %v7711
      %v7736 = vpack.c.b16 %v7714, %v7713
      %v7737 = vpack.c.b16 %v7716, %v7715
      %v7738 = vpack.c.b16 %v7718, %v7717
      %v7739 = vpack.c.b16 %v7720, %v7719
      %v7740 = vpack.c.b16 %v7722, %v7721
      %v7741 = vpack.c.b16 %v7724, %v7723
      %v7742 = vpack.c.b16 %v7726, %v7725
      %v7744 = vsel %vm2091, %v7727, 0
      %v7747 = vsel %vm2091, %v7728, 0
      %v7750 = vsel %vm2091, %v7729, 0
      %v7753 = vsel %vm2091, %v7730, 0
      %v7756 = vsel %vm2091, %v7731, 0
      %v7759 = vsel %vm2091, %v7732, 0
      %v7762 = vsel %vm2091, %v7733, 0
      %v7765 = vsel %vm2091, %v7734, 0
      %v7768 = vsel %vm2091, %v7735, 0
      %v7771 = vsel %vm2091, %v7736, 0
      %v7774 = vsel %vm2091, %v7737, 0
      %v7777 = vsel %vm2091, %v7738, 0
      %v7780 = vsel %vm2091, %v7739, 0
      %v7783 = vsel %vm2091, %v7740, 0
      %v7786 = vsel %vm2091, %v7741, 0
      %v7789 = vsel %vm2091, %v7742, 0
      %v7792 = vsel %vm2140, %v7472, 0
      %7794 = vmatpush.bf16.msra.mxu0 0
      %7795 = vmatpush.bf16.msra.mxu0 0
      %7796 = vmatpush.bf16.msra.mxu0 0
      %7797 = vmatpush.bf16.msra.mxu0 0
      %7798 = vmatpush.bf16.msra.mxu0 0
      %7799 = vmatpush.bf16.msra.mxu0 0
      %7800 = vmatpush.bf16.msra.mxu0 0
      %7801 = vmatpush.bf16.msra.mxu0 %v7792
      %7802 = vmatmul.bf16.gmra.mxu0 %v7744
      %v7803 = vpop.f32.mrf.mxu0
      %v7804 = vadd.f32 %v7616, %v7803
      %v7805 = vpop.f32.mrf.mxu0
      %v7806 = vadd.f32 %v7618, %v7805
      %7807 = vmatmul.bf16.gmra.mxu0 %v7747
      %v7808 = vpop.f32.mrf.mxu0
      %v7809 = vadd.f32 %v7621, %v7808
      %v7810 = vpop.f32.mrf.mxu0
      %v7811 = vadd.f32 %v7623, %v7810
      %7812 = vmatmul.bf16.gmra.mxu0 %v7750
      %v7813 = vpop.f32.mrf.mxu0
      %v7814 = vadd.f32 %v7626, %v7813
      %v7815 = vpop.f32.mrf.mxu0
      %v7816 = vadd.f32 %v7628, %v7815
      %7817 = vmatmul.bf16.gmra.mxu0 %v7753
      %v7818 = vpop.f32.mrf.mxu0
      %v7819 = vadd.f32 %v7631, %v7818
      %v7820 = vpop.f32.mrf.mxu0
      %v7821 = vadd.f32 %v7633, %v7820
      %7822 = vmatmul.bf16.gmra.mxu0 %v7756
      %v7823 = vpop.f32.mrf.mxu0
      %v7824 = vadd.f32 %v7636, %v7823
      %v7825 = vpop.f32.mrf.mxu0
      %v7826 = vadd.f32 %v7638, %v7825
      %7827 = vmatmul.bf16.gmra.mxu0 %v7759
      %v7828 = vpop.f32.mrf.mxu0
      %v7829 = vadd.f32 %v7641, %v7828
      %v7830 = vpop.f32.mrf.mxu0
      %v7831 = vadd.f32 %v7643, %v7830
      %7832 = vmatmul.bf16.gmra.mxu0 %v7762
      %v7833 = vpop.f32.mrf.mxu0
      %v7834 = vadd.f32 %v7646, %v7833
      %v7835 = vpop.f32.mrf.mxu0
      %v7836 = vadd.f32 %v7648, %v7835
      %7837 = vmatmul.bf16.gmra.mxu0 %v7765
      %v7838 = vpop.f32.mrf.mxu0
      %v7839 = vadd.f32 %v7651, %v7838
      %v7840 = vpop.f32.mrf.mxu0
      %v7841 = vadd.f32 %v7653, %v7840
      %7842 = vmatmul.bf16.gmra.mxu0 %v7768
      %v7843 = vpop.f32.mrf.mxu0
      %v7844 = vadd.f32 %v7656, %v7843
      %v7845 = vpop.f32.mrf.mxu0
      %v7846 = vadd.f32 %v7658, %v7845
      %7847 = vmatmul.bf16.gmra.mxu0 %v7771
      %v7848 = vpop.f32.mrf.mxu0
      %v7849 = vadd.f32 %v7661, %v7848
      %v7850 = vpop.f32.mrf.mxu0
      %v7851 = vadd.f32 %v7663, %v7850
      %7852 = vmatmul.bf16.gmra.mxu0 %v7774
      %v7853 = vpop.f32.mrf.mxu0
      %v7854 = vadd.f32 %v7666, %v7853
      %v7855 = vpop.f32.mrf.mxu0
      %v7856 = vadd.f32 %v7668, %v7855
      %7857 = vmatmul.bf16.gmra.mxu0 %v7777
      %v7858 = vpop.f32.mrf.mxu0
      %v7859 = vadd.f32 %v7671, %v7858
      %v7860 = vpop.f32.mrf.mxu0
      %v7861 = vadd.f32 %v7673, %v7860
      %7862 = vmatmul.bf16.gmra.mxu0 %v7780
      %v7863 = vpop.f32.mrf.mxu0
      %v7864 = vadd.f32 %v7676, %v7863
      %v7865 = vpop.f32.mrf.mxu0
      %v7866 = vadd.f32 %v7678, %v7865
      %7867 = vmatmul.bf16.gmra.mxu0 %v7783
      %v7868 = vpop.f32.mrf.mxu0
      %v7869 = vadd.f32 %v7681, %v7868
      %v7870 = vpop.f32.mrf.mxu0
      %v7871 = vadd.f32 %v7683, %v7870
      %7872 = vmatmul.bf16.gmra.mxu0 %v7786
      %v7873 = vpop.f32.mrf.mxu0
      %v7874 = vadd.f32 %v7686, %v7873
      %v7875 = vpop.f32.mrf.mxu0
      %v7876 = vadd.f32 %v7688, %v7875
      %7877 = vmatmul.bf16.gmra.mxu0 %v7789
      %v7878 = vpop.f32.mrf.mxu0
      %v7879 = vadd.f32 %v7691, %v7878
      %v7880 = vpop.f32.mrf.mxu0
      %v7881 = vadd.f32 %v7693, %v7880
      %7882 = vdwg.mxu0
      %v7883 = vld [vmem:[#allocation2 + $0x4] sm:$0xf]
      %v7884 = vld [vmem:[#allocation2 + $0x8] sm:$0xf]
      %v7885 = vld [vmem:[#allocation2 + $0xc] sm:$0x1]
      %v7886 = vld [vmem:[#allocation2 + $0x14] sm:$0xf]
      %v7887 = vld [vmem:[#allocation2 + $0x18] sm:$0xf]
      %v7888 = vld [vmem:[#allocation2 + $0x1c] sm:$0x1]
      %v7889 = vld [vmem:[#allocation2 + $0x24] sm:$0xf]
      %v7890 = vld [vmem:[#allocation2 + $0x28] sm:$0xf]
      %v7891 = vld [vmem:[#allocation2 + $0x2c] sm:$0x1]
      %v7892 = vld [vmem:[#allocation2 + $0x34] sm:$0xf]
      %v7893 = vld [vmem:[#allocation2 + $0x38] sm:$0xf]
      %v7894 = vld [vmem:[#allocation2 + $0x3c] sm:$0x1]
      %v7895 = vld [vmem:[#allocation2 + $0x44] sm:$0xf]
      %v7896 = vld [vmem:[#allocation2 + $0x48] sm:$0xf]
      %v7897 = vld [vmem:[#allocation2 + $0x4c] sm:$0x1]
      %v7898 = vld [vmem:[#allocation2 + $0x54] sm:$0xf]
      %v7899 = vld [vmem:[#allocation2 + $0x58] sm:$0xf]
      %v7900 = vld [vmem:[#allocation2 + $0x5c] sm:$0x1]
      %v7901 = vld [vmem:[#allocation2 + $0x64] sm:$0xf]
      %v7902 = vld [vmem:[#allocation2 + $0x68] sm:$0xf]
      %v7903 = vld [vmem:[#allocation2 + $0x6c] sm:$0x1]
      %v7904 = vld [vmem:[#allocation2 + $0x74] sm:$0xf]
      %v7905 = vld [vmem:[#allocation2 + $0x78] sm:$0xf]
      %v7906 = vld [vmem:[#allocation2 + $0x7c] sm:$0x1]
      %v7907 = vld [vmem:[#allocation2 + $0x84] sm:$0xf]
      %v7908 = vld [vmem:[#allocation2 + $0x88] sm:$0xf]
      %v7909 = vld [vmem:[#allocation2 + $0x8c] sm:$0x1]
      %v7910 = vld [vmem:[#allocation2 + $0x94] sm:$0xf]
      %v7911 = vld [vmem:[#allocation2 + $0x98] sm:$0xf]
      %v7912 = vld [vmem:[#allocation2 + $0x9c] sm:$0x1]
      %v7913 = vld [vmem:[#allocation2 + $0xa4] sm:$0xf]
      %v7914 = vld [vmem:[#allocation2 + $0xa8] sm:$0xf]
      %v7915 = vld [vmem:[#allocation2 + $0xac] sm:$0x1]
      %v7916 = vld [vmem:[#allocation2 + $0xb4] sm:$0xf]
      %v7917 = vld [vmem:[#allocation2 + $0xb8] sm:$0xf]
      %v7918 = vld [vmem:[#allocation2 + $0xbc] sm:$0x1]
      %v7919 = vld [vmem:[#allocation2 + $0xc4] sm:$0xf]
      %v7920 = vld [vmem:[#allocation2 + $0xc8] sm:$0xf]
      %v7921 = vld [vmem:[#allocation2 + $0xcc] sm:$0x1]
      %v7922 = vld [vmem:[#allocation2 + $0xd4] sm:$0xf]
      %v7923 = vld [vmem:[#allocation2 + $0xd8] sm:$0xf]
      %v7924 = vld [vmem:[#allocation2 + $0xdc] sm:$0x1]
      %v7925 = vld [vmem:[#allocation2 + $0xe4] sm:$0xf]
      %v7926 = vld [vmem:[#allocation2 + $0xe8] sm:$0xf]
      %v7927 = vld [vmem:[#allocation2 + $0xec] sm:$0x1]
      %v7928 = vld [vmem:[#allocation2 + $0xf4] sm:$0xf]
      %v7929 = vld [vmem:[#allocation2 + $0xf8] sm:$0xf]
      %v7930 = vld [vmem:[#allocation2 + $0xfc] sm:$0x1]
      %v7932 = vshrl.u32 %v7883, 16
      %v7934 = vrot.slane %v7932, 4
      %v7935 = vshll.u32 %v7883, 16
      %v7937 = vrot.slane %v7935, 5
      %v7938 = vor.u32 %v7934, %v7937
      %v7939 = vrot.slane %v7938, 4
      %v7941 = vshll.u32 %v7884, 16
      %v7943 = vrot.slane %v7941, 5
      %v7944 = vsel %vm2471, %v7939, %v7943
      %v7945 = vshrl.u32 %v7884, 16
      %v7947 = vrot.slane %v7945, 4
      %v7948 = vor.u32 %v7947, %v7943
      %v7949 = vrot.slane %v7948, 4
      %v7951 = vshll.u32 %v7885, 16
      %v7953 = vrot.slane %v7951, 5
      %v7954 = vsel %vm2471, %v7949, %v7953
      %v7956 = vshrl.u32 %v7886, 16
      %v7958 = vrot.slane %v7956, 4
      %v7959 = vshll.u32 %v7886, 16
      %v7961 = vrot.slane %v7959, 5
      %v7962 = vor.u32 %v7958, %v7961
      %v7963 = vrot.slane %v7962, 4
      %v7965 = vshll.u32 %v7887, 16
      %v7967 = vrot.slane %v7965, 5
      %v7968 = vsel %vm2471, %v7963, %v7967
      %v7969 = vshrl.u32 %v7887, 16
      %v7971 = vrot.slane %v7969, 4
      %v7972 = vor.u32 %v7971, %v7967
      %v7973 = vrot.slane %v7972, 4
      %v7975 = vshll.u32 %v7888, 16
      %v7977 = vrot.slane %v7975, 5
      %v7978 = vsel %vm2471, %v7973, %v7977
      %v7980 = vshrl.u32 %v7889, 16
      %v7982 = vrot.slane %v7980, 4
      %v7983 = vshll.u32 %v7889, 16
      %v7985 = vrot.slane %v7983, 5
      %v7986 = vor.u32 %v7982, %v7985
      %v7987 = vrot.slane %v7986, 4
      %v7989 = vshll.u32 %v7890, 16
      %v7991 = vrot.slane %v7989, 5
      %v7992 = vsel %vm2471, %v7987, %v7991
      %v7993 = vshrl.u32 %v7890, 16
      %v7995 = vrot.slane %v7993, 4
      %v7996 = vor.u32 %v7995, %v7991
      %v7997 = vrot.slane %v7996, 4
      %v7999 = vshll.u32 %v7891, 16
      %v8001 = vrot.slane %v7999, 5
      %v8002 = vsel %vm2471, %v7997, %v8001
      %v8004 = vshrl.u32 %v7892, 16
      %v8006 = vrot.slane %v8004, 4
      %v8007 = vshll.u32 %v7892, 16
      %v8009 = vrot.slane %v8007, 5
      %v8010 = vor.u32 %v8006, %v8009
      %v8011 = vrot.slane %v8010, 4
      %v8013 = vshll.u32 %v7893, 16
      %v8015 = vrot.slane %v8013, 5
      %v8016 = vsel %vm2471, %v8011, %v8015
      %v8017 = vshrl.u32 %v7893, 16
      %v8019 = vrot.slane %v8017, 4
      %v8020 = vor.u32 %v8019, %v8015
      %v8021 = vrot.slane %v8020, 4
      %v8023 = vshll.u32 %v7894, 16
      %v8025 = vrot.slane %v8023, 5
      %v8026 = vsel %vm2471, %v8021, %v8025
      %v8028 = vshrl.u32 %v7895, 16
      %v8030 = vrot.slane %v8028, 4
      %v8031 = vshll.u32 %v7895, 16
      %v8033 = vrot.slane %v8031, 5
      %v8034 = vor.u32 %v8030, %v8033
      %v8035 = vrot.slane %v8034, 4
      %v8037 = vshll.u32 %v7896, 16
      %v8039 = vrot.slane %v8037, 5
      %v8040 = vsel %vm2471, %v8035, %v8039
      %v8041 = vshrl.u32 %v7896, 16
      %v8043 = vrot.slane %v8041, 4
      %v8044 = vor.u32 %v8043, %v8039
      %v8045 = vrot.slane %v8044, 4
      %v8047 = vshll.u32 %v7897, 16
      %v8049 = vrot.slane %v8047, 5
      %v8050 = vsel %vm2471, %v8045, %v8049
      %v8052 = vshrl.u32 %v7898, 16
      %v8054 = vrot.slane %v8052, 4
      %v8055 = vshll.u32 %v7898, 16
      %v8057 = vrot.slane %v8055, 5
      %v8058 = vor.u32 %v8054, %v8057
      %v8059 = vrot.slane %v8058, 4
      %v8061 = vshll.u32 %v7899, 16
      %v8063 = vrot.slane %v8061, 5
      %v8064 = vsel %vm2471, %v8059, %v8063
      %v8065 = vshrl.u32 %v7899, 16
      %v8067 = vrot.slane %v8065, 4
      %v8068 = vor.u32 %v8067, %v8063
      %v8069 = vrot.slane %v8068, 4
      %v8071 = vshll.u32 %v7900, 16
      %v8073 = vrot.slane %v8071, 5
      %v8074 = vsel %vm2471, %v8069, %v8073
      %v8076 = vshrl.u32 %v7901, 16
      %v8078 = vrot.slane %v8076, 4
      %v8079 = vshll.u32 %v7901, 16
      %v8081 = vrot.slane %v8079, 5
      %v8082 = vor.u32 %v8078, %v8081
      %v8083 = vrot.slane %v8082, 4
      %v8085 = vshll.u32 %v7902, 16
      %v8087 = vrot.slane %v8085, 5
      %v8088 = vsel %vm2471, %v8083, %v8087
      %v8089 = vshrl.u32 %v7902, 16
      %v8091 = vrot.slane %v8089, 4
      %v8092 = vor.u32 %v8091, %v8087
      %v8093 = vrot.slane %v8092, 4
      %v8095 = vshll.u32 %v7903, 16
      %v8097 = vrot.slane %v8095, 5
      %v8098 = vsel %vm2471, %v8093, %v8097
      %v8100 = vshrl.u32 %v7904, 16
      %v8102 = vrot.slane %v8100, 4
      %v8103 = vshll.u32 %v7904, 16
      %v8105 = vrot.slane %v8103, 5
      %v8106 = vor.u32 %v8102, %v8105
      %v8107 = vrot.slane %v8106, 4
      %v8109 = vshll.u32 %v7905, 16
      %v8111 = vrot.slane %v8109, 5
      %v8112 = vsel %vm2471, %v8107, %v8111
      %v8113 = vshrl.u32 %v7905, 16
      %v8115 = vrot.slane %v8113, 4
      %v8116 = vor.u32 %v8115, %v8111
      %v8117 = vrot.slane %v8116, 4
      %v8119 = vshll.u32 %v7906, 16
      %v8121 = vrot.slane %v8119, 5
      %v8122 = vsel %vm2471, %v8117, %v8121
      %v8124 = vshrl.u32 %v7907, 16
      %v8126 = vrot.slane %v8124, 4
      %v8127 = vshll.u32 %v7907, 16
      %v8129 = vrot.slane %v8127, 5
      %v8130 = vor.u32 %v8126, %v8129
      %v8131 = vrot.slane %v8130, 4
      %v8133 = vshll.u32 %v7908, 16
      %v8135 = vrot.slane %v8133, 5
      %v8136 = vsel %vm2471, %v8131, %v8135
      %v8137 = vshrl.u32 %v7908, 16
      %v8139 = vrot.slane %v8137, 4
      %v8140 = vor.u32 %v8139, %v8135
      %v8141 = vrot.slane %v8140, 4
      %v8143 = vshll.u32 %v7909, 16
      %v8145 = vrot.slane %v8143, 5
      %v8146 = vsel %vm2471, %v8141, %v8145
      %v8148 = vshrl.u32 %v7910, 16
      %v8150 = vrot.slane %v8148, 4
      %v8151 = vshll.u32 %v7910, 16
      %v8153 = vrot.slane %v8151, 5
      %v8154 = vor.u32 %v8150, %v8153
      %v8155 = vrot.slane %v8154, 4
      %v8157 = vshll.u32 %v7911, 16
      %v8159 = vrot.slane %v8157, 5
      %v8160 = vsel %vm2471, %v8155, %v8159
      %v8161 = vshrl.u32 %v7911, 16
      %v8163 = vrot.slane %v8161, 4
      %v8164 = vor.u32 %v8163, %v8159
      %v8165 = vrot.slane %v8164, 4
      %v8167 = vshll.u32 %v7912, 16
      %v8169 = vrot.slane %v8167, 5
      %v8170 = vsel %vm2471, %v8165, %v8169
      %v8172 = vshrl.u32 %v7913, 16
      %v8174 = vrot.slane %v8172, 4
      %v8175 = vshll.u32 %v7913, 16
      %v8177 = vrot.slane %v8175, 5
      %v8178 = vor.u32 %v8174, %v8177
      %v8179 = vrot.slane %v8178, 4
      %v8181 = vshll.u32 %v7914, 16
      %v8183 = vrot.slane %v8181, 5
      %v8184 = vsel %vm2471, %v8179, %v8183
      %v8185 = vshrl.u32 %v7914, 16
      %v8187 = vrot.slane %v8185, 4
      %v8188 = vor.u32 %v8187, %v8183
      %v8189 = vrot.slane %v8188, 4
      %v8191 = vshll.u32 %v7915, 16
      %v8193 = vrot.slane %v8191, 5
      %v8194 = vsel %vm2471, %v8189, %v8193
      %v8196 = vshrl.u32 %v7916, 16
      %v8198 = vrot.slane %v8196, 4
      %v8199 = vshll.u32 %v7916, 16
      %v8201 = vrot.slane %v8199, 5
      %v8202 = vor.u32 %v8198, %v8201
      %v8203 = vrot.slane %v8202, 4
      %v8205 = vshll.u32 %v7917, 16
      %v8207 = vrot.slane %v8205, 5
      %v8208 = vsel %vm2471, %v8203, %v8207
      %v8209 = vshrl.u32 %v7917, 16
      %v8211 = vrot.slane %v8209, 4
      %v8212 = vor.u32 %v8211, %v8207
      %v8213 = vrot.slane %v8212, 4
      %v8215 = vshll.u32 %v7918, 16
      %v8217 = vrot.slane %v8215, 5
      %v8218 = vsel %vm2471, %v8213, %v8217
      %v8220 = vshrl.u32 %v7919, 16
      %v8222 = vrot.slane %v8220, 4
      %v8223 = vshll.u32 %v7919, 16
      %v8225 = vrot.slane %v8223, 5
      %v8226 = vor.u32 %v8222, %v8225
      %v8227 = vrot.slane %v8226, 4
      %v8229 = vshll.u32 %v7920, 16
      %v8231 = vrot.slane %v8229, 5
      %v8232 = vsel %vm2471, %v8227, %v8231
      %v8233 = vshrl.u32 %v7920, 16
      %v8235 = vrot.slane %v8233, 4
      %v8236 = vor.u32 %v8235, %v8231
      %v8237 = vrot.slane %v8236, 4
      %v8239 = vshll.u32 %v7921, 16
      %v8241 = vrot.slane %v8239, 5
      %v8242 = vsel %vm2471, %v8237, %v8241
      %v8244 = vshrl.u32 %v7922, 16
      %v8246 = vrot.slane %v8244, 4
      %v8247 = vshll.u32 %v7922, 16
      %v8249 = vrot.slane %v8247, 5
      %v8250 = vor.u32 %v8246, %v8249
      %v8251 = vrot.slane %v8250, 4
      %v8253 = vshll.u32 %v7923, 16
      %v8255 = vrot.slane %v8253, 5
      %v8256 = vsel %vm2471, %v8251, %v8255
      %v8257 = vshrl.u32 %v7923, 16
      %v8259 = vrot.slane %v8257, 4
      %v8260 = vor.u32 %v8259, %v8255
      %v8261 = vrot.slane %v8260, 4
      %v8263 = vshll.u32 %v7924, 16
      %v8265 = vrot.slane %v8263, 5
      %v8266 = vsel %vm2471, %v8261, %v8265
      %v8268 = vshrl.u32 %v7925, 16
      %v8270 = vrot.slane %v8268, 4
      %v8271 = vshll.u32 %v7925, 16
      %v8273 = vrot.slane %v8271, 5
      %v8274 = vor.u32 %v8270, %v8273
      %v8275 = vrot.slane %v8274, 4
      %v8277 = vshll.u32 %v7926, 16
      %v8279 = vrot.slane %v8277, 5
      %v8280 = vsel %vm2471, %v8275, %v8279
      %v8281 = vshrl.u32 %v7926, 16
      %v8283 = vrot.slane %v8281, 4
      %v8284 = vor.u32 %v8283, %v8279
      %v8285 = vrot.slane %v8284, 4
      %v8287 = vshll.u32 %v7927, 16
      %v8289 = vrot.slane %v8287, 5
      %v8290 = vsel %vm2471, %v8285, %v8289
      %v8292 = vshrl.u32 %v7928, 16
      %v8294 = vrot.slane %v8292, 4
      %v8295 = vshll.u32 %v7928, 16
      %v8297 = vrot.slane %v8295, 5
      %v8298 = vor.u32 %v8294, %v8297
      %v8299 = vrot.slane %v8298, 4
      %v8301 = vshll.u32 %v7929, 16
      %v8303 = vrot.slane %v8301, 5
      %v8304 = vsel %vm2471, %v8299, %v8303
      %v8305 = vshrl.u32 %v7929, 16
      %v8307 = vrot.slane %v8305, 4
      %v8308 = vor.u32 %v8307, %v8303
      %v8309 = vrot.slane %v8308, 4
      %v8311 = vshll.u32 %v7930, 16
      %v8313 = vrot.slane %v8311, 5
      %v8314 = vsel %vm2471, %v8309, %v8313
      %s8315 = scalar_lea.vmem %s9, 2
      %v8316 = vld [vmem:[%s8315] sm:$0x1]
      %v8317 = vunpack.c.l.b16 %v7944
      %v8318 = vunpack.c.l.b16 %v7954
      %v8319 = vunpack.c.l.b16 %v7968
      %v8320 = vunpack.c.l.b16 %v7978
      %v8321 = vunpack.c.l.b16 %v7992
      %v8322 = vunpack.c.l.b16 %v8002
      %v8323 = vunpack.c.l.b16 %v8016
      %v8324 = vunpack.c.l.b16 %v8026
      %v8325 = vunpack.c.l.b16 %v8040
      %v8326 = vunpack.c.l.b16 %v8050
      %v8327 = vunpack.c.l.b16 %v8064
      %v8328 = vunpack.c.l.b16 %v8074
      %v8329 = vunpack.c.l.b16 %v8088
      %v8330 = vunpack.c.l.b16 %v8098
      %v8331 = vunpack.c.l.b16 %v8112
      %v8332 = vunpack.c.l.b16 %v8122
      %v8333 = vunpack.c.l.b16 %v8136
      %v8334 = vunpack.c.l.b16 %v8146
      %v8335 = vunpack.c.l.b16 %v8160
      %v8336 = vunpack.c.l.b16 %v8170
      %v8337 = vunpack.c.l.b16 %v8184
      %v8338 = vunpack.c.l.b16 %v8194
      %v8339 = vunpack.c.l.b16 %v8208
      %v8340 = vunpack.c.l.b16 %v8218
      %v8341 = vunpack.c.l.b16 %v8232
      %v8342 = vunpack.c.l.b16 %v8242
      %v8343 = vunpack.c.l.b16 %v8256
      %v8344 = vunpack.c.l.b16 %v8266
      %v8345 = vunpack.c.l.b16 %v8280
      %v8346 = vunpack.c.l.b16 %v8290
      %v8347 = vunpack.c.l.b16 %v8304
      %v8348 = vunpack.c.l.b16 %v8314
      %v8349 = vpack.c.b16 %v8318, %v8317
      %v8350 = vpack.c.b16 %v8320, %v8319
      %v8351 = vpack.c.b16 %v8322, %v8321
      %v8352 = vpack.c.b16 %v8324, %v8323
      %v8353 = vpack.c.b16 %v8326, %v8325
      %v8354 = vpack.c.b16 %v8328, %v8327
      %v8355 = vpack.c.b16 %v8330, %v8329
      %v8356 = vpack.c.b16 %v8332, %v8331
      %v8357 = vpack.c.b16 %v8334, %v8333
      %v8358 = vpack.c.b16 %v8336, %v8335
      %v8359 = vpack.c.b16 %v8338, %v8337
      %v8360 = vpack.c.b16 %v8340, %v8339
      %v8361 = vpack.c.b16 %v8342, %v8341
      %v8362 = vpack.c.b16 %v8344, %v8343
      %v8363 = vpack.c.b16 %v8346, %v8345
      %v8364 = vpack.c.b16 %v8348, %v8347
      %v8366 = vsel %vm2091, %v8349, 0
      %v8369 = vsel %vm2091, %v8350, 0
      %v8372 = vsel %vm2091, %v8351, 0
      %v8375 = vsel %vm2091, %v8352, 0
      %v8378 = vsel %vm2091, %v8353, 0
      %v8381 = vsel %vm2091, %v8354, 0
      %v8384 = vsel %vm2091, %v8355, 0
      %v8387 = vsel %vm2091, %v8356, 0
      %v8390 = vsel %vm2091, %v8357, 0
      %v8393 = vsel %vm2091, %v8358, 0
      %v8396 = vsel %vm2091, %v8359, 0
      %v8399 = vsel %vm2091, %v8360, 0
      %v8402 = vsel %vm2091, %v8361, 0
      %v8405 = vsel %vm2091, %v8362, 0
      %v8408 = vsel %vm2091, %v8363, 0
      %v8411 = vsel %vm2091, %v8364, 0
      %v8414 = vsel %vm2140, %v8316, 0
      %8416 = vmatpush.bf16.msra.mxu0 0
      %8417 = vmatpush.bf16.msra.mxu0 0
      %8418 = vmatpush.bf16.msra.mxu0 0
      %8419 = vmatpush.bf16.msra.mxu0 0
      %8420 = vmatpush.bf16.msra.mxu0 0
      %8421 = vmatpush.bf16.msra.mxu0 0
      %8422 = vmatpush.bf16.msra.mxu0 0
      %8423 = vmatpush.bf16.msra.mxu0 %v8414
      %8424 = vmatmul.bf16.gmra.mxu0 %v8366
      %v8425 = vpop.f32.mrf.mxu0
      %v8426 = vadd.f32 0.0, %v8425
      %v8427 = vpop.f32.mrf.mxu0
      %v8428 = vadd.f32 0.0, %v8427
      %8429 = vmatmul.bf16.gmra.mxu0 %v8369
      %v8430 = vpop.f32.mrf.mxu0
      %v8431 = vadd.f32 0.0, %v8430
      %v8432 = vpop.f32.mrf.mxu0
      %v8433 = vadd.f32 0.0, %v8432
      %8434 = vmatmul.bf16.gmra.mxu0 %v8372
      %v8435 = vpop.f32.mrf.mxu0
      %v8436 = vadd.f32 0.0, %v8435
      %v8437 = vpop.f32.mrf.mxu0
      %v8438 = vadd.f32 0.0, %v8437
      %8439 = vmatmul.bf16.gmra.mxu0 %v8375
      %v8440 = vpop.f32.mrf.mxu0
      %v8441 = vadd.f32 0.0, %v8440
      %v8442 = vpop.f32.mrf.mxu0
      %v8443 = vadd.f32 0.0, %v8442
      %8444 = vmatmul.bf16.gmra.mxu0 %v8378
      %v8445 = vpop.f32.mrf.mxu0
      %v8446 = vadd.f32 0.0, %v8445
      %v8447 = vpop.f32.mrf.mxu0
      %v8448 = vadd.f32 0.0, %v8447
      %8449 = vmatmul.bf16.gmra.mxu0 %v8381
      %v8450 = vpop.f32.mrf.mxu0
      %v8451 = vadd.f32 0.0, %v8450
      %v8452 = vpop.f32.mrf.mxu0
      %v8453 = vadd.f32 0.0, %v8452
      %8454 = vmatmul.bf16.gmra.mxu0 %v8384
      %v8455 = vpop.f32.mrf.mxu0
      %v8456 = vadd.f32 0.0, %v8455
      %v8457 = vpop.f32.mrf.mxu0
      %v8458 = vadd.f32 0.0, %v8457
      %8459 = vmatmul.bf16.gmra.mxu0 %v8387
      %v8460 = vpop.f32.mrf.mxu0
      %v8461 = vadd.f32 0.0, %v8460
      %v8462 = vpop.f32.mrf.mxu0
      %v8463 = vadd.f32 0.0, %v8462
      %8464 = vmatmul.bf16.gmra.mxu0 %v8390
      %v8465 = vpop.f32.mrf.mxu0
      %v8466 = vadd.f32 0.0, %v8465
      %v8467 = vpop.f32.mrf.mxu0
      %v8468 = vadd.f32 0.0, %v8467
      %8469 = vmatmul.bf16.gmra.mxu0 %v8393
      %v8470 = vpop.f32.mrf.mxu0
      %v8471 = vadd.f32 0.0, %v8470
      %v8472 = vpop.f32.mrf.mxu0
      %v8473 = vadd.f32 0.0, %v8472
      %8474 = vmatmul.bf16.gmra.mxu0 %v8396
      %v8475 = vpop.f32.mrf.mxu0
      %v8476 = vadd.f32 0.0, %v8475
      %v8477 = vpop.f32.mrf.mxu0
      %v8478 = vadd.f32 0.0, %v8477
      %8479 = vmatmul.bf16.gmra.mxu0 %v8399
      %v8480 = vpop.f32.mrf.mxu0
      %v8481 = vadd.f32 0.0, %v8480
      %v8482 = vpop.f32.mrf.mxu0
      %v8483 = vadd.f32 0.0, %v8482
      %8484 = vmatmul.bf16.gmra.mxu0 %v8402
      %v8485 = vpop.f32.mrf.mxu0
      %v8486 = vadd.f32 0.0, %v8485
      %v8487 = vpop.f32.mrf.mxu0
      %v8488 = vadd.f32 0.0, %v8487
      %8489 = vmatmul.bf16.gmra.mxu0 %v8405
      %v8490 = vpop.f32.mrf.mxu0
      %v8491 = vadd.f32 0.0, %v8490
      %v8492 = vpop.f32.mrf.mxu0
      %v8493 = vadd.f32 0.0, %v8492
      %8494 = vmatmul.bf16.gmra.mxu0 %v8408
      %v8495 = vpop.f32.mrf.mxu0
      %v8496 = vadd.f32 0.0, %v8495
      %v8497 = vpop.f32.mrf.mxu0
      %v8498 = vadd.f32 0.0, %v8497
      %8499 = vmatmul.bf16.gmra.mxu0 %v8411
      %v8500 = vpop.f32.mrf.mxu0
      %v8501 = vadd.f32 0.0, %v8500
      %v8502 = vpop.f32.mrf.mxu0
      %v8503 = vadd.f32 0.0, %v8502
      %8504 = vdwg.mxu0
      %v8505 = vadd.f32 %v7804, %v8426
      %v8506 = vadd.f32 %v7806, %v8428
      %v8507 = vadd.f32 %v7809, %v8431
      %v8508 = vadd.f32 %v7811, %v8433
      %v8509 = vadd.f32 %v7814, %v8436
      %v8510 = vadd.f32 %v7816, %v8438
      %v8511 = vadd.f32 %v7819, %v8441
      %v8512 = vadd.f32 %v7821, %v8443
      %v8513 = vadd.f32 %v7824, %v8446
      %v8514 = vadd.f32 %v7826, %v8448
      %v8515 = vadd.f32 %v7829, %v8451
      %v8516 = vadd.f32 %v7831, %v8453
      %v8517 = vadd.f32 %v7834, %v8456
      %v8518 = vadd.f32 %v7836, %v8458
      %v8519 = vadd.f32 %v7839, %v8461
      %v8520 = vadd.f32 %v7841, %v8463
      %v8521 = vadd.f32 %v7844, %v8466
      %v8522 = vadd.f32 %v7846, %v8468
      %v8523 = vadd.f32 %v7849, %v8471
      %v8524 = vadd.f32 %v7851, %v8473
      %v8525 = vadd.f32 %v7854, %v8476
      %v8526 = vadd.f32 %v7856, %v8478
      %v8527 = vadd.f32 %v7859, %v8481
      %v8528 = vadd.f32 %v7861, %v8483
      %v8529 = vadd.f32 %v7864, %v8486
      %v8530 = vadd.f32 %v7866, %v8488
      %v8531 = vadd.f32 %v7869, %v8491
      %v8532 = vadd.f32 %v7871, %v8493
      %v8533 = vadd.f32 %v7874, %v8496
      %v8534 = vadd.f32 %v7876, %v8498
      %v8535 = vadd.f32 %v7879, %v8501
      %v8536 = vadd.f32 %v7881, %v8503
      %v8537 = vld [vmem:[%s1572] sm:$0x8]
      %v8538 = vld [vmem:[%s1572 + $0x4] sm:$0xf]
      %v8539 = vld [vmem:[%s1572 + $0x8] sm:$0xf]
      %v8540 = vld [vmem:[%s1572 + $0x10] sm:$0x8]
      %v8541 = vld [vmem:[%s1572 + $0x14] sm:$0xf]
      %v8542 = vld [vmem:[%s1572 + $0x18] sm:$0xf]
      %v8543 = vld [vmem:[%s1572 + $0x20] sm:$0x8]
      %v8544 = vld [vmem:[%s1572 + $0x24] sm:$0xf]
      %v8545 = vld [vmem:[%s1572 + $0x28] sm:$0xf]
      %v8546 = vld [vmem:[%s1572 + $0x30] sm:$0x8]
      %v8547 = vld [vmem:[%s1572 + $0x34] sm:$0xf]
      %v8548 = vld [vmem:[%s1572 + $0x38] sm:$0xf]
      %v8549 = vld [vmem:[%s1572 + $0x40] sm:$0x8]
      %v8550 = vld [vmem:[%s1572 + $0x44] sm:$0xf]
      %v8551 = vld [vmem:[%s1572 + $0x48] sm:$0xf]
      %v8552 = vld [vmem:[%s1572 + $0x50] sm:$0x8]
      %v8553 = vld [vmem:[%s1572 + $0x54] sm:$0xf]
      %v8554 = vld [vmem:[%s1572 + $0x58] sm:$0xf]
      %v8555 = vld [vmem:[%s1572 + $0x60] sm:$0x8]
      %v8556 = vld [vmem:[%s1572 + $0x64] sm:$0xf]
      %v8557 = vld [vmem:[%s1572 + $0x68] sm:$0xf]
      %v8558 = vld [vmem:[%s1572 + $0x70] sm:$0x8]
      %v8559 = vld [vmem:[%s1572 + $0x74] sm:$0xf]
      %v8560 = vld [vmem:[%s1572 + $0x78] sm:$0xf]
      %v8561 = vld [vmem:[%s1572 + $0x80] sm:$0x8]
      %v8562 = vld [vmem:[%s1572 + $0x84] sm:$0xf]
      %v8563 = vld [vmem:[%s1572 + $0x88] sm:$0xf]
      %v8564 = vld [vmem:[%s1572 + $0x90] sm:$0x8]
      %v8565 = vld [vmem:[%s1572 + $0x94] sm:$0xf]
      %v8566 = vld [vmem:[%s1572 + $0x98] sm:$0xf]
      %v8567 = vld [vmem:[%s1572 + $0xa0] sm:$0x8]
      %v8568 = vld [vmem:[%s1572 + $0xa4] sm:$0xf]
      %v8569 = vld [vmem:[%s1572 + $0xa8] sm:$0xf]
      %v8570 = vld [vmem:[%s1572 + $0xb0] sm:$0x8]
      %v8571 = vld [vmem:[%s1572 + $0xb4] sm:$0xf]
      %v8572 = vld [vmem:[%s1572 + $0xb8] sm:$0xf]
      %v8573 = vld [vmem:[%s1572 + $0xc0] sm:$0x8]
      %v8574 = vld [vmem:[%s1572 + $0xc4] sm:$0xf]
      %v8575 = vld [vmem:[%s1572 + $0xc8] sm:$0xf]
      %v8576 = vld [vmem:[%s1572 + $0xd0] sm:$0x8]
      %v8577 = vld [vmem:[%s1572 + $0xd4] sm:$0xf]
      %v8578 = vld [vmem:[%s1572 + $0xd8] sm:$0xf]
      %v8579 = vld [vmem:[%s1572 + $0xe0] sm:$0x8]
      %v8580 = vld [vmem:[%s1572 + $0xe4] sm:$0xf]
      %v8581 = vld [vmem:[%s1572 + $0xe8] sm:$0xf]
      %v8582 = vld [vmem:[%s1572 + $0xf0] sm:$0x8]
      %v8583 = vld [vmem:[%s1572 + $0xf4] sm:$0xf]
      %v8584 = vld [vmem:[%s1572 + $0xf8] sm:$0xf]
      %v8586 = vshrl.u32 %v8537, 16
      %v8588 = vrot.slane %v8586, 7
      %v8589 = vrot.slane %v8588, 4
      %v8591 = vshrl.u32 %v8538, 16
      %v8593 = vrot.slane %v8591, 7
      %v8594 = vshll.u32 %v8538, 16
      %v8596 = vor.u32 %v8593, %v8594
      %v8597 = vsel %vm1655, %v8589, %v8596
      %v8598 = vrot.slane %v8593, 4
      %v8600 = vshrl.u32 %v8539, 16
      %v8602 = vrot.slane %v8600, 7
      %v8603 = vshll.u32 %v8539, 16
      %v8605 = vor.u32 %v8602, %v8603
      %v8606 = vsel %vm1655, %v8598, %v8605
      %v8608 = vshrl.u32 %v8540, 16
      %v8610 = vrot.slane %v8608, 7
      %v8611 = vrot.slane %v8610, 4
      %v8613 = vshrl.u32 %v8541, 16
      %v8615 = vrot.slane %v8613, 7
      %v8616 = vshll.u32 %v8541, 16
      %v8618 = vor.u32 %v8615, %v8616
      %v8619 = vsel %vm1655, %v8611, %v8618
      %v8620 = vrot.slane %v8615, 4
      %v8622 = vshrl.u32 %v8542, 16
      %v8624 = vrot.slane %v8622, 7
      %v8625 = vshll.u32 %v8542, 16
      %v8627 = vor.u32 %v8624, %v8625
      %v8628 = vsel %vm1655, %v8620, %v8627
      %v8630 = vshrl.u32 %v8543, 16
      %v8632 = vrot.slane %v8630, 7
      %v8633 = vrot.slane %v8632, 4
      %v8635 = vshrl.u32 %v8544, 16
      %v8637 = vrot.slane %v8635, 7
      %v8638 = vshll.u32 %v8544, 16
      %v8640 = vor.u32 %v8637, %v8638
      %v8641 = vsel %vm1655, %v8633, %v8640
      %v8642 = vrot.slane %v8637, 4
      %v8644 = vshrl.u32 %v8545, 16
      %v8646 = vrot.slane %v8644, 7
      %v8647 = vshll.u32 %v8545, 16
      %v8649 = vor.u32 %v8646, %v8647
      %v8650 = vsel %vm1655, %v8642, %v8649
      %v8652 = vshrl.u32 %v8546, 16
      %v8654 = vrot.slane %v8652, 7
      %v8655 = vrot.slane %v8654, 4
      %v8657 = vshrl.u32 %v8547, 16
      %v8659 = vrot.slane %v8657, 7
      %v8660 = vshll.u32 %v8547, 16
      %v8662 = vor.u32 %v8659, %v8660
      %v8663 = vsel %vm1655, %v8655, %v8662
      %v8664 = vrot.slane %v8659, 4
      %v8666 = vshrl.u32 %v8548, 16
      %v8668 = vrot.slane %v8666, 7
      %v8669 = vshll.u32 %v8548, 16
      %v8671 = vor.u32 %v8668, %v8669
      %v8672 = vsel %vm1655, %v8664, %v8671
      %v8674 = vshrl.u32 %v8549, 16
      %v8676 = vrot.slane %v8674, 7
      %v8677 = vrot.slane %v8676, 4
      %v8679 = vshrl.u32 %v8550, 16
      %v8681 = vrot.slane %v8679, 7
      %v8682 = vshll.u32 %v8550, 16
      %v8684 = vor.u32 %v8681, %v8682
      %v8685 = vsel %vm1655, %v8677, %v8684
      %v8686 = vrot.slane %v8681, 4
      %v8688 = vshrl.u32 %v8551, 16
      %v8690 = vrot.slane %v8688, 7
      %v8691 = vshll.u32 %v8551, 16
      %v8693 = vor.u32 %v8690, %v8691
      %v8694 = vsel %vm1655, %v8686, %v8693
      %v8696 = vshrl.u32 %v8552, 16
      %v8698 = vrot.slane %v8696, 7
      %v8699 = vrot.slane %v8698, 4
      %v8701 = vshrl.u32 %v8553, 16
      %v8703 = vrot.slane %v8701, 7
      %v8704 = vshll.u32 %v8553, 16
      %v8706 = vor.u32 %v8703, %v8704
      %v8707 = vsel %vm1655, %v8699, %v8706
      %v8708 = vrot.slane %v8703, 4
      %v8710 = vshrl.u32 %v8554, 16
      %v8712 = vrot.slane %v8710, 7
      %v8713 = vshll.u32 %v8554, 16
      %v8715 = vor.u32 %v8712, %v8713
      %v8716 = vsel %vm1655, %v8708, %v8715
      %v8718 = vshrl.u32 %v8555, 16
      %v8720 = vrot.slane %v8718, 7
      %v8721 = vrot.slane %v8720, 4
      %v8723 = vshrl.u32 %v8556, 16
      %v8725 = vrot.slane %v8723, 7
      %v8726 = vshll.u32 %v8556, 16
      %v8728 = vor.u32 %v8725, %v8726
      %v8729 = vsel %vm1655, %v8721, %v8728
      %v8730 = vrot.slane %v8725, 4
      %v8732 = vshrl.u32 %v8557, 16
      %v8734 = vrot.slane %v8732, 7
      %v8735 = vshll.u32 %v8557, 16
      %v8737 = vor.u32 %v8734, %v8735
      %v8738 = vsel %vm1655, %v8730, %v8737
      %v8740 = vshrl.u32 %v8558, 16
      %v8742 = vrot.slane %v8740, 7
      %v8743 = vrot.slane %v8742, 4
      %v8745 = vshrl.u32 %v8559, 16
      %v8747 = vrot.slane %v8745, 7
      %v8748 = vshll.u32 %v8559, 16
      %v8750 = vor.u32 %v8747, %v8748
      %v8751 = vsel %vm1655, %v8743, %v8750
      %v8752 = vrot.slane %v8747, 4
      %v8754 = vshrl.u32 %v8560, 16
      %v8756 = vrot.slane %v8754, 7
      %v8757 = vshll.u32 %v8560, 16
      %v8759 = vor.u32 %v8756, %v8757
      %v8760 = vsel %vm1655, %v8752, %v8759
      %v8762 = vshrl.u32 %v8561, 16
      %v8764 = vrot.slane %v8762, 7
      %v8765 = vrot.slane %v8764, 4
      %v8767 = vshrl.u32 %v8562, 16
      %v8769 = vrot.slane %v8767, 7
      %v8770 = vshll.u32 %v8562, 16
      %v8772 = vor.u32 %v8769, %v8770
      %v8773 = vsel %vm1655, %v8765, %v8772
      %v8774 = vrot.slane %v8769, 4
      %v8776 = vshrl.u32 %v8563, 16
      %v8778 = vrot.slane %v8776, 7
      %v8779 = vshll.u32 %v8563, 16
      %v8781 = vor.u32 %v8778, %v8779
      %v8782 = vsel %vm1655, %v8774, %v8781
      %v8784 = vshrl.u32 %v8564, 16
      %v8786 = vrot.slane %v8784, 7
      %v8787 = vrot.slane %v8786, 4
      %v8789 = vshrl.u32 %v8565, 16
      %v8791 = vrot.slane %v8789, 7
      %v8792 = vshll.u32 %v8565, 16
      %v8794 = vor.u32 %v8791, %v8792
      %v8795 = vsel %vm1655, %v8787, %v8794
      %v8796 = vrot.slane %v8791, 4
      %v8798 = vshrl.u32 %v8566, 16
      %v8800 = vrot.slane %v8798, 7
      %v8801 = vshll.u32 %v8566, 16
      %v8803 = vor.u32 %v8800, %v8801
      %v8804 = vsel %vm1655, %v8796, %v8803
      %v8806 = vshrl.u32 %v8567, 16
      %v8808 = vrot.slane %v8806, 7
      %v8809 = vrot.slane %v8808, 4
      %v8811 = vshrl.u32 %v8568, 16
      %v8813 = vrot.slane %v8811, 7
      %v8814 = vshll.u32 %v8568, 16
      %v8816 = vor.u32 %v8813, %v8814
      %v8817 = vsel %vm1655, %v8809, %v8816
      %v8818 = vrot.slane %v8813, 4
      %v8820 = vshrl.u32 %v8569, 16
      %v8822 = vrot.slane %v8820, 7
      %v8823 = vshll.u32 %v8569, 16
      %v8825 = vor.u32 %v8822, %v8823
      %v8826 = vsel %vm1655, %v8818, %v8825
      %v8828 = vshrl.u32 %v8570, 16
      %v8830 = vrot.slane %v8828, 7
      %v8831 = vrot.slane %v8830, 4
      %v8833 = vshrl.u32 %v8571, 16
      %v8835 = vrot.slane %v8833, 7
      %v8836 = vshll.u32 %v8571, 16
      %v8838 = vor.u32 %v8835, %v8836
      %v8839 = vsel %vm1655, %v8831, %v8838
      %v8840 = vrot.slane %v8835, 4
      %v8842 = vshrl.u32 %v8572, 16
      %v8844 = vrot.slane %v8842, 7
      %v8845 = vshll.u32 %v8572, 16
      %v8847 = vor.u32 %v8844, %v8845
      %v8848 = vsel %vm1655, %v8840, %v8847
      %v8850 = vshrl.u32 %v8573, 16
      %v8852 = vrot.slane %v8850, 7
      %v8853 = vrot.slane %v8852, 4
      %v8855 = vshrl.u32 %v8574, 16
      %v8857 = vrot.slane %v8855, 7
      %v8858 = vshll.u32 %v8574, 16
      %v8860 = vor.u32 %v8857, %v8858
      %v8861 = vsel %vm1655, %v8853, %v8860
      %v8862 = vrot.slane %v8857, 4
      %v8864 = vshrl.u32 %v8575, 16
      %v8866 = vrot.slane %v8864, 7
      %v8867 = vshll.u32 %v8575, 16
      %v8869 = vor.u32 %v8866, %v8867
      %v8870 = vsel %vm1655, %v8862, %v8869
      %v8872 = vshrl.u32 %v8576, 16
      %v8874 = vrot.slane %v8872, 7
      %v8875 = vrot.slane %v8874, 4
      %v8877 = vshrl.u32 %v8577, 16
      %v8879 = vrot.slane %v8877, 7
      %v8880 = vshll.u32 %v8577, 16
      %v8882 = vor.u32 %v8879, %v8880
      %v8883 = vsel %vm1655, %v8875, %v8882
      %v8884 = vrot.slane %v8879, 4
      %v8886 = vshrl.u32 %v8578, 16
      %v8888 = vrot.slane %v8886, 7
      %v8889 = vshll.u32 %v8578, 16
      %v8891 = vor.u32 %v8888, %v8889
      %v8892 = vsel %vm1655, %v8884, %v8891
      %v8894 = vshrl.u32 %v8579, 16
      %v8896 = vrot.slane %v8894, 7
      %v8897 = vrot.slane %v8896, 4
      %v8899 = vshrl.u32 %v8580, 16
      %v8901 = vrot.slane %v8899, 7
      %v8902 = vshll.u32 %v8580, 16
      %v8904 = vor.u32 %v8901, %v8902
      %v8905 = vsel %vm1655, %v8897, %v8904
      %v8906 = vrot.slane %v8901, 4
      %v8908 = vshrl.u32 %v8581, 16
      %v8910 = vrot.slane %v8908, 7
      %v8911 = vshll.u32 %v8581, 16
      %v8913 = vor.u32 %v8910, %v8911
      %v8914 = vsel %vm1655, %v8906, %v8913
      %v8916 = vshrl.u32 %v8582, 16
      %v8918 = vrot.slane %v8916, 7
      %v8919 = vrot.slane %v8918, 4
      %v8921 = vshrl.u32 %v8583, 16
      %v8923 = vrot.slane %v8921, 7
      %v8924 = vshll.u32 %v8583, 16
      %v8926 = vor.u32 %v8923, %v8924
      %v8927 = vsel %vm1655, %v8919, %v8926
      %v8928 = vrot.slane %v8923, 4
      %v8930 = vshrl.u32 %v8584, 16
      %v8932 = vrot.slane %v8930, 7
      %v8933 = vshll.u32 %v8584, 16
      %v8935 = vor.u32 %v8932, %v8933
      %v8936 = vsel %vm1655, %v8928, %v8935
      %s8937 = scalar_lea.vmem %s9, 3
      %v8938 = vld [vmem:[%s8937] sm:$0x1]
      %v8939 = vunpack.c.l.b16 %v8597
      %v8940 = vunpack.c.l.b16 %v8606
      %v8941 = vunpack.c.l.b16 %v8619
      %v8942 = vunpack.c.l.b16 %v8628
      %v8943 = vunpack.c.l.b16 %v8641
      %v8944 = vunpack.c.l.b16 %v8650
      %v8945 = vunpack.c.l.b16 %v8663
      %v8946 = vunpack.c.l.b16 %v8672
      %v8947 = vunpack.c.l.b16 %v8685
      %v8948 = vunpack.c.l.b16 %v8694
      %v8949 = vunpack.c.l.b16 %v8707
      %v8950 = vunpack.c.l.b16 %v8716
      %v8951 = vunpack.c.l.b16 %v8729
      %v8952 = vunpack.c.l.b16 %v8738
      %v8953 = vunpack.c.l.b16 %v8751
      %v8954 = vunpack.c.l.b16 %v8760
      %v8955 = vunpack.c.l.b16 %v8773
      %v8956 = vunpack.c.l.b16 %v8782
      %v8957 = vunpack.c.l.b16 %v8795
      %v8958 = vunpack.c.l.b16 %v8804
      %v8959 = vunpack.c.l.b16 %v8817
      %v8960 = vunpack.c.l.b16 %v8826
      %v8961 = vunpack.c.l.b16 %v8839
      %v8962 = vunpack.c.l.b16 %v8848
      %v8963 = vunpack.c.l.b16 %v8861
      %v8964 = vunpack.c.l.b16 %v8870
      %v8965 = vunpack.c.l.b16 %v8883
      %v8966 = vunpack.c.l.b16 %v8892
      %v8967 = vunpack.c.l.b16 %v8905
      %v8968 = vunpack.c.l.b16 %v8914
      %v8969 = vunpack.c.l.b16 %v8927
      %v8970 = vunpack.c.l.b16 %v8936
      %v8971 = vpack.c.b16 %v8940, %v8939
      %v8972 = vpack.c.b16 %v8942, %v8941
      %v8973 = vpack.c.b16 %v8944, %v8943
      %v8974 = vpack.c.b16 %v8946, %v8945
      %v8975 = vpack.c.b16 %v8948, %v8947
      %v8976 = vpack.c.b16 %v8950, %v8949
      %v8977 = vpack.c.b16 %v8952, %v8951
      %v8978 = vpack.c.b16 %v8954, %v8953
      %v8979 = vpack.c.b16 %v8956, %v8955
      %v8980 = vpack.c.b16 %v8958, %v8957
      %v8981 = vpack.c.b16 %v8960, %v8959
      %v8982 = vpack.c.b16 %v8962, %v8961
      %v8983 = vpack.c.b16 %v8964, %v8963
      %v8984 = vpack.c.b16 %v8966, %v8965
      %v8985 = vpack.c.b16 %v8968, %v8967
      %v8986 = vpack.c.b16 %v8970, %v8969
      %v8988 = vsel %vm2091, %v8971, 0
      %v8991 = vsel %vm2091, %v8972, 0
      %v8994 = vsel %vm2091, %v8973, 0
      %v8997 = vsel %vm2091, %v8974, 0
      %v9000 = vsel %vm2091, %v8975, 0
      %v9003 = vsel %vm2091, %v8976, 0
      %v9006 = vsel %vm2091, %v8977, 0
      %v9009 = vsel %vm2091, %v8978, 0
      %v9012 = vsel %vm2091, %v8979, 0
      %v9015 = vsel %vm2091, %v8980, 0
      %v9018 = vsel %vm2091, %v8981, 0
      %v9021 = vsel %vm2091, %v8982, 0
      %v9024 = vsel %vm2091, %v8983, 0
      %v9027 = vsel %vm2091, %v8984, 0
      %v9030 = vsel %vm2091, %v8985, 0
      %v9033 = vsel %vm2091, %v8986, 0
      %v9036 = vsel %vm2140, %v8938, 0
      %9038 = vmatpush.bf16.msra.mxu0 0
      %9039 = vmatpush.bf16.msra.mxu0 0
      %9040 = vmatpush.bf16.msra.mxu0 0
      %9041 = vmatpush.bf16.msra.mxu0 0
      %9042 = vmatpush.bf16.msra.mxu0 0
      %9043 = vmatpush.bf16.msra.mxu0 0
      %9044 = vmatpush.bf16.msra.mxu0 0
      %9045 = vmatpush.bf16.msra.mxu0 %v9036
      %9046 = vmatmul.bf16.gmra.mxu0 %v8988
      %v9047 = vpop.f32.mrf.mxu0
      %v9048 = vadd.f32 0.0, %v9047
      %v9049 = vpop.f32.mrf.mxu0
      %v9050 = vadd.f32 0.0, %v9049
      %9051 = vmatmul.bf16.gmra.mxu0 %v8991
      %v9052 = vpop.f32.mrf.mxu0
      %v9053 = vadd.f32 0.0, %v9052
      %v9054 = vpop.f32.mrf.mxu0
      %v9055 = vadd.f32 0.0, %v9054
      %9056 = vmatmul.bf16.gmra.mxu0 %v8994
      %v9057 = vpop.f32.mrf.mxu0
      %v9058 = vadd.f32 0.0, %v9057
      %v9059 = vpop.f32.mrf.mxu0
      %v9060 = vadd.f32 0.0, %v9059
      %9061 = vmatmul.bf16.gmra.mxu0 %v8997
      %v9062 = vpop.f32.mrf.mxu0
      %v9063 = vadd.f32 0.0, %v9062
      %v9064 = vpop.f32.mrf.mxu0
      %v9065 = vadd.f32 0.0, %v9064
      %9066 = vmatmul.bf16.gmra.mxu0 %v9000
      %v9067 = vpop.f32.mrf.mxu0
      %v9068 = vadd.f32 0.0, %v9067
      %v9069 = vpop.f32.mrf.mxu0
      %v9070 = vadd.f32 0.0, %v9069
      %9071 = vmatmul.bf16.gmra.mxu0 %v9003
      %v9072 = vpop.f32.mrf.mxu0
      %v9073 = vadd.f32 0.0, %v9072
      %v9074 = vpop.f32.mrf.mxu0
      %v9075 = vadd.f32 0.0, %v9074
      %9076 = vmatmul.bf16.gmra.mxu0 %v9006
      %v9077 = vpop.f32.mrf.mxu0
      %v9078 = vadd.f32 0.0, %v9077
      %v9079 = vpop.f32.mrf.mxu0
      %v9080 = vadd.f32 0.0, %v9079
      %9081 = vmatmul.bf16.gmra.mxu0 %v9009
      %v9082 = vpop.f32.mrf.mxu0
      %v9083 = vadd.f32 0.0, %v9082
      %v9084 = vpop.f32.mrf.mxu0
      %v9085 = vadd.f32 0.0, %v9084
      %9086 = vmatmul.bf16.gmra.mxu0 %v9012
      %v9087 = vpop.f32.mrf.mxu0
      %v9088 = vadd.f32 0.0, %v9087
      %v9089 = vpop.f32.mrf.mxu0
      %v9090 = vadd.f32 0.0, %v9089
      %9091 = vmatmul.bf16.gmra.mxu0 %v9015
      %v9092 = vpop.f32.mrf.mxu0
      %v9093 = vadd.f32 0.0, %v9092
      %v9094 = vpop.f32.mrf.mxu0
      %v9095 = vadd.f32 0.0, %v9094
      %9096 = vmatmul.bf16.gmra.mxu0 %v9018
      %v9097 = vpop.f32.mrf.mxu0
      %v9098 = vadd.f32 0.0, %v9097
      %v9099 = vpop.f32.mrf.mxu0
      %v9100 = vadd.f32 0.0, %v9099
      %9101 = vmatmul.bf16.gmra.mxu0 %v9021
      %v9102 = vpop.f32.mrf.mxu0
      %v9103 = vadd.f32 0.0, %v9102
      %v9104 = vpop.f32.mrf.mxu0
      %v9105 = vadd.f32 0.0, %v9104
      %9106 = vmatmul.bf16.gmra.mxu0 %v9024
      %v9107 = vpop.f32.mrf.mxu0
      %v9108 = vadd.f32 0.0, %v9107
      %v9109 = vpop.f32.mrf.mxu0
      %v9110 = vadd.f32 0.0, %v9109
      %9111 = vmatmul.bf16.gmra.mxu0 %v9027
      %v9112 = vpop.f32.mrf.mxu0
      %v9113 = vadd.f32 0.0, %v9112
      %v9114 = vpop.f32.mrf.mxu0
      %v9115 = vadd.f32 0.0, %v9114
      %9116 = vmatmul.bf16.gmra.mxu0 %v9030
      %v9117 = vpop.f32.mrf.mxu0
      %v9118 = vadd.f32 0.0, %v9117
      %v9119 = vpop.f32.mrf.mxu0
      %v9120 = vadd.f32 0.0, %v9119
      %9121 = vmatmul.bf16.gmra.mxu0 %v9033
      %v9122 = vpop.f32.mrf.mxu0
      %v9123 = vadd.f32 0.0, %v9122
      %v9124 = vpop.f32.mrf.mxu0
      %v9125 = vadd.f32 0.0, %v9124
      %9126 = vdwg.mxu0
      %v9127 = vadd.f32 %v8505, %v9048
      %v9128 = vadd.f32 %v8506, %v9050
      %v9129 = vadd.f32 %v8507, %v9053
      %v9130 = vadd.f32 %v8508, %v9055
      %v9131 = vadd.f32 %v8509, %v9058
      %v9132 = vadd.f32 %v8510, %v9060
      %v9133 = vadd.f32 %v8511, %v9063
      %v9134 = vadd.f32 %v8512, %v9065
      %v9135 = vadd.f32 %v8513, %v9068
      %v9136 = vadd.f32 %v8514, %v9070
      %v9137 = vadd.f32 %v8515, %v9073
      %v9138 = vadd.f32 %v8516, %v9075
      %v9139 = vadd.f32 %v8517, %v9078
      %v9140 = vadd.f32 %v8518, %v9080
      %v9141 = vadd.f32 %v8519, %v9083
      %v9142 = vadd.f32 %v8520, %v9085
      %v9143 = vadd.f32 %v8521, %v9088
      %v9144 = vadd.f32 %v8522, %v9090
      %v9145 = vadd.f32 %v8523, %v9093
      %v9146 = vadd.f32 %v8524, %v9095
      %v9147 = vadd.f32 %v8525, %v9098
      %v9148 = vadd.f32 %v8526, %v9100
      %v9149 = vadd.f32 %v8527, %v9103
      %v9150 = vadd.f32 %v8528, %v9105
      %v9151 = vadd.f32 %v8529, %v9108
      %v9152 = vadd.f32 %v8530, %v9110
      %v9153 = vadd.f32 %v8531, %v9113
      %v9154 = vadd.f32 %v8532, %v9115
      %v9155 = vadd.f32 %v8533, %v9118
      %v9156 = vadd.f32 %v8534, %v9120
      %v9157 = vadd.f32 %v8535, %v9123
      %v9158 = vadd.f32 %v8536, %v9125
      %s9159 = scalar_lea.vmem %s9, 4
      %v9160 = vld [vmem:[%s9159] sm:$0x1]
      %v9193 = vunpack.c.l.b16 %v8538
      %v9194 = vunpack.c.l.b16 %v8539
      %v9195 = vunpack.c.l.b16 %v8541
      %v9196 = vunpack.c.l.b16 %v8542
      %v9197 = vunpack.c.l.b16 %v8544
      %v9198 = vunpack.c.l.b16 %v8545
      %v9199 = vunpack.c.l.b16 %v8547
      %v9200 = vunpack.c.l.b16 %v8548
      %v9201 = vunpack.c.l.b16 %v8550
      %v9202 = vunpack.c.l.b16 %v8551
      %v9203 = vunpack.c.l.b16 %v8553
      %v9204 = vunpack.c.l.b16 %v8554
      %v9205 = vunpack.c.l.b16 %v8556
      %v9206 = vunpack.c.l.b16 %v8557
      %v9207 = vunpack.c.l.b16 %v8559
      %v9208 = vunpack.c.l.b16 %v8560
      %v9209 = vunpack.c.l.b16 %v8562
      %v9210 = vunpack.c.l.b16 %v8563
      %v9211 = vunpack.c.l.b16 %v8565
      %v9212 = vunpack.c.l.b16 %v8566
      %v9213 = vunpack.c.l.b16 %v8568
      %v9214 = vunpack.c.l.b16 %v8569
      %v9215 = vunpack.c.l.b16 %v8571
      %v9216 = vunpack.c.l.b16 %v8572
      %v9217 = vunpack.c.l.b16 %v8574
      %v9218 = vunpack.c.l.b16 %v8575
      %v9219 = vunpack.c.l.b16 %v8577
      %v9220 = vunpack.c.l.b16 %v8578
      %v9221 = vunpack.c.l.b16 %v8580
      %v9222 = vunpack.c.l.b16 %v8581
      %v9223 = vunpack.c.l.b16 %v8583
      %v9224 = vunpack.c.l.b16 %v8584
      %v9225 = vpack.c.b16 %v9194, %v9193
      %v9226 = vpack.c.b16 %v9196, %v9195
      %v9227 = vpack.c.b16 %v9198, %v9197
      %v9228 = vpack.c.b16 %v9200, %v9199
      %v9229 = vpack.c.b16 %v9202, %v9201
      %v9230 = vpack.c.b16 %v9204, %v9203
      %v9231 = vpack.c.b16 %v9206, %v9205
      %v9232 = vpack.c.b16 %v9208, %v9207
      %v9233 = vpack.c.b16 %v9210, %v9209
      %v9234 = vpack.c.b16 %v9212, %v9211
      %v9235 = vpack.c.b16 %v9214, %v9213
      %v9236 = vpack.c.b16 %v9216, %v9215
      %v9237 = vpack.c.b16 %v9218, %v9217
      %v9238 = vpack.c.b16 %v9220, %v9219
      %v9239 = vpack.c.b16 %v9222, %v9221
      %v9240 = vpack.c.b16 %v9224, %v9223
      %v9242 = vsel %vm2091, %v9225, 0
      %v9245 = vsel %vm2091, %v9226, 0
      %v9248 = vsel %vm2091, %v9227, 0
      %v9251 = vsel %vm2091, %v9228, 0
      %v9254 = vsel %vm2091, %v9229, 0
      %v9257 = vsel %vm2091, %v9230, 0
      %v9260 = vsel %vm2091, %v9231, 0
      %v9263 = vsel %vm2091, %v9232, 0
      %v9266 = vsel %vm2091, %v9233, 0
      %v9269 = vsel %vm2091, %v9234, 0
      %v9272 = vsel %vm2091, %v9235, 0
      %v9275 = vsel %vm2091, %v9236, 0
      %v9278 = vsel %vm2091, %v9237, 0
      %v9281 = vsel %vm2091, %v9238, 0
      %v9284 = vsel %vm2091, %v9239, 0
      %v9287 = vsel %vm2091, %v9240, 0
      %v9290 = vsel %vm2140, %v9160, 0
      %9292 = vmatpush.bf16.msra.mxu0 0
      %9293 = vmatpush.bf16.msra.mxu0 0
      %9294 = vmatpush.bf16.msra.mxu0 0
      %9295 = vmatpush.bf16.msra.mxu0 0
      %9296 = vmatpush.bf16.msra.mxu0 0
      %9297 = vmatpush.bf16.msra.mxu0 0
      %9298 = vmatpush.bf16.msra.mxu0 0
      %9299 = vmatpush.bf16.msra.mxu0 %v9290
      %9300 = vmatmul.bf16.gmra.mxu0 %v9242
      %v9301 = vpop.f32.mrf.mxu0
      %v9302 = vadd.f32 0.0, %v9301
      %v9303 = vpop.f32.mrf.mxu0
      %v9304 = vadd.f32 0.0, %v9303
      %9305 = vmatmul.bf16.gmra.mxu0 %v9245
      %v9306 = vpop.f32.mrf.mxu0
      %v9307 = vadd.f32 0.0, %v9306
      %v9308 = vpop.f32.mrf.mxu0
      %v9309 = vadd.f32 0.0, %v9308
      %9310 = vmatmul.bf16.gmra.mxu0 %v9248
      %v9311 = vpop.f32.mrf.mxu0
      %v9312 = vadd.f32 0.0, %v9311
      %v9313 = vpop.f32.mrf.mxu0
      %v9314 = vadd.f32 0.0, %v9313
      %9315 = vmatmul.bf16.gmra.mxu0 %v9251
      %v9316 = vpop.f32.mrf.mxu0
      %v9317 = vadd.f32 0.0, %v9316
      %v9318 = vpop.f32.mrf.mxu0
      %v9319 = vadd.f32 0.0, %v9318
      %9320 = vmatmul.bf16.gmra.mxu0 %v9254
      %v9321 = vpop.f32.mrf.mxu0
      %v9322 = vadd.f32 0.0, %v9321
      %v9323 = vpop.f32.mrf.mxu0
      %v9324 = vadd.f32 0.0, %v9323
      %9325 = vmatmul.bf16.gmra.mxu0 %v9257
      %v9326 = vpop.f32.mrf.mxu0
      %v9327 = vadd.f32 0.0, %v9326
      %v9328 = vpop.f32.mrf.mxu0
      %v9329 = vadd.f32 0.0, %v9328
      %9330 = vmatmul.bf16.gmra.mxu0 %v9260
      %v9331 = vpop.f32.mrf.mxu0
      %v9332 = vadd.f32 0.0, %v9331
      %v9333 = vpop.f32.mrf.mxu0
      %v9334 = vadd.f32 0.0, %v9333
      %9335 = vmatmul.bf16.gmra.mxu0 %v9263
      %v9336 = vpop.f32.mrf.mxu0
      %v9337 = vadd.f32 0.0, %v9336
      %v9338 = vpop.f32.mrf.mxu0
      %v9339 = vadd.f32 0.0, %v9338
      %9340 = vmatmul.bf16.gmra.mxu0 %v9266
      %v9341 = vpop.f32.mrf.mxu0
      %v9342 = vadd.f32 0.0, %v9341
      %v9343 = vpop.f32.mrf.mxu0
      %v9344 = vadd.f32 0.0, %v9343
      %9345 = vmatmul.bf16.gmra.mxu0 %v9269
      %v9346 = vpop.f32.mrf.mxu0
      %v9347 = vadd.f32 0.0, %v9346
      %v9348 = vpop.f32.mrf.mxu0
      %v9349 = vadd.f32 0.0, %v9348
      %9350 = vmatmul.bf16.gmra.mxu0 %v9272
      %v9351 = vpop.f32.mrf.mxu0
      %v9352 = vadd.f32 0.0, %v9351
      %v9353 = vpop.f32.mrf.mxu0
      %v9354 = vadd.f32 0.0, %v9353
      %9355 = vmatmul.bf16.gmra.mxu0 %v9275
      %v9356 = vpop.f32.mrf.mxu0
      %v9357 = vadd.f32 0.0, %v9356
      %v9358 = vpop.f32.mrf.mxu0
      %v9359 = vadd.f32 0.0, %v9358
      %9360 = vmatmul.bf16.gmra.mxu0 %v9278
      %v9361 = vpop.f32.mrf.mxu0
      %v9362 = vadd.f32 0.0, %v9361
      %v9363 = vpop.f32.mrf.mxu0
      %v9364 = vadd.f32 0.0, %v9363
      %9365 = vmatmul.bf16.gmra.mxu0 %v9281
      %v9366 = vpop.f32.mrf.mxu0
      %v9367 = vadd.f32 0.0, %v9366
      %v9368 = vpop.f32.mrf.mxu0
      %v9369 = vadd.f32 0.0, %v9368
      %9370 = vmatmul.bf16.gmra.mxu0 %v9284
      %v9371 = vpop.f32.mrf.mxu0
      %v9372 = vadd.f32 0.0, %v9371
      %v9373 = vpop.f32.mrf.mxu0
      %v9374 = vadd.f32 0.0, %v9373
      %9375 = vmatmul.bf16.gmra.mxu0 %v9287
      %v9376 = vpop.f32.mrf.mxu0
      %v9377 = vadd.f32 0.0, %v9376
      %v9378 = vpop.f32.mrf.mxu0
      %v9379 = vadd.f32 0.0, %v9378
      %9380 = vdwg.mxu0
      %v9381 = vadd.f32 %v9127, %v9302
      %v9382 = vadd.f32 %v9128, %v9304
      %v9383 = vadd.f32 %v9129, %v9307
      %v9384 = vadd.f32 %v9130, %v9309
      %v9385 = vadd.f32 %v9131, %v9312
      %v9386 = vadd.f32 %v9132, %v9314
      %v9387 = vadd.f32 %v9133, %v9317
      %v9388 = vadd.f32 %v9134, %v9319
      %v9389 = vadd.f32 %v9135, %v9322
      %v9390 = vadd.f32 %v9136, %v9324
      %v9391 = vadd.f32 %v9137, %v9327
      %v9392 = vadd.f32 %v9138, %v9329
      %v9393 = vadd.f32 %v9139, %v9332
      %v9394 = vadd.f32 %v9140, %v9334
      %v9395 = vadd.f32 %v9141, %v9337
      %v9396 = vadd.f32 %v9142, %v9339
      %v9397 = vadd.f32 %v9143, %v9342
      %v9398 = vadd.f32 %v9144, %v9344
      %v9399 = vadd.f32 %v9145, %v9347
      %v9400 = vadd.f32 %v9146, %v9349
      %v9401 = vadd.f32 %v9147, %v9352
      %v9402 = vadd.f32 %v9148, %v9354
      %v9403 = vadd.f32 %v9149, %v9357
      %v9404 = vadd.f32 %v9150, %v9359
      %v9405 = vadd.f32 %v9151, %v9362
      %v9406 = vadd.f32 %v9152, %v9364
      %v9407 = vadd.f32 %v9153, %v9367
      %v9408 = vadd.f32 %v9154, %v9369
      %v9409 = vadd.f32 %v9155, %v9372
      %v9410 = vadd.f32 %v9156, %v9374
      %v9411 = vadd.f32 %v9157, %v9377
      %v9412 = vadd.f32 %v9158, %v9379
      %v9413 = vld [vmem:[%s1572 + $0x4] sm:$0xf]
      %v9414 = vld [vmem:[%s1572 + $0x8] sm:$0xf]
      %v9415 = vld [vmem:[%s1572 + $0xc] sm:$0x1]
      %v9416 = vld [vmem:[%s1572 + $0x14] sm:$0xf]
      %v9417 = vld [vmem:[%s1572 + $0x18] sm:$0xf]
      %v9418 = vld [vmem:[%s1572 + $0x1c] sm:$0x1]
      %v9419 = vld [vmem:[%s1572 + $0x24] sm:$0xf]
      %v9420 = vld [vmem:[%s1572 + $0x28] sm:$0xf]
      %v9421 = vld [vmem:[%s1572 + $0x2c] sm:$0x1]
      %v9422 = vld [vmem:[%s1572 + $0x34] sm:$0xf]
      %v9423 = vld [vmem:[%s1572 + $0x38] sm:$0xf]
      %v9424 = vld [vmem:[%s1572 + $0x3c] sm:$0x1]
      %v9425 = vld [vmem:[%s1572 + $0x44] sm:$0xf]
      %v9426 = vld [vmem:[%s1572 + $0x48] sm:$0xf]
      %v9427 = vld [vmem:[%s1572 + $0x4c] sm:$0x1]
      %v9428 = vld [vmem:[%s1572 + $0x54] sm:$0xf]
      %v9429 = vld [vmem:[%s1572 + $0x58] sm:$0xf]
      %v9430 = vld [vmem:[%s1572 + $0x5c] sm:$0x1]
      %v9431 = vld [vmem:[%s1572 + $0x64] sm:$0xf]
      %v9432 = vld [vmem:[%s1572 + $0x68] sm:$0xf]
      %v9433 = vld [vmem:[%s1572 + $0x6c] sm:$0x1]
      %v9434 = vld [vmem:[%s1572 + $0x74] sm:$0xf]
      %v9435 = vld [vmem:[%s1572 + $0x78] sm:$0xf]
      %v9436 = vld [vmem:[%s1572 + $0x7c] sm:$0x1]
      %v9437 = vld [vmem:[%s1572 + $0x84] sm:$0xf]
      %v9438 = vld [vmem:[%s1572 + $0x88] sm:$0xf]
      %v9439 = vld [vmem:[%s1572 + $0x8c] sm:$0x1]
      %v9440 = vld [vmem:[%s1572 + $0x94] sm:$0xf]
      %v9441 = vld [vmem:[%s1572 + $0x98] sm:$0xf]
      %v9442 = vld [vmem:[%s1572 + $0x9c] sm:$0x1]
      %v9443 = vld [vmem:[%s1572 + $0xa4] sm:$0xf]
      %v9444 = vld [vmem:[%s1572 + $0xa8] sm:$0xf]
      %v9445 = vld [vmem:[%s1572 + $0xac] sm:$0x1]
      %v9446 = vld [vmem:[%s1572 + $0xb4] sm:$0xf]
      %v9447 = vld [vmem:[%s1572 + $0xb8] sm:$0xf]
      %v9448 = vld [vmem:[%s1572 + $0xbc] sm:$0x1]
      %v9449 = vld [vmem:[%s1572 + $0xc4] sm:$0xf]
      %v9450 = vld [vmem:[%s1572 + $0xc8] sm:$0xf]
      %v9451 = vld [vmem:[%s1572 + $0xcc] sm:$0x1]
      %v9452 = vld [vmem:[%s1572 + $0xd4] sm:$0xf]
      %v9453 = vld [vmem:[%s1572 + $0xd8] sm:$0xf]
      %v9454 = vld [vmem:[%s1572 + $0xdc] sm:$0x1]
      %v9455 = vld [vmem:[%s1572 + $0xe4] sm:$0xf]
      %v9456 = vld [vmem:[%s1572 + $0xe8] sm:$0xf]
      %v9457 = vld [vmem:[%s1572 + $0xec] sm:$0x1]
      %v9458 = vld [vmem:[%s1572 + $0xf4] sm:$0xf]
      %v9459 = vld [vmem:[%s1572 + $0xf8] sm:$0xf]
      %v9460 = vld [vmem:[%s1572 + $0xfc] sm:$0x1]
      %v9462 = vshrl.u32 %v9413, 16
      %v9464 = vrot.slane %v9462, 4
      %v9465 = vshll.u32 %v9413, 16
      %v9467 = vrot.slane %v9465, 5
      %v9468 = vor.u32 %v9464, %v9467
      %v9469 = vrot.slane %v9468, 4
      %v9471 = vshll.u32 %v9414, 16
      %v9473 = vrot.slane %v9471, 5
      %v9474 = vsel %vm2471, %v9469, %v9473
      %v9475 = vshrl.u32 %v9414, 16
      %v9477 = vrot.slane %v9475, 4
      %v9478 = vor.u32 %v9477, %v9473
      %v9479 = vrot.slane %v9478, 4
      %v9481 = vshll.u32 %v9415, 16
      %v9483 = vrot.slane %v9481, 5
      %v9484 = vsel %vm2471, %v9479, %v9483
      %v9486 = vshrl.u32 %v9416, 16
      %v9488 = vrot.slane %v9486, 4
      %v9489 = vshll.u32 %v9416, 16
      %v9491 = vrot.slane %v9489, 5
      %v9492 = vor.u32 %v9488, %v9491
      %v9493 = vrot.slane %v9492, 4
      %v9495 = vshll.u32 %v9417, 16
      %v9497 = vrot.slane %v9495, 5
      %v9498 = vsel %vm2471, %v9493, %v9497
      %v9499 = vshrl.u32 %v9417, 16
      %v9501 = vrot.slane %v9499, 4
      %v9502 = vor.u32 %v9501, %v9497
      %v9503 = vrot.slane %v9502, 4
      %v9505 = vshll.u32 %v9418, 16
      %v9507 = vrot.slane %v9505, 5
      %v9508 = vsel %vm2471, %v9503, %v9507
      %v9510 = vshrl.u32 %v9419, 16
      %v9512 = vrot.slane %v9510, 4
      %v9513 = vshll.u32 %v9419, 16
      %v9515 = vrot.slane %v9513, 5
      %v9516 = vor.u32 %v9512, %v9515
      %v9517 = vrot.slane %v9516, 4
      %v9519 = vshll.u32 %v9420, 16
      %v9521 = vrot.slane %v9519, 5
      %v9522 = vsel %vm2471, %v9517, %v9521
      %v9523 = vshrl.u32 %v9420, 16
      %v9525 = vrot.slane %v9523, 4
      %v9526 = vor.u32 %v9525, %v9521
      %v9527 = vrot.slane %v9526, 4
      %v9529 = vshll.u32 %v9421, 16
      %v9531 = vrot.slane %v9529, 5
      %v9532 = vsel %vm2471, %v9527, %v9531
      %v9534 = vshrl.u32 %v9422, 16
      %v9536 = vrot.slane %v9534, 4
      %v9537 = vshll.u32 %v9422, 16
      %v9539 = vrot.slane %v9537, 5
      %v9540 = vor.u32 %v9536, %v9539
      %v9541 = vrot.slane %v9540, 4
      %v9543 = vshll.u32 %v9423, 16
      %v9545 = vrot.slane %v9543, 5
      %v9546 = vsel %vm2471, %v9541, %v9545
      %v9547 = vshrl.u32 %v9423, 16
      %v9549 = vrot.slane %v9547, 4
      %v9550 = vor.u32 %v9549, %v9545
      %v9551 = vrot.slane %v9550, 4
      %v9553 = vshll.u32 %v9424, 16
      %v9555 = vrot.slane %v9553, 5
      %v9556 = vsel %vm2471, %v9551, %v9555
      %v9558 = vshrl.u32 %v9425, 16
      %v9560 = vrot.slane %v9558, 4
      %v9561 = vshll.u32 %v9425, 16
      %v9563 = vrot.slane %v9561, 5
      %v9564 = vor.u32 %v9560, %v9563
      %v9565 = vrot.slane %v9564, 4
      %v9567 = vshll.u32 %v9426, 16
      %v9569 = vrot.slane %v9567, 5
      %v9570 = vsel %vm2471, %v9565, %v9569
      %v9571 = vshrl.u32 %v9426, 16
      %v9573 = vrot.slane %v9571, 4
      %v9574 = vor.u32 %v9573, %v9569
      %v9575 = vrot.slane %v9574, 4
      %v9577 = vshll.u32 %v9427, 16
      %v9579 = vrot.slane %v9577, 5
      %v9580 = vsel %vm2471, %v9575, %v9579
      %v9582 = vshrl.u32 %v9428, 16
      %v9584 = vrot.slane %v9582, 4
      %v9585 = vshll.u32 %v9428, 16
      %v9587 = vrot.slane %v9585, 5
      %v9588 = vor.u32 %v9584, %v9587
      %v9589 = vrot.slane %v9588, 4
      %v9591 = vshll.u32 %v9429, 16
      %v9593 = vrot.slane %v9591, 5
      %v9594 = vsel %vm2471, %v9589, %v9593
      %v9595 = vshrl.u32 %v9429, 16
      %v9597 = vrot.slane %v9595, 4
      %v9598 = vor.u32 %v9597, %v9593
      %v9599 = vrot.slane %v9598, 4
      %v9601 = vshll.u32 %v9430, 16
      %v9603 = vrot.slane %v9601, 5
      %v9604 = vsel %vm2471, %v9599, %v9603
      %v9606 = vshrl.u32 %v9431, 16
      %v9608 = vrot.slane %v9606, 4
      %v9609 = vshll.u32 %v9431, 16
      %v9611 = vrot.slane %v9609, 5
      %v9612 = vor.u32 %v9608, %v9611
      %v9613 = vrot.slane %v9612, 4
      %v9615 = vshll.u32 %v9432, 16
      %v9617 = vrot.slane %v9615, 5
      %v9618 = vsel %vm2471, %v9613, %v9617
      %v9619 = vshrl.u32 %v9432, 16
      %v9621 = vrot.slane %v9619, 4
      %v9622 = vor.u32 %v9621, %v9617
      %v9623 = vrot.slane %v9622, 4
      %v9625 = vshll.u32 %v9433, 16
      %v9627 = vrot.slane %v9625, 5
      %v9628 = vsel %vm2471, %v9623, %v9627
      %v9630 = vshrl.u32 %v9434, 16
      %v9632 = vrot.slane %v9630, 4
      %v9633 = vshll.u32 %v9434, 16
      %v9635 = vrot.slane %v9633, 5
      %v9636 = vor.u32 %v9632, %v9635
      %v9637 = vrot.slane %v9636, 4
      %v9639 = vshll.u32 %v9435, 16
      %v9641 = vrot.slane %v9639, 5
      %v9642 = vsel %vm2471, %v9637, %v9641
      %v9643 = vshrl.u32 %v9435, 16
      %v9645 = vrot.slane %v9643, 4
      %v9646 = vor.u32 %v9645, %v9641
      %v9647 = vrot.slane %v9646, 4
      %v9649 = vshll.u32 %v9436, 16
      %v9651 = vrot.slane %v9649, 5
      %v9652 = vsel %vm2471, %v9647, %v9651
      %v9654 = vshrl.u32 %v9437, 16
      %v9656 = vrot.slane %v9654, 4
      %v9657 = vshll.u32 %v9437, 16
      %v9659 = vrot.slane %v9657, 5
      %v9660 = vor.u32 %v9656, %v9659
      %v9661 = vrot.slane %v9660, 4
      %v9663 = vshll.u32 %v9438, 16
      %v9665 = vrot.slane %v9663, 5
      %v9666 = vsel %vm2471, %v9661, %v9665
      %v9667 = vshrl.u32 %v9438, 16
      %v9669 = vrot.slane %v9667, 4
      %v9670 = vor.u32 %v9669, %v9665
      %v9671 = vrot.slane %v9670, 4
      %v9673 = vshll.u32 %v9439, 16
      %v9675 = vrot.slane %v9673, 5
      %v9676 = vsel %vm2471, %v9671, %v9675
      %v9678 = vshrl.u32 %v9440, 16
      %v9680 = vrot.slane %v9678, 4
      %v9681 = vshll.u32 %v9440, 16
      %v9683 = vrot.slane %v9681, 5
      %v9684 = vor.u32 %v9680, %v9683
      %v9685 = vrot.slane %v9684, 4
      %v9687 = vshll.u32 %v9441, 16
      %v9689 = vrot.slane %v9687, 5
      %v9690 = vsel %vm2471, %v9685, %v9689
      %v9691 = vshrl.u32 %v9441, 16
      %v9693 = vrot.slane %v9691, 4
      %v9694 = vor.u32 %v9693, %v9689
      %v9695 = vrot.slane %v9694, 4
      %v9697 = vshll.u32 %v9442, 16
      %v9699 = vrot.slane %v9697, 5
      %v9700 = vsel %vm2471, %v9695, %v9699
      %v9702 = vshrl.u32 %v9443, 16
      %v9704 = vrot.slane %v9702, 4
      %v9705 = vshll.u32 %v9443, 16
      %v9707 = vrot.slane %v9705, 5
      %v9708 = vor.u32 %v9704, %v9707
      %v9709 = vrot.slane %v9708, 4
      %v9711 = vshll.u32 %v9444, 16
      %v9713 = vrot.slane %v9711, 5
      %v9714 = vsel %vm2471, %v9709, %v9713
      %v9715 = vshrl.u32 %v9444, 16
      %v9717 = vrot.slane %v9715, 4
      %v9718 = vor.u32 %v9717, %v9713
      %v9719 = vrot.slane %v9718, 4
      %v9721 = vshll.u32 %v9445, 16
      %v9723 = vrot.slane %v9721, 5
      %v9724 = vsel %vm2471, %v9719, %v9723
      %v9726 = vshrl.u32 %v9446, 16
      %v9728 = vrot.slane %v9726, 4
      %v9729 = vshll.u32 %v9446, 16
      %v9731 = vrot.slane %v9729, 5
      %v9732 = vor.u32 %v9728, %v9731
      %v9733 = vrot.slane %v9732, 4
      %v9735 = vshll.u32 %v9447, 16
      %v9737 = vrot.slane %v9735, 5
      %v9738 = vsel %vm2471, %v9733, %v9737
      %v9739 = vshrl.u32 %v9447, 16
      %v9741 = vrot.slane %v9739, 4
      %v9742 = vor.u32 %v9741, %v9737
      %v9743 = vrot.slane %v9742, 4
      %v9745 = vshll.u32 %v9448, 16
      %v9747 = vrot.slane %v9745, 5
      %v9748 = vsel %vm2471, %v9743, %v9747
      %v9750 = vshrl.u32 %v9449, 16
      %v9752 = vrot.slane %v9750, 4
      %v9753 = vshll.u32 %v9449, 16
      %v9755 = vrot.slane %v9753, 5
      %v9756 = vor.u32 %v9752, %v9755
      %v9757 = vrot.slane %v9756, 4
      %v9759 = vshll.u32 %v9450, 16
      %v9761 = vrot.slane %v9759, 5
      %v9762 = vsel %vm2471, %v9757, %v9761
      %v9763 = vshrl.u32 %v9450, 16
      %v9765 = vrot.slane %v9763, 4
      %v9766 = vor.u32 %v9765, %v9761
      %v9767 = vrot.slane %v9766, 4
      %v9769 = vshll.u32 %v9451, 16
      %v9771 = vrot.slane %v9769, 5
      %v9772 = vsel %vm2471, %v9767, %v9771
      %v9774 = vshrl.u32 %v9452, 16
      %v9776 = vrot.slane %v9774, 4
      %v9777 = vshll.u32 %v9452, 16
      %v9779 = vrot.slane %v9777, 5
      %v9780 = vor.u32 %v9776, %v9779
      %v9781 = vrot.slane %v9780, 4
      %v9783 = vshll.u32 %v9453, 16
      %v9785 = vrot.slane %v9783, 5
      %v9786 = vsel %vm2471, %v9781, %v9785
      %v9787 = vshrl.u32 %v9453, 16
      %v9789 = vrot.slane %v9787, 4
      %v9790 = vor.u32 %v9789, %v9785
      %v9791 = vrot.slane %v9790, 4
      %v9793 = vshll.u32 %v9454, 16
      %v9795 = vrot.slane %v9793, 5
      %v9796 = vsel %vm2471, %v9791, %v9795
      %v9798 = vshrl.u32 %v9455, 16
      %v9800 = vrot.slane %v9798, 4
      %v9801 = vshll.u32 %v9455, 16
      %v9803 = vrot.slane %v9801, 5
      %v9804 = vor.u32 %v9800, %v9803
      %v9805 = vrot.slane %v9804, 4
      %v9807 = vshll.u32 %v9456, 16
      %v9809 = vrot.slane %v9807, 5
      %v9810 = vsel %vm2471, %v9805, %v9809
      %v9811 = vshrl.u32 %v9456, 16
      %v9813 = vrot.slane %v9811, 4
      %v9814 = vor.u32 %v9813, %v9809
      %v9815 = vrot.slane %v9814, 4
      %v9817 = vshll.u32 %v9457, 16
      %v9819 = vrot.slane %v9817, 5
      %v9820 = vsel %vm2471, %v9815, %v9819
      %v9822 = vshrl.u32 %v9458, 16
      %v9824 = vrot.slane %v9822, 4
      %v9825 = vshll.u32 %v9458, 16
      %v9827 = vrot.slane %v9825, 5
      %v9828 = vor.u32 %v9824, %v9827
      %v9829 = vrot.slane %v9828, 4
      %v9831 = vshll.u32 %v9459, 16
      %v9833 = vrot.slane %v9831, 5
      %v9834 = vsel %vm2471, %v9829, %v9833
      %v9835 = vshrl.u32 %v9459, 16
      %v9837 = vrot.slane %v9835, 4
      %v9838 = vor.u32 %v9837, %v9833
      %v9839 = vrot.slane %v9838, 4
      %v9841 = vshll.u32 %v9460, 16
      %v9843 = vrot.slane %v9841, 5
      %v9844 = vsel %vm2471, %v9839, %v9843
      %s9845 = scalar_lea.vmem %s9, 5
      %v9846 = vld [vmem:[%s9845] sm:$0x1]
      %v9847 = vunpack.c.l.b16 %v9474
      %v9848 = vunpack.c.l.b16 %v9484
      %v9849 = vunpack.c.l.b16 %v9498
      %v9850 = vunpack.c.l.b16 %v9508
      %v9851 = vunpack.c.l.b16 %v9522
      %v9852 = vunpack.c.l.b16 %v9532
      %v9853 = vunpack.c.l.b16 %v9546
      %v9854 = vunpack.c.l.b16 %v9556
      %v9855 = vunpack.c.l.b16 %v9570
      %v9856 = vunpack.c.l.b16 %v9580
      %v9857 = vunpack.c.l.b16 %v9594
      %v9858 = vunpack.c.l.b16 %v9604
      %v9859 = vunpack.c.l.b16 %v9618
      %v9860 = vunpack.c.l.b16 %v9628
      %v9861 = vunpack.c.l.b16 %v9642
      %v9862 = vunpack.c.l.b16 %v9652
      %v9863 = vunpack.c.l.b16 %v9666
      %v9864 = vunpack.c.l.b16 %v9676
      %v9865 = vunpack.c.l.b16 %v9690
      %v9866 = vunpack.c.l.b16 %v9700
      %v9867 = vunpack.c.l.b16 %v9714
      %v9868 = vunpack.c.l.b16 %v9724
      %v9869 = vunpack.c.l.b16 %v9738
      %v9870 = vunpack.c.l.b16 %v9748
      %v9871 = vunpack.c.l.b16 %v9762
      %v9872 = vunpack.c.l.b16 %v9772
      %v9873 = vunpack.c.l.b16 %v9786
      %v9874 = vunpack.c.l.b16 %v9796
      %v9875 = vunpack.c.l.b16 %v9810
      %v9876 = vunpack.c.l.b16 %v9820
      %v9877 = vunpack.c.l.b16 %v9834
      %v9878 = vunpack.c.l.b16 %v9844
      %v9879 = vpack.c.b16 %v9848, %v9847
      %v9880 = vpack.c.b16 %v9850, %v9849
      %v9881 = vpack.c.b16 %v9852, %v9851
      %v9882 = vpack.c.b16 %v9854, %v9853
      %v9883 = vpack.c.b16 %v9856, %v9855
      %v9884 = vpack.c.b16 %v9858, %v9857
      %v9885 = vpack.c.b16 %v9860, %v9859
      %v9886 = vpack.c.b16 %v9862, %v9861
      %v9887 = vpack.c.b16 %v9864, %v9863
      %v9888 = vpack.c.b16 %v9866, %v9865
      %v9889 = vpack.c.b16 %v9868, %v9867
      %v9890 = vpack.c.b16 %v9870, %v9869
      %v9891 = vpack.c.b16 %v9872, %v9871
      %v9892 = vpack.c.b16 %v9874, %v9873
      %v9893 = vpack.c.b16 %v9876, %v9875
      %v9894 = vpack.c.b16 %v9878, %v9877
      %v9896 = vsel %vm2091, %v9879, 0
      %v9899 = vsel %vm2091, %v9880, 0
      %v9902 = vsel %vm2091, %v9881, 0
      %v9905 = vsel %vm2091, %v9882, 0
      %v9908 = vsel %vm2091, %v9883, 0
      %v9911 = vsel %vm2091, %v9884, 0
      %v9914 = vsel %vm2091, %v9885, 0
      %v9917 = vsel %vm2091, %v9886, 0
      %v9920 = vsel %vm2091, %v9887, 0
      %v9923 = vsel %vm2091, %v9888, 0
      %v9926 = vsel %vm2091, %v9889, 0
      %v9929 = vsel %vm2091, %v9890, 0
      %v9932 = vsel %vm2091, %v9891, 0
      %v9935 = vsel %vm2091, %v9892, 0
      %v9938 = vsel %vm2091, %v9893, 0
      %v9941 = vsel %vm2091, %v9894, 0
      %v9944 = vsel %vm2140, %v9846, 0
      %9946 = vmatpush.bf16.msra.mxu0 0
      %9947 = vmatpush.bf16.msra.mxu0 0
      %9948 = vmatpush.bf16.msra.mxu0 0
      %9949 = vmatpush.bf16.msra.mxu0 0
      %9950 = vmatpush.bf16.msra.mxu0 0
      %9951 = vmatpush.bf16.msra.mxu0 0
      %9952 = vmatpush.bf16.msra.mxu0 0
      %9953 = vmatpush.bf16.msra.mxu0 %v9944
      %9954 = vmatmul.bf16.gmra.mxu0 %v9896
      %v9955 = vpop.f32.mrf.mxu0
      %v9956 = vadd.f32 0.0, %v9955
      %v9957 = vpop.f32.mrf.mxu0
      %v9958 = vadd.f32 0.0, %v9957
      %9959 = vmatmul.bf16.gmra.mxu0 %v9899
      %v9960 = vpop.f32.mrf.mxu0
      %v9961 = vadd.f32 0.0, %v9960
      %v9962 = vpop.f32.mrf.mxu0
      %v9963 = vadd.f32 0.0, %v9962
      %9964 = vmatmul.bf16.gmra.mxu0 %v9902
      %v9965 = vpop.f32.mrf.mxu0
      %v9966 = vadd.f32 0.0, %v9965
      %v9967 = vpop.f32.mrf.mxu0
      %v9968 = vadd.f32 0.0, %v9967
      %9969 = vmatmul.bf16.gmra.mxu0 %v9905
      %v9970 = vpop.f32.mrf.mxu0
      %v9971 = vadd.f32 0.0, %v9970
      %v9972 = vpop.f32.mrf.mxu0
      %v9973 = vadd.f32 0.0, %v9972
      %9974 = vmatmul.bf16.gmra.mxu0 %v9908
      %v9975 = vpop.f32.mrf.mxu0
      %v9976 = vadd.f32 0.0, %v9975
      %v9977 = vpop.f32.mrf.mxu0
      %v9978 = vadd.f32 0.0, %v9977
      %9979 = vmatmul.bf16.gmra.mxu0 %v9911
      %v9980 = vpop.f32.mrf.mxu0
      %v9981 = vadd.f32 0.0, %v9980
      %v9982 = vpop.f32.mrf.mxu0
      %v9983 = vadd.f32 0.0, %v9982
      %9984 = vmatmul.bf16.gmra.mxu0 %v9914
      %v9985 = vpop.f32.mrf.mxu0
      %v9986 = vadd.f32 0.0, %v9985
      %v9987 = vpop.f32.mrf.mxu0
      %v9988 = vadd.f32 0.0, %v9987
      %9989 = vmatmul.bf16.gmra.mxu0 %v9917
      %v9990 = vpop.f32.mrf.mxu0
      %v9991 = vadd.f32 0.0, %v9990
      %v9992 = vpop.f32.mrf.mxu0
      %v9993 = vadd.f32 0.0, %v9992
      %9994 = vmatmul.bf16.gmra.mxu0 %v9920
      %v9995 = vpop.f32.mrf.mxu0
      %v9996 = vadd.f32 0.0, %v9995
      %v9997 = vpop.f32.mrf.mxu0
      %v9998 = vadd.f32 0.0, %v9997
      %9999 = vmatmul.bf16.gmra.mxu0 %v9923
      %v10000 = vpop.f32.mrf.mxu0
      %v10001 = vadd.f32 0.0, %v10000
      %v10002 = vpop.f32.mrf.mxu0
      %v10003 = vadd.f32 0.0, %v10002
      %10004 = vmatmul.bf16.gmra.mxu0 %v9926
      %v10005 = vpop.f32.mrf.mxu0
      %v10006 = vadd.f32 0.0, %v10005
      %v10007 = vpop.f32.mrf.mxu0
      %v10008 = vadd.f32 0.0, %v10007
      %10009 = vmatmul.bf16.gmra.mxu0 %v9929
      %v10010 = vpop.f32.mrf.mxu0
      %v10011 = vadd.f32 0.0, %v10010
      %v10012 = vpop.f32.mrf.mxu0
      %v10013 = vadd.f32 0.0, %v10012
      %10014 = vmatmul.bf16.gmra.mxu0 %v9932
      %v10015 = vpop.f32.mrf.mxu0
      %v10016 = vadd.f32 0.0, %v10015
      %v10017 = vpop.f32.mrf.mxu0
      %v10018 = vadd.f32 0.0, %v10017
      %10019 = vmatmul.bf16.gmra.mxu0 %v9935
      %v10020 = vpop.f32.mrf.mxu0
      %v10021 = vadd.f32 0.0, %v10020
      %v10022 = vpop.f32.mrf.mxu0
      %v10023 = vadd.f32 0.0, %v10022
      %10024 = vmatmul.bf16.gmra.mxu0 %v9938
      %v10025 = vpop.f32.mrf.mxu0
      %v10026 = vadd.f32 0.0, %v10025
      %v10027 = vpop.f32.mrf.mxu0
      %v10028 = vadd.f32 0.0, %v10027
      %10029 = vmatmul.bf16.gmra.mxu0 %v9941
      %v10030 = vpop.f32.mrf.mxu0
      %v10031 = vadd.f32 0.0, %v10030
      %v10032 = vpop.f32.mrf.mxu0
      %v10033 = vadd.f32 0.0, %v10032
      %10034 = vdwg.mxu0
      %v10035 = vadd.f32 %v9381, %v9956
      %v10036 = vadd.f32 %v9382, %v9958
      %v10037 = vadd.f32 %v9383, %v9961
      %v10038 = vadd.f32 %v9384, %v9963
      %v10039 = vadd.f32 %v9385, %v9966
      %v10040 = vadd.f32 %v9386, %v9968
      %v10041 = vadd.f32 %v9387, %v9971
      %v10042 = vadd.f32 %v9388, %v9973
      %v10043 = vadd.f32 %v9389, %v9976
      %v10044 = vadd.f32 %v9390, %v9978
      %v10045 = vadd.f32 %v9391, %v9981
      %v10046 = vadd.f32 %v9392, %v9983
      %v10047 = vadd.f32 %v9393, %v9986
      %v10048 = vadd.f32 %v9394, %v9988
      %v10049 = vadd.f32 %v9395, %v9991
      %v10050 = vadd.f32 %v9396, %v9993
      %v10051 = vadd.f32 %v9397, %v9996
      %v10052 = vadd.f32 %v9398, %v9998
      %v10053 = vadd.f32 %v9399, %v10001
      %v10054 = vadd.f32 %v9400, %v10003
      %v10055 = vadd.f32 %v9401, %v10006
      %v10056 = vadd.f32 %v9402, %v10008
      %v10057 = vadd.f32 %v9403, %v10011
      %v10058 = vadd.f32 %v9404, %v10013
      %v10059 = vadd.f32 %v9405, %v10016
      %v10060 = vadd.f32 %v9406, %v10018
      %v10061 = vadd.f32 %v9407, %v10021
      %v10062 = vadd.f32 %v9408, %v10023
      %v10063 = vadd.f32 %v9409, %v10026
      %v10064 = vadd.f32 %v9410, %v10028
      %v10065 = vadd.f32 %v9411, %v10031
      %v10066 = vadd.f32 %v9412, %v10033
      %v10067 = vld [vmem:[%s4608] sm:$0x8]
      %v10068 = vld [vmem:[%s4608 + $0x4] sm:$0xf]
      %v10069 = vld [vmem:[%s4608 + $0x8] sm:$0xf]
      %v10070 = vld [vmem:[%s4608 + $0x10] sm:$0x8]
      %v10071 = vld [vmem:[%s4608 + $0x14] sm:$0xf]
      %v10072 = vld [vmem:[%s4608 + $0x18] sm:$0xf]
      %v10073 = vld [vmem:[%s4608 + $0x20] sm:$0x8]
      %v10074 = vld [vmem:[%s4608 + $0x24] sm:$0xf]
      %v10075 = vld [vmem:[%s4608 + $0x28] sm:$0xf]
      %v10076 = vld [vmem:[%s4608 + $0x30] sm:$0x8]
      %v10077 = vld [vmem:[%s4608 + $0x34] sm:$0xf]
      %v10078 = vld [vmem:[%s4608 + $0x38] sm:$0xf]
      %v10079 = vld [vmem:[%s4608 + $0x40] sm:$0x8]
      %v10080 = vld [vmem:[%s4608 + $0x44] sm:$0xf]
      %v10081 = vld [vmem:[%s4608 + $0x48] sm:$0xf]
      %v10082 = vld [vmem:[%s4608 + $0x50] sm:$0x8]
      %v10083 = vld [vmem:[%s4608 + $0x54] sm:$0xf]
      %v10084 = vld [vmem:[%s4608 + $0x58] sm:$0xf]
      %v10085 = vld [vmem:[%s4608 + $0x60] sm:$0x8]
      %v10086 = vld [vmem:[%s4608 + $0x64] sm:$0xf]
      %v10087 = vld [vmem:[%s4608 + $0x68] sm:$0xf]
      %v10088 = vld [vmem:[%s4608 + $0x70] sm:$0x8]
      %v10089 = vld [vmem:[%s4608 + $0x74] sm:$0xf]
      %v10090 = vld [vmem:[%s4608 + $0x78] sm:$0xf]
      %v10091 = vld [vmem:[%s4608 + $0x80] sm:$0x8]
      %v10092 = vld [vmem:[%s4608 + $0x84] sm:$0xf]
      %v10093 = vld [vmem:[%s4608 + $0x88] sm:$0xf]
      %v10094 = vld [vmem:[%s4608 + $0x90] sm:$0x8]
      %v10095 = vld [vmem:[%s4608 + $0x94] sm:$0xf]
      %v10096 = vld [vmem:[%s4608 + $0x98] sm:$0xf]
      %v10097 = vld [vmem:[%s4608 + $0xa0] sm:$0x8]
      %v10098 = vld [vmem:[%s4608 + $0xa4] sm:$0xf]
      %v10099 = vld [vmem:[%s4608 + $0xa8] sm:$0xf]
      %v10100 = vld [vmem:[%s4608 + $0xb0] sm:$0x8]
      %v10101 = vld [vmem:[%s4608 + $0xb4] sm:$0xf]
      %v10102 = vld [vmem:[%s4608 + $0xb8] sm:$0xf]
      %v10103 = vld [vmem:[%s4608 + $0xc0] sm:$0x8]
      %v10104 = vld [vmem:[%s4608 + $0xc4] sm:$0xf]
      %v10105 = vld [vmem:[%s4608 + $0xc8] sm:$0xf]
      %v10106 = vld [vmem:[%s4608 + $0xd0] sm:$0x8]
      %v10107 = vld [vmem:[%s4608 + $0xd4] sm:$0xf]
      %v10108 = vld [vmem:[%s4608 + $0xd8] sm:$0xf]
      %v10109 = vld [vmem:[%s4608 + $0xe0] sm:$0x8]
      %v10110 = vld [vmem:[%s4608 + $0xe4] sm:$0xf]
      %v10111 = vld [vmem:[%s4608 + $0xe8] sm:$0xf]
      %v10112 = vld [vmem:[%s4608 + $0xf0] sm:$0x8]
      %v10113 = vld [vmem:[%s4608 + $0xf4] sm:$0xf]
      %v10114 = vld [vmem:[%s4608 + $0xf8] sm:$0xf]
      %v10116 = vshrl.u32 %v10067, 16
      %v10118 = vrot.slane %v10116, 7
      %v10119 = vrot.slane %v10118, 4
      %v10121 = vshrl.u32 %v10068, 16
      %v10123 = vrot.slane %v10121, 7
      %v10124 = vshll.u32 %v10068, 16
      %v10126 = vor.u32 %v10123, %v10124
      %v10127 = vsel %vm1655, %v10119, %v10126
      %v10128 = vrot.slane %v10123, 4
      %v10130 = vshrl.u32 %v10069, 16
      %v10132 = vrot.slane %v10130, 7
      %v10133 = vshll.u32 %v10069, 16
      %v10135 = vor.u32 %v10132, %v10133
      %v10136 = vsel %vm1655, %v10128, %v10135
      %v10138 = vshrl.u32 %v10070, 16
      %v10140 = vrot.slane %v10138, 7
      %v10141 = vrot.slane %v10140, 4
      %v10143 = vshrl.u32 %v10071, 16
      %v10145 = vrot.slane %v10143, 7
      %v10146 = vshll.u32 %v10071, 16
      %v10148 = vor.u32 %v10145, %v10146
      %v10149 = vsel %vm1655, %v10141, %v10148
      %v10150 = vrot.slane %v10145, 4
      %v10152 = vshrl.u32 %v10072, 16
      %v10154 = vrot.slane %v10152, 7
      %v10155 = vshll.u32 %v10072, 16
      %v10157 = vor.u32 %v10154, %v10155
      %v10158 = vsel %vm1655, %v10150, %v10157
      %v10160 = vshrl.u32 %v10073, 16
      %v10162 = vrot.slane %v10160, 7
      %v10163 = vrot.slane %v10162, 4
      %v10165 = vshrl.u32 %v10074, 16
      %v10167 = vrot.slane %v10165, 7
      %v10168 = vshll.u32 %v10074, 16
      %v10170 = vor.u32 %v10167, %v10168
      %v10171 = vsel %vm1655, %v10163, %v10170
      %v10172 = vrot.slane %v10167, 4
      %v10174 = vshrl.u32 %v10075, 16
      %v10176 = vrot.slane %v10174, 7
      %v10177 = vshll.u32 %v10075, 16
      %v10179 = vor.u32 %v10176, %v10177
      %v10180 = vsel %vm1655, %v10172, %v10179
      %v10182 = vshrl.u32 %v10076, 16
      %v10184 = vrot.slane %v10182, 7
      %v10185 = vrot.slane %v10184, 4
      %v10187 = vshrl.u32 %v10077, 16
      %v10189 = vrot.slane %v10187, 7
      %v10190 = vshll.u32 %v10077, 16
      %v10192 = vor.u32 %v10189, %v10190
      %v10193 = vsel %vm1655, %v10185, %v10192
      %v10194 = vrot.slane %v10189, 4
      %v10196 = vshrl.u32 %v10078, 16
      %v10198 = vrot.slane %v10196, 7
      %v10199 = vshll.u32 %v10078, 16
      %v10201 = vor.u32 %v10198, %v10199
      %v10202 = vsel %vm1655, %v10194, %v10201
      %v10204 = vshrl.u32 %v10079, 16
      %v10206 = vrot.slane %v10204, 7
      %v10207 = vrot.slane %v10206, 4
      %v10209 = vshrl.u32 %v10080, 16
      %v10211 = vrot.slane %v10209, 7
      %v10212 = vshll.u32 %v10080, 16
      %v10214 = vor.u32 %v10211, %v10212
      %v10215 = vsel %vm1655, %v10207, %v10214
      %v10216 = vrot.slane %v10211, 4
      %v10218 = vshrl.u32 %v10081, 16
      %v10220 = vrot.slane %v10218, 7
      %v10221 = vshll.u32 %v10081, 16
      %v10223 = vor.u32 %v10220, %v10221
      %v10224 = vsel %vm1655, %v10216, %v10223
      %v10226 = vshrl.u32 %v10082, 16
      %v10228 = vrot.slane %v10226, 7
      %v10229 = vrot.slane %v10228, 4
      %v10231 = vshrl.u32 %v10083, 16
      %v10233 = vrot.slane %v10231, 7
      %v10234 = vshll.u32 %v10083, 16
      %v10236 = vor.u32 %v10233, %v10234
      %v10237 = vsel %vm1655, %v10229, %v10236
      %v10238 = vrot.slane %v10233, 4
      %v10240 = vshrl.u32 %v10084, 16
      %v10242 = vrot.slane %v10240, 7
      %v10243 = vshll.u32 %v10084, 16
      %v10245 = vor.u32 %v10242, %v10243
      %v10246 = vsel %vm1655, %v10238, %v10245
      %v10248 = vshrl.u32 %v10085, 16
      %v10250 = vrot.slane %v10248, 7
      %v10251 = vrot.slane %v10250, 4
      %v10253 = vshrl.u32 %v10086, 16
      %v10255 = vrot.slane %v10253, 7
      %v10256 = vshll.u32 %v10086, 16
      %v10258 = vor.u32 %v10255, %v10256
      %v10259 = vsel %vm1655, %v10251, %v10258
      %v10260 = vrot.slane %v10255, 4
      %v10262 = vshrl.u32 %v10087, 16
      %v10264 = vrot.slane %v10262, 7
      %v10265 = vshll.u32 %v10087, 16
      %v10267 = vor.u32 %v10264, %v10265
      %v10268 = vsel %vm1655, %v10260, %v10267
      %v10270 = vshrl.u32 %v10088, 16
      %v10272 = vrot.slane %v10270, 7
      %v10273 = vrot.slane %v10272, 4
      %v10275 = vshrl.u32 %v10089, 16
      %v10277 = vrot.slane %v10275, 7
      %v10278 = vshll.u32 %v10089, 16
      %v10280 = vor.u32 %v10277, %v10278
      %v10281 = vsel %vm1655, %v10273, %v10280
      %v10282 = vrot.slane %v10277, 4
      %v10284 = vshrl.u32 %v10090, 16
      %v10286 = vrot.slane %v10284, 7
      %v10287 = vshll.u32 %v10090, 16
      %v10289 = vor.u32 %v10286, %v10287
      %v10290 = vsel %vm1655, %v10282, %v10289
      %v10292 = vshrl.u32 %v10091, 16
      %v10294 = vrot.slane %v10292, 7
      %v10295 = vrot.slane %v10294, 4
      %v10297 = vshrl.u32 %v10092, 16
      %v10299 = vrot.slane %v10297, 7
      %v10300 = vshll.u32 %v10092, 16
      %v10302 = vor.u32 %v10299, %v10300
      %v10303 = vsel %vm1655, %v10295, %v10302
      %v10304 = vrot.slane %v10299, 4
      %v10306 = vshrl.u32 %v10093, 16
      %v10308 = vrot.slane %v10306, 7
      %v10309 = vshll.u32 %v10093, 16
      %v10311 = vor.u32 %v10308, %v10309
      %v10312 = vsel %vm1655, %v10304, %v10311
      %v10314 = vshrl.u32 %v10094, 16
      %v10316 = vrot.slane %v10314, 7
      %v10317 = vrot.slane %v10316, 4
      %v10319 = vshrl.u32 %v10095, 16
      %v10321 = vrot.slane %v10319, 7
      %v10322 = vshll.u32 %v10095, 16
      %v10324 = vor.u32 %v10321, %v10322
      %v10325 = vsel %vm1655, %v10317, %v10324
      %v10326 = vrot.slane %v10321, 4
      %v10328 = vshrl.u32 %v10096, 16
      %v10330 = vrot.slane %v10328, 7
      %v10331 = vshll.u32 %v10096, 16
      %v10333 = vor.u32 %v10330, %v10331
      %v10334 = vsel %vm1655, %v10326, %v10333
      %v10336 = vshrl.u32 %v10097, 16
      %v10338 = vrot.slane %v10336, 7
      %v10339 = vrot.slane %v10338, 4
      %v10341 = vshrl.u32 %v10098, 16
      %v10343 = vrot.slane %v10341, 7
      %v10344 = vshll.u32 %v10098, 16
      %v10346 = vor.u32 %v10343, %v10344
      %v10347 = vsel %vm1655, %v10339, %v10346
      %v10348 = vrot.slane %v10343, 4
      %v10350 = vshrl.u32 %v10099, 16
      %v10352 = vrot.slane %v10350, 7
      %v10353 = vshll.u32 %v10099, 16
      %v10355 = vor.u32 %v10352, %v10353
      %v10356 = vsel %vm1655, %v10348, %v10355
      %v10358 = vshrl.u32 %v10100, 16
      %v10360 = vrot.slane %v10358, 7
      %v10361 = vrot.slane %v10360, 4
      %v10363 = vshrl.u32 %v10101, 16
      %v10365 = vrot.slane %v10363, 7
      %v10366 = vshll.u32 %v10101, 16
      %v10368 = vor.u32 %v10365, %v10366
      %v10369 = vsel %vm1655, %v10361, %v10368
      %v10370 = vrot.slane %v10365, 4
      %v10372 = vshrl.u32 %v10102, 16
      %v10374 = vrot.slane %v10372, 7
      %v10375 = vshll.u32 %v10102, 16
      %v10377 = vor.u32 %v10374, %v10375
      %v10378 = vsel %vm1655, %v10370, %v10377
      %v10380 = vshrl.u32 %v10103, 16
      %v10382 = vrot.slane %v10380, 7
      %v10383 = vrot.slane %v10382, 4
      %v10385 = vshrl.u32 %v10104, 16
      %v10387 = vrot.slane %v10385, 7
      %v10388 = vshll.u32 %v10104, 16
      %v10390 = vor.u32 %v10387, %v10388
      %v10391 = vsel %vm1655, %v10383, %v10390
      %v10392 = vrot.slane %v10387, 4
      %v10394 = vshrl.u32 %v10105, 16
      %v10396 = vrot.slane %v10394, 7
      %v10397 = vshll.u32 %v10105, 16
      %v10399 = vor.u32 %v10396, %v10397
      %v10400 = vsel %vm1655, %v10392, %v10399
      %v10402 = vshrl.u32 %v10106, 16
      %v10404 = vrot.slane %v10402, 7
      %v10405 = vrot.slane %v10404, 4
      %v10407 = vshrl.u32 %v10107, 16
      %v10409 = vrot.slane %v10407, 7
      %v10410 = vshll.u32 %v10107, 16
      %v10412 = vor.u32 %v10409, %v10410
      %v10413 = vsel %vm1655, %v10405, %v10412
      %v10414 = vrot.slane %v10409, 4
      %v10416 = vshrl.u32 %v10108, 16
      %v10418 = vrot.slane %v10416, 7
      %v10419 = vshll.u32 %v10108, 16
      %v10421 = vor.u32 %v10418, %v10419
      %v10422 = vsel %vm1655, %v10414, %v10421
      %v10424 = vshrl.u32 %v10109, 16
      %v10426 = vrot.slane %v10424, 7
      %v10427 = vrot.slane %v10426, 4
      %v10429 = vshrl.u32 %v10110, 16
      %v10431 = vrot.slane %v10429, 7
      %v10432 = vshll.u32 %v10110, 16
      %v10434 = vor.u32 %v10431, %v10432
      %v10435 = vsel %vm1655, %v10427, %v10434
      %v10436 = vrot.slane %v10431, 4
      %v10438 = vshrl.u32 %v10111, 16
      %v10440 = vrot.slane %v10438, 7
      %v10441 = vshll.u32 %v10111, 16
      %v10443 = vor.u32 %v10440, %v10441
      %v10444 = vsel %vm1655, %v10436, %v10443
      %v10446 = vshrl.u32 %v10112, 16
      %v10448 = vrot.slane %v10446, 7
      %v10449 = vrot.slane %v10448, 4
      %v10451 = vshrl.u32 %v10113, 16
      %v10453 = vrot.slane %v10451, 7
      %v10454 = vshll.u32 %v10113, 16
      %v10456 = vor.u32 %v10453, %v10454
      %v10457 = vsel %vm1655, %v10449, %v10456
      %v10458 = vrot.slane %v10453, 4
      %v10460 = vshrl.u32 %v10114, 16
      %v10462 = vrot.slane %v10460, 7
      %v10463 = vshll.u32 %v10114, 16
      %v10465 = vor.u32 %v10462, %v10463
      %v10466 = vsel %vm1655, %v10458, %v10465
      %s10467 = scalar_lea.vmem %s9, 6
      %v10468 = vld [vmem:[%s10467] sm:$0x1]
      %v10469 = vunpack.c.l.b16 %v10127
      %v10470 = vunpack.c.l.b16 %v10136
      %v10471 = vunpack.c.l.b16 %v10149
      %v10472 = vunpack.c.l.b16 %v10158
      %v10473 = vunpack.c.l.b16 %v10171
      %v10474 = vunpack.c.l.b16 %v10180
      %v10475 = vunpack.c.l.b16 %v10193
      %v10476 = vunpack.c.l.b16 %v10202
      %v10477 = vunpack.c.l.b16 %v10215
      %v10478 = vunpack.c.l.b16 %v10224
      %v10479 = vunpack.c.l.b16 %v10237
      %v10480 = vunpack.c.l.b16 %v10246
      %v10481 = vunpack.c.l.b16 %v10259
      %v10482 = vunpack.c.l.b16 %v10268
      %v10483 = vunpack.c.l.b16 %v10281
      %v10484 = vunpack.c.l.b16 %v10290
      %v10485 = vunpack.c.l.b16 %v10303
      %v10486 = vunpack.c.l.b16 %v10312
      %v10487 = vunpack.c.l.b16 %v10325
      %v10488 = vunpack.c.l.b16 %v10334
      %v10489 = vunpack.c.l.b16 %v10347
      %v10490 = vunpack.c.l.b16 %v10356
      %v10491 = vunpack.c.l.b16 %v10369
      %v10492 = vunpack.c.l.b16 %v10378
      %v10493 = vunpack.c.l.b16 %v10391
      %v10494 = vunpack.c.l.b16 %v10400
      %v10495 = vunpack.c.l.b16 %v10413
      %v10496 = vunpack.c.l.b16 %v10422
      %v10497 = vunpack.c.l.b16 %v10435
      %v10498 = vunpack.c.l.b16 %v10444
      %v10499 = vunpack.c.l.b16 %v10457
      %v10500 = vunpack.c.l.b16 %v10466
      %v10501 = vpack.c.b16 %v10470, %v10469
      %v10502 = vpack.c.b16 %v10472, %v10471
      %v10503 = vpack.c.b16 %v10474, %v10473
      %v10504 = vpack.c.b16 %v10476, %v10475
      %v10505 = vpack.c.b16 %v10478, %v10477
      %v10506 = vpack.c.b16 %v10480, %v10479
      %v10507 = vpack.c.b16 %v10482, %v10481
      %v10508 = vpack.c.b16 %v10484, %v10483
      %v10509 = vpack.c.b16 %v10486, %v10485
      %v10510 = vpack.c.b16 %v10488, %v10487
      %v10511 = vpack.c.b16 %v10490, %v10489
      %v10512 = vpack.c.b16 %v10492, %v10491
      %v10513 = vpack.c.b16 %v10494, %v10493
      %v10514 = vpack.c.b16 %v10496, %v10495
      %v10515 = vpack.c.b16 %v10498, %v10497
      %v10516 = vpack.c.b16 %v10500, %v10499
      %v10518 = vsel %vm2091, %v10501, 0
      %v10521 = vsel %vm2091, %v10502, 0
      %v10524 = vsel %vm2091, %v10503, 0
      %v10527 = vsel %vm2091, %v10504, 0
      %v10530 = vsel %vm2091, %v10505, 0
      %v10533 = vsel %vm2091, %v10506, 0
      %v10536 = vsel %vm2091, %v10507, 0
      %v10539 = vsel %vm2091, %v10508, 0
      %v10542 = vsel %vm2091, %v10509, 0
      %v10545 = vsel %vm2091, %v10510, 0
      %v10548 = vsel %vm2091, %v10511, 0
      %v10551 = vsel %vm2091, %v10512, 0
      %v10554 = vsel %vm2091, %v10513, 0
      %v10557 = vsel %vm2091, %v10514, 0
      %v10560 = vsel %vm2091, %v10515, 0
      %v10563 = vsel %vm2091, %v10516, 0
      %v10566 = vsel %vm2140, %v10468, 0
      %10568 = vmatpush.bf16.msra.mxu0 0
      %10569 = vmatpush.bf16.msra.mxu0 0
      %10570 = vmatpush.bf16.msra.mxu0 0
      %10571 = vmatpush.bf16.msra.mxu0 0
      %10572 = vmatpush.bf16.msra.mxu0 0
      %10573 = vmatpush.bf16.msra.mxu0 0
      %10574 = vmatpush.bf16.msra.mxu0 0
      %10575 = vmatpush.bf16.msra.mxu0 %v10566
      %10576 = vmatmul.bf16.gmra.mxu0 %v10518
      %v10577 = vpop.f32.mrf.mxu0
      %v10578 = vadd.f32 0.0, %v10577
      %v10579 = vpop.f32.mrf.mxu0
      %v10580 = vadd.f32 0.0, %v10579
      %10581 = vmatmul.bf16.gmra.mxu0 %v10521
      %v10582 = vpop.f32.mrf.mxu0
      %v10583 = vadd.f32 0.0, %v10582
      %v10584 = vpop.f32.mrf.mxu0
      %v10585 = vadd.f32 0.0, %v10584
      %10586 = vmatmul.bf16.gmra.mxu0 %v10524
      %v10587 = vpop.f32.mrf.mxu0
      %v10588 = vadd.f32 0.0, %v10587
      %v10589 = vpop.f32.mrf.mxu0
      %v10590 = vadd.f32 0.0, %v10589
      %10591 = vmatmul.bf16.gmra.mxu0 %v10527
      %v10592 = vpop.f32.mrf.mxu0
      %v10593 = vadd.f32 0.0, %v10592
      %v10594 = vpop.f32.mrf.mxu0
      %v10595 = vadd.f32 0.0, %v10594
      %10596 = vmatmul.bf16.gmra.mxu0 %v10530
      %v10597 = vpop.f32.mrf.mxu0
      %v10598 = vadd.f32 0.0, %v10597
      %v10599 = vpop.f32.mrf.mxu0
      %v10600 = vadd.f32 0.0, %v10599
      %10601 = vmatmul.bf16.gmra.mxu0 %v10533
      %v10602 = vpop.f32.mrf.mxu0
      %v10603 = vadd.f32 0.0, %v10602
      %v10604 = vpop.f32.mrf.mxu0
      %v10605 = vadd.f32 0.0, %v10604
      %10606 = vmatmul.bf16.gmra.mxu0 %v10536
      %v10607 = vpop.f32.mrf.mxu0
      %v10608 = vadd.f32 0.0, %v10607
      %v10609 = vpop.f32.mrf.mxu0
      %v10610 = vadd.f32 0.0, %v10609
      %10611 = vmatmul.bf16.gmra.mxu0 %v10539
      %v10612 = vpop.f32.mrf.mxu0
      %v10613 = vadd.f32 0.0, %v10612
      %v10614 = vpop.f32.mrf.mxu0
      %v10615 = vadd.f32 0.0, %v10614
      %10616 = vmatmul.bf16.gmra.mxu0 %v10542
      %v10617 = vpop.f32.mrf.mxu0
      %v10618 = vadd.f32 0.0, %v10617
      %v10619 = vpop.f32.mrf.mxu0
      %v10620 = vadd.f32 0.0, %v10619
      %10621 = vmatmul.bf16.gmra.mxu0 %v10545
      %v10622 = vpop.f32.mrf.mxu0
      %v10623 = vadd.f32 0.0, %v10622
      %v10624 = vpop.f32.mrf.mxu0
      %v10625 = vadd.f32 0.0, %v10624
      %10626 = vmatmul.bf16.gmra.mxu0 %v10548
      %v10627 = vpop.f32.mrf.mxu0
      %v10628 = vadd.f32 0.0, %v10627
      %v10629 = vpop.f32.mrf.mxu0
      %v10630 = vadd.f32 0.0, %v10629
      %10631 = vmatmul.bf16.gmra.mxu0 %v10551
      %v10632 = vpop.f32.mrf.mxu0
      %v10633 = vadd.f32 0.0, %v10632
      %v10634 = vpop.f32.mrf.mxu0
      %v10635 = vadd.f32 0.0, %v10634
      %10636 = vmatmul.bf16.gmra.mxu0 %v10554
      %v10637 = vpop.f32.mrf.mxu0
      %v10638 = vadd.f32 0.0, %v10637
      %v10639 = vpop.f32.mrf.mxu0
      %v10640 = vadd.f32 0.0, %v10639
      %10641 = vmatmul.bf16.gmra.mxu0 %v10557
      %v10642 = vpop.f32.mrf.mxu0
      %v10643 = vadd.f32 0.0, %v10642
      %v10644 = vpop.f32.mrf.mxu0
      %v10645 = vadd.f32 0.0, %v10644
      %10646 = vmatmul.bf16.gmra.mxu0 %v10560
      %v10647 = vpop.f32.mrf.mxu0
      %v10648 = vadd.f32 0.0, %v10647
      %v10649 = vpop.f32.mrf.mxu0
      %v10650 = vadd.f32 0.0, %v10649
      %10651 = vmatmul.bf16.gmra.mxu0 %v10563
      %v10652 = vpop.f32.mrf.mxu0
      %v10653 = vadd.f32 0.0, %v10652
      %v10654 = vpop.f32.mrf.mxu0
      %v10655 = vadd.f32 0.0, %v10654
      %10656 = vdwg.mxu0
      %v10657 = vadd.f32 %v10035, %v10578
      %v10658 = vadd.f32 %v10036, %v10580
      %v10659 = vadd.f32 %v10037, %v10583
      %v10660 = vadd.f32 %v10038, %v10585
      %v10661 = vadd.f32 %v10039, %v10588
      %v10662 = vadd.f32 %v10040, %v10590
      %v10663 = vadd.f32 %v10041, %v10593
      %v10664 = vadd.f32 %v10042, %v10595
      %v10665 = vadd.f32 %v10043, %v10598
      %v10666 = vadd.f32 %v10044, %v10600
      %v10667 = vadd.f32 %v10045, %v10603
      %v10668 = vadd.f32 %v10046, %v10605
      %v10669 = vadd.f32 %v10047, %v10608
      %v10670 = vadd.f32 %v10048, %v10610
      %v10671 = vadd.f32 %v10049, %v10613
      %v10672 = vadd.f32 %v10050, %v10615
      %v10673 = vadd.f32 %v10051, %v10618
      %v10674 = vadd.f32 %v10052, %v10620
      %v10675 = vadd.f32 %v10053, %v10623
      %v10676 = vadd.f32 %v10054, %v10625
      %v10677 = vadd.f32 %v10055, %v10628
      %v10678 = vadd.f32 %v10056, %v10630
      %v10679 = vadd.f32 %v10057, %v10633
      %v10680 = vadd.f32 %v10058, %v10635
      %v10681 = vadd.f32 %v10059, %v10638
      %v10682 = vadd.f32 %v10060, %v10640
      %v10683 = vadd.f32 %v10061, %v10643
      %v10684 = vadd.f32 %v10062, %v10645
      %v10685 = vadd.f32 %v10063, %v10648
      %v10686 = vadd.f32 %v10064, %v10650
      %v10687 = vadd.f32 %v10065, %v10653
      %v10688 = vadd.f32 %v10066, %v10655
      %s10689 = scalar_lea.vmem %s9, 7
      %v10690 = vld [vmem:[%s10689] sm:$0x1]
      %v10723 = vunpack.c.l.b16 %v10068
      %v10724 = vunpack.c.l.b16 %v10069
      %v10725 = vunpack.c.l.b16 %v10071
      %v10726 = vunpack.c.l.b16 %v10072
      %v10727 = vunpack.c.l.b16 %v10074
      %v10728 = vunpack.c.l.b16 %v10075
      %v10729 = vunpack.c.l.b16 %v10077
      %v10730 = vunpack.c.l.b16 %v10078
      %v10731 = vunpack.c.l.b16 %v10080
      %v10732 = vunpack.c.l.b16 %v10081
      %v10733 = vunpack.c.l.b16 %v10083
      %v10734 = vunpack.c.l.b16 %v10084
      %v10735 = vunpack.c.l.b16 %v10086
      %v10736 = vunpack.c.l.b16 %v10087
      %v10737 = vunpack.c.l.b16 %v10089
      %v10738 = vunpack.c.l.b16 %v10090
      %v10739 = vunpack.c.l.b16 %v10092
      %v10740 = vunpack.c.l.b16 %v10093
      %v10741 = vunpack.c.l.b16 %v10095
      %v10742 = vunpack.c.l.b16 %v10096
      %v10743 = vunpack.c.l.b16 %v10098
      %v10744 = vunpack.c.l.b16 %v10099
      %v10745 = vunpack.c.l.b16 %v10101
      %v10746 = vunpack.c.l.b16 %v10102
      %v10747 = vunpack.c.l.b16 %v10104
      %v10748 = vunpack.c.l.b16 %v10105
      %v10749 = vunpack.c.l.b16 %v10107
      %v10750 = vunpack.c.l.b16 %v10108
      %v10751 = vunpack.c.l.b16 %v10110
      %v10752 = vunpack.c.l.b16 %v10111
      %v10753 = vunpack.c.l.b16 %v10113
      %v10754 = vunpack.c.l.b16 %v10114
      %v10755 = vpack.c.b16 %v10724, %v10723
      %v10756 = vpack.c.b16 %v10726, %v10725
      %v10757 = vpack.c.b16 %v10728, %v10727
      %v10758 = vpack.c.b16 %v10730, %v10729
      %v10759 = vpack.c.b16 %v10732, %v10731
      %v10760 = vpack.c.b16 %v10734, %v10733
      %v10761 = vpack.c.b16 %v10736, %v10735
      %v10762 = vpack.c.b16 %v10738, %v10737
      %v10763 = vpack.c.b16 %v10740, %v10739
      %v10764 = vpack.c.b16 %v10742, %v10741
      %v10765 = vpack.c.b16 %v10744, %v10743
      %v10766 = vpack.c.b16 %v10746, %v10745
      %v10767 = vpack.c.b16 %v10748, %v10747
      %v10768 = vpack.c.b16 %v10750, %v10749
      %v10769 = vpack.c.b16 %v10752, %v10751
      %v10770 = vpack.c.b16 %v10754, %v10753
      %v10772 = vsel %vm2091, %v10755, 0
      %v10775 = vsel %vm2091, %v10756, 0
      %v10778 = vsel %vm2091, %v10757, 0
      %v10781 = vsel %vm2091, %v10758, 0
      %v10784 = vsel %vm2091, %v10759, 0
      %v10787 = vsel %vm2091, %v10760, 0
      %v10790 = vsel %vm2091, %v10761, 0
      %v10793 = vsel %vm2091, %v10762, 0
      %v10796 = vsel %vm2091, %v10763, 0
      %v10799 = vsel %vm2091, %v10764, 0
      %v10802 = vsel %vm2091, %v10765, 0
      %v10805 = vsel %vm2091, %v10766, 0
      %v10808 = vsel %vm2091, %v10767, 0
      %v10811 = vsel %vm2091, %v10768, 0
      %v10814 = vsel %vm2091, %v10769, 0
      %v10817 = vsel %vm2091, %v10770, 0
      %v10820 = vsel %vm2140, %v10690, 0
      %10822 = vmatpush.bf16.msra.mxu0 0
      %10823 = vmatpush.bf16.msra.mxu0 0
      %10824 = vmatpush.bf16.msra.mxu0 0
      %10825 = vmatpush.bf16.msra.mxu0 0
      %10826 = vmatpush.bf16.msra.mxu0 0
      %10827 = vmatpush.bf16.msra.mxu0 0
      %10828 = vmatpush.bf16.msra.mxu0 0
      %10829 = vmatpush.bf16.msra.mxu0 %v10820
      %10830 = vmatmul.bf16.gmra.mxu0 %v10772
      %v10831 = vpop.f32.mrf.mxu0
      %v10832 = vadd.f32 0.0, %v10831
      %v10833 = vpop.f32.mrf.mxu0
      %v10834 = vadd.f32 0.0, %v10833
      %10835 = vmatmul.bf16.gmra.mxu0 %v10775
      %v10836 = vpop.f32.mrf.mxu0
      %v10837 = vadd.f32 0.0, %v10836
      %v10838 = vpop.f32.mrf.mxu0
      %v10839 = vadd.f32 0.0, %v10838
      %10840 = vmatmul.bf16.gmra.mxu0 %v10778
      %v10841 = vpop.f32.mrf.mxu0
      %v10842 = vadd.f32 0.0, %v10841
      %v10843 = vpop.f32.mrf.mxu0
      %v10844 = vadd.f32 0.0, %v10843
      %10845 = vmatmul.bf16.gmra.mxu0 %v10781
      %v10846 = vpop.f32.mrf.mxu0
      %v10847 = vadd.f32 0.0, %v10846
      %v10848 = vpop.f32.mrf.mxu0
      %v10849 = vadd.f32 0.0, %v10848
      %10850 = vmatmul.bf16.gmra.mxu0 %v10784
      %v10851 = vpop.f32.mrf.mxu0
      %v10852 = vadd.f32 0.0, %v10851
      %v10853 = vpop.f32.mrf.mxu0
      %v10854 = vadd.f32 0.0, %v10853
      %10855 = vmatmul.bf16.gmra.mxu0 %v10787
      %v10856 = vpop.f32.mrf.mxu0
      %v10857 = vadd.f32 0.0, %v10856
      %v10858 = vpop.f32.mrf.mxu0
      %v10859 = vadd.f32 0.0, %v10858
      %10860 = vmatmul.bf16.gmra.mxu0 %v10790
      %v10861 = vpop.f32.mrf.mxu0
      %v10862 = vadd.f32 0.0, %v10861
      %v10863 = vpop.f32.mrf.mxu0
      %v10864 = vadd.f32 0.0, %v10863
      %10865 = vmatmul.bf16.gmra.mxu0 %v10793
      %v10866 = vpop.f32.mrf.mxu0
      %v10867 = vadd.f32 0.0, %v10866
      %v10868 = vpop.f32.mrf.mxu0
      %v10869 = vadd.f32 0.0, %v10868
      %10870 = vmatmul.bf16.gmra.mxu0 %v10796
      %v10871 = vpop.f32.mrf.mxu0
      %v10872 = vadd.f32 0.0, %v10871
      %v10873 = vpop.f32.mrf.mxu0
      %v10874 = vadd.f32 0.0, %v10873
      %10875 = vmatmul.bf16.gmra.mxu0 %v10799
      %v10876 = vpop.f32.mrf.mxu0
      %v10877 = vadd.f32 0.0, %v10876
      %v10878 = vpop.f32.mrf.mxu0
      %v10879 = vadd.f32 0.0, %v10878
      %10880 = vmatmul.bf16.gmra.mxu0 %v10802
      %v10881 = vpop.f32.mrf.mxu0
      %v10882 = vadd.f32 0.0, %v10881
      %v10883 = vpop.f32.mrf.mxu0
      %v10884 = vadd.f32 0.0, %v10883
      %10885 = vmatmul.bf16.gmra.mxu0 %v10805
      %v10886 = vpop.f32.mrf.mxu0
      %v10887 = vadd.f32 0.0, %v10886
      %v10888 = vpop.f32.mrf.mxu0
      %v10889 = vadd.f32 0.0, %v10888
      %10890 = vmatmul.bf16.gmra.mxu0 %v10808
      %v10891 = vpop.f32.mrf.mxu0
      %v10892 = vadd.f32 0.0, %v10891
      %v10893 = vpop.f32.mrf.mxu0
      %v10894 = vadd.f32 0.0, %v10893
      %10895 = vmatmul.bf16.gmra.mxu0 %v10811
      %v10896 = vpop.f32.mrf.mxu0
      %v10897 = vadd.f32 0.0, %v10896
      %v10898 = vpop.f32.mrf.mxu0
      %v10899 = vadd.f32 0.0, %v10898
      %10900 = vmatmul.bf16.gmra.mxu0 %v10814
      %v10901 = vpop.f32.mrf.mxu0
      %v10902 = vadd.f32 0.0, %v10901
      %v10903 = vpop.f32.mrf.mxu0
      %v10904 = vadd.f32 0.0, %v10903
      %10905 = vmatmul.bf16.gmra.mxu0 %v10817
      %v10906 = vpop.f32.mrf.mxu0
      %v10907 = vadd.f32 0.0, %v10906
      %v10908 = vpop.f32.mrf.mxu0
      %v10909 = vadd.f32 0.0, %v10908
      %10910 = vdwg.mxu0
      %v10911 = vadd.f32 %v10657, %v10832
      %v10912 = vadd.f32 %v10658, %v10834
      %v10913 = vadd.f32 %v10659, %v10837
      %v10914 = vadd.f32 %v10660, %v10839
      %v10915 = vadd.f32 %v10661, %v10842
      %v10916 = vadd.f32 %v10662, %v10844
      %v10917 = vadd.f32 %v10663, %v10847
      %v10918 = vadd.f32 %v10664, %v10849
      %v10919 = vadd.f32 %v10665, %v10852
      %v10920 = vadd.f32 %v10666, %v10854
      %v10921 = vadd.f32 %v10667, %v10857
      %v10922 = vadd.f32 %v10668, %v10859
      %v10923 = vadd.f32 %v10669, %v10862
      %v10924 = vadd.f32 %v10670, %v10864
      %v10925 = vadd.f32 %v10671, %v10867
      %v10926 = vadd.f32 %v10672, %v10869
      %v10927 = vadd.f32 %v10673, %v10872
      %v10928 = vadd.f32 %v10674, %v10874
      %v10929 = vadd.f32 %v10675, %v10877
      %v10930 = vadd.f32 %v10676, %v10879
      %v10931 = vadd.f32 %v10677, %v10882
      %v10932 = vadd.f32 %v10678, %v10884
      %v10933 = vadd.f32 %v10679, %v10887
      %v10934 = vadd.f32 %v10680, %v10889
      %v10935 = vadd.f32 %v10681, %v10892
      %v10936 = vadd.f32 %v10682, %v10894
      %v10937 = vadd.f32 %v10683, %v10897
      %v10938 = vadd.f32 %v10684, %v10899
      %v10939 = vadd.f32 %v10685, %v10902
      %v10940 = vadd.f32 %v10686, %v10904
      %v10941 = vadd.f32 %v10687, %v10907
      %v10942 = vadd.f32 %v10688, %v10909
      %v10943 = vld [vmem:[%s4608 + $0x4] sm:$0xf]
      %v10944 = vld [vmem:[%s4608 + $0x8] sm:$0xf]
      %v10945 = vld [vmem:[%s4608 + $0xc] sm:$0x1]
      %v10946 = vld [vmem:[%s4608 + $0x14] sm:$0xf]
      %v10947 = vld [vmem:[%s4608 + $0x18] sm:$0xf]
      %v10948 = vld [vmem:[%s4608 + $0x1c] sm:$0x1]
      %v10949 = vld [vmem:[%s4608 + $0x24] sm:$0xf]
      %v10950 = vld [vmem:[%s4608 + $0x28] sm:$0xf]
      %v10951 = vld [vmem:[%s4608 + $0x2c] sm:$0x1]
      %v10952 = vld [vmem:[%s4608 + $0x34] sm:$0xf]
      %v10953 = vld [vmem:[%s4608 + $0x38] sm:$0xf]
      %v10954 = vld [vmem:[%s4608 + $0x3c] sm:$0x1]
      %v10955 = vld [vmem:[%s4608 + $0x44] sm:$0xf]
      %v10956 = vld [vmem:[%s4608 + $0x48] sm:$0xf]
      %v10957 = vld [vmem:[%s4608 + $0x4c] sm:$0x1]
      %v10958 = vld [vmem:[%s4608 + $0x54] sm:$0xf]
      %v10959 = vld [vmem:[%s4608 + $0x58] sm:$0xf]
      %v10960 = vld [vmem:[%s4608 + $0x5c] sm:$0x1]
      %v10961 = vld [vmem:[%s4608 + $0x64] sm:$0xf]
      %v10962 = vld [vmem:[%s4608 + $0x68] sm:$0xf]
      %v10963 = vld [vmem:[%s4608 + $0x6c] sm:$0x1]
      %v10964 = vld [vmem:[%s4608 + $0x74] sm:$0xf]
      %v10965 = vld [vmem:[%s4608 + $0x78] sm:$0xf]
      %v10966 = vld [vmem:[%s4608 + $0x7c] sm:$0x1]
      %v10967 = vld [vmem:[%s4608 + $0x84] sm:$0xf]
      %v10968 = vld [vmem:[%s4608 + $0x88] sm:$0xf]
      %v10969 = vld [vmem:[%s4608 + $0x8c] sm:$0x1]
      %v10970 = vld [vmem:[%s4608 + $0x94] sm:$0xf]
      %v10971 = vld [vmem:[%s4608 + $0x98] sm:$0xf]
      %v10972 = vld [vmem:[%s4608 + $0x9c] sm:$0x1]
      %v10973 = vld [vmem:[%s4608 + $0xa4] sm:$0xf]
      %v10974 = vld [vmem:[%s4608 + $0xa8] sm:$0xf]
      %v10975 = vld [vmem:[%s4608 + $0xac] sm:$0x1]
      %v10976 = vld [vmem:[%s4608 + $0xb4] sm:$0xf]
      %v10977 = vld [vmem:[%s4608 + $0xb8] sm:$0xf]
      %v10978 = vld [vmem:[%s4608 + $0xbc] sm:$0x1]
      %v10979 = vld [vmem:[%s4608 + $0xc4] sm:$0xf]
      %v10980 = vld [vmem:[%s4608 + $0xc8] sm:$0xf]
      %v10981 = vld [vmem:[%s4608 + $0xcc] sm:$0x1]
      %v10982 = vld [vmem:[%s4608 + $0xd4] sm:$0xf]
      %v10983 = vld [vmem:[%s4608 + $0xd8] sm:$0xf]
      %v10984 = vld [vmem:[%s4608 + $0xdc] sm:$0x1]
      %v10985 = vld [vmem:[%s4608 + $0xe4] sm:$0xf]
      %v10986 = vld [vmem:[%s4608 + $0xe8] sm:$0xf]
      %v10987 = vld [vmem:[%s4608 + $0xec] sm:$0x1]
      %v10988 = vld [vmem:[%s4608 + $0xf4] sm:$0xf]
      %v10989 = vld [vmem:[%s4608 + $0xf8] sm:$0xf]
      %v10990 = vld [vmem:[%s4608 + $0xfc] sm:$0x1]
      %v10992 = vshrl.u32 %v10943, 16
      %v10994 = vrot.slane %v10992, 4
      %v10995 = vshll.u32 %v10943, 16
      %v10997 = vrot.slane %v10995, 5
      %v10998 = vor.u32 %v10994, %v10997
      %v10999 = vrot.slane %v10998, 4
      %v11001 = vshll.u32 %v10944, 16
      %v11003 = vrot.slane %v11001, 5
      %v11004 = vsel %vm2471, %v10999, %v11003
      %v11005 = vshrl.u32 %v10944, 16
      %v11007 = vrot.slane %v11005, 4
      %v11008 = vor.u32 %v11007, %v11003
      %v11009 = vrot.slane %v11008, 4
      %v11011 = vshll.u32 %v10945, 16
      %v11013 = vrot.slane %v11011, 5
      %v11014 = vsel %vm2471, %v11009, %v11013
      %v11016 = vshrl.u32 %v10946, 16
      %v11018 = vrot.slane %v11016, 4
      %v11019 = vshll.u32 %v10946, 16
      %v11021 = vrot.slane %v11019, 5
      %v11022 = vor.u32 %v11018, %v11021
      %v11023 = vrot.slane %v11022, 4
      %v11025 = vshll.u32 %v10947, 16
      %v11027 = vrot.slane %v11025, 5
      %v11028 = vsel %vm2471, %v11023, %v11027
      %v11029 = vshrl.u32 %v10947, 16
      %v11031 = vrot.slane %v11029, 4
      %v11032 = vor.u32 %v11031, %v11027
      %v11033 = vrot.slane %v11032, 4
      %v11035 = vshll.u32 %v10948, 16
      %v11037 = vrot.slane %v11035, 5
      %v11038 = vsel %vm2471, %v11033, %v11037
      %v11040 = vshrl.u32 %v10949, 16
      %v11042 = vrot.slane %v11040, 4
      %v11043 = vshll.u32 %v10949, 16
      %v11045 = vrot.slane %v11043, 5
      %v11046 = vor.u32 %v11042, %v11045
      %v11047 = vrot.slane %v11046, 4
      %v11049 = vshll.u32 %v10950, 16
      %v11051 = vrot.slane %v11049, 5
      %v11052 = vsel %vm2471, %v11047, %v11051
      %v11053 = vshrl.u32 %v10950, 16
      %v11055 = vrot.slane %v11053, 4
      %v11056 = vor.u32 %v11055, %v11051
      %v11057 = vrot.slane %v11056, 4
      %v11059 = vshll.u32 %v10951, 16
      %v11061 = vrot.slane %v11059, 5
      %v11062 = vsel %vm2471, %v11057, %v11061
      %v11064 = vshrl.u32 %v10952, 16
      %v11066 = vrot.slane %v11064, 4
      %v11067 = vshll.u32 %v10952, 16
      %v11069 = vrot.slane %v11067, 5
      %v11070 = vor.u32 %v11066, %v11069
      %v11071 = vrot.slane %v11070, 4
      %v11073 = vshll.u32 %v10953, 16
      %v11075 = vrot.slane %v11073, 5
      %v11076 = vsel %vm2471, %v11071, %v11075
      %v11077 = vshrl.u32 %v10953, 16
      %v11079 = vrot.slane %v11077, 4
      %v11080 = vor.u32 %v11079, %v11075
      %v11081 = vrot.slane %v11080, 4
      %v11083 = vshll.u32 %v10954, 16
      %v11085 = vrot.slane %v11083, 5
      %v11086 = vsel %vm2471, %v11081, %v11085
      %v11088 = vshrl.u32 %v10955, 16
      %v11090 = vrot.slane %v11088, 4
      %v11091 = vshll.u32 %v10955, 16
      %v11093 = vrot.slane %v11091, 5
      %v11094 = vor.u32 %v11090, %v11093
      %v11095 = vrot.slane %v11094, 4
      %v11097 = vshll.u32 %v10956, 16
      %v11099 = vrot.slane %v11097, 5
      %v11100 = vsel %vm2471, %v11095, %v11099
      %v11101 = vshrl.u32 %v10956, 16
      %v11103 = vrot.slane %v11101, 4
      %v11104 = vor.u32 %v11103, %v11099
      %v11105 = vrot.slane %v11104, 4
      %v11107 = vshll.u32 %v10957, 16
      %v11109 = vrot.slane %v11107, 5
      %v11110 = vsel %vm2471, %v11105, %v11109
      %v11112 = vshrl.u32 %v10958, 16
      %v11114 = vrot.slane %v11112, 4
      %v11115 = vshll.u32 %v10958, 16
      %v11117 = vrot.slane %v11115, 5
      %v11118 = vor.u32 %v11114, %v11117
      %v11119 = vrot.slane %v11118, 4
      %v11121 = vshll.u32 %v10959, 16
      %v11123 = vrot.slane %v11121, 5
      %v11124 = vsel %vm2471, %v11119, %v11123
      %v11125 = vshrl.u32 %v10959, 16
      %v11127 = vrot.slane %v11125, 4
      %v11128 = vor.u32 %v11127, %v11123
      %v11129 = vrot.slane %v11128, 4
      %v11131 = vshll.u32 %v10960, 16
      %v11133 = vrot.slane %v11131, 5
      %v11134 = vsel %vm2471, %v11129, %v11133
      %v11136 = vshrl.u32 %v10961, 16
      %v11138 = vrot.slane %v11136, 4
      %v11139 = vshll.u32 %v10961, 16
      %v11141 = vrot.slane %v11139, 5
      %v11142 = vor.u32 %v11138, %v11141
      %v11143 = vrot.slane %v11142, 4
      %v11145 = vshll.u32 %v10962, 16
      %v11147 = vrot.slane %v11145, 5
      %v11148 = vsel %vm2471, %v11143, %v11147
      %v11149 = vshrl.u32 %v10962, 16
      %v11151 = vrot.slane %v11149, 4
      %v11152 = vor.u32 %v11151, %v11147
      %v11153 = vrot.slane %v11152, 4
      %v11155 = vshll.u32 %v10963, 16
      %v11157 = vrot.slane %v11155, 5
      %v11158 = vsel %vm2471, %v11153, %v11157
      %v11160 = vshrl.u32 %v10964, 16
      %v11162 = vrot.slane %v11160, 4
      %v11163 = vshll.u32 %v10964, 16
      %v11165 = vrot.slane %v11163, 5
      %v11166 = vor.u32 %v11162, %v11165
      %v11167 = vrot.slane %v11166, 4
      %v11169 = vshll.u32 %v10965, 16
      %v11171 = vrot.slane %v11169, 5
      %v11172 = vsel %vm2471, %v11167, %v11171
      %v11173 = vshrl.u32 %v10965, 16
      %v11175 = vrot.slane %v11173, 4
      %v11176 = vor.u32 %v11175, %v11171
      %v11177 = vrot.slane %v11176, 4
      %v11179 = vshll.u32 %v10966, 16
      %v11181 = vrot.slane %v11179, 5
      %v11182 = vsel %vm2471, %v11177, %v11181
      %v11184 = vshrl.u32 %v10967, 16
      %v11186 = vrot.slane %v11184, 4
      %v11187 = vshll.u32 %v10967, 16
      %v11189 = vrot.slane %v11187, 5
      %v11190 = vor.u32 %v11186, %v11189
      %v11191 = vrot.slane %v11190, 4
      %v11193 = vshll.u32 %v10968, 16
      %v11195 = vrot.slane %v11193, 5
      %v11196 = vsel %vm2471, %v11191, %v11195
      %v11197 = vshrl.u32 %v10968, 16
      %v11199 = vrot.slane %v11197, 4
      %v11200 = vor.u32 %v11199, %v11195
      %v11201 = vrot.slane %v11200, 4
      %v11203 = vshll.u32 %v10969, 16
      %v11205 = vrot.slane %v11203, 5
      %v11206 = vsel %vm2471, %v11201, %v11205
      %v11208 = vshrl.u32 %v10970, 16
      %v11210 = vrot.slane %v11208, 4
      %v11211 = vshll.u32 %v10970, 16
      %v11213 = vrot.slane %v11211, 5
      %v11214 = vor.u32 %v11210, %v11213
      %v11215 = vrot.slane %v11214, 4
      %v11217 = vshll.u32 %v10971, 16
      %v11219 = vrot.slane %v11217, 5
      %v11220 = vsel %vm2471, %v11215, %v11219
      %v11221 = vshrl.u32 %v10971, 16
      %v11223 = vrot.slane %v11221, 4
      %v11224 = vor.u32 %v11223, %v11219
      %v11225 = vrot.slane %v11224, 4
      %v11227 = vshll.u32 %v10972, 16
      %v11229 = vrot.slane %v11227, 5
      %v11230 = vsel %vm2471, %v11225, %v11229
      %v11232 = vshrl.u32 %v10973, 16
      %v11234 = vrot.slane %v11232, 4
      %v11235 = vshll.u32 %v10973, 16
      %v11237 = vrot.slane %v11235, 5
      %v11238 = vor.u32 %v11234, %v11237
      %v11239 = vrot.slane %v11238, 4
      %v11241 = vshll.u32 %v10974, 16
      %v11243 = vrot.slane %v11241, 5
      %v11244 = vsel %vm2471, %v11239, %v11243
      %v11245 = vshrl.u32 %v10974, 16
      %v11247 = vrot.slane %v11245, 4
      %v11248 = vor.u32 %v11247, %v11243
      %v11249 = vrot.slane %v11248, 4
      %v11251 = vshll.u32 %v10975, 16
      %v11253 = vrot.slane %v11251, 5
      %v11254 = vsel %vm2471, %v11249, %v11253
      %v11256 = vshrl.u32 %v10976, 16
      %v11258 = vrot.slane %v11256, 4
      %v11259 = vshll.u32 %v10976, 16
      %v11261 = vrot.slane %v11259, 5
      %v11262 = vor.u32 %v11258, %v11261
      %v11263 = vrot.slane %v11262, 4
      %v11265 = vshll.u32 %v10977, 16
      %v11267 = vrot.slane %v11265, 5
      %v11268 = vsel %vm2471, %v11263, %v11267
      %v11269 = vshrl.u32 %v10977, 16
      %v11271 = vrot.slane %v11269, 4
      %v11272 = vor.u32 %v11271, %v11267
      %v11273 = vrot.slane %v11272, 4
      %v11275 = vshll.u32 %v10978, 16
      %v11277 = vrot.slane %v11275, 5
      %v11278 = vsel %vm2471, %v11273, %v11277
      %v11280 = vshrl.u32 %v10979, 16
      %v11282 = vrot.slane %v11280, 4
      %v11283 = vshll.u32 %v10979, 16
      %v11285 = vrot.slane %v11283, 5
      %v11286 = vor.u32 %v11282, %v11285
      %v11287 = vrot.slane %v11286, 4
      %v11289 = vshll.u32 %v10980, 16
      %v11291 = vrot.slane %v11289, 5
      %v11292 = vsel %vm2471, %v11287, %v11291
      %v11293 = vshrl.u32 %v10980, 16
      %v11295 = vrot.slane %v11293, 4
      %v11296 = vor.u32 %v11295, %v11291
      %v11297 = vrot.slane %v11296, 4
      %v11299 = vshll.u32 %v10981, 16
      %v11301 = vrot.slane %v11299, 5
      %v11302 = vsel %vm2471, %v11297, %v11301
      %v11304 = vshrl.u32 %v10982, 16
      %v11306 = vrot.slane %v11304, 4
      %v11307 = vshll.u32 %v10982, 16
      %v11309 = vrot.slane %v11307, 5
      %v11310 = vor.u32 %v11306, %v11309
      %v11311 = vrot.slane %v11310, 4
      %v11313 = vshll.u32 %v10983, 16
      %v11315 = vrot.slane %v11313, 5
      %v11316 = vsel %vm2471, %v11311, %v11315
      %v11317 = vshrl.u32 %v10983, 16
      %v11319 = vrot.slane %v11317, 4
      %v11320 = vor.u32 %v11319, %v11315
      %v11321 = vrot.slane %v11320, 4
      %v11323 = vshll.u32 %v10984, 16
      %v11325 = vrot.slane %v11323, 5
      %v11326 = vsel %vm2471, %v11321, %v11325
      %v11328 = vshrl.u32 %v10985, 16
      %v11330 = vrot.slane %v11328, 4
      %v11331 = vshll.u32 %v10985, 16
      %v11333 = vrot.slane %v11331, 5
      %v11334 = vor.u32 %v11330, %v11333
      %v11335 = vrot.slane %v11334, 4
      %v11337 = vshll.u32 %v10986, 16
      %v11339 = vrot.slane %v11337, 5
      %v11340 = vsel %vm2471, %v11335, %v11339
      %v11341 = vshrl.u32 %v10986, 16
      %v11343 = vrot.slane %v11341, 4
      %v11344 = vor.u32 %v11343, %v11339
      %v11345 = vrot.slane %v11344, 4
      %v11347 = vshll.u32 %v10987, 16
      %v11349 = vrot.slane %v11347, 5
      %v11350 = vsel %vm2471, %v11345, %v11349
      %v11352 = vshrl.u32 %v10988, 16
      %v11354 = vrot.slane %v11352, 4
      %v11355 = vshll.u32 %v10988, 16
      %v11357 = vrot.slane %v11355, 5
      %v11358 = vor.u32 %v11354, %v11357
      %v11359 = vrot.slane %v11358, 4
      %v11361 = vshll.u32 %v10989, 16
      %v11363 = vrot.slane %v11361, 5
      %v11364 = vsel %vm2471, %v11359, %v11363
      %v11365 = vshrl.u32 %v10989, 16
      %v11367 = vrot.slane %v11365, 4
      %v11368 = vor.u32 %v11367, %v11363
      %v11369 = vrot.slane %v11368, 4
      %v11371 = vshll.u32 %v10990, 16
      %v11373 = vrot.slane %v11371, 5
      %v11374 = vsel %vm2471, %v11369, %v11373
      %s11375 = scalar_lea.vmem %s9, 8
      %v11376 = vld [vmem:[%s11375] sm:$0x1]
      %v11377 = vunpack.c.l.b16 %v11004
      %v11378 = vunpack.c.l.b16 %v11014
      %v11379 = vunpack.c.l.b16 %v11028
      %v11380 = vunpack.c.l.b16 %v11038
      %v11381 = vunpack.c.l.b16 %v11052
      %v11382 = vunpack.c.l.b16 %v11062
      %v11383 = vunpack.c.l.b16 %v11076
      %v11384 = vunpack.c.l.b16 %v11086
      %v11385 = vunpack.c.l.b16 %v11100
      %v11386 = vunpack.c.l.b16 %v11110
      %v11387 = vunpack.c.l.b16 %v11124
      %v11388 = vunpack.c.l.b16 %v11134
      %v11389 = vunpack.c.l.b16 %v11148
      %v11390 = vunpack.c.l.b16 %v11158
      %v11391 = vunpack.c.l.b16 %v11172
      %v11392 = vunpack.c.l.b16 %v11182
      %v11393 = vunpack.c.l.b16 %v11196
      %v11394 = vunpack.c.l.b16 %v11206
      %v11395 = vunpack.c.l.b16 %v11220
      %v11396 = vunpack.c.l.b16 %v11230
      %v11397 = vunpack.c.l.b16 %v11244
      %v11398 = vunpack.c.l.b16 %v11254
      %v11399 = vunpack.c.l.b16 %v11268
      %v11400 = vunpack.c.l.b16 %v11278
      %v11401 = vunpack.c.l.b16 %v11292
      %v11402 = vunpack.c.l.b16 %v11302
      %v11403 = vunpack.c.l.b16 %v11316
      %v11404 = vunpack.c.l.b16 %v11326
      %v11405 = vunpack.c.l.b16 %v11340
      %v11406 = vunpack.c.l.b16 %v11350
      %v11407 = vunpack.c.l.b16 %v11364
      %v11408 = vunpack.c.l.b16 %v11374
      %v11409 = vpack.c.b16 %v11378, %v11377
      %v11410 = vpack.c.b16 %v11380, %v11379
      %v11411 = vpack.c.b16 %v11382, %v11381
      %v11412 = vpack.c.b16 %v11384, %v11383
      %v11413 = vpack.c.b16 %v11386, %v11385
      %v11414 = vpack.c.b16 %v11388, %v11387
      %v11415 = vpack.c.b16 %v11390, %v11389
      %v11416 = vpack.c.b16 %v11392, %v11391
      %v11417 = vpack.c.b16 %v11394, %v11393
      %v11418 = vpack.c.b16 %v11396, %v11395
      %v11419 = vpack.c.b16 %v11398, %v11397
      %v11420 = vpack.c.b16 %v11400, %v11399
      %v11421 = vpack.c.b16 %v11402, %v11401
      %v11422 = vpack.c.b16 %v11404, %v11403
      %v11423 = vpack.c.b16 %v11406, %v11405
      %v11424 = vpack.c.b16 %v11408, %v11407
      %v11426 = vsel %vm2091, %v11409, 0
      %v11429 = vsel %vm2091, %v11410, 0
      %v11432 = vsel %vm2091, %v11411, 0
      %v11435 = vsel %vm2091, %v11412, 0
      %v11438 = vsel %vm2091, %v11413, 0
      %v11441 = vsel %vm2091, %v11414, 0
      %v11444 = vsel %vm2091, %v11415, 0
      %v11447 = vsel %vm2091, %v11416, 0
      %v11450 = vsel %vm2091, %v11417, 0
      %v11453 = vsel %vm2091, %v11418, 0
      %v11456 = vsel %vm2091, %v11419, 0
      %v11459 = vsel %vm2091, %v11420, 0
      %v11462 = vsel %vm2091, %v11421, 0
      %v11465 = vsel %vm2091, %v11422, 0
      %v11468 = vsel %vm2091, %v11423, 0
      %v11471 = vsel %vm2091, %v11424, 0
      %v11474 = vsel %vm2140, %v11376, 0
      %11476 = vmatpush.bf16.msra.mxu0 0
      %11477 = vmatpush.bf16.msra.mxu0 0
      %11478 = vmatpush.bf16.msra.mxu0 0
      %11479 = vmatpush.bf16.msra.mxu0 0
      %11480 = vmatpush.bf16.msra.mxu0 0
      %11481 = vmatpush.bf16.msra.mxu0 0
      %11482 = vmatpush.bf16.msra.mxu0 0
      %11483 = vmatpush.bf16.msra.mxu0 %v11474
      %11484 = vmatmul.bf16.gmra.mxu0 %v11426
      %v11485 = vpop.f32.mrf.mxu0
      %v11486 = vadd.f32 0.0, %v11485
      %v11487 = vpop.f32.mrf.mxu0
      %v11488 = vadd.f32 0.0, %v11487
      %11489 = vmatmul.bf16.gmra.mxu0 %v11429
      %v11490 = vpop.f32.mrf.mxu0
      %v11491 = vadd.f32 0.0, %v11490
      %v11492 = vpop.f32.mrf.mxu0
      %v11493 = vadd.f32 0.0, %v11492
      %11494 = vmatmul.bf16.gmra.mxu0 %v11432
      %v11495 = vpop.f32.mrf.mxu0
      %v11496 = vadd.f32 0.0, %v11495
      %v11497 = vpop.f32.mrf.mxu0
      %v11498 = vadd.f32 0.0, %v11497
      %11499 = vmatmul.bf16.gmra.mxu0 %v11435
      %v11500 = vpop.f32.mrf.mxu0
      %v11501 = vadd.f32 0.0, %v11500
      %v11502 = vpop.f32.mrf.mxu0
      %v11503 = vadd.f32 0.0, %v11502
      %11504 = vmatmul.bf16.gmra.mxu0 %v11438
      %v11505 = vpop.f32.mrf.mxu0
      %v11506 = vadd.f32 0.0, %v11505
      %v11507 = vpop.f32.mrf.mxu0
      %v11508 = vadd.f32 0.0, %v11507
      %11509 = vmatmul.bf16.gmra.mxu0 %v11441
      %v11510 = vpop.f32.mrf.mxu0
      %v11511 = vadd.f32 0.0, %v11510
      %v11512 = vpop.f32.mrf.mxu0
      %v11513 = vadd.f32 0.0, %v11512
      %11514 = vmatmul.bf16.gmra.mxu0 %v11444
      %v11515 = vpop.f32.mrf.mxu0
      %v11516 = vadd.f32 0.0, %v11515
      %v11517 = vpop.f32.mrf.mxu0
      %v11518 = vadd.f32 0.0, %v11517
      %11519 = vmatmul.bf16.gmra.mxu0 %v11447
      %v11520 = vpop.f32.mrf.mxu0
      %v11521 = vadd.f32 0.0, %v11520
      %v11522 = vpop.f32.mrf.mxu0
      %v11523 = vadd.f32 0.0, %v11522
      %11524 = vmatmul.bf16.gmra.mxu0 %v11450
      %v11525 = vpop.f32.mrf.mxu0
      %v11526 = vadd.f32 0.0, %v11525
      %v11527 = vpop.f32.mrf.mxu0
      %v11528 = vadd.f32 0.0, %v11527
      %11529 = vmatmul.bf16.gmra.mxu0 %v11453
      %v11530 = vpop.f32.mrf.mxu0
      %v11531 = vadd.f32 0.0, %v11530
      %v11532 = vpop.f32.mrf.mxu0
      %v11533 = vadd.f32 0.0, %v11532
      %11534 = vmatmul.bf16.gmra.mxu0 %v11456
      %v11535 = vpop.f32.mrf.mxu0
      %v11536 = vadd.f32 0.0, %v11535
      %v11537 = vpop.f32.mrf.mxu0
      %v11538 = vadd.f32 0.0, %v11537
      %11539 = vmatmul.bf16.gmra.mxu0 %v11459
      %v11540 = vpop.f32.mrf.mxu0
      %v11541 = vadd.f32 0.0, %v11540
      %v11542 = vpop.f32.mrf.mxu0
      %v11543 = vadd.f32 0.0, %v11542
      %11544 = vmatmul.bf16.gmra.mxu0 %v11462
      %v11545 = vpop.f32.mrf.mxu0
      %v11546 = vadd.f32 0.0, %v11545
      %v11547 = vpop.f32.mrf.mxu0
      %v11548 = vadd.f32 0.0, %v11547
      %11549 = vmatmul.bf16.gmra.mxu0 %v11465
      %v11550 = vpop.f32.mrf.mxu0
      %v11551 = vadd.f32 0.0, %v11550
      %v11552 = vpop.f32.mrf.mxu0
      %v11553 = vadd.f32 0.0, %v11552
      %11554 = vmatmul.bf16.gmra.mxu0 %v11468
      %v11555 = vpop.f32.mrf.mxu0
      %v11556 = vadd.f32 0.0, %v11555
      %v11557 = vpop.f32.mrf.mxu0
      %v11558 = vadd.f32 0.0, %v11557
      %11559 = vmatmul.bf16.gmra.mxu0 %v11471
      %v11560 = vpop.f32.mrf.mxu0
      %v11561 = vadd.f32 0.0, %v11560
      %v11562 = vpop.f32.mrf.mxu0
      %v11563 = vadd.f32 0.0, %v11562
      %11564 = vdwg.mxu0
      %v11565 = vadd.f32 %v10911, %v11486
      %v11566 = vadd.f32 %v10912, %v11488
      %v11567 = vadd.f32 %v10913, %v11491
      %v11568 = vadd.f32 %v10914, %v11493
      %v11569 = vadd.f32 %v10915, %v11496
      %v11570 = vadd.f32 %v10916, %v11498
      %v11571 = vadd.f32 %v10917, %v11501
      %v11572 = vadd.f32 %v10918, %v11503
      %v11573 = vadd.f32 %v10919, %v11506
      %v11574 = vadd.f32 %v10920, %v11508
      %v11575 = vadd.f32 %v10921, %v11511
      %v11576 = vadd.f32 %v10922, %v11513
      %v11577 = vadd.f32 %v10923, %v11516
      %v11578 = vadd.f32 %v10924, %v11518
      %v11579 = vadd.f32 %v10925, %v11521
      %v11580 = vadd.f32 %v10926, %v11523
      %v11581 = vadd.f32 %v10927, %v11526
      %v11582 = vadd.f32 %v10928, %v11528
      %v11583 = vadd.f32 %v10929, %v11531
      %v11584 = vadd.f32 %v10930, %v11533
      %v11585 = vadd.f32 %v10931, %v11536
      %v11586 = vadd.f32 %v10932, %v11538
      %v11587 = vadd.f32 %v10933, %v11541
      %v11588 = vadd.f32 %v10934, %v11543
      %v11589 = vadd.f32 %v10935, %v11546
      %v11590 = vadd.f32 %v10936, %v11548
      %v11591 = vadd.f32 %v10937, %v11551
      %v11592 = vadd.f32 %v10938, %v11553
      %v11593 = vadd.f32 %v10939, %v11556
      %v11594 = vadd.f32 %v10940, %v11558
      %v11595 = vadd.f32 %v10941, %v11561
      %v11596 = vadd.f32 %v10942, %v11563
      %v11597 = vld [vmem:[%s10] sm:$0x1]
      %v11599 = vperm.slane %v11597, 0
      %v11601 = vadd.f32 %v11565, %v11599
      %v11602 = vadd.f32 %v11566, %v11599
      %v11603 = vadd.f32 %v11567, %v11599
      %v11604 = vadd.f32 %v11568, %v11599
      %v11605 = vadd.f32 %v11569, %v11599
      %v11606 = vadd.f32 %v11570, %v11599
      %v11607 = vadd.f32 %v11571, %v11599
      %v11608 = vadd.f32 %v11572, %v11599
      %v11609 = vadd.f32 %v11573, %v11599
      %v11610 = vadd.f32 %v11574, %v11599
      %v11611 = vadd.f32 %v11575, %v11599
      %v11612 = vadd.f32 %v11576, %v11599
      %v11613 = vadd.f32 %v11577, %v11599
      %v11614 = vadd.f32 %v11578, %v11599
      %v11615 = vadd.f32 %v11579, %v11599
      %v11616 = vadd.f32 %v11580, %v11599
      %v11617 = vadd.f32 %v11581, %v11599
      %v11618 = vadd.f32 %v11582, %v11599
      %v11619 = vadd.f32 %v11583, %v11599
      %v11620 = vadd.f32 %v11584, %v11599
      %v11621 = vadd.f32 %v11585, %v11599
      %v11622 = vadd.f32 %v11586, %v11599
      %v11623 = vadd.f32 %v11587, %v11599
      %v11624 = vadd.f32 %v11588, %v11599
      %v11625 = vadd.f32 %v11589, %v11599
      %v11626 = vadd.f32 %v11590, %v11599
      %v11627 = vadd.f32 %v11591, %v11599
      %v11628 = vadd.f32 %v11592, %v11599
      %v11629 = vadd.f32 %v11593, %v11599
      %v11630 = vadd.f32 %v11594, %v11599
      %v11631 = vadd.f32 %v11595, %v11599
      %v11632 = vadd.f32 %v11596, %v11599
      %v11633 = vmin.f32 %v11601, 20.0
      %v11634 = vmin.f32 %v11602, 20.0
      %v11635 = vmin.f32 %v11603, 20.0
      %v11636 = vmin.f32 %v11604, 20.0
      %v11637 = vmin.f32 %v11605, 20.0
      %v11638 = vmin.f32 %v11606, 20.0
      %v11639 = vmin.f32 %v11607, 20.0
      %v11640 = vmin.f32 %v11608, 20.0
      %v11641 = vmin.f32 %v11609, 20.0
      %v11642 = vmin.f32 %v11610, 20.0
      %v11643 = vmin.f32 %v11611, 20.0
      %v11644 = vmin.f32 %v11612, 20.0
      %v11645 = vmin.f32 %v11613, 20.0
      %v11646 = vmin.f32 %v11614, 20.0
      %v11647 = vmin.f32 %v11615, 20.0
      %v11648 = vmin.f32 %v11616, 20.0
      %v11649 = vmin.f32 %v11617, 20.0
      %v11650 = vmin.f32 %v11618, 20.0
      %v11651 = vmin.f32 %v11619, 20.0
      %v11652 = vmin.f32 %v11620, 20.0
      %v11653 = vmin.f32 %v11621, 20.0
      %v11654 = vmin.f32 %v11622, 20.0
      %v11655 = vmin.f32 %v11623, 20.0
      %v11656 = vmin.f32 %v11624, 20.0
      %v11657 = vmin.f32 %v11625, 20.0
      %v11658 = vmin.f32 %v11626, 20.0
      %v11659 = vmin.f32 %v11627, 20.0
      %v11660 = vmin.f32 %v11628, 20.0
      %v11661 = vmin.f32 %v11629, 20.0
      %v11662 = vmin.f32 %v11630, 20.0
      %v11663 = vmin.f32 %v11631, 20.0
      %v11664 = vmin.f32 %v11632, 20.0
      %v11665 = vmul.f32 %v11633, 1.442695
      %v11666 = vpow.pop %v11665
      %v11667 = vmul.f32 %v11634, 1.442695
      %v11668 = vpow.pop %v11667
      %v11669 = vmul.f32 %v11635, 1.442695
      %v11670 = vpow.pop %v11669
      %v11671 = vmul.f32 %v11636, 1.442695
      %v11672 = vpow.pop %v11671
      %v11673 = vmul.f32 %v11637, 1.442695
      %v11674 = vpow.pop %v11673
      %v11675 = vmul.f32 %v11638, 1.442695
      %v11676 = vpow.pop %v11675
      %v11677 = vmul.f32 %v11639, 1.442695
      %v11678 = vpow.pop %v11677
      %v11679 = vmul.f32 %v11640, 1.442695
      %v11680 = vpow.pop %v11679
      %v11681 = vmul.f32 %v11641, 1.442695
      %v11682 = vpow.pop %v11681
      %v11683 = vmul.f32 %v11642, 1.442695
      %v11684 = vpow.pop %v11683
      %v11685 = vmul.f32 %v11643, 1.442695
      %v11686 = vpow.pop %v11685
      %v11687 = vmul.f32 %v11644, 1.442695
      %v11688 = vpow.pop %v11687
      %v11689 = vmul.f32 %v11645, 1.442695
      %v11690 = vpow.pop %v11689
      %v11691 = vmul.f32 %v11646, 1.442695
      %v11692 = vpow.pop %v11691
      %v11693 = vmul.f32 %v11647, 1.442695
      %v11694 = vpow.pop %v11693
      %v11695 = vmul.f32 %v11648, 1.442695
      %v11696 = vpow.pop %v11695
      %v11697 = vmul.f32 %v11649, 1.442695
      %v11698 = vpow.pop %v11697
      %v11699 = vmul.f32 %v11650, 1.442695
      %v11700 = vpow.pop %v11699
      %v11701 = vmul.f32 %v11651, 1.442695
      %v11702 = vpow.pop %v11701
      %v11703 = vmul.f32 %v11652, 1.442695
      %v11704 = vpow.pop %v11703
      %v11705 = vmul.f32 %v11653, 1.442695
      %v11706 = vpow.pop %v11705
      %v11707 = vmul.f32 %v11654, 1.442695
      %v11708 = vpow.pop %v11707
      %v11709 = vmul.f32 %v11655, 1.442695
      %v11710 = vpow.pop %v11709
      %v11711 = vmul.f32 %v11656, 1.442695
      %v11712 = vpow.pop %v11711
      %v11713 = vmul.f32 %v11657, 1.442695
      %v11714 = vpow.pop %v11713
      %v11715 = vmul.f32 %v11658, 1.442695
      %v11716 = vpow.pop %v11715
      %v11717 = vmul.f32 %v11659, 1.442695
      %v11718 = vpow.pop %v11717
      %v11719 = vmul.f32 %v11660, 1.442695
      %v11720 = vpow.pop %v11719
      %v11721 = vmul.f32 %v11661, 1.442695
      %v11722 = vpow.pop %v11721
      %v11723 = vmul.f32 %v11662, 1.442695
      %v11724 = vpow.pop %v11723
      %v11725 = vmul.f32 %v11663, 1.442695
      %v11726 = vpow.pop %v11725
      %v11727 = vmul.f32 %v11664, 1.442695
      %v11728 = vpow.pop %v11727
      %v11729 = vadd.f32 %v11666, 1.0
      %v11730 = vadd.f32 %v11668, 1.0
      %v11731 = vadd.f32 %v11670, 1.0
      %v11732 = vadd.f32 %v11672, 1.0
      %v11733 = vadd.f32 %v11674, 1.0
      %v11734 = vadd.f32 %v11676, 1.0
      %v11735 = vadd.f32 %v11678, 1.0
      %v11736 = vadd.f32 %v11680, 1.0
      %v11737 = vadd.f32 %v11682, 1.0
      %v11738 = vadd.f32 %v11684, 1.0
      %v11739 = vadd.f32 %v11686, 1.0
      %v11740 = vadd.f32 %v11688, 1.0
      %v11741 = vadd.f32 %v11690, 1.0
      %v11742 = vadd.f32 %v11692, 1.0
      %v11743 = vadd.f32 %v11694, 1.0
      %v11744 = vadd.f32 %v11696, 1.0
      %v11745 = vadd.f32 %v11698, 1.0
      %v11746 = vadd.f32 %v11700, 1.0
      %v11747 = vadd.f32 %v11702, 1.0
      %v11748 = vadd.f32 %v11704, 1.0
      %v11749 = vadd.f32 %v11706, 1.0
      %v11750 = vadd.f32 %v11708, 1.0
      %v11751 = vadd.f32 %v11710, 1.0
      %v11752 = vadd.f32 %v11712, 1.0
      %v11753 = vadd.f32 %v11714, 1.0
      %v11754 = vadd.f32 %v11716, 1.0
      %v11755 = vadd.f32 %v11718, 1.0
      %v11756 = vadd.f32 %v11720, 1.0
      %v11757 = vadd.f32 %v11722, 1.0
      %v11758 = vadd.f32 %v11724, 1.0
      %v11759 = vadd.f32 %v11726, 1.0
      %v11760 = vadd.f32 %v11728, 1.0
      %v11761 = vmul.f32 %v11729, %v11729
      %v11762 = vmul.f32 %v11730, %v11730
      %v11763 = vmul.f32 %v11731, %v11731
      %v11764 = vmul.f32 %v11732, %v11732
      %v11765 = vmul.f32 %v11733, %v11733
      %v11766 = vmul.f32 %v11734, %v11734
      %v11767 = vmul.f32 %v11735, %v11735
      %v11768 = vmul.f32 %v11736, %v11736
      %v11769 = vmul.f32 %v11737, %v11737
      %v11770 = vmul.f32 %v11738, %v11738
      %v11771 = vmul.f32 %v11739, %v11739
      %v11772 = vmul.f32 %v11740, %v11740
      %v11773 = vmul.f32 %v11741, %v11741
      %v11774 = vmul.f32 %v11742, %v11742
      %v11775 = vmul.f32 %v11743, %v11743
      %v11776 = vmul.f32 %v11744, %v11744
      %v11777 = vmul.f32 %v11745, %v11745
      %v11778 = vmul.f32 %v11746, %v11746
      %v11779 = vmul.f32 %v11747, %v11747
      %v11780 = vmul.f32 %v11748, %v11748
      %v11781 = vmul.f32 %v11749, %v11749
      %v11782 = vmul.f32 %v11750, %v11750
      %v11783 = vmul.f32 %v11751, %v11751
      %v11784 = vmul.f32 %v11752, %v11752
      %v11785 = vmul.f32 %v11753, %v11753
      %v11786 = vmul.f32 %v11754, %v11754
      %v11787 = vmul.f32 %v11755, %v11755
      %v11788 = vmul.f32 %v11756, %v11756
      %v11789 = vmul.f32 %v11757, %v11757
      %v11790 = vmul.f32 %v11758, %v11758
      %v11791 = vmul.f32 %v11759, %v11759
      %v11792 = vmul.f32 %v11760, %v11760
      %v11793 = vadd.f32 %v11761, 1.0
      %v11794 = vadd.f32 %v11762, 1.0
      %v11795 = vadd.f32 %v11763, 1.0
      %v11796 = vadd.f32 %v11764, 1.0
      %v11797 = vadd.f32 %v11765, 1.0
      %v11798 = vadd.f32 %v11766, 1.0
      %v11799 = vadd.f32 %v11767, 1.0
      %v11800 = vadd.f32 %v11768, 1.0
      %v11801 = vadd.f32 %v11769, 1.0
      %v11802 = vadd.f32 %v11770, 1.0
      %v11803 = vadd.f32 %v11771, 1.0
      %v11804 = vadd.f32 %v11772, 1.0
      %v11805 = vadd.f32 %v11773, 1.0
      %v11806 = vadd.f32 %v11774, 1.0
      %v11807 = vadd.f32 %v11775, 1.0
      %v11808 = vadd.f32 %v11776, 1.0
      %v11809 = vadd.f32 %v11777, 1.0
      %v11810 = vadd.f32 %v11778, 1.0
      %v11811 = vadd.f32 %v11779, 1.0
      %v11812 = vadd.f32 %v11780, 1.0
      %v11813 = vadd.f32 %v11781, 1.0
      %v11814 = vadd.f32 %v11782, 1.0
      %v11815 = vadd.f32 %v11783, 1.0
      %v11816 = vadd.f32 %v11784, 1.0
      %v11817 = vadd.f32 %v11785, 1.0
      %v11818 = vadd.f32 %v11786, 1.0
      %v11819 = vadd.f32 %v11787, 1.0
      %v11820 = vadd.f32 %v11788, 1.0
      %v11821 = vadd.f32 %v11789, 1.0
      %v11822 = vadd.f32 %v11790, 1.0
      %v11823 = vadd.f32 %v11791, 1.0
      %v11824 = vadd.f32 %v11792, 1.0
      %v11825 = vrcp.pop %v11793
      %v11826 = vrcp.pop %v11794
      %v11827 = vrcp.pop %v11795
      %v11828 = vrcp.pop %v11796
      %v11829 = vrcp.pop %v11797
      %v11830 = vrcp.pop %v11798
      %v11831 = vrcp.pop %v11799
      %v11832 = vrcp.pop %v11800
      %v11833 = vrcp.pop %v11801
      %v11834 = vrcp.pop %v11802
      %v11835 = vrcp.pop %v11803
      %v11836 = vrcp.pop %v11804
      %v11837 = vrcp.pop %v11805
      %v11838 = vrcp.pop %v11806
      %v11839 = vrcp.pop %v11807
      %v11840 = vrcp.pop %v11808
      %v11841 = vrcp.pop %v11809
      %v11842 = vrcp.pop %v11810
      %v11843 = vrcp.pop %v11811
      %v11844 = vrcp.pop %v11812
      %v11845 = vrcp.pop %v11813
      %v11846 = vrcp.pop %v11814
      %v11847 = vrcp.pop %v11815
      %v11848 = vrcp.pop %v11816
      %v11849 = vrcp.pop %v11817
      %v11850 = vrcp.pop %v11818
      %v11851 = vrcp.pop %v11819
      %v11852 = vrcp.pop %v11820
      %v11853 = vrcp.pop %v11821
      %v11854 = vrcp.pop %v11822
      %v11855 = vrcp.pop %v11823
      %v11856 = vrcp.pop %v11824
      %v11857 = vmul.f32 %v11825, 2.0
      %v11858 = vmul.f32 %v11826, 2.0
      %v11859 = vmul.f32 %v11827, 2.0
      %v11860 = vmul.f32 %v11828, 2.0
      %v11861 = vmul.f32 %v11829, 2.0
      %v11862 = vmul.f32 %v11830, 2.0
      %v11863 = vmul.f32 %v11831, 2.0
      %v11864 = vmul.f32 %v11832, 2.0
      %v11865 = vmul.f32 %v11833, 2.0
      %v11866 = vmul.f32 %v11834, 2.0
      %v11867 = vmul.f32 %v11835, 2.0
      %v11868 = vmul.f32 %v11836, 2.0
      %v11869 = vmul.f32 %v11837, 2.0
      %v11870 = vmul.f32 %v11838, 2.0
      %v11871 = vmul.f32 %v11839, 2.0
      %v11872 = vmul.f32 %v11840, 2.0
      %v11873 = vmul.f32 %v11841, 2.0
      %v11874 = vmul.f32 %v11842, 2.0
      %v11875 = vmul.f32 %v11843, 2.0
      %v11876 = vmul.f32 %v11844, 2.0
      %v11877 = vmul.f32 %v11845, 2.0
      %v11878 = vmul.f32 %v11846, 2.0
      %v11879 = vmul.f32 %v11847, 2.0
      %v11880 = vmul.f32 %v11848, 2.0
      %v11881 = vmul.f32 %v11849, 2.0
      %v11882 = vmul.f32 %v11850, 2.0
      %v11883 = vmul.f32 %v11851, 2.0
      %v11884 = vmul.f32 %v11852, 2.0
      %v11885 = vmul.f32 %v11853, 2.0
      %v11886 = vmul.f32 %v11854, 2.0
      %v11887 = vmul.f32 %v11855, 2.0
      %v11888 = vmul.f32 %v11856, 2.0
      %v11889 = vsub.f32 1.0, %v11857
      %v11890 = vsub.f32 1.0, %v11858
      %v11891 = vsub.f32 1.0, %v11859
      %v11892 = vsub.f32 1.0, %v11860
      %v11893 = vsub.f32 1.0, %v11861
      %v11894 = vsub.f32 1.0, %v11862
      %v11895 = vsub.f32 1.0, %v11863
      %v11896 = vsub.f32 1.0, %v11864
      %v11897 = vsub.f32 1.0, %v11865
      %v11898 = vsub.f32 1.0, %v11866
      %v11899 = vsub.f32 1.0, %v11867
      %v11900 = vsub.f32 1.0, %v11868
      %v11901 = vsub.f32 1.0, %v11869
      %v11902 = vsub.f32 1.0, %v11870
      %v11903 = vsub.f32 1.0, %v11871
      %v11904 = vsub.f32 1.0, %v11872
      %v11905 = vsub.f32 1.0, %v11873
      %v11906 = vsub.f32 1.0, %v11874
      %v11907 = vsub.f32 1.0, %v11875
      %v11908 = vsub.f32 1.0, %v11876
      %v11909 = vsub.f32 1.0, %v11877
      %v11910 = vsub.f32 1.0, %v11878
      %v11911 = vsub.f32 1.0, %v11879
      %v11912 = vsub.f32 1.0, %v11880
      %v11913 = vsub.f32 1.0, %v11881
      %v11914 = vsub.f32 1.0, %v11882
      %v11915 = vsub.f32 1.0, %v11883
      %v11916 = vsub.f32 1.0, %v11884
      %v11917 = vsub.f32 1.0, %v11885
      %v11918 = vsub.f32 1.0, %v11886
      %v11919 = vsub.f32 1.0, %v11887
      %v11920 = vsub.f32 1.0, %v11888
      %v11921 = vmul.f32 %v11601, %v11889
      %v11922 = vmul.f32 %v11602, %v11890
      %v11923 = vmul.f32 %v11603, %v11891
      %v11924 = vmul.f32 %v11604, %v11892
      %v11925 = vmul.f32 %v11605, %v11893
      %v11926 = vmul.f32 %v11606, %v11894
      %v11927 = vmul.f32 %v11607, %v11895
      %v11928 = vmul.f32 %v11608, %v11896
      %v11929 = vmul.f32 %v11609, %v11897
      %v11930 = vmul.f32 %v11610, %v11898
      %v11931 = vmul.f32 %v11611, %v11899
      %v11932 = vmul.f32 %v11612, %v11900
      %v11933 = vmul.f32 %v11613, %v11901
      %v11934 = vmul.f32 %v11614, %v11902
      %v11935 = vmul.f32 %v11615, %v11903
      %v11936 = vmul.f32 %v11616, %v11904
      %v11937 = vmul.f32 %v11617, %v11905
      %v11938 = vmul.f32 %v11618, %v11906
      %v11939 = vmul.f32 %v11619, %v11907
      %v11940 = vmul.f32 %v11620, %v11908
      %v11941 = vmul.f32 %v11621, %v11909
      %v11942 = vmul.f32 %v11622, %v11910
      %v11943 = vmul.f32 %v11623, %v11911
      %v11944 = vmul.f32 %v11624, %v11912
      %v11945 = vmul.f32 %v11625, %v11913
      %v11946 = vmul.f32 %v11626, %v11914
      %v11947 = vmul.f32 %v11627, %v11915
      %v11948 = vmul.f32 %v11628, %v11916
      %v11949 = vmul.f32 %v11629, %v11917
      %v11950 = vmul.f32 %v11630, %v11918
      %v11951 = vmul.f32 %v11631, %v11919
      %v11952 = vmul.f32 %v11632, %v11920
      %v11953 = vadd.f32 %v11921, %v6495
      %v11954 = vadd.f32 %v11922, %v6496
      %v11955 = vadd.f32 %v11923, %v6497
      %v11956 = vadd.f32 %v11924, %v6498
      %v11957 = vadd.f32 %v11925, %v6499
      %v11958 = vadd.f32 %v11926, %v6500
      %v11959 = vadd.f32 %v11927, %v6501
      %v11960 = vadd.f32 %v11928, %v6502
      %v11961 = vadd.f32 %v11929, %v6503
      %v11962 = vadd.f32 %v11930, %v6504
      %v11963 = vadd.f32 %v11931, %v6505
      %v11964 = vadd.f32 %v11932, %v6506
      %v11965 = vadd.f32 %v11933, %v6507
      %v11966 = vadd.f32 %v11934, %v6508
      %v11967 = vadd.f32 %v11935, %v6509
      %v11968 = vadd.f32 %v11936, %v6510
      %v11969 = vadd.f32 %v11937, %v6511
      %v11970 = vadd.f32 %v11938, %v6512
      %v11971 = vadd.f32 %v11939, %v6513
      %v11972 = vadd.f32 %v11940, %v6514
      %v11973 = vadd.f32 %v11941, %v6515
      %v11974 = vadd.f32 %v11942, %v6516
      %v11975 = vadd.f32 %v11943, %v6517
      %v11976 = vadd.f32 %v11944, %v6518
      %v11977 = vadd.f32 %v11945, %v6519
      %v11978 = vadd.f32 %v11946, %v6520
      %v11979 = vadd.f32 %v11947, %v6521
      %v11980 = vadd.f32 %v11948, %v6522
      %v11981 = vadd.f32 %v11949, %v6523
      %v11982 = vadd.f32 %v11950, %v6524
      %v11983 = vadd.f32 %v11951, %v6525
      %v11984 = vadd.f32 %v11952, %v6526
      %v11985 = vld [vmem:[%s11] sm:$0x3]
      %v11986 = vpack.c.bf16 %v11954, %v11953
      %v11987 = vpack.c.bf16 %v11956, %v11955
      %v11988 = vpack.c.bf16 %v11958, %v11957
      %v11989 = vpack.c.bf16 %v11960, %v11959
      %v11990 = vpack.c.bf16 %v11962, %v11961
      %v11991 = vpack.c.bf16 %v11964, %v11963
      %v11992 = vpack.c.bf16 %v11966, %v11965
      %v11993 = vpack.c.bf16 %v11968, %v11967
      %v11994 = vpack.c.bf16 %v11970, %v11969
      %v11995 = vpack.c.bf16 %v11972, %v11971
      %v11996 = vpack.c.bf16 %v11974, %v11973
      %v11997 = vpack.c.bf16 %v11976, %v11975
      %v11998 = vpack.c.bf16 %v11978, %v11977
      %v11999 = vpack.c.bf16 %v11980, %v11979
      %v12000 = vpack.c.bf16 %v11982, %v11981
      %v12001 = vpack.c.bf16 %v11984, %v11983
      %v12002 = vld [vmem:[%s12] sm:$0x3]
      %v12004 = vsel %vm1078, %v11986, 0
      %v12007 = vsel %vm1078, %v11987, 0
      %v12010 = vsel %vm1078, %v11988, 0
      %v12013 = vsel %vm1078, %v11989, 0
      %v12016 = vsel %vm1078, %v11990, 0
      %v12019 = vsel %vm1078, %v11991, 0
      %v12022 = vsel %vm1078, %v11992, 0
      %v12025 = vsel %vm1078, %v11993, 0
      %v12028 = vsel %vm1078, %v11994, 0
      %v12031 = vsel %vm1078, %v11995, 0
      %v12034 = vsel %vm1078, %v11996, 0
      %v12037 = vsel %vm1078, %v11997, 0
      %v12040 = vsel %vm1078, %v11998, 0
      %v12043 = vsel %vm1078, %v11999, 0
      %v12046 = vsel %vm1078, %v12000, 0
      %v12049 = vsel %vm1078, %v12001, 0
      %v12052 = vsel %vm1127, %v12002, 0
      %12054 = vmatpush.bf16.msra.mxu0 0
      %12055 = vmatpush.bf16.msra.mxu0 0
      %12056 = vmatpush.bf16.msra.mxu0 0
      %12057 = vmatpush.bf16.msra.mxu0 0
      %12058 = vmatpush.bf16.msra.mxu0 0
      %12059 = vmatpush.bf16.msra.mxu0 0
      %12060 = vmatpush.bf16.msra.mxu0 0
      %12061 = vmatpush.bf16.msra.mxu0 %v12052
      %12062 = vmatmul.bf16.gmra.mxu0 %v12004
      %v12063 = vpop.f32.mrf.mxu0
      %v12064 = vadd.f32 0.0, %v12063
      %v12065 = vpop.f32.mrf.mxu0
      %v12066 = vadd.f32 0.0, %v12065
      %12067 = vmatmul.bf16.gmra.mxu0 %v12007
      %v12068 = vpop.f32.mrf.mxu0
      %v12069 = vadd.f32 0.0, %v12068
      %v12070 = vpop.f32.mrf.mxu0
      %v12071 = vadd.f32 0.0, %v12070
      %12072 = vmatmul.bf16.gmra.mxu0 %v12010
      %v12073 = vpop.f32.mrf.mxu0
      %v12074 = vadd.f32 0.0, %v12073
      %v12075 = vpop.f32.mrf.mxu0
      %v12076 = vadd.f32 0.0, %v12075
      %12077 = vmatmul.bf16.gmra.mxu0 %v12013
      %v12078 = vpop.f32.mrf.mxu0
      %v12079 = vadd.f32 0.0, %v12078
      %v12080 = vpop.f32.mrf.mxu0
      %v12081 = vadd.f32 0.0, %v12080
      %12082 = vmatmul.bf16.gmra.mxu0 %v12016
      %v12083 = vpop.f32.mrf.mxu0
      %v12084 = vadd.f32 0.0, %v12083
      %v12085 = vpop.f32.mrf.mxu0
      %v12086 = vadd.f32 0.0, %v12085
      %12087 = vmatmul.bf16.gmra.mxu0 %v12019
      %v12088 = vpop.f32.mrf.mxu0
      %v12089 = vadd.f32 0.0, %v12088
      %v12090 = vpop.f32.mrf.mxu0
      %v12091 = vadd.f32 0.0, %v12090
      %12092 = vmatmul.bf16.gmra.mxu0 %v12022
      %v12093 = vpop.f32.mrf.mxu0
      %v12094 = vadd.f32 0.0, %v12093
      %v12095 = vpop.f32.mrf.mxu0
      %v12096 = vadd.f32 0.0, %v12095
      %12097 = vmatmul.bf16.gmra.mxu0 %v12025
      %v12098 = vpop.f32.mrf.mxu0
      %v12099 = vadd.f32 0.0, %v12098
      %v12100 = vpop.f32.mrf.mxu0
      %v12101 = vadd.f32 0.0, %v12100
      %12102 = vmatmul.bf16.gmra.mxu0 %v12028
      %v12103 = vpop.f32.mrf.mxu0
      %v12104 = vadd.f32 0.0, %v12103
      %v12105 = vpop.f32.mrf.mxu0
      %v12106 = vadd.f32 0.0, %v12105
      %12107 = vmatmul.bf16.gmra.mxu0 %v12031
      %v12108 = vpop.f32.mrf.mxu0
      %v12109 = vadd.f32 0.0, %v12108
      %v12110 = vpop.f32.mrf.mxu0
      %v12111 = vadd.f32 0.0, %v12110
      %12112 = vmatmul.bf16.gmra.mxu0 %v12034
      %v12113 = vpop.f32.mrf.mxu0
      %v12114 = vadd.f32 0.0, %v12113
      %v12115 = vpop.f32.mrf.mxu0
      %v12116 = vadd.f32 0.0, %v12115
      %12117 = vmatmul.bf16.gmra.mxu0 %v12037
      %v12118 = vpop.f32.mrf.mxu0
      %v12119 = vadd.f32 0.0, %v12118
      %v12120 = vpop.f32.mrf.mxu0
      %v12121 = vadd.f32 0.0, %v12120
      %12122 = vmatmul.bf16.gmra.mxu0 %v12040
      %v12123 = vpop.f32.mrf.mxu0
      %v12124 = vadd.f32 0.0, %v12123
      %v12125 = vpop.f32.mrf.mxu0
      %v12126 = vadd.f32 0.0, %v12125
      %12127 = vmatmul.bf16.gmra.mxu0 %v12043
      %v12128 = vpop.f32.mrf.mxu0
      %v12129 = vadd.f32 0.0, %v12128
      %v12130 = vpop.f32.mrf.mxu0
      %v12131 = vadd.f32 0.0, %v12130
      %12132 = vmatmul.bf16.gmra.mxu0 %v12046
      %v12133 = vpop.f32.mrf.mxu0
      %v12134 = vadd.f32 0.0, %v12133
      %v12135 = vpop.f32.mrf.mxu0
      %v12136 = vadd.f32 0.0, %v12135
      %12137 = vmatmul.bf16.gmra.mxu0 %v12049
      %v12138 = vpop.f32.mrf.mxu0
      %v12139 = vadd.f32 0.0, %v12138
      %v12140 = vpop.f32.mrf.mxu0
      %v12141 = vadd.f32 0.0, %v12140
      %12142 = vdwg.mxu0
      %v12144 = vsel %vm1127, %v11985, 0
      %12146 = vmatpush.bf16.msra.mxu0 0
      %12147 = vmatpush.bf16.msra.mxu0 0
      %12148 = vmatpush.bf16.msra.mxu0 0
      %12149 = vmatpush.bf16.msra.mxu0 0
      %12150 = vmatpush.bf16.msra.mxu0 0
      %12151 = vmatpush.bf16.msra.mxu0 0
      %12152 = vmatpush.bf16.msra.mxu0 0
      %12153 = vmatpush.bf16.msra.mxu0 %v12144
      %12154 = vmatmul.bf16.gmra.mxu0 %v1080
      %v12155 = vpop.f32.mrf.mxu0
      %v12156 = vadd.f32 %v12064, %v12155
      %v12157 = vpop.f32.mrf.mxu0
      %v12158 = vadd.f32 %v12066, %v12157
      %12159 = vmatmul.bf16.gmra.mxu0 %v1083
      %v12160 = vpop.f32.mrf.mxu0
      %v12161 = vadd.f32 %v12069, %v12160
      %v12162 = vpop.f32.mrf.mxu0
      %v12163 = vadd.f32 %v12071, %v12162
      %12164 = vmatmul.bf16.gmra.mxu0 %v1086
      %v12165 = vpop.f32.mrf.mxu0
      %v12166 = vadd.f32 %v12074, %v12165
      %v12167 = vpop.f32.mrf.mxu0
      %v12168 = vadd.f32 %v12076, %v12167
      %12169 = vmatmul.bf16.gmra.mxu0 %v1089
      %v12170 = vpop.f32.mrf.mxu0
      %v12171 = vadd.f32 %v12079, %v12170
      %v12172 = vpop.f32.mrf.mxu0
      %v12173 = vadd.f32 %v12081, %v12172
      %12174 = vmatmul.bf16.gmra.mxu0 %v1092
      %v12175 = vpop.f32.mrf.mxu0
      %v12176 = vadd.f32 %v12084, %v12175
      %v12177 = vpop.f32.mrf.mxu0
      %v12178 = vadd.f32 %v12086, %v12177
      %12179 = vmatmul.bf16.gmra.mxu0 %v1095
      %v12180 = vpop.f32.mrf.mxu0
      %v12181 = vadd.f32 %v12089, %v12180
      %v12182 = vpop.f32.mrf.mxu0
      %v12183 = vadd.f32 %v12091, %v12182
      %12184 = vmatmul.bf16.gmra.mxu0 %v1098
      %v12185 = vpop.f32.mrf.mxu0
      %v12186 = vadd.f32 %v12094, %v12185
      %v12187 = vpop.f32.mrf.mxu0
      %v12188 = vadd.f32 %v12096, %v12187
      %12189 = vmatmul.bf16.gmra.mxu0 %v1101
      %v12190 = vpop.f32.mrf.mxu0
      %v12191 = vadd.f32 %v12099, %v12190
      %v12192 = vpop.f32.mrf.mxu0
      %v12193 = vadd.f32 %v12101, %v12192
      %12194 = vmatmul.bf16.gmra.mxu0 %v1104
      %v12195 = vpop.f32.mrf.mxu0
      %v12196 = vadd.f32 %v12104, %v12195
      %v12197 = vpop.f32.mrf.mxu0
      %v12198 = vadd.f32 %v12106, %v12197
      %12199 = vmatmul.bf16.gmra.mxu0 %v1107
      %v12200 = vpop.f32.mrf.mxu0
      %v12201 = vadd.f32 %v12109, %v12200
      %v12202 = vpop.f32.mrf.mxu0
      %v12203 = vadd.f32 %v12111, %v12202
      %12204 = vmatmul.bf16.gmra.mxu0 %v1110
      %v12205 = vpop.f32.mrf.mxu0
      %v12206 = vadd.f32 %v12114, %v12205
      %v12207 = vpop.f32.mrf.mxu0
      %v12208 = vadd.f32 %v12116, %v12207
      %12209 = vmatmul.bf16.gmra.mxu0 %v1113
      %v12210 = vpop.f32.mrf.mxu0
      %v12211 = vadd.f32 %v12119, %v12210
      %v12212 = vpop.f32.mrf.mxu0
      %v12213 = vadd.f32 %v12121, %v12212
      %12214 = vmatmul.bf16.gmra.mxu0 %v1116
      %v12215 = vpop.f32.mrf.mxu0
      %v12216 = vadd.f32 %v12124, %v12215
      %v12217 = vpop.f32.mrf.mxu0
      %v12218 = vadd.f32 %v12126, %v12217
      %12219 = vmatmul.bf16.gmra.mxu0 %v1119
      %v12220 = vpop.f32.mrf.mxu0
      %v12221 = vadd.f32 %v12129, %v12220
      %v12222 = vpop.f32.mrf.mxu0
      %v12223 = vadd.f32 %v12131, %v12222
      %12224 = vmatmul.bf16.gmra.mxu0 %v1122
      %v12225 = vpop.f32.mrf.mxu0
      %v12226 = vadd.f32 %v12134, %v12225
      %v12227 = vpop.f32.mrf.mxu0
      %v12228 = vadd.f32 %v12136, %v12227
      %12229 = vmatmul.bf16.gmra.mxu0 %v1125
      %v12230 = vpop.f32.mrf.mxu0
      %v12231 = vadd.f32 %v12139, %v12230
      %v12232 = vpop.f32.mrf.mxu0
      %v12233 = vadd.f32 %v12141, %v12232
      %12234 = vdwg.mxu0
      %v12235 = vld [vmem:[%s13] sm:$0x1]
      %v12237 = vperm.slane %v12235, 0
      %v12239 = vadd.f32 %v12156, %v12237
      %v12240 = vadd.f32 %v12158, %v12237
      %v12241 = vadd.f32 %v12161, %v12237
      %v12242 = vadd.f32 %v12163, %v12237
      %v12243 = vadd.f32 %v12166, %v12237
      %v12244 = vadd.f32 %v12168, %v12237
      %v12245 = vadd.f32 %v12171, %v12237
      %v12246 = vadd.f32 %v12173, %v12237
      %v12247 = vadd.f32 %v12176, %v12237
      %v12248 = vadd.f32 %v12178, %v12237
      %v12249 = vadd.f32 %v12181, %v12237
      %v12250 = vadd.f32 %v12183, %v12237
      %v12251 = vadd.f32 %v12186, %v12237
      %v12252 = vadd.f32 %v12188, %v12237
      %v12253 = vadd.f32 %v12191, %v12237
      %v12254 = vadd.f32 %v12193, %v12237
      %v12255 = vadd.f32 %v12196, %v12237
      %v12256 = vadd.f32 %v12198, %v12237
      %v12257 = vadd.f32 %v12201, %v12237
      %v12258 = vadd.f32 %v12203, %v12237
      %v12259 = vadd.f32 %v12206, %v12237
      %v12260 = vadd.f32 %v12208, %v12237
      %v12261 = vadd.f32 %v12211, %v12237
      %v12262 = vadd.f32 %v12213, %v12237
      %v12263 = vadd.f32 %v12216, %v12237
      %v12264 = vadd.f32 %v12218, %v12237
      %v12265 = vadd.f32 %v12221, %v12237
      %v12266 = vadd.f32 %v12223, %v12237
      %v12267 = vadd.f32 %v12226, %v12237
      %v12268 = vadd.f32 %v12228, %v12237
      %v12269 = vadd.f32 %v12231, %v12237
      %v12270 = vadd.f32 %v12233, %v12237
      %12271 = vst.msk [vmem:[%s467] sm:$0xff] %vm522, %v12239
      %12272 = vst.msk [vmem:[%s467 + $0x8] sm:$0xff] %vm522, %v12240
      %12273 = vst.msk [vmem:[%s467 + $0x10] sm:$0xff] %vm522, %v12241
      %12274 = vst.msk [vmem:[%s467 + $0x18] sm:$0xff] %vm522, %v12242
      %12275 = vst.msk [vmem:[%s467 + $0x20] sm:$0xff] %vm522, %v12243
      %12276 = vst.msk [vmem:[%s467 + $0x28] sm:$0xff] %vm522, %v12244
      %12277 = vst.msk [vmem:[%s467 + $0x30] sm:$0xff] %vm522, %v12245
      %12278 = vst.msk [vmem:[%s467 + $0x38] sm:$0xff] %vm522, %v12246
      %12279 = vst.msk [vmem:[%s467 + $0x40] sm:$0xff] %vm522, %v12247
      %12280 = vst.msk [vmem:[%s467 + $0x48] sm:$0xff] %vm522, %v12248
      %12281 = vst.msk [vmem:[%s467 + $0x50] sm:$0xff] %vm522, %v12249
      %12282 = vst.msk [vmem:[%s467 + $0x58] sm:$0xff] %vm522, %v12250
      %12283 = vst.msk [vmem:[%s467 + $0x60] sm:$0xff] %vm522, %v12251
      %12284 = vst.msk [vmem:[%s467 + $0x68] sm:$0xff] %vm522, %v12252
      %12285 = vst.msk [vmem:[%s467 + $0x70] sm:$0xff] %vm522, %v12253
      %12286 = vst.msk [vmem:[%s467 + $0x78] sm:$0xff] %vm522, %v12254
      %12287 = vst.msk [vmem:[%s467 + $0x80] sm:$0xff] %vm522, %v12255
      %12288 = vst.msk [vmem:[%s467 + $0x88] sm:$0xff] %vm522, %v12256
      %12289 = vst.msk [vmem:[%s467 + $0x90] sm:$0xff] %vm522, %v12257
      %12290 = vst.msk [vmem:[%s467 + $0x98] sm:$0xff] %vm522, %v12258
      %12291 = vst.msk [vmem:[%s467 + $0xa0] sm:$0xff] %vm522, %v12259
      %12292 = vst.msk [vmem:[%s467 + $0xa8] sm:$0xff] %vm522, %v12260
      %12293 = vst.msk [vmem:[%s467 + $0xb0] sm:$0xff] %vm522, %v12261
      %12294 = vst.msk [vmem:[%s467 + $0xb8] sm:$0xff] %vm522, %v12262
      %12295 = vst.msk [vmem:[%s467 + $0xc0] sm:$0xff] %vm522, %v12263
      %12296 = vst.msk [vmem:[%s467 + $0xc8] sm:$0xff] %vm522, %v12264
      %12297 = vst.msk [vmem:[%s467 + $0xd0] sm:$0xff] %vm522, %v12265
      %12298 = vst.msk [vmem:[%s467 + $0xd8] sm:$0xff] %vm522, %v12266
      %12299 = vst.msk [vmem:[%s467 + $0xe0] sm:$0xff] %vm522, %v12267
      %12300 = vst.msk [vmem:[%s467 + $0xe8] sm:$0xff] %vm522, %v12268
      %12301 = vst.msk [vmem:[%s467 + $0xf0] sm:$0xff] %vm522, %v12269
      %12302 = vst.msk [vmem:[%s467 + $0xf8] sm:$0xff] %vm522, %v12270
      %p12303 = scmp.lt.s32.totalorder %s25, 1
      %s12304 = scalar_select %p12303, %s25, 1
      %s12305 = smul.addr %s12304, 32
      %s12306 = smul.addr %s12305, 8
      %s12307 = scalar_lea.vmem %s14, %s12306
      // Predicated region
      $region77: #{csp_block_forward.1} parent=75 // pred_check
        %p12308 = pneg %p342
      $region78: #{csp_block_forward.1} parent=75 // pred_check_branch
        %12310 = sbr.rel (%p12308) target = $region80
      $region79: #{csp_block_forward.1} parent=75 // pred_region
        _
      $region80: #{csp_block_forward.1} parent=75 // pred_fallthru
        _
    $region76: #{csp_block_forward.1} parent=5 // pred_fallthru
      _
    %p12311 = scmp.le.s32.totalorder 2, %s20
    // Predicated region
    $region81: #{csp_block_forward.1} parent=5 // pred_check
      %p12312 = pneg %p12311
    $region82: #{csp_block_forward.1} parent=5 // pred_check_branch
      %12314 = sbr.rel (%p12312) target = $region84
    $region83: #{csp_block_forward.1} parent=5 // pred_region
      %s12315 = ssub.s32 %s20, 2
      // Predicated region
      $region85: #{csp_block_forward.1} parent=83 // pred_check
        %p12316 = pneg %p348
      $region86: #{csp_block_forward.1} parent=83 // pred_check_branch
        %12318 = sbr.rel (%p12316) target = $region88
      $region87: #{csp_block_forward.1} parent=83 // pred_region
        %p12319 = scmp.lt.s32.totalorder %s26, 1
        %s12320 = scalar_select %p12319, %s26, 1
        %s12321 = smul.addr %s12320, 32
        %s12322 = smul.addr %s12321, 8
        %s12323 = scalar_lea.vmem %s14, %s12322
      $region88: #{csp_block_forward.1} parent=83 // pred_fallthru
        _
    $region84: #{csp_block_forward.1} parent=5 // pred_fallthru
      _
  $region6: #{csp_block_forward.1} parent=0 // loop_footer
    %s24 = sadd.s32 1, %s20
  $region7: #{csp_block_forward.1} parent=0 // loop_footer_branch
    %19 = sbr.rel target = $region3
  $region8: #{csp_block_forward.1} parent=0 // loop_exit
    _

</llo_original>
